<compile_context>
chip_gen: v5e
topology: v5e:2x2
jax: 0.10.0
libtpu: 0.0.40
codegen_flags: <defaults>
</compile_context>

<pallas_src>
import functools
import numpy as np
import jax
import jax.numpy as jnp
from jax.experimental import pallas as pl
from jax.experimental.pallas import tpu as pltpu

# ---------------- synthetic (small) ModelConfig -------------------------------------
N_FFT = 32
HOP = 16
N_MELS = 16
SAMPLE_RATE = 16000

CONF_SIZE = 64          # conformer_size
NUM_LAYERS = 2          # num_layers
NUM_HEADS = 4           # num_heads
FF_DIM = 128            # ff_dim
CONV_KERNEL = 7         # conv_kernel_size
LABEL_TARGET_SIZE = 20
VOCAB = LABEL_TARGET_SIZE + 1   # + blank
VOCAB_PAD = 128                 # lane-dense padded vocab for the fused final linear
MEL_PAD = 128                   # lane-dense padded logmel output

FRONT_C1 = 8
FRONT_C2 = 16

_SEQ = pltpu.CompilerParams(dimension_semantics=("arbitrary",))


# =============================== small helper kernels ================================

def _matmul_kernel(x_ref, w_ref, b_ref, o_ref, *, activation):
    acc = jnp.dot(x_ref[...], w_ref[...], preferred_element_type=jnp.float32) + b_ref[...]
    if activation == "relu":
        acc = jnp.maximum(acc, 0.0)
    o_ref[...] = acc.astype(o_ref.dtype)


def linear_pallas(x, w, b, activation="none"):
    """x: [..., K] @ w: [K, N] + b: [1, N]; single full-block grid step."""
    K = x.shape[-1]
    lead = x.shape[:-1]
    x2 = x.reshape(-1, K)
    M = x2.shape[0]
    N = w.shape[1]
    out = pl.pallas_call(
        functools.partial(_matmul_kernel, activation=activation),
        out_shape=jax.ShapeDtypeStruct((M, N), jnp.float32),
        grid=(1,),
        in_specs=[
            pl.BlockSpec((M, K), lambda i: (0, 0)),
            pl.BlockSpec((K, N), lambda i: (0, 0)),
            pl.BlockSpec((1, N), lambda i: (0, 0)),
        ],
        out_specs=pl.BlockSpec((M, N), lambda i: (0, 0)),
        compiler_params=_SEQ,
    )(x2, w, b)
    return out.reshape(lead + (N,))


def _logmel_kernel(fr_ref, dftr_ref, dfti_ref, mel_ref, o_ref):
    x = fr_ref[...]
    re = jnp.dot(x, dftr_ref[...], preferred_element_type=jnp.float32)
    im = jnp.dot(x, dfti_ref[...], preferred_element_type=jnp.float32)
    power = re * re + im * im
    mel = jnp.dot(power, mel_ref[...], preferred_element_type=jnp.float32)
    o_ref[...] = jnp.log10(jnp.maximum(mel, 1e-10))


def logmel_pallas(frames, dft_r, dft_i, mel_fb_pad):
    """frames: [B, T, n_fft] -> log-mel [B, T, N_MELS]; 128-lane padded output store."""
    B, T, NF = frames.shape
    NB = dft_r.shape[1]
    x2 = frames.reshape(-1, NF)
    M = x2.shape[0]
    out = pl.pallas_call(
        _logmel_kernel,
        out_shape=jax.ShapeDtypeStruct((M, MEL_PAD), jnp.float32),
        grid=(1,),
        in_specs=[
            pl.BlockSpec((M, NF), lambda i: (0, 0)),
            pl.BlockSpec((NF, NB), lambda i: (0, 0)),
            pl.BlockSpec((NF, NB), lambda i: (0, 0)),
            pl.BlockSpec((NB, MEL_PAD), lambda i: (0, 0)),
        ],
        out_specs=pl.BlockSpec((M, MEL_PAD), lambda i: (0, 0)),
        compiler_params=_SEQ,
    )(x2, dft_r, dft_i, mel_fb_pad)
    return out[:, :N_MELS].reshape(B, T, N_MELS)


# =============================== fused encoder (one pallas_call) =====================

_BLOCK_WEIGHTS = (
    "ff1_ln_g", "ff1_ln_b", "ff1_w1", "ff1_b1", "ff1_w2", "ff1_b2",
    "mhsa_ln_g", "mhsa_ln_b", "wqk", "bqk", "wvo", "bo",
    "conv_ln_g", "conv_ln_b", "pw1_wa", "pw1_ba", "pw1_wb", "pw1_bb",
    "dw_w", "dw_b", "nc_g", "nc_b", "pw2_w", "pw2_b",
    "ff2_ln_g", "ff2_ln_b", "ff2_w1", "ff2_b1", "ff2_w2", "ff2_b2",
    "final_ln_g", "final_ln_b",
)


def _encoder_kernel(lens_ref, x_ref, linw_ref, linb_ref, *refs, T, D, H, K, L):
    nw = len(_BLOCK_WEIGHTS)
    w = dict(zip(_BLOCK_WEIGHTS, refs[:nw]))
    fw_ref, fb_ref, o_ref = refs[nw], refs[nw + 1], refs[nw + 2]

    eps = 1e-5
    b = pl.program_id(0)
    seq_len = lens_ref[b]

    t_col = jax.lax.broadcasted_iota(jnp.int32, (T, 1), 0)
    t_row = jax.lax.broadcasted_iota(jnp.int32, (1, T), 1)
    key_neg = jnp.where(t_row < seq_len, 0.0, -1e9)          # (1,T) additive key mask
    time_mask = (t_col < seq_len).astype(jnp.float32)         # (T,1) zero padded frames (conv)

    def mm(a, bm):
        return jnp.dot(a, bm, preferred_element_type=jnp.float32)

    def ln(v, g, bvec):
        mu = jnp.mean(v, axis=-1, keepdims=True)
        var = jnp.mean(jnp.square(v - mu), axis=-1, keepdims=True)
        return (v - mu) * jax.lax.rsqrt(var + eps) * g + bvec

    def silu(v):
        return v * jax.nn.sigmoid(v)

    # --- fused frontend output projection: (T, Din) @ (Din, D) + b ---
    x = mm(x_ref[0].astype(jnp.float32), linw_ref[...]) + linb_ref[...]

    Dh = D // H
    scale = 1.0 / float(np.sqrt(Dh))
    pad = (K - 1) // 2

    for l in range(L):   # unrolled: all layer weights stay VMEM-resident
        def ff(v, pre, l=l):
            y = ln(v, w[pre + "_ln_g"][l], w[pre + "_ln_b"][l])
            y = silu(mm(y, w[pre + "_w1"][l]) + w[pre + "_b1"][l])
            return mm(y, w[pre + "_w2"][l]) + w[pre + "_b2"][l]

        # --- feed-forward module 1 (0.5x residual) ---
        x = x + 0.5 * ff(x, "ff1")

        # --- MHSA: fused QK matmul, per-head folded V@Wo value path ---
        y = ln(x, w["mhsa_ln_g"][l], w["mhsa_ln_b"][l])
        qk = mm(y, w["wqk"][l]) + w["bqk"][l]          # (T, 2D)
        vo = mm(y, w["wvo"][l])                        # (T, H*D): per-head Wv_h @ Wo_h folded
        attn = jnp.zeros((T, D), jnp.float32)
        for h in range(H):
            q = qk[:, h * Dh:(h + 1) * Dh]
            k = qk[:, D + h * Dh:D + (h + 1) * Dh]
            s = jax.lax.dot_general(q, k, (((1,), (1,)), ((), ())),
                                    preferred_element_type=jnp.float32) * scale + key_neg
            s = s - jnp.max(s, axis=-1, keepdims=True)
            p = jnp.exp(s)
            p = p / jnp.sum(p, axis=-1, keepdims=True)
            attn = attn + mm(p, vo[:, h * D:(h + 1) * D])
        x = x + attn + w["bo"][l]

        # --- convolution module ---
        y = ln(x, w["conv_ln_g"][l], w["conv_ln_b"][l])
        a = mm(y, w["pw1_wa"][l]) + w["pw1_ba"][l]     # GLU value path
        g = mm(y, w["pw1_wb"][l]) + w["pw1_bb"][l]     # GLU gate path
        y = (a * jax.nn.sigmoid(g)) * time_mask        # zero padded frames before depthwise conv
        dw = w["dw_w"][l]                              # (K, D)
        acc = jnp.zeros((T, D), jnp.float32)
        for kk in range(K):                            # depthwise conv via XLU rolls
            off = kk - pad                             # out[t] += dw[kk] * y[t + off]
            if off == 0:
                acc = acc + y * dw[kk:kk + 1, :]
            else:
                rolled = pltpu.roll(y, shift=(-off) % T, axis=0)   # rolled[t] = y[(t+off)%T]
                valid = ((t_col + off >= 0) & (t_col + off < T)).astype(jnp.float32)
                acc = acc + rolled * valid * dw[kk:kk + 1, :]
        y = acc + w["dw_b"][l]
        y = silu(ln(y, w["nc_g"][l], w["nc_b"][l]))    # LayerNormNC + SiLU
        y = mm(y, w["pw2_w"][l]) + w["pw2_b"][l]
        x = x + y

        # --- feed-forward module 2 (0.5x residual) ---
        x = x + 0.5 * ff(x, "ff2")

        # --- per-block final layer norm ---
        x = ln(x, w["final_ln_g"][l], w["final_ln_b"][l])

    # --- fused final linear + log_softmax (vocab padded to 128 lanes, pad bias = -1e9) ---
    logits = mm(x, fw_ref[...]) + fb_ref[...]
    m = jnp.max(logits, axis=-1, keepdims=True)
    lse = jnp.log(jnp.sum(jnp.exp(logits - m), axis=-1, keepdims=True)) + m
    o_ref[0] = (logits - lse).astype(o_ref.dtype)


def encoder_pallas(x, out_lens, params):
    """Frontend projection + all conformer layers + final linear/log_softmax, grid=(B,)."""
    B, T, Din = x.shape
    blocks = params["blocks"]
    w_list = [blocks[n] for n in _BLOCK_WEIGHTS]
    L = w_list[0].shape[0]

    def const_map(nd):
        return lambda b, lens: (0,) * nd

    in_specs = [
        pl.BlockSpec((1, T, Din), lambda b, lens: (b, 0, 0)),
        pl.BlockSpec(params["lin_w"].shape, const_map(2)),
        pl.BlockSpec(params["lin_b"].shape, const_map(2)),
    ]
    for arr in w_list:
        in_specs.append(pl.BlockSpec(arr.shape, const_map(arr.ndim)))
    in_specs.append(pl.BlockSpec(params["final_w"].shape, const_map(2)))
    in_specs.append(pl.BlockSpec(params["final_b"].shape, const_map(2)))

    grid_spec = pltpu.PrefetchScalarGridSpec(
        num_scalar_prefetch=1,
        grid=(B,),
        in_specs=in_specs,
        out_specs=pl.BlockSpec((1, T, VOCAB_PAD), lambda b, lens: (b, 0, 0)),
    )
    kernel = functools.partial(_encoder_kernel, T=T, D=CONF_SIZE, H=NUM_HEADS,
                               K=CONV_KERNEL, L=L)
    return pl.pallas_call(
        kernel,
        out_shape=jax.ShapeDtypeStruct((B, T, VOCAB_PAD), jnp.float32),
        grid_spec=grid_spec,
        compiler_params=pltpu.CompilerParams(dimension_semantics=("parallel",)),
    )(out_lens.astype(jnp.int32), x, params["lin_w"], params["lin_b"],
      *w_list, params["final_w"], params["final_b"])


# =============================== model glue ==========================================

def mel_filterbank(n_mels, n_fft, sr):
    n_bins = n_fft // 2 + 1
    hz2mel = lambda f: 2595.0 * np.log10(1.0 + f / 700.0)
    mel2hz = lambda m: 700.0 * (10.0 ** (m / 2595.0) - 1.0)
    mels = np.linspace(hz2mel(0.0), hz2mel(sr / 2.0), n_mels + 2)
    freqs = mel2hz(mels)
    fft_freqs = np.linspace(0.0, sr / 2.0, n_bins)
    fb = np.zeros((n_bins, n_mels), np.float32)
    for m in range(n_mels):
        fl, fc, fr = freqs[m], freqs[m + 1], freqs[m + 2]
        lower = (fft_freqs - fl) / max(fc - fl, 1e-6)
        upper = (fr - fft_freqs) / max(fr - fc, 1e-6)
        fb[:, m] = np.maximum(0.0, np.minimum(lower, upper))
    return jnp.asarray(fb)


def _im2col_3x3(x):  # NHWC, same padding
    B, H, W, C = x.shape
    xp = jnp.pad(x, ((0, 0), (1, 1), (1, 1), (0, 0)))
    cols = []
    for dh in range(3):
        for dw in range(3):
            cols.append(xp[:, dh:dh + H, dw:dw + W, :])
    return jnp.concatenate(cols, axis=-1)


def _maxpool_time2(x):
    B, T, F, C = x.shape
    return jnp.max(x.reshape(B, T // 2, 2, F, C), axis=2)


def extract_features(raw_audio, raw_audio_len, consts):
    dft_r, dft_i, mel_fb_pad, window = consts
    audio = jnp.squeeze(raw_audio, axis=-1)            # [B, S]
    B, S = audio.shape
    pad = N_FFT // 2                                    # center=True STFT
    audio_p = jnp.pad(audio, ((0, 0), (pad, pad)))
    n_frames = S // HOP + 1
    idx = jnp.arange(n_frames)[:, None] * HOP + jnp.arange(N_FFT)[None, :]
    frames = audio_p[:, idx] * window[None, None, :]    # [B, T, n_fft]
    feats = logmel_pallas(frames, dft_r, dft_i, mel_fb_pad)
    # pad time to a multiple of 32 so the 4x-downsampled conformer T is sublane-aligned
    t_pad = (-n_frames) % 32
    feats = jnp.pad(feats, ((0, 0), (0, t_pad), (0, 0)))
    feat_lens = raw_audio_len // HOP + 1                # mask_tensor equivalent (lengths)
    return feats, feat_lens


def frontend_apply(p, feats, feat_lens):
    # TODO(synk): VGG frontend kept as XLA im2col glue + Pallas matmuls; runs once so
    #             the remaining HBM traffic is negligible at these sizes.
    x = feats[..., None]                                               # [B,T,F,1]
    x = linear_pallas(_im2col_3x3(x), p["c1_w"], p["c1_b"], "relu")    # conv1 (3x3)
    x = _maxpool_time2(x)                                              # time /2
    x = linear_pallas(_im2col_3x3(x), p["c2_w"], p["c2_b"], "relu")    # conv2 (3x3)
    x = _maxpool_time2(x)                                              # time /4
    B2, T2, F2, C2 = x.shape
    x = x.reshape(B2, T2, F2 * C2)                      # linear projection fused in encoder
    out_lens = feat_lens // 4
    return x, out_lens


def model_forward(params, consts, raw_audio, raw_audio_len):
    # Mode.OFFLINE: no chunking / merge_chunks, lookahead_size unused; dropouts identity.
    feats, feat_lens = extract_features(raw_audio, raw_audio_len, consts)
    x, out_lens = frontend_apply(params["frontend"], feats, feat_lens)
    log_probs_pad = encoder_pallas(x, out_lens, params)
    log_probs = log_probs_pad[:, :, :VOCAB]
    return log_probs, out_lens


# =============================== parameter init ======================================

def init_params():
    key = jax.random.PRNGKey(0)
    counter = [0]

    def nk():
        counter[0] += 1
        return jax.random.fold_in(key, counter[0])

    def w(shape, scale=0.02):
        return (scale * jax.random.normal(nk(), shape)).astype(jnp.float32)

    zeros = lambda s: jnp.zeros(s, jnp.float32)
    ones = lambda s: jnp.ones(s, jnp.float32)

    D, H = CONF_SIZE, NUM_HEADS
    Dh = D // H

    params = {
        "frontend": {
            "c1_w": w((9 * 1, FRONT_C1)), "c1_b": zeros((1, FRONT_C1)),
            "c2_w": w((9 * FRONT_C1, FRONT_C2)), "c2_b": zeros((1, FRONT_C2)),
        },
        "lin_w": w((FRONT_C2 * N_MELS, D)),
        "lin_b": zeros((1, D)),
    }

    blocks = []
    for _ in range(NUM_LAYERS):
        wq, wk, wv, wo = w((D, D)), w((D, D)), w((D, D)), w((D, D))
        bq, bk, bv, bo = zeros((D,)), zeros((D,)), zeros((D,)), zeros((D,))
        # fold per-head value/output projections: wvo[:, h*D:(h+1)*D] = Wv_h @ Wo_h
        wvo = jnp.concatenate(
            [wv[:, h * Dh:(h + 1) * Dh] @ wo[h * Dh:(h + 1) * Dh, :] for h in range(H)],
            axis=1)
        bo_eff = (bo + bv @ wo).reshape(1, D)   # exact: softmax rows sum to 1
        blocks.append({
            "ff1_ln_g": ones((1, D)), "ff1_ln_b": zeros((1, D)),
            "ff1_w1": w((D, FF_DIM)), "ff1_b1": zeros((1, FF_DIM)),
            "ff1_w2": w((FF_DIM, D)), "ff1_b2": zeros((1, D)),
            "mhsa_ln_g": ones((1, D)), "mhsa_ln_b": zeros((1, D)),
            "wqk": jnp.concatenate([wq, wk], axis=1),
            "bqk": jnp.concatenate([bq, bk]).reshape(1, 2 * D),
            "wvo": wvo, "bo": bo_eff,
            "conv_ln_g": ones((1, D)), "conv_ln_b": zeros((1, D)),
            "pw1_wa": w((D, D)), "pw1_ba": zeros((1, D)),
            "pw1_wb": w((D, D)), "pw1_bb": zeros((1, D)),
            "dw_w": w((CONV_KERNEL, D)), "dw_b": zeros((1, D)),
            "nc_g": ones((1, D)), "nc_b": zeros((1, D)),
            "pw2_w": w((D, D)), "pw2_b": zeros((1, D)),
            "ff2_ln_g": ones((1, D)), "ff2_ln_b": zeros((1, D)),
            "ff2_w1": w((D, FF_DIM)), "ff2_b1": zeros((1, FF_DIM)),
            "ff2_w2": w((FF_DIM, D)), "ff2_b2": zeros((1, D)),
            "final_ln_g": ones((1, D)), "final_ln_b": zeros((1, D)),
        })
    # stack per-layer weights along a leading layer axis (all kept VMEM-resident)
    params["blocks"] = {name: jnp.stack([b[name] for b in blocks], axis=0)
                        for name in _BLOCK_WEIGHTS}

    # final linear padded to 128 lanes; padded columns get -1e9 bias (masked in log-softmax)
    fw = w((D, VOCAB))
    params["final_w"] = jnp.pad(fw, ((0, 0), (0, VOCAB_PAD - VOCAB)))
    fb = jnp.full((1, VOCAB_PAD), -1e9, jnp.float32)
    params["final_b"] = fb.at[:, :VOCAB].set(0.0)
    return params


def build_consts():
    n_bins = N_FFT // 2 + 1
    n = np.arange(N_FFT)[:, None].astype(np.float64)
    kk = np.arange(n_bins)[None, :].astype(np.float64)
    dft_r = jnp.asarray(np.cos(2.0 * np.pi * n * kk / N_FFT), jnp.float32)
    dft_i = jnp.asarray(-np.sin(2.0 * np.pi * n * kk / N_FFT), jnp.float32)
    mel_fb = mel_filterbank(N_MELS, N_FFT, SAMPLE_RATE)
    mel_fb_pad = jnp.pad(mel_fb, ((0, 0), (0, MEL_PAD - N_MELS)))   # lane-dense output
    window = jnp.asarray(0.5 * (1.0 - np.cos(2.0 * np.pi * np.arange(N_FFT) / N_FFT)),
                         jnp.float32)
    return dft_r, dft_i, mel_fb_pad, window


# =============================== main =================================================

if __name__ == "__main__":
    params = init_params()
    consts = build_consts()

    key = jax.random.PRNGKey(0)
    raw_audio = jax.random.normal(key, (2, 512, 1), dtype=jnp.float32)  # [B, S, 1]
    raw_audio_len = jnp.array([512, 400], dtype=jnp.int32)              # [B]

    fwd = jax.jit(model_forward)
    log_probs, out_lens = fwd(params, consts, raw_audio, raw_audio_len)
    jax.block_until_ready((log_probs, out_lens))

    assert log_probs.shape[0] == 2 and log_probs.shape[-1] == VOCAB
    assert bool(jnp.all(jnp.isfinite(log_probs)))
    print("KERNEL_OK")
</pallas_src>

<mosaic_0001>
module attributes {stable_mosaic.version = 11 : i64} {
  func.func @_logmel_kernel(%arg0: i32, %arg1: memref<66x32xf32, #tpu.memory_space<vmem>>, %arg2: memref<32x17xf32, #tpu.memory_space<vmem>>, %arg3: memref<32x17xf32, #tpu.memory_space<vmem>>, %arg4: memref<17x128xf32, #tpu.memory_space<vmem>>, %arg5: memref<66x128xf32, #tpu.memory_space<vmem>>) attributes {dimension_semantics = [#tpu.dimension_semantics<arbitrary>], iteration_bounds = array<i64: 1>, scalar_prefetch = 0 : i64, scratch_operands = 0 : i64, tpu.core_type = #tpu.core_type<tc>, window_params = [{pipeline_mode = #tpu.pipeline_mode<synchronous>, transform_indices = @transform_0, window_bounds = array<i64: 66, 32>}, {pipeline_mode = #tpu.pipeline_mode<synchronous>, transform_indices = @transform_1, window_bounds = array<i64: 32, 17>}, {pipeline_mode = #tpu.pipeline_mode<synchronous>, transform_indices = @transform_2, window_bounds = array<i64: 32, 17>}, {pipeline_mode = #tpu.pipeline_mode<synchronous>, transform_indices = @transform_3, window_bounds = array<i64: 17, 128>}, {pipeline_mode = #tpu.pipeline_mode<synchronous>, transform_indices = @transform_4, window_bounds = array<i64: 66, 128>}]} {
    %c0 = arith.constant 0 : index
    %c0_0 = arith.constant 0 : index
    %0 = vector.load %arg1[%c0, %c0_0] : memref<66x32xf32, #tpu.memory_space<vmem>>, vector<66x32xf32>
    %c0_1 = arith.constant 0 : index
    %c0_2 = arith.constant 0 : index
    %1 = vector.load %arg2[%c0_1, %c0_2] : memref<32x17xf32, #tpu.memory_space<vmem>>, vector<32x17xf32>
    %cst = arith.constant dense<0.000000e+00> : vector<66x17xf32>
    %2 = tpu.matmul %0, %1, %cst {dimension_numbers = #tpu.dot_dimension_numbers<[1], [0], [0], [1], [0, 0, 1, 1], [], []>} : vector<66x32xf32>, vector<32x17xf32>, vector<66x17xf32> -> vector<66x17xf32>
    %c0_3 = arith.constant 0 : index
    %c0_4 = arith.constant 0 : index
    %3 = vector.load %arg3[%c0_3, %c0_4] : memref<32x17xf32, #tpu.memory_space<vmem>>, vector<32x17xf32>
    %cst_5 = arith.constant dense<0.000000e+00> : vector<66x17xf32>
    %4 = tpu.matmul %0, %3, %cst_5 {dimension_numbers = #tpu.dot_dimension_numbers<[1], [0], [0], [1], [0, 0, 1, 1], [], []>} : vector<66x32xf32>, vector<32x17xf32>, vector<66x17xf32> -> vector<66x17xf32>
    %5 = arith.mulf %2, %2 : vector<66x17xf32>
    %6 = arith.mulf %4, %4 : vector<66x17xf32>
    %7 = arith.addf %5, %6 : vector<66x17xf32>
    %c0_6 = arith.constant 0 : index
    %c0_7 = arith.constant 0 : index
    %8 = vector.load %arg4[%c0_6, %c0_7] : memref<17x128xf32, #tpu.memory_space<vmem>>, vector<17x128xf32>
    %cst_8 = arith.constant dense<0.000000e+00> : vector<66x128xf32>
    %9 = tpu.matmul %7, %8, %cst_8 {dimension_numbers = #tpu.dot_dimension_numbers<[1], [0], [0], [1], [0, 0, 1, 1], [], []>} : vector<66x17xf32>, vector<17x128xf32>, vector<66x128xf32> -> vector<66x128xf32>
    %cst_9 = arith.constant 1.000000e-10 : f32
    %10 = vector.broadcast %cst_9 : f32 to vector<66x128xf32>
    %11 = arith.maximumf %9, %10 : vector<66x128xf32>
    %12 = math.log %11 : vector<66x128xf32>
    %cst_10 = arith.constant 0.434294492 : f32
    %13 = vector.broadcast %cst_10 : f32 to vector<66x128xf32>
    %14 = arith.mulf %12, %13 : vector<66x128xf32>
    %c0_11 = arith.constant 0 : index
    %c0_12 = arith.constant 0 : index
    %15 = vector.load %arg5[%c0_11, %c0_12] : memref<66x128xf32, #tpu.memory_space<vmem>>, vector<66x128xf32>
    tpu.vector_store %arg5[%c0_11, %c0_12], %14 {strides = array<i32>} : memref<66x128xf32, #tpu.memory_space<vmem>>, vector<66x128xf32>,
    return
  }
  func.func @transform_0(%arg0: i32) -> (i32, i32) {
    %c0_i32 = arith.constant 0 : i32
    %c0_i32_0 = arith.constant 0 : i32
    %c0_i32_1 = arith.constant 0 : i32
    return %c0_i32, %c0_i32_0 : i32, i32
  }
  func.func @transform_1(%arg0: i32) -> (i32, i32) {
    %c0_i32 = arith.constant 0 : i32
    %c0_i32_0 = arith.constant 0 : i32
    %c0_i32_1 = arith.constant 0 : i32
    return %c0_i32, %c0_i32_0 : i32, i32
  }
  func.func @transform_2(%arg0: i32) -> (i32, i32) {
    %c0_i32 = arith.constant 0 : i32
    %c0_i32_0 = arith.constant 0 : i32
    %c0_i32_1 = arith.constant 0 : i32
    return %c0_i32, %c0_i32_0 : i32, i32
  }
  func.func @transform_3(%arg0: i32) -> (i32, i32) {
    %c0_i32 = arith.constant 0 : i32
    %c0_i32_0 = arith.constant 0 : i32
    %c0_i32_1 = arith.constant 0 : i32
    return %c0_i32, %c0_i32_0 : i32, i32
  }
  func.func @transform_4(%arg0: i32) -> (i32, i32) {
    %c0_i32 = arith.constant 0 : i32
    %c0_i32_0 = arith.constant 0 : i32
    %c0_i32_1 = arith.constant 0 : i32
    return %c0_i32, %c0_i32_0 : i32, i32
  }
}

module attributes {stable_mosaic.version = 11 : i64} {
  func.func @_matmul_kernel(%arg0: i32, %arg1: memref<2048x9xf32, #tpu.memory_space<vmem>>, %arg2: memref<9x8xf32, #tpu.memory_space<vmem>>, %arg3: memref<1x8xf32, #tpu.memory_space<vmem>>, %arg4: memref<2048x8xf32, #tpu.memory_space<vmem>>) attributes {dimension_semantics = [#tpu.dimension_semantics<arbitrary>], iteration_bounds = array<i64: 1>, scalar_prefetch = 0 : i64, scratch_operands = 0 : i64, tpu.core_type = #tpu.core_type<tc>, window_params = [{pipeline_mode = #tpu.pipeline_mode<synchronous>, transform_indices = @transform_0, window_bounds = array<i64: 2048, 9>}, {pipeline_mode = #tpu.pipeline_mode<synchronous>, transform_indices = @transform_1, window_bounds = array<i64: 9, 8>}, {pipeline_mode = #tpu.pipeline_mode<synchronous>, transform_indices = @transform_2, window_bounds = array<i64: 1, 8>}, {pipeline_mode = #tpu.pipeline_mode<synchronous>, transform_indices = @transform_3, window_bounds = array<i64: 2048, 8>}]} {
    %c0 = arith.constant 0 : index
    %c0_0 = arith.constant 0 : index
    %0 = vector.load %arg1[%c0, %c0_0] : memref<2048x9xf32, #tpu.memory_space<vmem>>, vector<2048x9xf32>
    %c0_1 = arith.constant 0 : index
    %c0_2 = arith.constant 0 : index
    %1 = vector.load %arg2[%c0_1, %c0_2] : memref<9x8xf32, #tpu.memory_space<vmem>>, vector<9x8xf32>
    %cst = arith.constant dense<0.000000e+00> : vector<2048x8xf32>
    %2 = tpu.matmul %0, %1, %cst {dimension_numbers = #tpu.dot_dimension_numbers<[1], [0], [0], [1], [0, 0, 1, 1], [], []>} : vector<2048x9xf32>, vector<9x8xf32>, vector<2048x8xf32> -> vector<2048x8xf32>
    %c0_3 = arith.constant 0 : index
    %c0_4 = arith.constant 0 : index
    %3 = vector.load %arg3[%c0_3, %c0_4] : memref<1x8xf32, #tpu.memory_space<vmem>>, vector<1x8xf32>
    %4 = vector.broadcast %3 : vector<1x8xf32> to vector<2048x8xf32>
    %5 = arith.addf %2, %4 : vector<2048x8xf32>
    %cst_5 = arith.constant 0.000000e+00 : f32
    %6 = vector.broadcast %cst_5 : f32 to vector<2048x8xf32>
    %7 = arith.maximumf %5, %6 : vector<2048x8xf32>
    %c0_6 = arith.constant 0 : index
    %c0_7 = arith.constant 0 : index
    %8 = vector.load %arg4[%c0_6, %c0_7] : memref<2048x8xf32, #tpu.memory_space<vmem>>, vector<2048x8xf32>
    tpu.vector_store %arg4[%c0_6, %c0_7], %7 {strides = array<i32>} : memref<2048x8xf32, #tpu.memory_space<vmem>>, vector<2048x8xf32>,
    return
  }
  func.func @transform_0(%arg0: i32) -> (i32, i32) {
    %c0_i32 = arith.constant 0 : i32
    %c0_i32_0 = arith.constant 0 : i32
    %c0_i32_1 = arith.constant 0 : i32
    return %c0_i32, %c0_i32_0 : i32, i32
  }
  func.func @transform_1(%arg0: i32) -> (i32, i32) {
    %c0_i32 = arith.constant 0 : i32
    %c0_i32_0 = arith.constant 0 : i32
    %c0_i32_1 = arith.constant 0 : i32
    return %c0_i32, %c0_i32_0 : i32, i32
  }
  func.func @transform_2(%arg0: i32) -> (i32, i32) {
    %c0_i32 = arith.constant 0 : i32
    %c0_i32_0 = arith.constant 0 : i32
    %c0_i32_1 = arith.constant 0 : i32
    return %c0_i32, %c0_i32_0 : i32, i32
  }
  func.func @transform_3(%arg0: i32) -> (i32, i32) {
    %c0_i32 = arith.constant 0 : i32
    %c0_i32_0 = arith.constant 0 : i32
    %c0_i32_1 = arith.constant 0 : i32
    return %c0_i32, %c0_i32_0 : i32, i32
  }
}

module attributes {stable_mosaic.version = 11 : i64} {
  func.func @_matmul_kernel(%arg0: i32, %arg1: memref<1024x72xf32, #tpu.memory_space<vmem>>, %arg2: memref<72x16xf32, #tpu.memory_space<vmem>>, %arg3: memref<1x16xf32, #tpu.memory_space<vmem>>, %arg4: memref<1024x16xf32, #tpu.memory_space<vmem>>) attributes {dimension_semantics = [#tpu.dimension_semantics<arbitrary>], iteration_bounds = array<i64: 1>, scalar_prefetch = 0 : i64, scratch_operands = 0 : i64, tpu.core_type = #tpu.core_type<tc>, window_params = [{pipeline_mode = #tpu.pipeline_mode<synchronous>, transform_indices = @transform_0, window_bounds = array<i64: 1024, 72>}, {pipeline_mode = #tpu.pipeline_mode<synchronous>, transform_indices = @transform_1, window_bounds = array<i64: 72, 16>}, {pipeline_mode = #tpu.pipeline_mode<synchronous>, transform_indices = @transform_2, window_bounds = array<i64: 1, 16>}, {pipeline_mode = #tpu.pipeline_mode<synchronous>, transform_indices = @transform_3, window_bounds = array<i64: 1024, 16>}]} {
    %c0 = arith.constant 0 : index
    %c0_0 = arith.constant 0 : index
    %0 = vector.load %arg1[%c0, %c0_0] : memref<1024x72xf32, #tpu.memory_space<vmem>>, vector<1024x72xf32>
    %c0_1 = arith.constant 0 : index
    %c0_2 = arith.constant 0 : index
    %1 = vector.load %arg2[%c0_1, %c0_2] : memref<72x16xf32, #tpu.memory_space<vmem>>, vector<72x16xf32>
    %cst = arith.constant dense<0.000000e+00> : vector<1024x16xf32>
    %2 = tpu.matmul %0, %1, %cst {dimension_numbers = #tpu.dot_dimension_numbers<[1], [0], [0], [1], [0, 0, 1, 1], [], []>} : vector<1024x72xf32>, vector<72x16xf32>, vector<1024x16xf32> -> vector<1024x16xf32>
    %c0_3 = arith.constant 0 : index
    %c0_4 = arith.constant 0 : index
    %3 = vector.load %arg3[%c0_3, %c0_4] : memref<1x16xf32, #tpu.memory_space<vmem>>, vector<1x16xf32>
    %4 = vector.broadcast %3 : vector<1x16xf32> to vector<1024x16xf32>
    %5 = arith.addf %2, %4 : vector<1024x16xf32>
    %cst_5 = arith.constant 0.000000e+00 : f32
    %6 = vector.broadcast %cst_5 : f32 to vector<1024x16xf32>
    %7 = arith.maximumf %5, %6 : vector<1024x16xf32>
    %c0_6 = arith.constant 0 : index
    %c0_7 = arith.constant 0 : index
    %8 = vector.load %arg4[%c0_6, %c0_7] : memref<1024x16xf32, #tpu.memory_space<vmem>>, vector<1024x16xf32>
    tpu.vector_store %arg4[%c0_6, %c0_7], %7 {strides = array<i32>} : memref<1024x16xf32, #tpu.memory_space<vmem>>, vector<1024x16xf32>,
    return
  }
  func.func @transform_0(%arg0: i32) -> (i32, i32) {
    %c0_i32 = arith.constant 0 : i32
    %c0_i32_0 = arith.constant 0 : i32
    %c0_i32_1 = arith.constant 0 : i32
    return %c0_i32, %c0_i32_0 : i32, i32
  }
  func.func @transform_1(%arg0: i32) -> (i32, i32) {
    %c0_i32 = arith.constant 0 : i32
    %c0_i32_0 = arith.constant 0 : i32
    %c0_i32_1 = arith.constant 0 : i32
    return %c0_i32, %c0_i32_0 : i32, i32
  }
  func.func @transform_2(%arg0: i32) -> (i32, i32) {
    %c0_i32 = arith.constant 0 : i32
    %c0_i32_0 = arith.constant 0 : i32
    %c0_i32_1 = arith.constant 0 : i32
    return %c0_i32, %c0_i32_0 : i32, i32
  }
  func.func @transform_3(%arg0: i32) -> (i32, i32) {
    %c0_i32 = arith.constant 0 : i32
    %c0_i32_0 = arith.constant 0 : i32
    %c0_i32_1 = arith.constant 0 : i32
    return %c0_i32, %c0_i32_0 : i32, i32
  }
}

module attributes {stable_mosaic.version = 11 : i64} {
  func.func @_encoder_kernel(%arg0: i32, %arg1: memref<2xi32, #tpu.memory_space<smem>>, %arg2: memref<1x16x256xf32, #tpu.memory_space<vmem>>, %arg3: memref<256x64xf32, #tpu.memory_space<vmem>>, %arg4: memref<1x64xf32, #tpu.memory_space<vmem>>, %arg5: memref<2x1x64xf32, #tpu.memory_space<vmem>>, %arg6: memref<2x1x64xf32, #tpu.memory_space<vmem>>, %arg7: memref<2x64x128xf32, #tpu.memory_space<vmem>>, %arg8: memref<2x1x128xf32, #tpu.memory_space<vmem>>, %arg9: memref<2x128x64xf32, #tpu.memory_space<vmem>>, %arg10: memref<2x1x64xf32, #tpu.memory_space<vmem>>, %arg11: memref<2x1x64xf32, #tpu.memory_space<vmem>>, %arg12: memref<2x1x64xf32, #tpu.memory_space<vmem>>, %arg13: memref<2x64x128xf32, #tpu.memory_space<vmem>>, %arg14: memref<2x1x128xf32, #tpu.memory_space<vmem>>, %arg15: memref<2x64x256xf32, #tpu.memory_space<vmem>>, %arg16: memref<2x1x64xf32, #tpu.memory_space<vmem>>, %arg17: memref<2x1x64xf32, #tpu.memory_space<vmem>>, %arg18: memref<2x1x64xf32, #tpu.memory_space<vmem>>, %arg19: memref<2x64x64xf32, #tpu.memory_space<vmem>>, %arg20: memref<2x1x64xf32, #tpu.memory_space<vmem>>, %arg21: memref<2x64x64xf32, #tpu.memory_space<vmem>>, %arg22: memref<2x1x64xf32, #tpu.memory_space<vmem>>, %arg23: memref<2x7x64xf32, #tpu.memory_space<vmem>>, %arg24: memref<2x1x64xf32, #tpu.memory_space<vmem>>, %arg25: memref<2x1x64xf32, #tpu.memory_space<vmem>>, %arg26: memref<2x1x64xf32, #tpu.memory_space<vmem>>, %arg27: memref<2x64x64xf32, #tpu.memory_space<vmem>>, %arg28: memref<2x1x64xf32, #tpu.memory_space<vmem>>, %arg29: memref<2x1x64xf32, #tpu.memory_space<vmem>>, %arg30: memref<2x1x64xf32, #tpu.memory_space<vmem>>, %arg31: memref<2x64x128xf32, #tpu.memory_space<vmem>>, %arg32: memref<2x1x128xf32, #tpu.memory_space<vmem>>, %arg33: memref<2x128x64xf32, #tpu.memory_space<vmem>>, %arg34: memref<2x1x64xf32, #tpu.memory_space<vmem>>, %arg35: memref<2x1x64xf32, #tpu.memory_space<vmem>>, %arg36: memref<2x1x64xf32, #tpu.memory_space<vmem>>, %arg37: memref<64x128xf32, #tpu.memory_space<vmem>>, %arg38: memref<1x128xf32, #tpu.memory_space<vmem>>, %arg39: memref<1x16x128xf32, #tpu.memory_space<vmem>>) attributes {dimension_semantics = [#tpu.dimension_semantics<parallel>], iteration_bounds = array<i64: 2>, scalar_prefetch = 1 : i64, scratch_operands = 0 : i64, tpu.core_type = #tpu.core_type<tc>, window_params = [{transform_indices = @transform_0, window_bounds = array<i64: 1, 16, 256>}, {pipeline_mode = #tpu.pipeline_mode<synchronous>, transform_indices = @transform_1, window_bounds = array<i64: 256, 64>}, {pipeline_mode = #tpu.pipeline_mode<synchronous>, transform_indices = @transform_2, window_bounds = array<i64: 1, 64>}, {pipeline_mode = #tpu.pipeline_mode<synchronous>, transform_indices = @transform_3, window_bounds = array<i64: 2, 1, 64>}, {pipeline_mode = #tpu.pipeline_mode<synchronous>, transform_indices = @transform_4, window_bounds = array<i64: 2, 1, 64>}, {pipeline_mode = #tpu.pipeline_mode<synchronous>, transform_indices = @transform_5, window_bounds = array<i64: 2, 64, 128>}, {pipeline_mode = #tpu.pipeline_mode<synchronous>, transform_indices = @transform_6, window_bounds = array<i64: 2, 1, 128>}, {pipeline_mode = #tpu.pipeline_mode<synchronous>, transform_indices = @transform_7, window_bounds = array<i64: 2, 128, 64>}, {pipeline_mode = #tpu.pipeline_mode<synchronous>, transform_indices = @transform_8, window_bounds = array<i64: 2, 1, 64>}, {pipeline_mode = #tpu.pipeline_mode<synchronous>, transform_indices = @transform_9, window_bounds = array<i64: 2, 1, 64>}, {pipeline_mode = #tpu.pipeline_mode<synchronous>, transform_indices = @transform_10, window_bounds = array<i64: 2, 1, 64>}, {pipeline_mode = #tpu.pipeline_mode<synchronous>, transform_indices = @transform_11, window_bounds = array<i64: 2, 64, 128>}, {pipeline_mode = #tpu.pipeline_mode<synchronous>, transform_indices = @transform_12, window_bounds = array<i64: 2, 1, 128>}, {pipeline_mode = #tpu.pipeline_mode<synchronous>, transform_indices = @transform_13, window_bounds = array<i64: 2, 64, 256>}, {pipeline_mode = #tpu.pipeline_mode<synchronous>, transform_indices = @transform_14, window_bounds = array<i64: 2, 1, 64>}, {pipeline_mode = #tpu.pipeline_mode<synchronous>, transform_indices = @transform_15, window_bounds = array<i64: 2, 1, 64>}, {pipeline_mode = #tpu.pipeline_mode<synchronous>, transform_indices = @transform_16, window_bounds = array<i64: 2, 1, 64>}, {pipeline_mode = #tpu.pipeline_mode<synchronous>, transform_indices = @transform_17, window_bounds = array<i64: 2, 64, 64>}, {pipeline_mode = #tpu.pipeline_mode<synchronous>, transform_indices = @transform_18, window_bounds = array<i64: 2, 1, 64>}, {pipeline_mode = #tpu.pipeline_mode<synchronous>, transform_indices = @transform_19, window_bounds = array<i64: 2, 64, 64>}, {pipeline_mode = #tpu.pipeline_mode<synchronous>, transform_indices = @transform_20, window_bounds = array<i64: 2, 1, 64>}, {pipeline_mode = #tpu.pipeline_mode<synchronous>, transform_indices = @transform_21, window_bounds = array<i64: 2, 7, 64>}, {pipeline_mode = #tpu.pipeline_mode<synchronous>, transform_indices = @transform_22, window_bounds = array<i64: 2, 1, 64>}, {pipeline_mode = #tpu.pipeline_mode<synchronous>, transform_indices = @transform_23, window_bounds = array<i64: 2, 1, 64>}, {pipeline_mode = #tpu.pipeline_mode<synchronous>, transform_indices = @transform_24, window_bounds = array<i64: 2, 1, 64>}, {pipeline_mode = #tpu.pipeline_mode<synchronous>, transform_indices = @transform_25, window_bounds = array<i64: 2, 64, 64>}, {pipeline_mode = #tpu.pipeline_mode<synchronous>, transform_indices = @transform_26, window_bounds = array<i64: 2, 1, 64>}, {pipeline_mode = #tpu.pipeline_mode<synchronous>, transform_indices = @transform_27, window_bounds = array<i64: 2, 1, 64>}, {pipeline_mode = #tpu.pipeline_mode<synchronous>, transform_indices = @transform_28, window_bounds = array<i64: 2, 1, 64>}, {pipeline_mode = #tpu.pipeline_mode<synchronous>, transform_indices = @transform_29, window_bounds = array<i64: 2, 64, 128>}, {pipeline_mode = #tpu.pipeline_mode<synchronous>, transform_indices = @transform_30, window_bounds = array<i64: 2, 1, 128>}, {pipeline_mode = #tpu.pipeline_mode<synchronous>, transform_indices = @transform_31, window_bounds = array<i64: 2, 128, 64>}, {pipeline_mode = #tpu.pipeline_mode<synchronous>, transform_indices = @transform_32, window_bounds = array<i64: 2, 1, 64>}, {pipeline_mode = #tpu.pipeline_mode<synchronous>, transform_indices = @transform_33, window_bounds = array<i64: 2, 1, 64>}, {pipeline_mode = #tpu.pipeline_mode<synchronous>, transform_indices = @transform_34, window_bounds = array<i64: 2, 1, 64>}, {pipeline_mode = #tpu.pipeline_mode<synchronous>, transform_indices = @transform_35, window_bounds = array<i64: 64, 128>}, {pipeline_mode = #tpu.pipeline_mode<synchronous>, transform_indices = @transform_36, window_bounds = array<i64: 1, 128>}, {transform_indices = @transform_37, window_bounds = array<i64: 1, 16, 128>}]} {
    %0 = arith.index_cast %arg0 : i32 to index
    %1 = memref.load %arg1[%0] : memref<2xi32, #tpu.memory_space<smem>>
    %2 = tpu.iota {dimensions = array<i32: 0>} : vector<16x1xi32>
    %3 = tpu.iota {dimensions = array<i32: 1>} : vector<1x16xi32>
    %4 = vector.broadcast %1 : i32 to vector<1x16xi32>
    %5 = arith.cmpi slt, %3, %4 : vector<1x16xi32>
    %cst = arith.constant 0.000000e+00 : f32
    %cst_0 = arith.constant -1.000000e+09 : f32
    %6 = vector.broadcast %cst : f32 to vector<1x16xf32>
    %7 = vector.broadcast %cst_0 : f32 to vector<1x16xf32>
    %8 = arith.select %5, %6, %7 : vector<1x16xi1>, vector<1x16xf32>
    %9 = vector.broadcast %1 : i32 to vector<16x1xi32>
    %10 = arith.cmpi slt, %2, %9 : vector<16x1xi32>
    %11 = arith.extui %10 : vector<16x1xi1> to vector<16x1xi32>
    %12 = arith.sitofp %11 : vector<16x1xi32> to vector<16x1xf32>
    %c0 = arith.constant 0 : index
    %c0_1 = arith.constant 0 : index
    %c0_2 = arith.constant 0 : index
    %13 = vector.load %arg2[%c0, %c0_1, %c0_2] : memref<1x16x256xf32, #tpu.memory_space<vmem>>, vector<1x16x256xf32>
    %14 = vector.shape_cast %13 : vector<1x16x256xf32> to vector<16x256xf32>
    %c0_3 = arith.constant 0 : index
    %c0_4 = arith.constant 0 : index
    %15 = vector.load %arg3[%c0_3, %c0_4] : memref<256x64xf32, #tpu.memory_space<vmem>>, vector<256x64xf32>
    %cst_5 = arith.constant dense<0.000000e+00> : vector<16x64xf32>
    %16 = tpu.matmul %14, %15, %cst_5 {dimension_numbers = #tpu.dot_dimension_numbers<[1], [0], [0], [1], [0, 0, 1, 1], [], []>} : vector<16x256xf32>, vector<256x64xf32>, vector<16x64xf32> -> vector<16x64xf32>
    %c0_6 = arith.constant 0 : index
    %c0_7 = arith.constant 0 : index
    %17 = vector.load %arg4[%c0_6, %c0_7] : memref<1x64xf32, #tpu.memory_space<vmem>>, vector<1x64xf32>
    %18 = vector.broadcast %17 : vector<1x64xf32> to vector<16x64xf32>
    %19 = arith.addf %16, %18 : vector<16x64xf32>
    %c0_8 = arith.constant 0 : index
    %c0_9 = arith.constant 0 : index
    %c0_10 = arith.constant 0 : index
    %20 = vector.load %arg5[%c0_8, %c0_9, %c0_10] : memref<2x1x64xf32, #tpu.memory_space<vmem>>, vector<1x1x64xf32>
    %21 = vector.shape_cast %20 : vector<1x1x64xf32> to vector<1x64xf32>
    %c0_11 = arith.constant 0 : index
    %c0_12 = arith.constant 0 : index
    %c0_13 = arith.constant 0 : index
    %22 = vector.load %arg6[%c0_11, %c0_12, %c0_13] : memref<2x1x64xf32, #tpu.memory_space<vmem>>, vector<1x1x64xf32>
    %23 = vector.shape_cast %22 : vector<1x1x64xf32> to vector<1x64xf32>
    %cst_14 = arith.constant dense<0.000000e+00> : vector<16xf32>
    %24 = vector.multi_reduction <add>, %19, %cst_14 [1] : vector<16x64xf32> to vector<16xf32>
    %25 = vector.shape_cast %24 : vector<16xf32> to vector<16x1xf32>
    %cst_15 = arith.constant 6.400000e+01 : f32
    %26 = vector.broadcast %cst_15 : f32 to vector<16x1xf32>
    %27 = arith.divf %25, %26 : vector<16x1xf32>
    %28 = vector.broadcast %27 : vector<16x1xf32> to vector<16x64xf32>
    %29 = arith.subf %19, %28 : vector<16x64xf32>
    %30 = arith.mulf %29, %29 : vector<16x64xf32>
    %cst_16 = arith.constant dense<0.000000e+00> : vector<16xf32>
    %31 = vector.multi_reduction <add>, %30, %cst_16 [1] : vector<16x64xf32> to vector<16xf32>
    %32 = vector.shape_cast %31 : vector<16xf32> to vector<16x1xf32>
    %cst_17 = arith.constant 6.400000e+01 : f32
    %33 = vector.broadcast %cst_17 : f32 to vector<16x1xf32>
    %34 = arith.divf %32, %33 : vector<16x1xf32>
    %35 = vector.broadcast %27 : vector<16x1xf32> to vector<16x64xf32>
    %36 = arith.subf %19, %35 : vector<16x64xf32>
    %cst_18 = arith.constant 9.99999974E-6 : f32
    %37 = vector.broadcast %cst_18 : f32 to vector<16x1xf32>
    %38 = arith.addf %34, %37 : vector<16x1xf32>
    %39 = math.rsqrt %38 : vector<16x1xf32>
    %40 = vector.broadcast %39 : vector<16x1xf32> to vector<16x64xf32>
    %41 = arith.mulf %36, %40 : vector<16x64xf32>
    %42 = vector.broadcast %21 : vector<1x64xf32> to vector<16x64xf32>
    %43 = arith.mulf %41, %42 : vector<16x64xf32>
    %44 = vector.broadcast %23 : vector<1x64xf32> to vector<16x64xf32>
    %45 = arith.addf %43, %44 : vector<16x64xf32>
    %c0_19 = arith.constant 0 : index
    %c0_20 = arith.constant 0 : index
    %c0_21 = arith.constant 0 : index
    %46 = vector.load %arg7[%c0_19, %c0_20, %c0_21] : memref<2x64x128xf32, #tpu.memory_space<vmem>>, vector<1x64x128xf32>
    %47 = vector.shape_cast %46 : vector<1x64x128xf32> to vector<64x128xf32>
    %cst_22 = arith.constant dense<0.000000e+00> : vector<16x128xf32>
    %48 = tpu.matmul %45, %47, %cst_22 {dimension_numbers = #tpu.dot_dimension_numbers<[1], [0], [0], [1], [0, 0, 1, 1], [], []>} : vector<16x64xf32>, vector<64x128xf32>, vector<16x128xf32> -> vector<16x128xf32>
    %c0_23 = arith.constant 0 : index
    %c0_24 = arith.constant 0 : index
    %c0_25 = arith.constant 0 : index
    %49 = vector.load %arg8[%c0_23, %c0_24, %c0_25] : memref<2x1x128xf32, #tpu.memory_space<vmem>>, vector<1x1x128xf32>
    %50 = vector.shape_cast %49 : vector<1x1x128xf32> to vector<1x128xf32>
    %51 = vector.broadcast %50 : vector<1x128xf32> to vector<16x128xf32>
    %52 = arith.addf %48, %51 : vector<16x128xf32>
    %53 = arith.negf %52 : vector<16x128xf32>
    %54 = math.exp %53 : vector<16x128xf32>
    %cst_26 = arith.constant 1.000000e+00 : f32
    %55 = vector.broadcast %cst_26 : f32 to vector<16x128xf32>
    %56 = arith.addf %55, %54 : vector<16x128xf32>
    %57 = arith.divf %55, %56 : vector<16x128xf32>
    %58 = arith.mulf %52, %57 : vector<16x128xf32>
    %c0_27 = arith.constant 0 : index
    %c0_28 = arith.constant 0 : index
    %c0_29 = arith.constant 0 : index
    %59 = vector.load %arg9[%c0_27, %c0_28, %c0_29] : memref<2x128x64xf32, #tpu.memory_space<vmem>>, vector<1x128x64xf32>
    %60 = vector.shape_cast %59 : vector<1x128x64xf32> to vector<128x64xf32>
    %cst_30 = arith.constant dense<0.000000e+00> : vector<16x64xf32>
    %61 = tpu.matmul %58, %60, %cst_30 {dimension_numbers = #tpu.dot_dimension_numbers<[1], [0], [0], [1], [0, 0, 1, 1], [], []>} : vector<16x128xf32>, vector<128x64xf32>, vector<16x64xf32> -> vector<16x64xf32>
    %c0_31 = arith.constant 0 : index
    %c0_32 = arith.constant 0 : index
    %c0_33 = arith.constant 0 : index
    %62 = vector.load %arg10[%c0_31, %c0_32, %c0_33] : memref<2x1x64xf32, #tpu.memory_space<vmem>>, vector<1x1x64xf32>
    %63 = vector.shape_cast %62 : vector<1x1x64xf32> to vector<1x64xf32>
    %64 = vector.broadcast %63 : vector<1x64xf32> to vector<16x64xf32>
    %65 = arith.addf %61, %64 : vector<16x64xf32>
    %cst_34 = arith.constant 5.000000e-01 : f32
    %66 = vector.broadcast %cst_34 : f32 to vector<16x64xf32>
    %67 = arith.mulf %66, %65 : vector<16x64xf32>
    %68 = arith.addf %19, %67 : vector<16x64xf32>
    %c0_35 = arith.constant 0 : index
    %c0_36 = arith.constant 0 : index
    %c0_37 = arith.constant 0 : index
    %69 = vector.load %arg11[%c0_35, %c0_36, %c0_37] : memref<2x1x64xf32, #tpu.memory_space<vmem>>, vector<1x1x64xf32>
    %70 = vector.shape_cast %69 : vector<1x1x64xf32> to vector<1x64xf32>
    %c0_38 = arith.constant 0 : index
    %c0_39 = arith.constant 0 : index
    %c0_40 = arith.constant 0 : index
    %71 = vector.load %arg12[%c0_38, %c0_39, %c0_40] : memref<2x1x64xf32, #tpu.memory_space<vmem>>, vector<1x1x64xf32>
    %72 = vector.shape_cast %71 : vector<1x1x64xf32> to vector<1x64xf32>
    %cst_41 = arith.constant dense<0.000000e+00> : vector<16xf32>
    %73 = vector.multi_reduction <add>, %68, %cst_41 [1] : vector<16x64xf32> to vector<16xf32>
    %74 = vector.shape_cast %73 : vector<16xf32> to vector<16x1xf32>
    %cst_42 = arith.constant 6.400000e+01 : f32
    %75 = vector.broadcast %cst_42 : f32 to vector<16x1xf32>
    %76 = arith.divf %74, %75 : vector<16x1xf32>
    %77 = vector.broadcast %76 : vector<16x1xf32> to vector<16x64xf32>
    %78 = arith.subf %68, %77 : vector<16x64xf32>
    %79 = arith.mulf %78, %78 : vector<16x64xf32>
    %cst_43 = arith.constant dense<0.000000e+00> : vector<16xf32>
    %80 = vector.multi_reduction <add>, %79, %cst_43 [1] : vector<16x64xf32> to vector<16xf32>
    %81 = vector.shape_cast %80 : vector<16xf32> to vector<16x1xf32>
    %cst_44 = arith.constant 6.400000e+01 : f32
    %82 = vector.broadcast %cst_44 : f32 to vector<16x1xf32>
    %83 = arith.divf %81, %82 : vector<16x1xf32>
    %84 = vector.broadcast %76 : vector<16x1xf32> to vector<16x64xf32>
    %85 = arith.subf %68, %84 : vector<16x64xf32>
    %cst_45 = arith.constant 9.99999974E-6 : f32
    %86 = vector.broadcast %cst_45 : f32 to vector<16x1xf32>
    %87 = arith.addf %83, %86 : vector<16x1xf32>
    %88 = math.rsqrt %87 : vector<16x1xf32>
    %89 = vector.broadcast %88 : vector<16x1xf32> to vector<16x64xf32>
    %90 = arith.mulf %85, %89 : vector<16x64xf32>
    %91 = vector.broadcast %70 : vector<1x64xf32> to vector<16x64xf32>
    %92 = arith.mulf %90, %91 : vector<16x64xf32>
    %93 = vector.broadcast %72 : vector<1x64xf32> to vector<16x64xf32>
    %94 = arith.addf %92, %93 : vector<16x64xf32>
    %c0_46 = arith.constant 0 : index
    %c0_47 = arith.constant 0 : index
    %c0_48 = arith.constant 0 : index
    %95 = vector.load %arg13[%c0_46, %c0_47, %c0_48] : memref<2x64x128xf32, #tpu.memory_space<vmem>>, vector<1x64x128xf32>
    %96 = vector.shape_cast %95 : vector<1x64x128xf32> to vector<64x128xf32>
    %cst_49 = arith.constant dense<0.000000e+00> : vector<16x128xf32>
    %97 = tpu.matmul %94, %96, %cst_49 {dimension_numbers = #tpu.dot_dimension_numbers<[1], [0], [0], [1], [0, 0, 1, 1], [], []>} : vector<16x64xf32>, vector<64x128xf32>, vector<16x128xf32> -> vector<16x128xf32>
    %c0_50 = arith.constant 0 : index
    %c0_51 = arith.constant 0 : index
    %c0_52 = arith.constant 0 : index
    %98 = vector.load %arg14[%c0_50, %c0_51, %c0_52] : memref<2x1x128xf32, #tpu.memory_space<vmem>>, vector<1x1x128xf32>
    %99 = vector.shape_cast %98 : vector<1x1x128xf32> to vector<1x128xf32>
    %100 = vector.broadcast %99 : vector<1x128xf32> to vector<16x128xf32>
    %101 = arith.addf %97, %100 : vector<16x128xf32>
    %c0_53 = arith.constant 0 : index
    %c0_54 = arith.constant 0 : index
    %c0_55 = arith.constant 0 : index
    %102 = vector.load %arg15[%c0_53, %c0_54, %c0_55] : memref<2x64x256xf32, #tpu.memory_space<vmem>>, vector<1x64x256xf32>
    %103 = vector.shape_cast %102 : vector<1x64x256xf32> to vector<64x256xf32>
    %cst_56 = arith.constant dense<0.000000e+00> : vector<16x256xf32>
    %104 = tpu.matmul %94, %103, %cst_56 {dimension_numbers = #tpu.dot_dimension_numbers<[1], [0], [0], [1], [0, 0, 1, 1], [], []>} : vector<16x64xf32>, vector<64x256xf32>, vector<16x256xf32> -> vector<16x256xf32>
    %cst_57 = arith.constant 0.000000e+00 : f32
    %105 = vector.broadcast %cst_57 : f32 to vector<16x64xf32>
    %106 = vector.extract_strided_slice %101 {offsets = [0, 0], sizes = [16, 16], strides = [1, 1]} : vector<16x128xf32> to vector<16x16xf32>
    %107 = vector.extract_strided_slice %101 {offsets = [0, 64], sizes = [16, 16], strides = [1, 1]} : vector<16x128xf32> to vector<16x16xf32>
    %cst_58 = arith.constant dense<0.000000e+00> : vector<16x16xf32>
    %108 = tpu.matmul %106, %107, %cst_58 {dimension_numbers = #tpu.dot_dimension_numbers<[1], [1], [0], [0], [0, 0, 1, 0], [], []>} : vector<16x16xf32>, vector<16x16xf32>, vector<16x16xf32> -> vector<16x16xf32>
    %cst_59 = arith.constant 2.500000e-01 : f32
    %109 = vector.broadcast %cst_59 : f32 to vector<16x16xf32>
    %110 = arith.mulf %108, %109 : vector<16x16xf32>
    %111 = vector.broadcast %8 : vector<1x16xf32> to vector<16x16xf32>
    %112 = arith.addf %110, %111 : vector<16x16xf32>
    %cst_60 = arith.constant dense<0xFF800000> : vector<16xf32>
    %113 = vector.multi_reduction <maximumf>, %112, %cst_60 [1] : vector<16x16xf32> to vector<16xf32>
    %114 = vector.shape_cast %113 : vector<16xf32> to vector<16x1xf32>
    %115 = vector.broadcast %114 : vector<16x1xf32> to vector<16x16xf32>
    %116 = arith.subf %112, %115 : vector<16x16xf32>
    %117 = math.exp %116 : vector<16x16xf32>
    %cst_61 = arith.constant dense<0.000000e+00> : vector<16xf32>
    %118 = vector.multi_reduction <add>, %117, %cst_61 [1] : vector<16x16xf32> to vector<16xf32>
    %119 = vector.shape_cast %118 : vector<16xf32> to vector<16x1xf32>
    %120 = vector.broadcast %119 : vector<16x1xf32> to vector<16x16xf32>
    %121 = arith.divf %117, %120 : vector<16x16xf32>
    %122 = vector.extract_strided_slice %104 {offsets = [0, 0], sizes = [16, 64], strides = [1, 1]} : vector<16x256xf32> to vector<16x64xf32>
    %cst_62 = arith.constant dense<0.000000e+00> : vector<16x64xf32>
    %123 = tpu.matmul %121, %122, %cst_62 {dimension_numbers = #tpu.dot_dimension_numbers<[1], [0], [0], [1], [0, 0, 1, 1], [], []>} : vector<16x16xf32>, vector<16x64xf32>, vector<16x64xf32> -> vector<16x64xf32>
    %124 = arith.addf %105, %123 : vector<16x64xf32>
    %125 = vector.extract_strided_slice %101 {offsets = [0, 16], sizes = [16, 16], strides = [1, 1]} : vector<16x128xf32> to vector<16x16xf32>
    %126 = vector.extract_strided_slice %101 {offsets = [0, 80], sizes = [16, 16], strides = [1, 1]} : vector<16x128xf32> to vector<16x16xf32>
    %cst_63 = arith.constant dense<0.000000e+00> : vector<16x16xf32>
    %127 = tpu.matmul %125, %126, %cst_63 {dimension_numbers = #tpu.dot_dimension_numbers<[1], [1], [0], [0], [0, 0, 1, 0], [], []>} : vector<16x16xf32>, vector<16x16xf32>, vector<16x16xf32> -> vector<16x16xf32>
    %cst_64 = arith.constant 2.500000e-01 : f32
    %128 = vector.broadcast %cst_64 : f32 to vector<16x16xf32>
    %129 = arith.mulf %127, %128 : vector<16x16xf32>
    %130 = vector.broadcast %8 : vector<1x16xf32> to vector<16x16xf32>
    %131 = arith.addf %129, %130 : vector<16x16xf32>
    %cst_65 = arith.constant dense<0xFF800000> : vector<16xf32>
    %132 = vector.multi_reduction <maximumf>, %131, %cst_65 [1] : vector<16x16xf32> to vector<16xf32>
    %133 = vector.shape_cast %132 : vector<16xf32> to vector<16x1xf32>
    %134 = vector.broadcast %133 : vector<16x1xf32> to vector<16x16xf32>
    %135 = arith.subf %131, %134 : vector<16x16xf32>
    %136 = math.exp %135 : vector<16x16xf32>
    %cst_66 = arith.constant dense<0.000000e+00> : vector<16xf32>
    %137 = vector.multi_reduction <add>, %136, %cst_66 [1] : vector<16x16xf32> to vector<16xf32>
    %138 = vector.shape_cast %137 : vector<16xf32> to vector<16x1xf32>
    %139 = vector.broadcast %138 : vector<16x1xf32> to vector<16x16xf32>
    %140 = arith.divf %136, %139 : vector<16x16xf32>
    %141 = vector.extract_strided_slice %104 {offsets = [0, 64], sizes = [16, 64], strides = [1, 1]} : vector<16x256xf32> to vector<16x64xf32>
    %cst_67 = arith.constant dense<0.000000e+00> : vector<16x64xf32>
    %142 = tpu.matmul %140, %141, %cst_67 {dimension_numbers = #tpu.dot_dimension_numbers<[1], [0], [0], [1], [0, 0, 1, 1], [], []>} : vector<16x16xf32>, vector<16x64xf32>, vector<16x64xf32> -> vector<16x64xf32>
    %143 = arith.addf %124, %142 : vector<16x64xf32>
    %144 = vector.extract_strided_slice %101 {offsets = [0, 32], sizes = [16, 16], strides = [1, 1]} : vector<16x128xf32> to vector<16x16xf32>
    %145 = vector.extract_strided_slice %101 {offsets = [0, 96], sizes = [16, 16], strides = [1, 1]} : vector<16x128xf32> to vector<16x16xf32>
    %cst_68 = arith.constant dense<0.000000e+00> : vector<16x16xf32>
    %146 = tpu.matmul %144, %145, %cst_68 {dimension_numbers = #tpu.dot_dimension_numbers<[1], [1], [0], [0], [0, 0, 1, 0], [], []>} : vector<16x16xf32>, vector<16x16xf32>, vector<16x16xf32> -> vector<16x16xf32>
    %cst_69 = arith.constant 2.500000e-01 : f32
    %147 = vector.broadcast %cst_69 : f32 to vector<16x16xf32>
    %148 = arith.mulf %146, %147 : vector<16x16xf32>
    %149 = vector.broadcast %8 : vector<1x16xf32> to vector<16x16xf32>
    %150 = arith.addf %148, %149 : vector<16x16xf32>
    %cst_70 = arith.constant dense<0xFF800000> : vector<16xf32>
    %151 = vector.multi_reduction <maximumf>, %150, %cst_70 [1] : vector<16x16xf32> to vector<16xf32>
    %152 = vector.shape_cast %151 : vector<16xf32> to vector<16x1xf32>
    %153 = vector.broadcast %152 : vector<16x1xf32> to vector<16x16xf32>
    %154 = arith.subf %150, %153 : vector<16x16xf32>
    %155 = math.exp %154 : vector<16x16xf32>
    %cst_71 = arith.constant dense<0.000000e+00> : vector<16xf32>
    %156 = vector.multi_reduction <add>, %155, %cst_71 [1] : vector<16x16xf32> to vector<16xf32>
    %157 = vector.shape_cast %156 : vector<16xf32> to vector<16x1xf32>
    %158 = vector.broadcast %157 : vector<16x1xf32> to vector<16x16xf32>
    %159 = arith.divf %155, %158 : vector<16x16xf32>
    %160 = vector.extract_strided_slice %104 {offsets = [0, 128], sizes = [16, 64], strides = [1, 1]} : vector<16x256xf32> to vector<16x64xf32>
    %cst_72 = arith.constant dense<0.000000e+00> : vector<16x64xf32>
    %161 = tpu.matmul %159, %160, %cst_72 {dimension_numbers = #tpu.dot_dimension_numbers<[1], [0], [0], [1], [0, 0, 1, 1], [], []>} : vector<16x16xf32>, vector<16x64xf32>, vector<16x64xf32> -> vector<16x64xf32>
    %162 = arith.addf %143, %161 : vector<16x64xf32>
    %163 = vector.extract_strided_slice %101 {offsets = [0, 48], sizes = [16, 16], strides = [1, 1]} : vector<16x128xf32> to vector<16x16xf32>
    %164 = vector.extract_strided_slice %101 {offsets = [0, 112], sizes = [16, 16], strides = [1, 1]} : vector<16x128xf32> to vector<16x16xf32>
    %cst_73 = arith.constant dense<0.000000e+00> : vector<16x16xf32>
    %165 = tpu.matmul %163, %164, %cst_73 {dimension_numbers = #tpu.dot_dimension_numbers<[1], [1], [0], [0], [0, 0, 1, 0], [], []>} : vector<16x16xf32>, vector<16x16xf32>, vector<16x16xf32> -> vector<16x16xf32>
    %cst_74 = arith.constant 2.500000e-01 : f32
    %166 = vector.broadcast %cst_74 : f32 to vector<16x16xf32>
    %167 = arith.mulf %165, %166 : vector<16x16xf32>
    %168 = vector.broadcast %8 : vector<1x16xf32> to vector<16x16xf32>
    %169 = arith.addf %167, %168 : vector<16x16xf32>
    %cst_75 = arith.constant dense<0xFF800000> : vector<16xf32>
    %170 = vector.multi_reduction <maximumf>, %169, %cst_75 [1] : vector<16x16xf32> to vector<16xf32>
    %171 = vector.shape_cast %170 : vector<16xf32> to vector<16x1xf32>
    %172 = vector.broadcast %171 : vector<16x1xf32> to vector<16x16xf32>
    %173 = arith.subf %169, %172 : vector<16x16xf32>
    %174 = math.exp %173 : vector<16x16xf32>
    %cst_76 = arith.constant dense<0.000000e+00> : vector<16xf32>
    %175 = vector.multi_reduction <add>, %174, %cst_76 [1] : vector<16x16xf32> to vector<16xf32>
    %176 = vector.shape_cast %175 : vector<16xf32> to vector<16x1xf32>
    %177 = vector.broadcast %176 : vector<16x1xf32> to vector<16x16xf32>
    %178 = arith.divf %174, %177 : vector<16x16xf32>
    %179 = vector.extract_strided_slice %104 {offsets = [0, 192], sizes = [16, 64], strides = [1, 1]} : vector<16x256xf32> to vector<16x64xf32>
    %cst_77 = arith.constant dense<0.000000e+00> : vector<16x64xf32>
    %180 = tpu.matmul %178, %179, %cst_77 {dimension_numbers = #tpu.dot_dimension_numbers<[1], [0], [0], [1], [0, 0, 1, 1], [], []>} : vector<16x16xf32>, vector<16x64xf32>, vector<16x64xf32> -> vector<16x64xf32>
    %181 = arith.addf %162, %180 : vector<16x64xf32>
    %182 = arith.addf %68, %181 : vector<16x64xf32>
    %c0_78 = arith.constant 0 : index
    %c0_79 = arith.constant 0 : index
    %c0_80 = arith.constant 0 : index
    %183 = vector.load %arg16[%c0_78, %c0_79, %c0_80] : memref<2x1x64xf32, #tpu.memory_space<vmem>>, vector<1x1x64xf32>
    %184 = vector.shape_cast %183 : vector<1x1x64xf32> to vector<1x64xf32>
    %185 = vector.broadcast %184 : vector<1x64xf32> to vector<16x64xf32>
    %186 = arith.addf %182, %185 : vector<16x64xf32>
    %c0_81 = arith.constant 0 : index
    %c0_82 = arith.constant 0 : index
    %c0_83 = arith.constant 0 : index
    %187 = vector.load %arg17[%c0_81, %c0_82, %c0_83] : memref<2x1x64xf32, #tpu.memory_space<vmem>>, vector<1x1x64xf32>
    %188 = vector.shape_cast %187 : vector<1x1x64xf32> to vector<1x64xf32>
    %c0_84 = arith.constant 0 : index
    %c0_85 = arith.constant 0 : index
    %c0_86 = arith.constant 0 : index
    %189 = vector.load %arg18[%c0_84, %c0_85, %c0_86] : memref<2x1x64xf32, #tpu.memory_space<vmem>>, vector<1x1x64xf32>
    %190 = vector.shape_cast %189 : vector<1x1x64xf32> to vector<1x64xf32>
    %cst_87 = arith.constant dense<0.000000e+00> : vector<16xf32>
    %191 = vector.multi_reduction <add>, %186, %cst_87 [1] : vector<16x64xf32> to vector<16xf32>
    %192 = vector.shape_cast %191 : vector<16xf32> to vector<16x1xf32>
    %cst_88 = arith.constant 6.400000e+01 : f32
    %193 = vector.broadcast %cst_88 : f32 to vector<16x1xf32>
    %194 = arith.divf %192, %193 : vector<16x1xf32>
    %195 = vector.broadcast %194 : vector<16x1xf32> to vector<16x64xf32>
    %196 = arith.subf %186, %195 : vector<16x64xf32>
    %197 = arith.mulf %196, %196 : vector<16x64xf32>
    %cst_89 = arith.constant dense<0.000000e+00> : vector<16xf32>
    %198 = vector.multi_reduction <add>, %197, %cst_89 [1] : vector<16x64xf32> to vector<16xf32>
    %199 = vector.shape_cast %198 : vector<16xf32> to vector<16x1xf32>
    %cst_90 = arith.constant 6.400000e+01 : f32
    %200 = vector.broadcast %cst_90 : f32 to vector<16x1xf32>
    %201 = arith.divf %199, %200 : vector<16x1xf32>
    %202 = vector.broadcast %194 : vector<16x1xf32> to vector<16x64xf32>
    %203 = arith.subf %186, %202 : vector<16x64xf32>
    %cst_91 = arith.constant 9.99999974E-6 : f32
    %204 = vector.broadcast %cst_91 : f32 to vector<16x1xf32>
    %205 = arith.addf %201, %204 : vector<16x1xf32>
    %206 = math.rsqrt %205 : vector<16x1xf32>
    %207 = vector.broadcast %206 : vector<16x1xf32> to vector<16x64xf32>
    %208 = arith.mulf %203, %207 : vector<16x64xf32>
    %209 = vector.broadcast %188 : vector<1x64xf32> to vector<16x64xf32>
    %210 = arith.mulf %208, %209 : vector<16x64xf32>
    %211 = vector.broadcast %190 : vector<1x64xf32> to vector<16x64xf32>
    %212 = arith.addf %210, %211 : vector<16x64xf32>
    %c0_92 = arith.constant 0 : index
    %c0_93 = arith.constant 0 : index
    %c0_94 = arith.constant 0 : index
    %213 = vector.load %arg19[%c0_92, %c0_93, %c0_94] : memref<2x64x64xf32, #tpu.memory_space<vmem>>, vector<1x64x64xf32>
    %214 = vector.shape_cast %213 : vector<1x64x64xf32> to vector<64x64xf32>
    %cst_95 = arith.constant dense<0.000000e+00> : vector<16x64xf32>
    %215 = tpu.matmul %212, %214, %cst_95 {dimension_numbers = #tpu.dot_dimension_numbers<[1], [0], [0], [1], [0, 0, 1, 1], [], []>} : vector<16x64xf32>, vector<64x64xf32>, vector<16x64xf32> -> vector<16x64xf32>
    %c0_96 = arith.constant 0 : index
    %c0_97 = arith.constant 0 : index
    %c0_98 = arith.constant 0 : index
    %216 = vector.load %arg20[%c0_96, %c0_97, %c0_98] : memref<2x1x64xf32, #tpu.memory_space<vmem>>, vector<1x1x64xf32>
    %217 = vector.shape_cast %216 : vector<1x1x64xf32> to vector<1x64xf32>
    %218 = vector.broadcast %217 : vector<1x64xf32> to vector<16x64xf32>
    %219 = arith.addf %215, %218 : vector<16x64xf32>
    %c0_99 = arith.constant 0 : index
    %c0_100 = arith.constant 0 : index
    %c0_101 = arith.constant 0 : index
    %220 = vector.load %arg21[%c0_99, %c0_100, %c0_101] : memref<2x64x64xf32, #tpu.memory_space<vmem>>, vector<1x64x64xf32>
    %221 = vector.shape_cast %220 : vector<1x64x64xf32> to vector<64x64xf32>
    %cst_102 = arith.constant dense<0.000000e+00> : vector<16x64xf32>
    %222 = tpu.matmul %212, %221, %cst_102 {dimension_numbers = #tpu.dot_dimension_numbers<[1], [0], [0], [1], [0, 0, 1, 1], [], []>} : vector<16x64xf32>, vector<64x64xf32>, vector<16x64xf32> -> vector<16x64xf32>
    %c0_103 = arith.constant 0 : index
    %c0_104 = arith.constant 0 : index
    %c0_105 = arith.constant 0 : index
    %223 = vector.load %arg22[%c0_103, %c0_104, %c0_105] : memref<2x1x64xf32, #tpu.memory_space<vmem>>, vector<1x1x64xf32>
    %224 = vector.shape_cast %223 : vector<1x1x64xf32> to vector<1x64xf32>
    %225 = vector.broadcast %224 : vector<1x64xf32> to vector<16x64xf32>
    %226 = arith.addf %222, %225 : vector<16x64xf32>
    %227 = arith.negf %226 : vector<16x64xf32>
    %228 = math.exp %227 : vector<16x64xf32>
    %cst_106 = arith.constant 1.000000e+00 : f32
    %229 = vector.broadcast %cst_106 : f32 to vector<16x64xf32>
    %230 = arith.addf %229, %228 : vector<16x64xf32>
    %231 = arith.divf %229, %230 : vector<16x64xf32>
    %232 = arith.mulf %219, %231 : vector<16x64xf32>
    %233 = vector.broadcast %12 : vector<16x1xf32> to vector<16x64xf32>
    %234 = arith.mulf %232, %233 : vector<16x64xf32>
    %c0_107 = arith.constant 0 : index
    %c0_108 = arith.constant 0 : index
    %c0_109 = arith.constant 0 : index
    %235 = vector.load %arg23[%c0_107, %c0_108, %c0_109] : memref<2x7x64xf32, #tpu.memory_space<vmem>>, vector<1x7x64xf32>
    %236 = vector.shape_cast %235 : vector<1x7x64xf32> to vector<7x64xf32>
    %cst_110 = arith.constant 0.000000e+00 : f32
    %237 = vector.broadcast %cst_110 : f32 to vector<16x64xf32>
    %c3_i32 = arith.constant 3 : i32
    %238 = tpu.dynamic_rotate %234 by %c3_i32 dim 0 : vector<16x64xf32>, i32 -> vector<16x64xf32>
    %c-3_i32 = arith.constant -3 : i32
    %239 = vector.broadcast %c-3_i32 : i32 to vector<16x1xi32>
    %240 = arith.addi %2, %239 : vector<16x1xi32>
    %c0_i32 = arith.constant 0 : i32
    %241 = vector.broadcast %c0_i32 : i32 to vector<16x1xi32>
    %242 = arith.cmpi sge, %240, %241 : vector<16x1xi32>
    %c-3_i32_111 = arith.constant -3 : i32
    %243 = vector.broadcast %c-3_i32_111 : i32 to vector<16x1xi32>
    %244 = arith.addi %2, %243 : vector<16x1xi32>
    %c16_i32 = arith.constant 16 : i32
    %245 = vector.broadcast %c16_i32 : i32 to vector<16x1xi32>
    %246 = arith.cmpi slt, %244, %245 : vector<16x1xi32>
    %247 = arith.andi %242, %246 : vector<16x1xi1>
    %248 = arith.extui %247 : vector<16x1xi1> to vector<16x1xi32>
    %249 = arith.sitofp %248 : vector<16x1xi32> to vector<16x1xf32>
    %250 = vector.broadcast %249 : vector<16x1xf32> to vector<16x64xf32>
    %251 = arith.mulf %238, %250 : vector<16x64xf32>
    %252 = vector.extract_strided_slice %236 {offsets = [0, 0], sizes = [1, 64], strides = [1, 1]} : vector<7x64xf32> to vector<1x64xf32>
    %253 = vector.broadcast %252 : vector<1x64xf32> to vector<16x64xf32>
    %254 = arith.mulf %251, %253 : vector<16x64xf32>
    %255 = arith.addf %237, %254 : vector<16x64xf32>
    %c2_i32 = arith.constant 2 : i32
    %256 = tpu.dynamic_rotate %234 by %c2_i32 dim 0 : vector<16x64xf32>, i32 -> vector<16x64xf32>
    %c-2_i32 = arith.constant -2 : i32
    %257 = vector.broadcast %c-2_i32 : i32 to vector<16x1xi32>
    %258 = arith.addi %2, %257 : vector<16x1xi32>
    %c0_i32_112 = arith.constant 0 : i32
    %259 = vector.broadcast %c0_i32_112 : i32 to vector<16x1xi32>
    %260 = arith.cmpi sge, %258, %259 : vector<16x1xi32>
    %c-2_i32_113 = arith.constant -2 : i32
    %261 = vector.broadcast %c-2_i32_113 : i32 to vector<16x1xi32>
    %262 = arith.addi %2, %261 : vector<16x1xi32>
    %c16_i32_114 = arith.constant 16 : i32
    %263 = vector.broadcast %c16_i32_114 : i32 to vector<16x1xi32>
    %264 = arith.cmpi slt, %262, %263 : vector<16x1xi32>
    %265 = arith.andi %260, %264 : vector<16x1xi1>
    %266 = arith.extui %265 : vector<16x1xi1> to vector<16x1xi32>
    %267 = arith.sitofp %266 : vector<16x1xi32> to vector<16x1xf32>
    %268 = vector.broadcast %267 : vector<16x1xf32> to vector<16x64xf32>
    %269 = arith.mulf %256, %268 : vector<16x64xf32>
    %270 = vector.extract_strided_slice %236 {offsets = [1, 0], sizes = [1, 64], strides = [1, 1]} : vector<7x64xf32> to vector<1x64xf32>
    %271 = vector.broadcast %270 : vector<1x64xf32> to vector<16x64xf32>
    %272 = arith.mulf %269, %271 : vector<16x64xf32>
    %273 = arith.addf %255, %272 : vector<16x64xf32>
    %c1_i32 = arith.constant 1 : i32
    %274 = tpu.dynamic_rotate %234 by %c1_i32 dim 0 : vector<16x64xf32>, i32 -> vector<16x64xf32>
    %c-1_i32 = arith.constant -1 : i32
    %275 = vector.broadcast %c-1_i32 : i32 to vector<16x1xi32>
    %276 = arith.addi %2, %275 : vector<16x1xi32>
    %c0_i32_115 = arith.constant 0 : i32
    %277 = vector.broadcast %c0_i32_115 : i32 to vector<16x1xi32>
    %278 = arith.cmpi sge, %276, %277 : vector<16x1xi32>
    %c-1_i32_116 = arith.constant -1 : i32
    %279 = vector.broadcast %c-1_i32_116 : i32 to vector<16x1xi32>
    %280 = arith.addi %2, %279 : vector<16x1xi32>
    %c16_i32_117 = arith.constant 16 : i32
    %281 = vector.broadcast %c16_i32_117 : i32 to vector<16x1xi32>
    %282 = arith.cmpi slt, %280, %281 : vector<16x1xi32>
    %283 = arith.andi %278, %282 : vector<16x1xi1>
    %284 = arith.extui %283 : vector<16x1xi1> to vector<16x1xi32>
    %285 = arith.sitofp %284 : vector<16x1xi32> to vector<16x1xf32>
    %286 = vector.broadcast %285 : vector<16x1xf32> to vector<16x64xf32>
    %287 = arith.mulf %274, %286 : vector<16x64xf32>
    %288 = vector.extract_strided_slice %236 {offsets = [2, 0], sizes = [1, 64], strides = [1, 1]} : vector<7x64xf32> to vector<1x64xf32>
    %289 = vector.broadcast %288 : vector<1x64xf32> to vector<16x64xf32>
    %290 = arith.mulf %287, %289 : vector<16x64xf32>
    %291 = arith.addf %273, %290 : vector<16x64xf32>
    %292 = vector.extract_strided_slice %236 {offsets = [3, 0], sizes = [1, 64], strides = [1, 1]} : vector<7x64xf32> to vector<1x64xf32>
    %293 = vector.broadcast %292 : vector<1x64xf32> to vector<16x64xf32>
    %294 = arith.mulf %234, %293 : vector<16x64xf32>
    %295 = arith.addf %291, %294 : vector<16x64xf32>
    %c15_i32 = arith.constant 15 : i32
    %296 = tpu.dynamic_rotate %234 by %c15_i32 dim 0 : vector<16x64xf32>, i32 -> vector<16x64xf32>
    %c1_i32_118 = arith.constant 1 : i32
    %297 = vector.broadcast %c1_i32_118 : i32 to vector<16x1xi32>
    %298 = arith.addi %2, %297 : vector<16x1xi32>
    %c0_i32_119 = arith.constant 0 : i32
    %299 = vector.broadcast %c0_i32_119 : i32 to vector<16x1xi32>
    %300 = arith.cmpi sge, %298, %299 : vector<16x1xi32>
    %c1_i32_120 = arith.constant 1 : i32
    %301 = vector.broadcast %c1_i32_120 : i32 to vector<16x1xi32>
    %302 = arith.addi %2, %301 : vector<16x1xi32>
    %c16_i32_121 = arith.constant 16 : i32
    %303 = vector.broadcast %c16_i32_121 : i32 to vector<16x1xi32>
    %304 = arith.cmpi slt, %302, %303 : vector<16x1xi32>
    %305 = arith.andi %300, %304 : vector<16x1xi1>
    %306 = arith.extui %305 : vector<16x1xi1> to vector<16x1xi32>
    %307 = arith.sitofp %306 : vector<16x1xi32> to vector<16x1xf32>
    %308 = vector.broadcast %307 : vector<16x1xf32> to vector<16x64xf32>
    %309 = arith.mulf %296, %308 : vector<16x64xf32>
    %310 = vector.extract_strided_slice %236 {offsets = [4, 0], sizes = [1, 64], strides = [1, 1]} : vector<7x64xf32> to vector<1x64xf32>
    %311 = vector.broadcast %310 : vector<1x64xf32> to vector<16x64xf32>
    %312 = arith.mulf %309, %311 : vector<16x64xf32>
    %313 = arith.addf %295, %312 : vector<16x64xf32>
    %c14_i32 = arith.constant 14 : i32
    %314 = tpu.dynamic_rotate %234 by %c14_i32 dim 0 : vector<16x64xf32>, i32 -> vector<16x64xf32>
    %c2_i32_122 = arith.constant 2 : i32
    %315 = vector.broadcast %c2_i32_122 : i32 to vector<16x1xi32>
    %316 = arith.addi %2, %315 : vector<16x1xi32>
    %c0_i32_123 = arith.constant 0 : i32
    %317 = vector.broadcast %c0_i32_123 : i32 to vector<16x1xi32>
    %318 = arith.cmpi sge, %316, %317 : vector<16x1xi32>
    %c2_i32_124 = arith.constant 2 : i32
    %319 = vector.broadcast %c2_i32_124 : i32 to vector<16x1xi32>
    %320 = arith.addi %2, %319 : vector<16x1xi32>
    %c16_i32_125 = arith.constant 16 : i32
    %321 = vector.broadcast %c16_i32_125 : i32 to vector<16x1xi32>
    %322 = arith.cmpi slt, %320, %321 : vector<16x1xi32>
    %323 = arith.andi %318, %322 : vector<16x1xi1>
    %324 = arith.extui %323 : vector<16x1xi1> to vector<16x1xi32>
    %325 = arith.sitofp %324 : vector<16x1xi32> to vector<16x1xf32>
    %326 = vector.broadcast %325 : vector<16x1xf32> to vector<16x64xf32>
    %327 = arith.mulf %314, %326 : vector<16x64xf32>
    %328 = vector.extract_strided_slice %236 {offsets = [5, 0], sizes = [1, 64], strides = [1, 1]} : vector<7x64xf32> to vector<1x64xf32>
    %329 = vector.broadcast %328 : vector<1x64xf32> to vector<16x64xf32>
    %330 = arith.mulf %327, %329 : vector<16x64xf32>
    %331 = arith.addf %313, %330 : vector<16x64xf32>
    %c13_i32 = arith.constant 13 : i32
    %332 = tpu.dynamic_rotate %234 by %c13_i32 dim 0 : vector<16x64xf32>, i32 -> vector<16x64xf32>
    %c3_i32_126 = arith.constant 3 : i32
    %333 = vector.broadcast %c3_i32_126 : i32 to vector<16x1xi32>
    %334 = arith.addi %2, %333 : vector<16x1xi32>
    %c0_i32_127 = arith.constant 0 : i32
    %335 = vector.broadcast %c0_i32_127 : i32 to vector<16x1xi32>
    %336 = arith.cmpi sge, %334, %335 : vector<16x1xi32>
    %c3_i32_128 = arith.constant 3 : i32
    %337 = vector.broadcast %c3_i32_128 : i32 to vector<16x1xi32>
    %338 = arith.addi %2, %337 : vector<16x1xi32>
    %c16_i32_129 = arith.constant 16 : i32
    %339 = vector.broadcast %c16_i32_129 : i32 to vector<16x1xi32>
    %340 = arith.cmpi slt, %338, %339 : vector<16x1xi32>
    %341 = arith.andi %336, %340 : vector<16x1xi1>
    %342 = arith.extui %341 : vector<16x1xi1> to vector<16x1xi32>
    %343 = arith.sitofp %342 : vector<16x1xi32> to vector<16x1xf32>
    %344 = vector.broadcast %343 : vector<16x1xf32> to vector<16x64xf32>
    %345 = arith.mulf %332, %344 : vector<16x64xf32>
    %346 = vector.extract_strided_slice %236 {offsets = [6, 0], sizes = [1, 64], strides = [1, 1]} : vector<7x64xf32> to vector<1x64xf32>
    %347 = vector.broadcast %346 : vector<1x64xf32> to vector<16x64xf32>
    %348 = arith.mulf %345, %347 : vector<16x64xf32>
    %349 = arith.addf %331, %348 : vector<16x64xf32>
    %c0_130 = arith.constant 0 : index
    %c0_131 = arith.constant 0 : index
    %c0_132 = arith.constant 0 : index
    %350 = vector.load %arg24[%c0_130, %c0_131, %c0_132] : memref<2x1x64xf32, #tpu.memory_space<vmem>>, vector<1x1x64xf32>
    %351 = vector.shape_cast %350 : vector<1x1x64xf32> to vector<1x64xf32>
    %352 = vector.broadcast %351 : vector<1x64xf32> to vector<16x64xf32>
    %353 = arith.addf %349, %352 : vector<16x64xf32>
    %c0_133 = arith.constant 0 : index
    %c0_134 = arith.constant 0 : index
    %c0_135 = arith.constant 0 : index
    %354 = vector.load %arg25[%c0_133, %c0_134, %c0_135] : memref<2x1x64xf32, #tpu.memory_space<vmem>>, vector<1x1x64xf32>
    %355 = vector.shape_cast %354 : vector<1x1x64xf32> to vector<1x64xf32>
    %c0_136 = arith.constant 0 : index
    %c0_137 = arith.constant 0 : index
    %c0_138 = arith.constant 0 : index
    %356 = vector.load %arg26[%c0_136, %c0_137, %c0_138] : memref<2x1x64xf32, #tpu.memory_space<vmem>>, vector<1x1x64xf32>
    %357 = vector.shape_cast %356 : vector<1x1x64xf32> to vector<1x64xf32>
    %cst_139 = arith.constant dense<0.000000e+00> : vector<16xf32>
    %358 = vector.multi_reduction <add>, %353, %cst_139 [1] : vector<16x64xf32> to vector<16xf32>
    %359 = vector.shape_cast %358 : vector<16xf32> to vector<16x1xf32>
    %cst_140 = arith.constant 6.400000e+01 : f32
    %360 = vector.broadcast %cst_140 : f32 to vector<16x1xf32>
    %361 = arith.divf %359, %360 : vector<16x1xf32>
    %362 = vector.broadcast %361 : vector<16x1xf32> to vector<16x64xf32>
    %363 = arith.subf %353, %362 : vector<16x64xf32>
    %364 = arith.mulf %363, %363 : vector<16x64xf32>
    %cst_141 = arith.constant dense<0.000000e+00> : vector<16xf32>
    %365 = vector.multi_reduction <add>, %364, %cst_141 [1] : vector<16x64xf32> to vector<16xf32>
    %366 = vector.shape_cast %365 : vector<16xf32> to vector<16x1xf32>
    %cst_142 = arith.constant 6.400000e+01 : f32
    %367 = vector.broadcast %cst_142 : f32 to vector<16x1xf32>
    %368 = arith.divf %366, %367 : vector<16x1xf32>
    %369 = vector.broadcast %361 : vector<16x1xf32> to vector<16x64xf32>
    %370 = arith.subf %353, %369 : vector<16x64xf32>
    %cst_143 = arith.constant 9.99999974E-6 : f32
    %371 = vector.broadcast %cst_143 : f32 to vector<16x1xf32>
    %372 = arith.addf %368, %371 : vector<16x1xf32>
    %373 = math.rsqrt %372 : vector<16x1xf32>
    %374 = vector.broadcast %373 : vector<16x1xf32> to vector<16x64xf32>
    %375 = arith.mulf %370, %374 : vector<16x64xf32>
    %376 = vector.broadcast %355 : vector<1x64xf32> to vector<16x64xf32>
    %377 = arith.mulf %375, %376 : vector<16x64xf32>
    %378 = vector.broadcast %357 : vector<1x64xf32> to vector<16x64xf32>
    %379 = arith.addf %377, %378 : vector<16x64xf32>
    %380 = arith.negf %379 : vector<16x64xf32>
    %381 = math.exp %380 : vector<16x64xf32>
    %cst_144 = arith.constant 1.000000e+00 : f32
    %382 = vector.broadcast %cst_144 : f32 to vector<16x64xf32>
    %383 = arith.addf %382, %381 : vector<16x64xf32>
    %384 = arith.divf %382, %383 : vector<16x64xf32>
    %385 = arith.mulf %379, %384 : vector<16x64xf32>
    %c0_145 = arith.constant 0 : index
    %c0_146 = arith.constant 0 : index
    %c0_147 = arith.constant 0 : index
    %386 = vector.load %arg27[%c0_145, %c0_146, %c0_147] : memref<2x64x64xf32, #tpu.memory_space<vmem>>, vector<1x64x64xf32>
    %387 = vector.shape_cast %386 : vector<1x64x64xf32> to vector<64x64xf32>
    %cst_148 = arith.constant dense<0.000000e+00> : vector<16x64xf32>
    %388 = tpu.matmul %385, %387, %cst_148 {dimension_numbers = #tpu.dot_dimension_numbers<[1], [0], [0], [1], [0, 0, 1, 1], [], []>} : vector<16x64xf32>, vector<64x64xf32>, vector<16x64xf32> -> vector<16x64xf32>
    %c0_149 = arith.constant 0 : index
    %c0_150 = arith.constant 0 : index
    %c0_151 = arith.constant 0 : index
    %389 = vector.load %arg28[%c0_149, %c0_150, %c0_151] : memref<2x1x64xf32, #tpu.memory_space<vmem>>, vector<1x1x64xf32>
    %390 = vector.shape_cast %389 : vector<1x1x64xf32> to vector<1x64xf32>
    %391 = vector.broadcast %390 : vector<1x64xf32> to vector<16x64xf32>
    %392 = arith.addf %388, %391 : vector<16x64xf32>
    %393 = arith.addf %186, %392 : vector<16x64xf32>
    %c0_152 = arith.constant 0 : index
    %c0_153 = arith.constant 0 : index
    %c0_154 = arith.constant 0 : index
    %394 = vector.load %arg29[%c0_152, %c0_153, %c0_154] : memref<2x1x64xf32, #tpu.memory_space<vmem>>, vector<1x1x64xf32>
    %395 = vector.shape_cast %394 : vector<1x1x64xf32> to vector<1x64xf32>
    %c0_155 = arith.constant 0 : index
    %c0_156 = arith.constant 0 : index
    %c0_157 = arith.constant 0 : index
    %396 = vector.load %arg30[%c0_155, %c0_156, %c0_157] : memref<2x1x64xf32, #tpu.memory_space<vmem>>, vector<1x1x64xf32>
    %397 = vector.shape_cast %396 : vector<1x1x64xf32> to vector<1x64xf32>
    %cst_158 = arith.constant dense<0.000000e+00> : vector<16xf32>
    %398 = vector.multi_reduction <add>, %393, %cst_158 [1] : vector<16x64xf32> to vector<16xf32>
    %399 = vector.shape_cast %398 : vector<16xf32> to vector<16x1xf32>
    %cst_159 = arith.constant 6.400000e+01 : f32
    %400 = vector.broadcast %cst_159 : f32 to vector<16x1xf32>
    %401 = arith.divf %399, %400 : vector<16x1xf32>
    %402 = vector.broadcast %401 : vector<16x1xf32> to vector<16x64xf32>
    %403 = arith.subf %393, %402 : vector<16x64xf32>
    %404 = arith.mulf %403, %403 : vector<16x64xf32>
    %cst_160 = arith.constant dense<0.000000e+00> : vector<16xf32>
    %405 = vector.multi_reduction <add>, %404, %cst_160 [1] : vector<16x64xf32> to vector<16xf32>
    %406 = vector.shape_cast %405 : vector<16xf32> to vector<16x1xf32>
    %cst_161 = arith.constant 6.400000e+01 : f32
    %407 = vector.broadcast %cst_161 : f32 to vector<16x1xf32>
    %408 = arith.divf %406, %407 : vector<16x1xf32>
    %409 = vector.broadcast %401 : vector<16x1xf32> to vector<16x64xf32>
    %410 = arith.subf %393, %409 : vector<16x64xf32>
    %cst_162 = arith.constant 9.99999974E-6 : f32
    %411 = vector.broadcast %cst_162 : f32 to vector<16x1xf32>
    %412 = arith.addf %408, %411 : vector<16x1xf32>
    %413 = math.rsqrt %412 : vector<16x1xf32>
    %414 = vector.broadcast %413 : vector<16x1xf32> to vector<16x64xf32>
    %415 = arith.mulf %410, %414 : vector<16x64xf32>
    %416 = vector.broadcast %395 : vector<1x64xf32> to vector<16x64xf32>
    %417 = arith.mulf %415, %416 : vector<16x64xf32>
    %418 = vector.broadcast %397 : vector<1x64xf32> to vector<16x64xf32>
    %419 = arith.addf %417, %418 : vector<16x64xf32>
    %c0_163 = arith.constant 0 : index
    %c0_164 = arith.constant 0 : index
    %c0_165 = arith.constant 0 : index
    %420 = vector.load %arg31[%c0_163, %c0_164, %c0_165] : memref<2x64x128xf32, #tpu.memory_space<vmem>>, vector<1x64x128xf32>
    %421 = vector.shape_cast %420 : vector<1x64x128xf32> to vector<64x128xf32>
    %cst_166 = arith.constant dense<0.000000e+00> : vector<16x128xf32>
    %422 = tpu.matmul %419, %421, %cst_166 {dimension_numbers = #tpu.dot_dimension_numbers<[1], [0], [0], [1], [0, 0, 1, 1], [], []>} : vector<16x64xf32>, vector<64x128xf32>, vector<16x128xf32> -> vector<16x128xf32>
    %c0_167 = arith.constant 0 : index
    %c0_168 = arith.constant 0 : index
    %c0_169 = arith.constant 0 : index
    %423 = vector.load %arg32[%c0_167, %c0_168, %c0_169] : memref<2x1x128xf32, #tpu.memory_space<vmem>>, vector<1x1x128xf32>
    %424 = vector.shape_cast %423 : vector<1x1x128xf32> to vector<1x128xf32>
    %425 = vector.broadcast %424 : vector<1x128xf32> to vector<16x128xf32>
    %426 = arith.addf %422, %425 : vector<16x128xf32>
    %427 = arith.negf %426 : vector<16x128xf32>
    %428 = math.exp %427 : vector<16x128xf32>
    %cst_170 = arith.constant 1.000000e+00 : f32
    %429 = vector.broadcast %cst_170 : f32 to vector<16x128xf32>
    %430 = arith.addf %429, %428 : vector<16x128xf32>
    %431 = arith.divf %429, %430 : vector<16x128xf32>
    %432 = arith.mulf %426, %431 : vector<16x128xf32>
    %c0_171 = arith.constant 0 : index
    %c0_172 = arith.constant 0 : index
    %c0_173 = arith.constant 0 : index
    %433 = vector.load %arg33[%c0_171, %c0_172, %c0_173] : memref<2x128x64xf32, #tpu.memory_space<vmem>>, vector<1x128x64xf32>
    %434 = vector.shape_cast %433 : vector<1x128x64xf32> to vector<128x64xf32>
    %cst_174 = arith.constant dense<0.000000e+00> : vector<16x64xf32>
    %435 = tpu.matmul %432, %434, %cst_174 {dimension_numbers = #tpu.dot_dimension_numbers<[1], [0], [0], [1], [0, 0, 1, 1], [], []>} : vector<16x128xf32>, vector<128x64xf32>, vector<16x64xf32> -> vector<16x64xf32>
    %c0_175 = arith.constant 0 : index
    %c0_176 = arith.constant 0 : index
    %c0_177 = arith.constant 0 : index
    %436 = vector.load %arg34[%c0_175, %c0_176, %c0_177] : memref<2x1x64xf32, #tpu.memory_space<vmem>>, vector<1x1x64xf32>
    %437 = vector.shape_cast %436 : vector<1x1x64xf32> to vector<1x64xf32>
    %438 = vector.broadcast %437 : vector<1x64xf32> to vector<16x64xf32>
    %439 = arith.addf %435, %438 : vector<16x64xf32>
    %cst_178 = arith.constant 5.000000e-01 : f32
    %440 = vector.broadcast %cst_178 : f32 to vector<16x64xf32>
    %441 = arith.mulf %440, %439 : vector<16x64xf32>
    %442 = arith.addf %393, %441 : vector<16x64xf32>
    %c0_179 = arith.constant 0 : index
    %c0_180 = arith.constant 0 : index
    %c0_181 = arith.constant 0 : index
    %443 = vector.load %arg35[%c0_179, %c0_180, %c0_181] : memref<2x1x64xf32, #tpu.memory_space<vmem>>, vector<1x1x64xf32>
    %444 = vector.shape_cast %443 : vector<1x1x64xf32> to vector<1x64xf32>
    %c0_182 = arith.constant 0 : index
    %c0_183 = arith.constant 0 : index
    %c0_184 = arith.constant 0 : index
    %445 = vector.load %arg36[%c0_182, %c0_183, %c0_184] : memref<2x1x64xf32, #tpu.memory_space<vmem>>, vector<1x1x64xf32>
    %446 = vector.shape_cast %445 : vector<1x1x64xf32> to vector<1x64xf32>
    %cst_185 = arith.constant dense<0.000000e+00> : vector<16xf32>
    %447 = vector.multi_reduction <add>, %442, %cst_185 [1] : vector<16x64xf32> to vector<16xf32>
    %448 = vector.shape_cast %447 : vector<16xf32> to vector<16x1xf32>
    %cst_186 = arith.constant 6.400000e+01 : f32
    %449 = vector.broadcast %cst_186 : f32 to vector<16x1xf32>
    %450 = arith.divf %448, %449 : vector<16x1xf32>
    %451 = vector.broadcast %450 : vector<16x1xf32> to vector<16x64xf32>
    %452 = arith.subf %442, %451 : vector<16x64xf32>
    %453 = arith.mulf %452, %452 : vector<16x64xf32>
    %cst_187 = arith.constant dense<0.000000e+00> : vector<16xf32>
    %454 = vector.multi_reduction <add>, %453, %cst_187 [1] : vector<16x64xf32> to vector<16xf32>
    %455 = vector.shape_cast %454 : vector<16xf32> to vector<16x1xf32>
    %cst_188 = arith.constant 6.400000e+01 : f32
    %456 = vector.broadcast %cst_188 : f32 to vector<16x1xf32>
    %457 = arith.divf %455, %456 : vector<16x1xf32>
    %458 = vector.broadcast %450 : vector<16x1xf32> to vector<16x64xf32>
    %459 = arith.subf %442, %458 : vector<16x64xf32>
    %cst_189 = arith.constant 9.99999974E-6 : f32
    %460 = vector.broadcast %cst_189 : f32 to vector<16x1xf32>
    %461 = arith.addf %457, %460 : vector<16x1xf32>
    %462 = math.rsqrt %461 : vector<16x1xf32>
    %463 = vector.broadcast %462 : vector<16x1xf32> to vector<16x64xf32>
    %464 = arith.mulf %459, %463 : vector<16x64xf32>
    %465 = vector.broadcast %444 : vector<1x64xf32> to vector<16x64xf32>
    %466 = arith.mulf %464, %465 : vector<16x64xf32>
    %467 = vector.broadcast %446 : vector<1x64xf32> to vector<16x64xf32>
    %468 = arith.addf %466, %467 : vector<16x64xf32>
    %c1 = arith.constant 1 : index
    %c0_190 = arith.constant 0 : index
    %c0_191 = arith.constant 0 : index
    %469 = vector.load %arg5[%c1, %c0_190, %c0_191] : memref<2x1x64xf32, #tpu.memory_space<vmem>>, vector<1x1x64xf32>
    %470 = vector.shape_cast %469 : vector<1x1x64xf32> to vector<1x64xf32>
    %c1_192 = arith.constant 1 : index
    %c0_193 = arith.constant 0 : index
    %c0_194 = arith.constant 0 : index
    %471 = vector.load %arg6[%c1_192, %c0_193, %c0_194] : memref<2x1x64xf32, #tpu.memory_space<vmem>>, vector<1x1x64xf32>
    %472 = vector.shape_cast %471 : vector<1x1x64xf32> to vector<1x64xf32>
    %cst_195 = arith.constant dense<0.000000e+00> : vector<16xf32>
    %473 = vector.multi_reduction <add>, %468, %cst_195 [1] : vector<16x64xf32> to vector<16xf32>
    %474 = vector.shape_cast %473 : vector<16xf32> to vector<16x1xf32>
    %cst_196 = arith.constant 6.400000e+01 : f32
    %475 = vector.broadcast %cst_196 : f32 to vector<16x1xf32>
    %476 = arith.divf %474, %475 : vector<16x1xf32>
    %477 = vector.broadcast %476 : vector<16x1xf32> to vector<16x64xf32>
    %478 = arith.subf %468, %477 : vector<16x64xf32>
    %479 = arith.mulf %478, %478 : vector<16x64xf32>
    %cst_197 = arith.constant dense<0.000000e+00> : vector<16xf32>
    %480 = vector.multi_reduction <add>, %479, %cst_197 [1] : vector<16x64xf32> to vector<16xf32>
    %481 = vector.shape_cast %480 : vector<16xf32> to vector<16x1xf32>
    %cst_198 = arith.constant 6.400000e+01 : f32
    %482 = vector.broadcast %cst_198 : f32 to vector<16x1xf32>
    %483 = arith.divf %481, %482 : vector<16x1xf32>
    %484 = vector.broadcast %476 : vector<16x1xf32> to vector<16x64xf32>
    %485 = arith.subf %468, %484 : vector<16x64xf32>
    %cst_199 = arith.constant 9.99999974E-6 : f32
    %486 = vector.broadcast %cst_199 : f32 to vector<16x1xf32>
    %487 = arith.addf %483, %486 : vector<16x1xf32>
    %488 = math.rsqrt %487 : vector<16x1xf32>
    %489 = vector.broadcast %488 : vector<16x1xf32> to vector<16x64xf32>
    %490 = arith.mulf %485, %489 : vector<16x64xf32>
    %491 = vector.broadcast %470 : vector<1x64xf32> to vector<16x64xf32>
    %492 = arith.mulf %490, %491 : vector<16x64xf32>
    %493 = vector.broadcast %472 : vector<1x64xf32> to vector<16x64xf32>
    %494 = arith.addf %492, %493 : vector<16x64xf32>
    %c1_200 = arith.constant 1 : index
    %c0_201 = arith.constant 0 : index
    %c0_202 = arith.constant 0 : index
    %495 = vector.load %arg7[%c1_200, %c0_201, %c0_202] : memref<2x64x128xf32, #tpu.memory_space<vmem>>, vector<1x64x128xf32>
    %496 = vector.shape_cast %495 : vector<1x64x128xf32> to vector<64x128xf32>
    %cst_203 = arith.constant dense<0.000000e+00> : vector<16x128xf32>
    %497 = tpu.matmul %494, %496, %cst_203 {dimension_numbers = #tpu.dot_dimension_numbers<[1], [0], [0], [1], [0, 0, 1, 1], [], []>} : vector<16x64xf32>, vector<64x128xf32>, vector<16x128xf32> -> vector<16x128xf32>
    %c1_204 = arith.constant 1 : index
    %c0_205 = arith.constant 0 : index
    %c0_206 = arith.constant 0 : index
    %498 = vector.load %arg8[%c1_204, %c0_205, %c0_206] : memref<2x1x128xf32, #tpu.memory_space<vmem>>, vector<1x1x128xf32>
    %499 = vector.shape_cast %498 : vector<1x1x128xf32> to vector<1x128xf32>
    %500 = vector.broadcast %499 : vector<1x128xf32> to vector<16x128xf32>
    %501 = arith.addf %497, %500 : vector<16x128xf32>
    %502 = arith.negf %501 : vector<16x128xf32>
    %503 = math.exp %502 : vector<16x128xf32>
    %cst_207 = arith.constant 1.000000e+00 : f32
    %504 = vector.broadcast %cst_207 : f32 to vector<16x128xf32>
    %505 = arith.addf %504, %503 : vector<16x128xf32>
    %506 = arith.divf %504, %505 : vector<16x128xf32>
    %507 = arith.mulf %501, %506 : vector<16x128xf32>
    %c1_208 = arith.constant 1 : index
    %c0_209 = arith.constant 0 : index
    %c0_210 = arith.constant 0 : index
    %508 = vector.load %arg9[%c1_208, %c0_209, %c0_210] : memref<2x128x64xf32, #tpu.memory_space<vmem>>, vector<1x128x64xf32>
    %509 = vector.shape_cast %508 : vector<1x128x64xf32> to vector<128x64xf32>
    %cst_211 = arith.constant dense<0.000000e+00> : vector<16x64xf32>
    %510 = tpu.matmul %507, %509, %cst_211 {dimension_numbers = #tpu.dot_dimension_numbers<[1], [0], [0], [1], [0, 0, 1, 1], [], []>} : vector<16x128xf32>, vector<128x64xf32>, vector<16x64xf32> -> vector<16x64xf32>
    %c1_212 = arith.constant 1 : index
    %c0_213 = arith.constant 0 : index
    %c0_214 = arith.constant 0 : index
    %511 = vector.load %arg10[%c1_212, %c0_213, %c0_214] : memref<2x1x64xf32, #tpu.memory_space<vmem>>, vector<1x1x64xf32>
    %512 = vector.shape_cast %511 : vector<1x1x64xf32> to vector<1x64xf32>
    %513 = vector.broadcast %512 : vector<1x64xf32> to vector<16x64xf32>
    %514 = arith.addf %510, %513 : vector<16x64xf32>
    %cst_215 = arith.constant 5.000000e-01 : f32
    %515 = vector.broadcast %cst_215 : f32 to vector<16x64xf32>
    %516 = arith.mulf %515, %514 : vector<16x64xf32>
    %517 = arith.addf %468, %516 : vector<16x64xf32>
    %c1_216 = arith.constant 1 : index
    %c0_217 = arith.constant 0 : index
    %c0_218 = arith.constant 0 : index
    %518 = vector.load %arg11[%c1_216, %c0_217, %c0_218] : memref<2x1x64xf32, #tpu.memory_space<vmem>>, vector<1x1x64xf32>
    %519 = vector.shape_cast %518 : vector<1x1x64xf32> to vector<1x64xf32>
    %c1_219 = arith.constant 1 : index
    %c0_220 = arith.constant 0 : index
    %c0_221 = arith.constant 0 : index
    %520 = vector.load %arg12[%c1_219, %c0_220, %c0_221] : memref<2x1x64xf32, #tpu.memory_space<vmem>>, vector<1x1x64xf32>
    %521 = vector.shape_cast %520 : vector<1x1x64xf32> to vector<1x64xf32>
    %cst_222 = arith.constant dense<0.000000e+00> : vector<16xf32>
    %522 = vector.multi_reduction <add>, %517, %cst_222 [1] : vector<16x64xf32> to vector<16xf32>
    %523 = vector.shape_cast %522 : vector<16xf32> to vector<16x1xf32>
    %cst_223 = arith.constant 6.400000e+01 : f32
    %524 = vector.broadcast %cst_223 : f32 to vector<16x1xf32>
    %525 = arith.divf %523, %524 : vector<16x1xf32>
    %526 = vector.broadcast %525 : vector<16x1xf32> to vector<16x64xf32>
    %527 = arith.subf %517, %526 : vector<16x64xf32>
    %528 = arith.mulf %527, %527 : vector<16x64xf32>
    %cst_224 = arith.constant dense<0.000000e+00> : vector<16xf32>
    %529 = vector.multi_reduction <add>, %528, %cst_224 [1] : vector<16x64xf32> to vector<16xf32>
    %530 = vector.shape_cast %529 : vector<16xf32> to vector<16x1xf32>
    %cst_225 = arith.constant 6.400000e+01 : f32
    %531 = vector.broadcast %cst_225 : f32 to vector<16x1xf32>
    %532 = arith.divf %530, %531 : vector<16x1xf32>
    %533 = vector.broadcast %525 : vector<16x1xf32> to vector<16x64xf32>
    %534 = arith.subf %517, %533 : vector<16x64xf32>
    %cst_226 = arith.constant 9.99999974E-6 : f32
    %535 = vector.broadcast %cst_226 : f32 to vector<16x1xf32>
    %536 = arith.addf %532, %535 : vector<16x1xf32>
    %537 = math.rsqrt %536 : vector<16x1xf32>
    %538 = vector.broadcast %537 : vector<16x1xf32> to vector<16x64xf32>
    %539 = arith.mulf %534, %538 : vector<16x64xf32>
    %540 = vector.broadcast %519 : vector<1x64xf32> to vector<16x64xf32>
    %541 = arith.mulf %539, %540 : vector<16x64xf32>
    %542 = vector.broadcast %521 : vector<1x64xf32> to vector<16x64xf32>
    %543 = arith.addf %541, %542 : vector<16x64xf32>
    %c1_227 = arith.constant 1 : index
    %c0_228 = arith.constant 0 : index
    %c0_229 = arith.constant 0 : index
    %544 = vector.load %arg13[%c1_227, %c0_228, %c0_229] : memref<2x64x128xf32, #tpu.memory_space<vmem>>, vector<1x64x128xf32>
    %545 = vector.shape_cast %544 : vector<1x64x128xf32> to vector<64x128xf32>
    %cst_230 = arith.constant dense<0.000000e+00> : vector<16x128xf32>
    %546 = tpu.matmul %543, %545, %cst_230 {dimension_numbers = #tpu.dot_dimension_numbers<[1], [0], [0], [1], [0, 0, 1, 1], [], []>} : vector<16x64xf32>, vector<64x128xf32>, vector<16x128xf32> -> vector<16x128xf32>
    %c1_231 = arith.constant 1 : index
    %c0_232 = arith.constant 0 : index
    %c0_233 = arith.constant 0 : index
    %547 = vector.load %arg14[%c1_231, %c0_232, %c0_233] : memref<2x1x128xf32, #tpu.memory_space<vmem>>, vector<1x1x128xf32>
    %548 = vector.shape_cast %547 : vector<1x1x128xf32> to vector<1x128xf32>
    %549 = vector.broadcast %548 : vector<1x128xf32> to vector<16x128xf32>
    %550 = arith.addf %546, %549 : vector<16x128xf32>
    %c1_234 = arith.constant 1 : index
    %c0_235 = arith.constant 0 : index
    %c0_236 = arith.constant 0 : index
    %551 = vector.load %arg15[%c1_234, %c0_235, %c0_236] : memref<2x64x256xf32, #tpu.memory_space<vmem>>, vector<1x64x256xf32>
    %552 = vector.shape_cast %551 : vector<1x64x256xf32> to vector<64x256xf32>
    %cst_237 = arith.constant dense<0.000000e+00> : vector<16x256xf32>
    %553 = tpu.matmul %543, %552, %cst_237 {dimension_numbers = #tpu.dot_dimension_numbers<[1], [0], [0], [1], [0, 0, 1, 1], [], []>} : vector<16x64xf32>, vector<64x256xf32>, vector<16x256xf32> -> vector<16x256xf32>
    %cst_238 = arith.constant 0.000000e+00 : f32
    %554 = vector.broadcast %cst_238 : f32 to vector<16x64xf32>
    %555 = vector.extract_strided_slice %550 {offsets = [0, 0], sizes = [16, 16], strides = [1, 1]} : vector<16x128xf32> to vector<16x16xf32>
    %556 = vector.extract_strided_slice %550 {offsets = [0, 64], sizes = [16, 16], strides = [1, 1]} : vector<16x128xf32> to vector<16x16xf32>
    %cst_239 = arith.constant dense<0.000000e+00> : vector<16x16xf32>
    %557 = tpu.matmul %555, %556, %cst_239 {dimension_numbers = #tpu.dot_dimension_numbers<[1], [1], [0], [0], [0, 0, 1, 0], [], []>} : vector<16x16xf32>, vector<16x16xf32>, vector<16x16xf32> -> vector<16x16xf32>
    %cst_240 = arith.constant 2.500000e-01 : f32
    %558 = vector.broadcast %cst_240 : f32 to vector<16x16xf32>
    %559 = arith.mulf %557, %558 : vector<16x16xf32>
    %560 = vector.broadcast %8 : vector<1x16xf32> to vector<16x16xf32>
    %561 = arith.addf %559, %560 : vector<16x16xf32>
    %cst_241 = arith.constant dense<0xFF800000> : vector<16xf32>
    %562 = vector.multi_reduction <maximumf>, %561, %cst_241 [1] : vector<16x16xf32> to vector<16xf32>
    %563 = vector.shape_cast %562 : vector<16xf32> to vector<16x1xf32>
    %564 = vector.broadcast %563 : vector<16x1xf32> to vector<16x16xf32>
    %565 = arith.subf %561, %564 : vector<16x16xf32>
    %566 = math.exp %565 : vector<16x16xf32>
    %cst_242 = arith.constant dense<0.000000e+00> : vector<16xf32>
    %567 = vector.multi_reduction <add>, %566, %cst_242 [1] : vector<16x16xf32> to vector<16xf32>
    %568 = vector.shape_cast %567 : vector<16xf32> to vector<16x1xf32>
    %569 = vector.broadcast %568 : vector<16x1xf32> to vector<16x16xf32>
    %570 = arith.divf %566, %569 : vector<16x16xf32>
    %571 = vector.extract_strided_slice %553 {offsets = [0, 0], sizes = [16, 64], strides = [1, 1]} : vector<16x256xf32> to vector<16x64xf32>
    %cst_243 = arith.constant dense<0.000000e+00> : vector<16x64xf32>
    %572 = tpu.matmul %570, %571, %cst_243 {dimension_numbers = #tpu.dot_dimension_numbers<[1], [0], [0], [1], [0, 0, 1, 1], [], []>} : vector<16x16xf32>, vector<16x64xf32>, vector<16x64xf32> -> vector<16x64xf32>
    %573 = arith.addf %554, %572 : vector<16x64xf32>
    %574 = vector.extract_strided_slice %550 {offsets = [0, 16], sizes = [16, 16], strides = [1, 1]} : vector<16x128xf32> to vector<16x16xf32>
    %575 = vector.extract_strided_slice %550 {offsets = [0, 80], sizes = [16, 16], strides = [1, 1]} : vector<16x128xf32> to vector<16x16xf32>
    %cst_244 = arith.constant dense<0.000000e+00> : vector<16x16xf32>
    %576 = tpu.matmul %574, %575, %cst_244 {dimension_numbers = #tpu.dot_dimension_numbers<[1], [1], [0], [0], [0, 0, 1, 0], [], []>} : vector<16x16xf32>, vector<16x16xf32>, vector<16x16xf32> -> vector<16x16xf32>
    %cst_245 = arith.constant 2.500000e-01 : f32
    %577 = vector.broadcast %cst_245 : f32 to vector<16x16xf32>
    %578 = arith.mulf %576, %577 : vector<16x16xf32>
    %579 = vector.broadcast %8 : vector<1x16xf32> to vector<16x16xf32>
    %580 = arith.addf %578, %579 : vector<16x16xf32>
    %cst_246 = arith.constant dense<0xFF800000> : vector<16xf32>
    %581 = vector.multi_reduction <maximumf>, %580, %cst_246 [1] : vector<16x16xf32> to vector<16xf32>
    %582 = vector.shape_cast %581 : vector<16xf32> to vector<16x1xf32>
    %583 = vector.broadcast %582 : vector<16x1xf32> to vector<16x16xf32>
    %584 = arith.subf %580, %583 : vector<16x16xf32>
    %585 = math.exp %584 : vector<16x16xf32>
    %cst_247 = arith.constant dense<0.000000e+00> : vector<16xf32>
    %586 = vector.multi_reduction <add>, %585, %cst_247 [1] : vector<16x16xf32> to vector<16xf32>
    %587 = vector.shape_cast %586 : vector<16xf32> to vector<16x1xf32>
    %588 = vector.broadcast %587 : vector<16x1xf32> to vector<16x16xf32>
    %589 = arith.divf %585, %588 : vector<16x16xf32>
    %590 = vector.extract_strided_slice %553 {offsets = [0, 64], sizes = [16, 64], strides = [1, 1]} : vector<16x256xf32> to vector<16x64xf32>
    %cst_248 = arith.constant dense<0.000000e+00> : vector<16x64xf32>
    %591 = tpu.matmul %589, %590, %cst_248 {dimension_numbers = #tpu.dot_dimension_numbers<[1], [0], [0], [1], [0, 0, 1, 1], [], []>} : vector<16x16xf32>, vector<16x64xf32>, vector<16x64xf32> -> vector<16x64xf32>
    %592 = arith.addf %573, %591 : vector<16x64xf32>
    %593 = vector.extract_strided_slice %550 {offsets = [0, 32], sizes = [16, 16], strides = [1, 1]} : vector<16x128xf32> to vector<16x16xf32>
    %594 = vector.extract_strided_slice %550 {offsets = [0, 96], sizes = [16, 16], strides = [1, 1]} : vector<16x128xf32> to vector<16x16xf32>
    %cst_249 = arith.constant dense<0.000000e+00> : vector<16x16xf32>
    %595 = tpu.matmul %593, %594, %cst_249 {dimension_numbers = #tpu.dot_dimension_numbers<[1], [1], [0], [0], [0, 0, 1, 0], [], []>} : vector<16x16xf32>, vector<16x16xf32>, vector<16x16xf32> -> vector<16x16xf32>
    %cst_250 = arith.constant 2.500000e-01 : f32
    %596 = vector.broadcast %cst_250 : f32 to vector<16x16xf32>
    %597 = arith.mulf %595, %596 : vector<16x16xf32>
    %598 = vector.broadcast %8 : vector<1x16xf32> to vector<16x16xf32>
    %599 = arith.addf %597, %598 : vector<16x16xf32>
    %cst_251 = arith.constant dense<0xFF800000> : vector<16xf32>
    %600 = vector.multi_reduction <maximumf>, %599, %cst_251 [1] : vector<16x16xf32> to vector<16xf32>
    %601 = vector.shape_cast %600 : vector<16xf32> to vector<16x1xf32>
    %602 = vector.broadcast %601 : vector<16x1xf32> to vector<16x16xf32>
    %603 = arith.subf %599, %602 : vector<16x16xf32>
    %604 = math.exp %603 : vector<16x16xf32>
    %cst_252 = arith.constant dense<0.000000e+00> : vector<16xf32>
    %605 = vector.multi_reduction <add>, %604, %cst_252 [1] : vector<16x16xf32> to vector<16xf32>
    %606 = vector.shape_cast %605 : vector<16xf32> to vector<16x1xf32>
    %607 = vector.broadcast %606 : vector<16x1xf32> to vector<16x16xf32>
    %608 = arith.divf %604, %607 : vector<16x16xf32>
    %609 = vector.extract_strided_slice %553 {offsets = [0, 128], sizes = [16, 64], strides = [1, 1]} : vector<16x256xf32> to vector<16x64xf32>
    %cst_253 = arith.constant dense<0.000000e+00> : vector<16x64xf32>
    %610 = tpu.matmul %608, %609, %cst_253 {dimension_numbers = #tpu.dot_dimension_numbers<[1], [0], [0], [1], [0, 0, 1, 1], [], []>} : vector<16x16xf32>, vector<16x64xf32>, vector<16x64xf32> -> vector<16x64xf32>
    %611 = arith.addf %592, %610 : vector<16x64xf32>
    %612 = vector.extract_strided_slice %550 {offsets = [0, 48], sizes = [16, 16], strides = [1, 1]} : vector<16x128xf32> to vector<16x16xf32>
    %613 = vector.extract_strided_slice %550 {offsets = [0, 112], sizes = [16, 16], strides = [1, 1]} : vector<16x128xf32> to vector<16x16xf32>
    %cst_254 = arith.constant dense<0.000000e+00> : vector<16x16xf32>
    %614 = tpu.matmul %612, %613, %cst_254 {dimension_numbers = #tpu.dot_dimension_numbers<[1], [1], [0], [0], [0, 0, 1, 0], [], []>} : vector<16x16xf32>, vector<16x16xf32>, vector<16x16xf32> -> vector<16x16xf32>
    %cst_255 = arith.constant 2.500000e-01 : f32
    %615 = vector.broadcast %cst_255 : f32 to vector<16x16xf32>
    %616 = arith.mulf %614, %615 : vector<16x16xf32>
    %617 = vector.broadcast %8 : vector<1x16xf32> to vector<16x16xf32>
    %618 = arith.addf %616, %617 : vector<16x16xf32>
    %cst_256 = arith.constant dense<0xFF800000> : vector<16xf32>
    %619 = vector.multi_reduction <maximumf>, %618, %cst_256 [1] : vector<16x16xf32> to vector<16xf32>
    %620 = vector.shape_cast %619 : vector<16xf32> to vector<16x1xf32>
    %621 = vector.broadcast %620 : vector<16x1xf32> to vector<16x16xf32>
    %622 = arith.subf %618, %621 : vector<16x16xf32>
    %623 = math.exp %622 : vector<16x16xf32>
    %cst_257 = arith.constant dense<0.000000e+00> : vector<16xf32>
    %624 = vector.multi_reduction <add>, %623, %cst_257 [1] : vector<16x16xf32> to vector<16xf32>
    %625 = vector.shape_cast %624 : vector<16xf32> to vector<16x1xf32>
    %626 = vector.broadcast %625 : vector<16x1xf32> to vector<16x16xf32>
    %627 = arith.divf %623, %626 : vector<16x16xf32>
    %628 = vector.extract_strided_slice %553 {offsets = [0, 192], sizes = [16, 64], strides = [1, 1]} : vector<16x256xf32> to vector<16x64xf32>
    %cst_258 = arith.constant dense<0.000000e+00> : vector<16x64xf32>
    %629 = tpu.matmul %627, %628, %cst_258 {dimension_numbers = #tpu.dot_dimension_numbers<[1], [0], [0], [1], [0, 0, 1, 1], [], []>} : vector<16x16xf32>, vector<16x64xf32>, vector<16x64xf32> -> vector<16x64xf32>
    %630 = arith.addf %611, %629 : vector<16x64xf32>
    %631 = arith.addf %517, %630 : vector<16x64xf32>
    %c1_259 = arith.constant 1 : index
    %c0_260 = arith.constant 0 : index
    %c0_261 = arith.constant 0 : index
    %632 = vector.load %arg16[%c1_259, %c0_260, %c0_261] : memref<2x1x64xf32, #tpu.memory_space<vmem>>, vector<1x1x64xf32>
    %633 = vector.shape_cast %632 : vector<1x1x64xf32> to vector<1x64xf32>
    %634 = vector.broadcast %633 : vector<1x64xf32> to vector<16x64xf32>
    %635 = arith.addf %631, %634 : vector<16x64xf32>
    %c1_262 = arith.constant 1 : index
    %c0_263 = arith.constant 0 : index
    %c0_264 = arith.constant 0 : index
    %636 = vector.load %arg17[%c1_262, %c0_263, %c0_264] : memref<2x1x64xf32, #tpu.memory_space<vmem>>, vector<1x1x64xf32>
    %637 = vector.shape_cast %636 : vector<1x1x64xf32> to vector<1x64xf32>
    %c1_265 = arith.constant 1 : index
    %c0_266 = arith.constant 0 : index
    %c0_267 = arith.constant 0 : index
    %638 = vector.load %arg18[%c1_265, %c0_266, %c0_267] : memref<2x1x64xf32, #tpu.memory_space<vmem>>, vector<1x1x64xf32>
    %639 = vector.shape_cast %638 : vector<1x1x64xf32> to vector<1x64xf32>
    %cst_268 = arith.constant dense<0.000000e+00> : vector<16xf32>
    %640 = vector.multi_reduction <add>, %635, %cst_268 [1] : vector<16x64xf32> to vector<16xf32>
    %641 = vector.shape_cast %640 : vector<16xf32> to vector<16x1xf32>
    %cst_269 = arith.constant 6.400000e+01 : f32
    %642 = vector.broadcast %cst_269 : f32 to vector<16x1xf32>
    %643 = arith.divf %641, %642 : vector<16x1xf32>
    %644 = vector.broadcast %643 : vector<16x1xf32> to vector<16x64xf32>
    %645 = arith.subf %635, %644 : vector<16x64xf32>
    %646 = arith.mulf %645, %645 : vector<16x64xf32>
    %cst_270 = arith.constant dense<0.000000e+00> : vector<16xf32>
    %647 = vector.multi_reduction <add>, %646, %cst_270 [1] : vector<16x64xf32> to vector<16xf32>
    %648 = vector.shape_cast %647 : vector<16xf32> to vector<16x1xf32>
    %cst_271 = arith.constant 6.400000e+01 : f32
    %649 = vector.broadcast %cst_271 : f32 to vector<16x1xf32>
    %650 = arith.divf %648, %649 : vector<16x1xf32>
    %651 = vector.broadcast %643 : vector<16x1xf32> to vector<16x64xf32>
    %652 = arith.subf %635, %651 : vector<16x64xf32>
    %cst_272 = arith.constant 9.99999974E-6 : f32
    %653 = vector.broadcast %cst_272 : f32 to vector<16x1xf32>
    %654 = arith.addf %650, %653 : vector<16x1xf32>
    %655 = math.rsqrt %654 : vector<16x1xf32>
    %656 = vector.broadcast %655 : vector<16x1xf32> to vector<16x64xf32>
    %657 = arith.mulf %652, %656 : vector<16x64xf32>
    %658 = vector.broadcast %637 : vector<1x64xf32> to vector<16x64xf32>
    %659 = arith.mulf %657, %658 : vector<16x64xf32>
    %660 = vector.broadcast %639 : vector<1x64xf32> to vector<16x64xf32>
    %661 = arith.addf %659, %660 : vector<16x64xf32>
    %c1_273 = arith.constant 1 : index
    %c0_274 = arith.constant 0 : index
    %c0_275 = arith.constant 0 : index
    %662 = vector.load %arg19[%c1_273, %c0_274, %c0_275] : memref<2x64x64xf32, #tpu.memory_space<vmem>>, vector<1x64x64xf32>
    %663 = vector.shape_cast %662 : vector<1x64x64xf32> to vector<64x64xf32>
    %cst_276 = arith.constant dense<0.000000e+00> : vector<16x64xf32>
    %664 = tpu.matmul %661, %663, %cst_276 {dimension_numbers = #tpu.dot_dimension_numbers<[1], [0], [0], [1], [0, 0, 1, 1], [], []>} : vector<16x64xf32>, vector<64x64xf32>, vector<16x64xf32> -> vector<16x64xf32>
    %c1_277 = arith.constant 1 : index
    %c0_278 = arith.constant 0 : index
    %c0_279 = arith.constant 0 : index
    %665 = vector.load %arg20[%c1_277, %c0_278, %c0_279] : memref<2x1x64xf32, #tpu.memory_space<vmem>>, vector<1x1x64xf32>
    %666 = vector.shape_cast %665 : vector<1x1x64xf32> to vector<1x64xf32>
    %667 = vector.broadcast %666 : vector<1x64xf32> to vector<16x64xf32>
    %668 = arith.addf %664, %667 : vector<16x64xf32>
    %c1_280 = arith.constant 1 : index
    %c0_281 = arith.constant 0 : index
    %c0_282 = arith.constant 0 : index
    %669 = vector.load %arg21[%c1_280, %c0_281, %c0_282] : memref<2x64x64xf32, #tpu.memory_space<vmem>>, vector<1x64x64xf32>
    %670 = vector.shape_cast %669 : vector<1x64x64xf32> to vector<64x64xf32>
    %cst_283 = arith.constant dense<0.000000e+00> : vector<16x64xf32>
    %671 = tpu.matmul %661, %670, %cst_283 {dimension_numbers = #tpu.dot_dimension_numbers<[1], [0], [0], [1], [0, 0, 1, 1], [], []>} : vector<16x64xf32>, vector<64x64xf32>, vector<16x64xf32> -> vector<16x64xf32>
    %c1_284 = arith.constant 1 : index
    %c0_285 = arith.constant 0 : index
    %c0_286 = arith.constant 0 : index
    %672 = vector.load %arg22[%c1_284, %c0_285, %c0_286] : memref<2x1x64xf32, #tpu.memory_space<vmem>>, vector<1x1x64xf32>
    %673 = vector.shape_cast %672 : vector<1x1x64xf32> to vector<1x64xf32>
    %674 = vector.broadcast %673 : vector<1x64xf32> to vector<16x64xf32>
    %675 = arith.addf %671, %674 : vector<16x64xf32>
    %676 = arith.negf %675 : vector<16x64xf32>
    %677 = math.exp %676 : vector<16x64xf32>
    %cst_287 = arith.constant 1.000000e+00 : f32
    %678 = vector.broadcast %cst_287 : f32 to vector<16x64xf32>
    %679 = arith.addf %678, %677 : vector<16x64xf32>
    %680 = arith.divf %678, %679 : vector<16x64xf32>
    %681 = arith.mulf %668, %680 : vector<16x64xf32>
    %682 = vector.broadcast %12 : vector<16x1xf32> to vector<16x64xf32>
    %683 = arith.mulf %681, %682 : vector<16x64xf32>
    %c1_288 = arith.constant 1 : index
    %c0_289 = arith.constant 0 : index
    %c0_290 = arith.constant 0 : index
    %684 = vector.load %arg23[%c1_288, %c0_289, %c0_290] : memref<2x7x64xf32, #tpu.memory_space<vmem>>, vector<1x7x64xf32>
    %685 = vector.shape_cast %684 : vector<1x7x64xf32> to vector<7x64xf32>
    %cst_291 = arith.constant 0.000000e+00 : f32
    %686 = vector.broadcast %cst_291 : f32 to vector<16x64xf32>
    %c3_i32_292 = arith.constant 3 : i32
    %687 = tpu.dynamic_rotate %683 by %c3_i32_292 dim 0 : vector<16x64xf32>, i32 -> vector<16x64xf32>
    %c-3_i32_293 = arith.constant -3 : i32
    %688 = vector.broadcast %c-3_i32_293 : i32 to vector<16x1xi32>
    %689 = arith.addi %2, %688 : vector<16x1xi32>
    %c0_i32_294 = arith.constant 0 : i32
    %690 = vector.broadcast %c0_i32_294 : i32 to vector<16x1xi32>
    %691 = arith.cmpi sge, %689, %690 : vector<16x1xi32>
    %c-3_i32_295 = arith.constant -3 : i32
    %692 = vector.broadcast %c-3_i32_295 : i32 to vector<16x1xi32>
    %693 = arith.addi %2, %692 : vector<16x1xi32>
    %c16_i32_296 = arith.constant 16 : i32
    %694 = vector.broadcast %c16_i32_296 : i32 to vector<16x1xi32>
    %695 = arith.cmpi slt, %693, %694 : vector<16x1xi32>
    %696 = arith.andi %691, %695 : vector<16x1xi1>
    %697 = arith.extui %696 : vector<16x1xi1> to vector<16x1xi32>
    %698 = arith.sitofp %697 : vector<16x1xi32> to vector<16x1xf32>
    %699 = vector.broadcast %698 : vector<16x1xf32> to vector<16x64xf32>
    %700 = arith.mulf %687, %699 : vector<16x64xf32>
    %701 = vector.extract_strided_slice %685 {offsets = [0, 0], sizes = [1, 64], strides = [1, 1]} : vector<7x64xf32> to vector<1x64xf32>
    %702 = vector.broadcast %701 : vector<1x64xf32> to vector<16x64xf32>
    %703 = arith.mulf %700, %702 : vector<16x64xf32>
    %704 = arith.addf %686, %703 : vector<16x64xf32>
    %c2_i32_297 = arith.constant 2 : i32
    %705 = tpu.dynamic_rotate %683 by %c2_i32_297 dim 0 : vector<16x64xf32>, i32 -> vector<16x64xf32>
    %c-2_i32_298 = arith.constant -2 : i32
    %706 = vector.broadcast %c-2_i32_298 : i32 to vector<16x1xi32>
    %707 = arith.addi %2, %706 : vector<16x1xi32>
    %c0_i32_299 = arith.constant 0 : i32
    %708 = vector.broadcast %c0_i32_299 : i32 to vector<16x1xi32>
    %709 = arith.cmpi sge, %707, %708 : vector<16x1xi32>
    %c-2_i32_300 = arith.constant -2 : i32
    %710 = vector.broadcast %c-2_i32_300 : i32 to vector<16x1xi32>
    %711 = arith.addi %2, %710 : vector<16x1xi32>
    %c16_i32_301 = arith.constant 16 : i32
    %712 = vector.broadcast %c16_i32_301 : i32 to vector<16x1xi32>
    %713 = arith.cmpi slt, %711, %712 : vector<16x1xi32>
    %714 = arith.andi %709, %713 : vector<16x1xi1>
    %715 = arith.extui %714 : vector<16x1xi1> to vector<16x1xi32>
    %716 = arith.sitofp %715 : vector<16x1xi32> to vector<16x1xf32>
    %717 = vector.broadcast %716 : vector<16x1xf32> to vector<16x64xf32>
    %718 = arith.mulf %705, %717 : vector<16x64xf32>
    %719 = vector.extract_strided_slice %685 {offsets = [1, 0], sizes = [1, 64], strides = [1, 1]} : vector<7x64xf32> to vector<1x64xf32>
    %720 = vector.broadcast %719 : vector<1x64xf32> to vector<16x64xf32>
    %721 = arith.mulf %718, %720 : vector<16x64xf32>
    %722 = arith.addf %704, %721 : vector<16x64xf32>
    %c1_i32_302 = arith.constant 1 : i32
    %723 = tpu.dynamic_rotate %683 by %c1_i32_302 dim 0 : vector<16x64xf32>, i32 -> vector<16x64xf32>
    %c-1_i32_303 = arith.constant -1 : i32
    %724 = vector.broadcast %c-1_i32_303 : i32 to vector<16x1xi32>
    %725 = arith.addi %2, %724 : vector<16x1xi32>
    %c0_i32_304 = arith.constant 0 : i32
    %726 = vector.broadcast %c0_i32_304 : i32 to vector<16x1xi32>
    %727 = arith.cmpi sge, %725, %726 : vector<16x1xi32>
    %c-1_i32_305 = arith.constant -1 : i32
    %728 = vector.broadcast %c-1_i32_305 : i32 to vector<16x1xi32>
    %729 = arith.addi %2, %728 : vector<16x1xi32>
    %c16_i32_306 = arith.constant 16 : i32
    %730 = vector.broadcast %c16_i32_306 : i32 to vector<16x1xi32>
    %731 = arith.cmpi slt, %729, %730 : vector<16x1xi32>
    %732 = arith.andi %727, %731 : vector<16x1xi1>
    %733 = arith.extui %732 : vector<16x1xi1> to vector<16x1xi32>
    %734 = arith.sitofp %733 : vector<16x1xi32> to vector<16x1xf32>
    %735 = vector.broadcast %734 : vector<16x1xf32> to vector<16x64xf32>
    %736 = arith.mulf %723, %735 : vector<16x64xf32>
    %737 = vector.extract_strided_slice %685 {offsets = [2, 0], sizes = [1, 64], strides = [1, 1]} : vector<7x64xf32> to vector<1x64xf32>
    %738 = vector.broadcast %737 : vector<1x64xf32> to vector<16x64xf32>
    %739 = arith.mulf %736, %738 : vector<16x64xf32>
    %740 = arith.addf %722, %739 : vector<16x64xf32>
    %741 = vector.extract_strided_slice %685 {offsets = [3, 0], sizes = [1, 64], strides = [1, 1]} : vector<7x64xf32> to vector<1x64xf32>
    %742 = vector.broadcast %741 : vector<1x64xf32> to vector<16x64xf32>
    %743 = arith.mulf %683, %742 : vector<16x64xf32>
    %744 = arith.addf %740, %743 : vector<16x64xf32>
    %c15_i32_307 = arith.constant 15 : i32
    %745 = tpu.dynamic_rotate %683 by %c15_i32_307 dim 0 : vector<16x64xf32>, i32 -> vector<16x64xf32>
    %c1_i32_308 = arith.constant 1 : i32
    %746 = vector.broadcast %c1_i32_308 : i32 to vector<16x1xi32>
    %747 = arith.addi %2, %746 : vector<16x1xi32>
    %c0_i32_309 = arith.constant 0 : i32
    %748 = vector.broadcast %c0_i32_309 : i32 to vector<16x1xi32>
    %749 = arith.cmpi sge, %747, %748 : vector<16x1xi32>
    %c1_i32_310 = arith.constant 1 : i32
    %750 = vector.broadcast %c1_i32_310 : i32 to vector<16x1xi32>
    %751 = arith.addi %2, %750 : vector<16x1xi32>
    %c16_i32_311 = arith.constant 16 : i32
    %752 = vector.broadcast %c16_i32_311 : i32 to vector<16x1xi32>
    %753 = arith.cmpi slt, %751, %752 : vector<16x1xi32>
    %754 = arith.andi %749, %753 : vector<16x1xi1>
    %755 = arith.extui %754 : vector<16x1xi1> to vector<16x1xi32>
    %756 = arith.sitofp %755 : vector<16x1xi32> to vector<16x1xf32>
    %757 = vector.broadcast %756 : vector<16x1xf32> to vector<16x64xf32>
    %758 = arith.mulf %745, %757 : vector<16x64xf32>
    %759 = vector.extract_strided_slice %685 {offsets = [4, 0], sizes = [1, 64], strides = [1, 1]} : vector<7x64xf32> to vector<1x64xf32>
    %760 = vector.broadcast %759 : vector<1x64xf32> to vector<16x64xf32>
    %761 = arith.mulf %758, %760 : vector<16x64xf32>
    %762 = arith.addf %744, %761 : vector<16x64xf32>
    %c14_i32_312 = arith.constant 14 : i32
    %763 = tpu.dynamic_rotate %683 by %c14_i32_312 dim 0 : vector<16x64xf32>, i32 -> vector<16x64xf32>
    %c2_i32_313 = arith.constant 2 : i32
    %764 = vector.broadcast %c2_i32_313 : i32 to vector<16x1xi32>
    %765 = arith.addi %2, %764 : vector<16x1xi32>
    %c0_i32_314 = arith.constant 0 : i32
    %766 = vector.broadcast %c0_i32_314 : i32 to vector<16x1xi32>
    %767 = arith.cmpi sge, %765, %766 : vector<16x1xi32>
    %c2_i32_315 = arith.constant 2 : i32
    %768 = vector.broadcast %c2_i32_315 : i32 to vector<16x1xi32>
    %769 = arith.addi %2, %768 : vector<16x1xi32>
    %c16_i32_316 = arith.constant 16 : i32
    %770 = vector.broadcast %c16_i32_316 : i32 to vector<16x1xi32>
    %771 = arith.cmpi slt, %769, %770 : vector<16x1xi32>
    %772 = arith.andi %767, %771 : vector<16x1xi1>
    %773 = arith.extui %772 : vector<16x1xi1> to vector<16x1xi32>
    %774 = arith.sitofp %773 : vector<16x1xi32> to vector<16x1xf32>
    %775 = vector.broadcast %774 : vector<16x1xf32> to vector<16x64xf32>
    %776 = arith.mulf %763, %775 : vector<16x64xf32>
    %777 = vector.extract_strided_slice %685 {offsets = [5, 0], sizes = [1, 64], strides = [1, 1]} : vector<7x64xf32> to vector<1x64xf32>
    %778 = vector.broadcast %777 : vector<1x64xf32> to vector<16x64xf32>
    %779 = arith.mulf %776, %778 : vector<16x64xf32>
    %780 = arith.addf %762, %779 : vector<16x64xf32>
    %c13_i32_317 = arith.constant 13 : i32
    %781 = tpu.dynamic_rotate %683 by %c13_i32_317 dim 0 : vector<16x64xf32>, i32 -> vector<16x64xf32>
    %c3_i32_318 = arith.constant 3 : i32
    %782 = vector.broadcast %c3_i32_318 : i32 to vector<16x1xi32>
    %783 = arith.addi %2, %782 : vector<16x1xi32>
    %c0_i32_319 = arith.constant 0 : i32
    %784 = vector.broadcast %c0_i32_319 : i32 to vector<16x1xi32>
    %785 = arith.cmpi sge, %783, %784 : vector<16x1xi32>
    %c3_i32_320 = arith.constant 3 : i32
    %786 = vector.broadcast %c3_i32_320 : i32 to vector<16x1xi32>
    %787 = arith.addi %2, %786 : vector<16x1xi32>
    %c16_i32_321 = arith.constant 16 : i32
    %788 = vector.broadcast %c16_i32_321 : i32 to vector<16x1xi32>
    %789 = arith.cmpi slt, %787, %788 : vector<16x1xi32>
    %790 = arith.andi %785, %789 : vector<16x1xi1>
    %791 = arith.extui %790 : vector<16x1xi1> to vector<16x1xi32>
    %792 = arith.sitofp %791 : vector<16x1xi32> to vector<16x1xf32>
    %793 = vector.broadcast %792 : vector<16x1xf32> to vector<16x64xf32>
    %794 = arith.mulf %781, %793 : vector<16x64xf32>
    %795 = vector.extract_strided_slice %685 {offsets = [6, 0], sizes = [1, 64], strides = [1, 1]} : vector<7x64xf32> to vector<1x64xf32>
    %796 = vector.broadcast %795 : vector<1x64xf32> to vector<16x64xf32>
    %797 = arith.mulf %794, %796 : vector<16x64xf32>
    %798 = arith.addf %780, %797 : vector<16x64xf32>
    %c1_322 = arith.constant 1 : index
    %c0_323 = arith.constant 0 : index
    %c0_324 = arith.constant 0 : index
    %799 = vector.load %arg24[%c1_322, %c0_323, %c0_324] : memref<2x1x64xf32, #tpu.memory_space<vmem>>, vector<1x1x64xf32>
    %800 = vector.shape_cast %799 : vector<1x1x64xf32> to vector<1x64xf32>
    %801 = vector.broadcast %800 : vector<1x64xf32> to vector<16x64xf32>
    %802 = arith.addf %798, %801 : vector<16x64xf32>
    %c1_325 = arith.constant 1 : index
    %c0_326 = arith.constant 0 : index
    %c0_327 = arith.constant 0 : index
    %803 = vector.load %arg25[%c1_325, %c0_326, %c0_327] : memref<2x1x64xf32, #tpu.memory_space<vmem>>, vector<1x1x64xf32>
    %804 = vector.shape_cast %803 : vector<1x1x64xf32> to vector<1x64xf32>
    %c1_328 = arith.constant 1 : index
    %c0_329 = arith.constant 0 : index
    %c0_330 = arith.constant 0 : index
    %805 = vector.load %arg26[%c1_328, %c0_329, %c0_330] : memref<2x1x64xf32, #tpu.memory_space<vmem>>, vector<1x1x64xf32>
    %806 = vector.shape_cast %805 : vector<1x1x64xf32> to vector<1x64xf32>
    %cst_331 = arith.constant dense<0.000000e+00> : vector<16xf32>
    %807 = vector.multi_reduction <add>, %802, %cst_331 [1] : vector<16x64xf32> to vector<16xf32>
    %808 = vector.shape_cast %807 : vector<16xf32> to vector<16x1xf32>
    %cst_332 = arith.constant 6.400000e+01 : f32
    %809 = vector.broadcast %cst_332 : f32 to vector<16x1xf32>
    %810 = arith.divf %808, %809 : vector<16x1xf32>
    %811 = vector.broadcast %810 : vector<16x1xf32> to vector<16x64xf32>
    %812 = arith.subf %802, %811 : vector<16x64xf32>
    %813 = arith.mulf %812, %812 : vector<16x64xf32>
    %cst_333 = arith.constant dense<0.000000e+00> : vector<16xf32>
    %814 = vector.multi_reduction <add>, %813, %cst_333 [1] : vector<16x64xf32> to vector<16xf32>
    %815 = vector.shape_cast %814 : vector<16xf32> to vector<16x1xf32>
    %cst_334 = arith.constant 6.400000e+01 : f32
    %816 = vector.broadcast %cst_334 : f32 to vector<16x1xf32>
    %817 = arith.divf %815, %816 : vector<16x1xf32>
    %818 = vector.broadcast %810 : vector<16x1xf32> to vector<16x64xf32>
    %819 = arith.subf %802, %818 : vector<16x64xf32>
    %cst_335 = arith.constant 9.99999974E-6 : f32
    %820 = vector.broadcast %cst_335 : f32 to vector<16x1xf32>
    %821 = arith.addf %817, %820 : vector<16x1xf32>
    %822 = math.rsqrt %821 : vector<16x1xf32>
    %823 = vector.broadcast %822 : vector<16x1xf32> to vector<16x64xf32>
    %824 = arith.mulf %819, %823 : vector<16x64xf32>
    %825 = vector.broadcast %804 : vector<1x64xf32> to vector<16x64xf32>
    %826 = arith.mulf %824, %825 : vector<16x64xf32>
    %827 = vector.broadcast %806 : vector<1x64xf32> to vector<16x64xf32>
    %828 = arith.addf %826, %827 : vector<16x64xf32>
    %829 = arith.negf %828 : vector<16x64xf32>
    %830 = math.exp %829 : vector<16x64xf32>
    %cst_336 = arith.constant 1.000000e+00 : f32
    %831 = vector.broadcast %cst_336 : f32 to vector<16x64xf32>
    %832 = arith.addf %831, %830 : vector<16x64xf32>
    %833 = arith.divf %831, %832 : vector<16x64xf32>
    %834 = arith.mulf %828, %833 : vector<16x64xf32>
    %c1_337 = arith.constant 1 : index
    %c0_338 = arith.constant 0 : index
    %c0_339 = arith.constant 0 : index
    %835 = vector.load %arg27[%c1_337, %c0_338, %c0_339] : memref<2x64x64xf32, #tpu.memory_space<vmem>>, vector<1x64x64xf32>
    %836 = vector.shape_cast %835 : vector<1x64x64xf32> to vector<64x64xf32>
    %cst_340 = arith.constant dense<0.000000e+00> : vector<16x64xf32>
    %837 = tpu.matmul %834, %836, %cst_340 {dimension_numbers = #tpu.dot_dimension_numbers<[1], [0], [0], [1], [0, 0, 1, 1], [], []>} : vector<16x64xf32>, vector<64x64xf32>, vector<16x64xf32> -> vector<16x64xf32>
    %c1_341 = arith.constant 1 : index
    %c0_342 = arith.constant 0 : index
    %c0_343 = arith.constant 0 : index
    %838 = vector.load %arg28[%c1_341, %c0_342, %c0_343] : memref<2x1x64xf32, #tpu.memory_space<vmem>>, vector<1x1x64xf32>
    %839 = vector.shape_cast %838 : vector<1x1x64xf32> to vector<1x64xf32>
    %840 = vector.broadcast %839 : vector<1x64xf32> to vector<16x64xf32>
    %841 = arith.addf %837, %840 : vector<16x64xf32>
    %842 = arith.addf %635, %841 : vector<16x64xf32>
    %c1_344 = arith.constant 1 : index
    %c0_345 = arith.constant 0 : index
    %c0_346 = arith.constant 0 : index
    %843 = vector.load %arg29[%c1_344, %c0_345, %c0_346] : memref<2x1x64xf32, #tpu.memory_space<vmem>>, vector<1x1x64xf32>
    %844 = vector.shape_cast %843 : vector<1x1x64xf32> to vector<1x64xf32>
    %c1_347 = arith.constant 1 : index
    %c0_348 = arith.constant 0 : index
    %c0_349 = arith.constant 0 : index
    %845 = vector.load %arg30[%c1_347, %c0_348, %c0_349] : memref<2x1x64xf32, #tpu.memory_space<vmem>>, vector<1x1x64xf32>
    %846 = vector.shape_cast %845 : vector<1x1x64xf32> to vector<1x64xf32>
    %cst_350 = arith.constant dense<0.000000e+00> : vector<16xf32>
    %847 = vector.multi_reduction <add>, %842, %cst_350 [1] : vector<16x64xf32> to vector<16xf32>
    %848 = vector.shape_cast %847 : vector<16xf32> to vector<16x1xf32>
    %cst_351 = arith.constant 6.400000e+01 : f32
    %849 = vector.broadcast %cst_351 : f32 to vector<16x1xf32>
    %850 = arith.divf %848, %849 : vector<16x1xf32>
    %851 = vector.broadcast %850 : vector<16x1xf32> to vector<16x64xf32>
    %852 = arith.subf %842, %851 : vector<16x64xf32>
    %853 = arith.mulf %852, %852 : vector<16x64xf32>
    %cst_352 = arith.constant dense<0.000000e+00> : vector<16xf32>
    %854 = vector.multi_reduction <add>, %853, %cst_352 [1] : vector<16x64xf32> to vector<16xf32>
    %855 = vector.shape_cast %854 : vector<16xf32> to vector<16x1xf32>
    %cst_353 = arith.constant 6.400000e+01 : f32
    %856 = vector.broadcast %cst_353 : f32 to vector<16x1xf32>
    %857 = arith.divf %855, %856 : vector<16x1xf32>
    %858 = vector.broadcast %850 : vector<16x1xf32> to vector<16x64xf32>
    %859 = arith.subf %842, %858 : vector<16x64xf32>
    %cst_354 = arith.constant 9.99999974E-6 : f32
    %860 = vector.broadcast %cst_354 : f32 to vector<16x1xf32>
    %861 = arith.addf %857, %860 : vector<16x1xf32>
    %862 = math.rsqrt %861 : vector<16x1xf32>
    %863 = vector.broadcast %862 : vector<16x1xf32> to vector<16x64xf32>
    %864 = arith.mulf %859, %863 : vector<16x64xf32>
    %865 = vector.broadcast %844 : vector<1x64xf32> to vector<16x64xf32>
    %866 = arith.mulf %864, %865 : vector<16x64xf32>
    %867 = vector.broadcast %846 : vector<1x64xf32> to vector<16x64xf32>
    %868 = arith.addf %866, %867 : vector<16x64xf32>
    %c1_355 = arith.constant 1 : index
    %c0_356 = arith.constant 0 : index
    %c0_357 = arith.constant 0 : index
    %869 = vector.load %arg31[%c1_355, %c0_356, %c0_357] : memref<2x64x128xf32, #tpu.memory_space<vmem>>, vector<1x64x128xf32>
    %870 = vector.shape_cast %869 : vector<1x64x128xf32> to vector<64x128xf32>
    %cst_358 = arith.constant dense<0.000000e+00> : vector<16x128xf32>
    %871 = tpu.matmul %868, %870, %cst_358 {dimension_numbers = #tpu.dot_dimension_numbers<[1], [0], [0], [1], [0, 0, 1, 1], [], []>} : vector<16x64xf32>, vector<64x128xf32>, vector<16x128xf32> -> vector<16x128xf32>
    %c1_359 = arith.constant 1 : index
    %c0_360 = arith.constant 0 : index
    %c0_361 = arith.constant 0 : index
    %872 = vector.load %arg32[%c1_359, %c0_360, %c0_361] : memref<2x1x128xf32, #tpu.memory_space<vmem>>, vector<1x1x128xf32>
    %873 = vector.shape_cast %872 : vector<1x1x128xf32> to vector<1x128xf32>
    %874 = vector.broadcast %873 : vector<1x128xf32> to vector<16x128xf32>
    %875 = arith.addf %871, %874 : vector<16x128xf32>
    %876 = arith.negf %875 : vector<16x128xf32>
    %877 = math.exp %876 : vector<16x128xf32>
    %cst_362 = arith.constant 1.000000e+00 : f32
    %878 = vector.broadcast %cst_362 : f32 to vector<16x128xf32>
    %879 = arith.addf %878, %877 : vector<16x128xf32>
    %880 = arith.divf %878, %879 : vector<16x128xf32>
    %881 = arith.mulf %875, %880 : vector<16x128xf32>
    %c1_363 = arith.constant 1 : index
    %c0_364 = arith.constant 0 : index
    %c0_365 = arith.constant 0 : index
    %882 = vector.load %arg33[%c1_363, %c0_364, %c0_365] : memref<2x128x64xf32, #tpu.memory_space<vmem>>, vector<1x128x64xf32>
    %883 = vector.shape_cast %882 : vector<1x128x64xf32> to vector<128x64xf32>
    %cst_366 = arith.constant dense<0.000000e+00> : vector<16x64xf32>
    %884 = tpu.matmul %881, %883, %cst_366 {dimension_numbers = #tpu.dot_dimension_numbers<[1], [0], [0], [1], [0, 0, 1, 1], [], []>} : vector<16x128xf32>, vector<128x64xf32>, vector<16x64xf32> -> vector<16x64xf32>
    %c1_367 = arith.constant 1 : index
    %c0_368 = arith.constant 0 : index
    %c0_369 = arith.constant 0 : index
    %885 = vector.load %arg34[%c1_367, %c0_368, %c0_369] : memref<2x1x64xf32, #tpu.memory_space<vmem>>, vector<1x1x64xf32>
    %886 = vector.shape_cast %885 : vector<1x1x64xf32> to vector<1x64xf32>
    %887 = vector.broadcast %886 : vector<1x64xf32> to vector<16x64xf32>
    %888 = arith.addf %884, %887 : vector<16x64xf32>
    %cst_370 = arith.constant 5.000000e-01 : f32
    %889 = vector.broadcast %cst_370 : f32 to vector<16x64xf32>
    %890 = arith.mulf %889, %888 : vector<16x64xf32>
    %891 = arith.addf %842, %890 : vector<16x64xf32>
    %c1_371 = arith.constant 1 : index
    %c0_372 = arith.constant 0 : index
    %c0_373 = arith.constant 0 : index
    %892 = vector.load %arg35[%c1_371, %c0_372, %c0_373] : memref<2x1x64xf32, #tpu.memory_space<vmem>>, vector<1x1x64xf32>
    %893 = vector.shape_cast %892 : vector<1x1x64xf32> to vector<1x64xf32>
    %c1_374 = arith.constant 1 : index
    %c0_375 = arith.constant 0 : index
    %c0_376 = arith.constant 0 : index
    %894 = vector.load %arg36[%c1_374, %c0_375, %c0_376] : memref<2x1x64xf32, #tpu.memory_space<vmem>>, vector<1x1x64xf32>
    %895 = vector.shape_cast %894 : vector<1x1x64xf32> to vector<1x64xf32>
    %cst_377 = arith.constant dense<0.000000e+00> : vector<16xf32>
    %896 = vector.multi_reduction <add>, %891, %cst_377 [1] : vector<16x64xf32> to vector<16xf32>
    %897 = vector.shape_cast %896 : vector<16xf32> to vector<16x1xf32>
    %cst_378 = arith.constant 6.400000e+01 : f32
    %898 = vector.broadcast %cst_378 : f32 to vector<16x1xf32>
    %899 = arith.divf %897, %898 : vector<16x1xf32>
    %900 = vector.broadcast %899 : vector<16x1xf32> to vector<16x64xf32>
    %901 = arith.subf %891, %900 : vector<16x64xf32>
    %902 = arith.mulf %901, %901 : vector<16x64xf32>
    %cst_379 = arith.constant dense<0.000000e+00> : vector<16xf32>
    %903 = vector.multi_reduction <add>, %902, %cst_379 [1] : vector<16x64xf32> to vector<16xf32>
    %904 = vector.shape_cast %903 : vector<16xf32> to vector<16x1xf32>
    %cst_380 = arith.constant 6.400000e+01 : f32
    %905 = vector.broadcast %cst_380 : f32 to vector<16x1xf32>
    %906 = arith.divf %904, %905 : vector<16x1xf32>
    %907 = vector.broadcast %899 : vector<16x1xf32> to vector<16x64xf32>
    %908 = arith.subf %891, %907 : vector<16x64xf32>
    %cst_381 = arith.constant 9.99999974E-6 : f32
    %909 = vector.broadcast %cst_381 : f32 to vector<16x1xf32>
    %910 = arith.addf %906, %909 : vector<16x1xf32>
    %911 = math.rsqrt %910 : vector<16x1xf32>
    %912 = vector.broadcast %911 : vector<16x1xf32> to vector<16x64xf32>
    %913 = arith.mulf %908, %912 : vector<16x64xf32>
    %914 = vector.broadcast %893 : vector<1x64xf32> to vector<16x64xf32>
    %915 = arith.mulf %913, %914 : vector<16x64xf32>
    %916 = vector.broadcast %895 : vector<1x64xf32> to vector<16x64xf32>
    %917 = arith.addf %915, %916 : vector<16x64xf32>
    %c0_382 = arith.constant 0 : index
    %c0_383 = arith.constant 0 : index
    %918 = vector.load %arg37[%c0_382, %c0_383] : memref<64x128xf32, #tpu.memory_space<vmem>>, vector<64x128xf32>
    %cst_384 = arith.constant dense<0.000000e+00> : vector<16x128xf32>
    %919 = tpu.matmul %917, %918, %cst_384 {dimension_numbers = #tpu.dot_dimension_numbers<[1], [0], [0], [1], [0, 0, 1, 1], [], []>} : vector<16x64xf32>, vector<64x128xf32>, vector<16x128xf32> -> vector<16x128xf32>
    %c0_385 = arith.constant 0 : index
    %c0_386 = arith.constant 0 : index
    %920 = vector.load %arg38[%c0_385, %c0_386] : memref<1x128xf32, #tpu.memory_space<vmem>>, vector<1x128xf32>
    %921 = vector.broadcast %920 : vector<1x128xf32> to vector<16x128xf32>
    %922 = arith.addf %919, %921 : vector<16x128xf32>
    %cst_387 = arith.constant dense<0xFF800000> : vector<16xf32>
    %923 = vector.multi_reduction <maximumf>, %922, %cst_387 [1] : vector<16x128xf32> to vector<16xf32>
    %924 = vector.shape_cast %923 : vector<16xf32> to vector<16x1xf32>
    %925 = vector.broadcast %924 : vector<16x1xf32> to vector<16x128xf32>
    %926 = arith.subf %922, %925 : vector<16x128xf32>
    %927 = math.exp %926 : vector<16x128xf32>
    %cst_388 = arith.constant dense<0.000000e+00> : vector<16xf32>
    %928 = vector.multi_reduction <add>, %927, %cst_388 [1] : vector<16x128xf32> to vector<16xf32>
    %929 = vector.shape_cast %928 : vector<16xf32> to vector<16x1xf32>
    %930 = math.log %929 : vector<16x1xf32>
    %931 = arith.addf %930, %924 : vector<16x1xf32>
    %932 = vector.broadcast %931 : vector<16x1xf32> to vector<16x128xf32>
    %933 = arith.subf %922, %932 : vector<16x128xf32>
    %c0_389 = arith.constant 0 : index
    %c0_390 = arith.constant 0 : index
    %c0_391 = arith.constant 0 : index
    %934 = vector.load %arg39[%c0_389, %c0_390, %c0_391] : memref<1x16x128xf32, #tpu.memory_space<vmem>>, vector<1x16x128xf32>
    %935 = vector.shape_cast %934 : vector<1x16x128xf32> to vector<16x128xf32>
    %936 = vector.shape_cast %933 : vector<16x128xf32> to vector<1x16x128xf32>
    tpu.vector_store %arg39[%c0_389, %c0_390, %c0_391], %936 {strides = array<i32>} : memref<1x16x128xf32, #tpu.memory_space<vmem>>, vector<1x16x128xf32>,
    return
  }
  func.func @transform_0(%arg0: i32, %arg1: memref<2xi32, #tpu.memory_space<smem>>) -> (i32, i32, i32) {
    %c0_i32 = arith.constant 0 : i32
    %c0_i32_0 = arith.constant 0 : i32
    %c0_i32_1 = arith.constant 0 : i32
    return %arg0, %c0_i32, %c0_i32_0 : i32, i32, i32
  }
  func.func @transform_1(%arg0: i32, %arg1: memref<2xi32, #tpu.memory_space<smem>>) -> (i32, i32) {
    %c0_i32 = arith.constant 0 : i32
    %c0_i32_0 = arith.constant 0 : i32
    %c0_i32_1 = arith.constant 0 : i32
    return %c0_i32, %c0_i32_0 : i32, i32
  }
  func.func @transform_2(%arg0: i32, %arg1: memref<2xi32, #tpu.memory_space<smem>>) -> (i32, i32) {
    %c0_i32 = arith.constant 0 : i32
    %c0_i32_0 = arith.constant 0 : i32
    %c0_i32_1 = arith.constant 0 : i32
    return %c0_i32, %c0_i32_0 : i32, i32
  }
  func.func @transform_3(%arg0: i32, %arg1: memref<2xi32, #tpu.memory_space<smem>>) -> (i32, i32, i32) {
    %c0_i32 = arith.constant 0 : i32
    %c0_i32_0 = arith.constant 0 : i32
    %c0_i32_1 = arith.constant 0 : i32
    %c0_i32_2 = arith.constant 0 : i32
    return %c0_i32, %c0_i32_0, %c0_i32_1 : i32, i32, i32
  }
  func.func @transform_4(%arg0: i32, %arg1: memref<2xi32, #tpu.memory_space<smem>>) -> (i32, i32, i32) {
    %c0_i32 = arith.constant 0 : i32
    %c0_i32_0 = arith.constant 0 : i32
    %c0_i32_1 = arith.constant 0 : i32
    %c0_i32_2 = arith.constant 0 : i32
    return %c0_i32, %c0_i32_0, %c0_i32_1 : i32, i32, i32
  }
  func.func @transform_5(%arg0: i32, %arg1: memref<2xi32, #tpu.memory_space<smem>>) -> (i32, i32, i32) {
    %c0_i32 = arith.constant 0 : i32
    %c0_i32_0 = arith.constant 0 : i32
    %c0_i32_1 = arith.constant 0 : i32
    %c0_i32_2 = arith.constant 0 : i32
    return %c0_i32, %c0_i32_0, %c0_i32_1 : i32, i32, i32
  }
  func.func @transform_6(%arg0: i32, %arg1: memref<2xi32, #tpu.memory_space<smem>>) -> (i32, i32, i32) {
    %c0_i32 = arith.constant 0 : i32
    %c0_i32_0 = arith.constant 0 : i32
    %c0_i32_1 = arith.constant 0 : i32
    %c0_i32_2 = arith.constant 0 : i32
    return %c0_i32, %c0_i32_0, %c0_i32_1 : i32, i32, i32
  }
  func.func @transform_7(%arg0: i32, %arg1: memref<2xi32, #tpu.memory_space<smem>>) -> (i32, i32, i32) {
    %c0_i32 = arith.constant 0 : i32
    %c0_i32_0 = arith.constant 0 : i32
    %c0_i32_1 = arith.constant 0 : i32
    %c0_i32_2 = arith.constant 0 : i32
    return %c0_i32, %c0_i32_0, %c0_i32_1 : i32, i32, i32
  }
  func.func @transform_8(%arg0: i32, %arg1: memref<2xi32, #tpu.memory_space<smem>>) -> (i32, i32, i32) {
    %c0_i32 = arith.constant 0 : i32
    %c0_i32_0 = arith.constant 0 : i32
    %c0_i32_1 = arith.constant 0 : i32
    %c0_i32_2 = arith.constant 0 : i32
    return %c0_i32, %c0_i32_0, %c0_i32_1 : i32, i32, i32
  }
  func.func @transform_9(%arg0: i32, %arg1: memref<2xi32, #tpu.memory_space<smem>>) -> (i32, i32, i32) {
    %c0_i32 = arith.constant 0 : i32
    %c0_i32_0 = arith.constant 0 : i32
    %c0_i32_1 = arith.constant 0 : i32
    %c0_i32_2 = arith.constant 0 : i32
    return %c0_i32, %c0_i32_0, %c0_i32_1 : i32, i32, i32
  }
  func.func @transform_10(%arg0: i32, %arg1: memref<2xi32, #tpu.memory_space<smem>>) -> (i32, i32, i32) {
    %c0_i32 = arith.constant 0 : i32
    %c0_i32_0 = arith.constant 0 : i32
    %c0_i32_1 = arith.constant 0 : i32
    %c0_i32_2 = arith.constant 0 : i32
    return %c0_i32, %c0_i32_0, %c0_i32_1 : i32, i32, i32
  }
  func.func @transform_11(%arg0: i32, %arg1: memref<2xi32, #tpu.memory_space<smem>>) -> (i32, i32, i32) {
    %c0_i32 = arith.constant 0 : i32
    %c0_i32_0 = arith.constant 0 : i32
    %c0_i32_1 = arith.constant 0 : i32
    %c0_i32_2 = arith.constant 0 : i32
    return %c0_i32, %c0_i32_0, %c0_i32_1 : i32, i32, i32
  }
  func.func @transform_12(%arg0: i32, %arg1: memref<2xi32, #tpu.memory_space<smem>>) -> (i32, i32, i32) {
    %c0_i32 = arith.constant 0 : i32
    %c0_i32_0 = arith.constant 0 : i32
    %c0_i32_1 = arith.constant 0 : i32
    %c0_i32_2 = arith.constant 0 : i32
    return %c0_i32, %c0_i32_0, %c0_i32_1 : i32, i32, i32
  }
  func.func @transform_13(%arg0: i32, %arg1: memref<2xi32, #tpu.memory_space<smem>>) -> (i32, i32, i32) {
    %c0_i32 = arith.constant 0 : i32
    %c0_i32_0 = arith.constant 0 : i32
    %c0_i32_1 = arith.constant 0 : i32
    %c0_i32_2 = arith.constant 0 : i32
    return %c0_i32, %c0_i32_0, %c0_i32_1 : i32, i32, i32
  }
  func.func @transform_14(%arg0: i32, %arg1: memref<2xi32, #tpu.memory_space<smem>>) -> (i32, i32, i32) {
    %c0_i32 = arith.constant 0 : i32
    %c0_i32_0 = arith.constant 0 : i32
    %c0_i32_1 = arith.constant 0 : i32
    %c0_i32_2 = arith.constant 0 : i32
    return %c0_i32, %c0_i32_0, %c0_i32_1 : i32, i32, i32
  }
  func.func @transform_15(%arg0: i32, %arg1: memref<2xi32, #tpu.memory_space<smem>>) -> (i32, i32, i32) {
    %c0_i32 = arith.constant 0 : i32
    %c0_i32_0 = arith.constant 0 : i32
    %c0_i32_1 = arith.constant 0 : i32
    %c0_i32_2 = arith.constant 0 : i32
    return %c0_i32, %c0_i32_0, %c0_i32_1 : i32, i32, i32
  }
  func.func @transform_16(%arg0: i32, %arg1: memref<2xi32, #tpu.memory_space<smem>>) -> (i32, i32, i32) {
    %c0_i32 = arith.constant 0 : i32
    %c0_i32_0 = arith.constant 0 : i32
    %c0_i32_1 = arith.constant 0 : i32
    %c0_i32_2 = arith.constant 0 : i32
    return %c0_i32, %c0_i32_0, %c0_i32_1 : i32, i32, i32
  }
  func.func @transform_17(%arg0: i32, %arg1: memref<2xi32, #tpu.memory_space<smem>>) -> (i32, i32, i32) {
    %c0_i32 = arith.constant 0 : i32
    %c0_i32_0 = arith.constant 0 : i32
    %c0_i32_1 = arith.constant 0 : i32
    %c0_i32_2 = arith.constant 0 : i32
    return %c0_i32, %c0_i32_0, %c0_i32_1 : i32, i32, i32
  }
  func.func @transform_18(%arg0: i32, %arg1: memref<2xi32, #tpu.memory_space<smem>>) -> (i32, i32, i32) {
    %c0_i32 = arith.constant 0 : i32
    %c0_i32_0 = arith.constant 0 : i32
    %c0_i32_1 = arith.constant 0 : i32
    %c0_i32_2 = arith.constant 0 : i32
    return %c0_i32, %c0_i32_0, %c0_i32_1 : i32, i32, i32
  }
  func.func @transform_19(%arg0: i32, %arg1: memref<2xi32, #tpu.memory_space<smem>>) -> (i32, i32, i32) {
    %c0_i32 = arith.constant 0 : i32
    %c0_i32_0 = arith.constant 0 : i32
    %c0_i32_1 = arith.constant 0 : i32
    %c0_i32_2 = arith.constant 0 : i32
    return %c0_i32, %c0_i32_0, %c0_i32_1 : i32, i32, i32
  }
  func.func @transform_20(%arg0: i32, %arg1: memref<2xi32, #tpu.memory_space<smem>>) -> (i32, i32, i32) {
    %c0_i32 = arith.constant 0 : i32
    %c0_i32_0 = arith.constant 0 : i32
    %c0_i32_1 = arith.constant 0 : i32
    %c0_i32_2 = arith.constant 0 : i32
    return %c0_i32, %c0_i32_0, %c0_i32_1 : i32, i32, i32
  }
  func.func @transform_21(%arg0: i32, %arg1: memref<2xi32, #tpu.memory_space<smem>>) -> (i32, i32, i32) {
    %c0_i32 = arith.constant 0 : i32
    %c0_i32_0 = arith.constant 0 : i32
    %c0_i32_1 = arith.constant 0 : i32
    %c0_i32_2 = arith.constant 0 : i32
    return %c0_i32, %c0_i32_0, %c0_i32_1 : i32, i32, i32
  }
  func.func @transform_22(%arg0: i32, %arg1: memref<2xi32, #tpu.memory_space<smem>>) -> (i32, i32, i32) {
    %c0_i32 = arith.constant 0 : i32
    %c0_i32_0 = arith.constant 0 : i32
    %c0_i32_1 = arith.constant 0 : i32
    %c0_i32_2 = arith.constant 0 : i32
    return %c0_i32, %c0_i32_0, %c0_i32_1 : i32, i32, i32
  }
  func.func @transform_23(%arg0: i32, %arg1: memref<2xi32, #tpu.memory_space<smem>>) -> (i32, i32, i32) {
    %c0_i32 = arith.constant 0 : i32
    %c0_i32_0 = arith.constant 0 : i32
    %c0_i32_1 = arith.constant 0 : i32
    %c0_i32_2 = arith.constant 0 : i32
    return %c0_i32, %c0_i32_0, %c0_i32_1 : i32, i32, i32
  }
  func.func @transform_24(%arg0: i32, %arg1: memref<2xi32, #tpu.memory_space<smem>>) -> (i32, i32, i32) {
    %c0_i32 = arith.constant 0 : i32
    %c0_i32_0 = arith.constant 0 : i32
    %c0_i32_1 = arith.constant 0 : i32
    %c0_i32_2 = arith.constant 0 : i32
    return %c0_i32, %c0_i32_0, %c0_i32_1 : i32, i32, i32
  }
  func.func @transform_25(%arg0: i32, %arg1: memref<2xi32, #tpu.memory_space<smem>>) -> (i32, i32, i32) {
    %c0_i32 = arith.constant 0 : i32
    %c0_i32_0 = arith.constant 0 : i32
    %c0_i32_1 = arith.constant 0 : i32
    %c0_i32_2 = arith.constant 0 : i32
    return %c0_i32, %c0_i32_0, %c0_i32_1 : i32, i32, i32
  }
  func.func @transform_26(%arg0: i32, %arg1: memref<2xi32, #tpu.memory_space<smem>>) -> (i32, i32, i32) {
    %c0_i32 = arith.constant 0 : i32
    %c0_i32_0 = arith.constant 0 : i32
    %c0_i32_1 = arith.constant 0 : i32
    %c0_i32_2 = arith.constant 0 : i32
    return %c0_i32, %c0_i32_0, %c0_i32_1 : i32, i32, i32
  }
  func.func @transform_27(%arg0: i32, %arg1: memref<2xi32, #tpu.memory_space<smem>>) -> (i32, i32, i32) {
    %c0_i32 = arith.constant 0 : i32
    %c0_i32_0 = arith.constant 0 : i32
    %c0_i32_1 = arith.constant 0 : i32
    %c0_i32_2 = arith.constant 0 : i32
    return %c0_i32, %c0_i32_0, %c0_i32_1 : i32, i32, i32
  }
  func.func @transform_28(%arg0: i32, %arg1: memref<2xi32, #tpu.memory_space<smem>>) -> (i32, i32, i32) {
    %c0_i32 = arith.constant 0 : i32
    %c0_i32_0 = arith.constant 0 : i32
    %c0_i32_1 = arith.constant 0 : i32
    %c0_i32_2 = arith.constant 0 : i32
    return %c0_i32, %c0_i32_0, %c0_i32_1 : i32, i32, i32
  }
  func.func @transform_29(%arg0: i32, %arg1: memref<2xi32, #tpu.memory_space<smem>>) -> (i32, i32, i32) {
    %c0_i32 = arith.constant 0 : i32
    %c0_i32_0 = arith.constant 0 : i32
    %c0_i32_1 = arith.constant 0 : i32
    %c0_i32_2 = arith.constant 0 : i32
    return %c0_i32, %c0_i32_0, %c0_i32_1 : i32, i32, i32
  }
  func.func @transform_30(%arg0: i32, %arg1: memref<2xi32, #tpu.memory_space<smem>>) -> (i32, i32, i32) {
    %c0_i32 = arith.constant 0 : i32
    %c0_i32_0 = arith.constant 0 : i32
    %c0_i32_1 = arith.constant 0 : i32
    %c0_i32_2 = arith.constant 0 : i32
    return %c0_i32, %c0_i32_0, %c0_i32_1 : i32, i32, i32
  }
  func.func @transform_31(%arg0: i32, %arg1: memref<2xi32, #tpu.memory_space<smem>>) -> (i32, i32, i32) {
    %c0_i32 = arith.constant 0 : i32
    %c0_i32_0 = arith.constant 0 : i32
    %c0_i32_1 = arith.constant 0 : i32
    %c0_i32_2 = arith.constant 0 : i32
    return %c0_i32, %c0_i32_0, %c0_i32_1 : i32, i32, i32
  }
  func.func @transform_32(%arg0: i32, %arg1: memref<2xi32, #tpu.memory_space<smem>>) -> (i32, i32, i32) {
    %c0_i32 = arith.constant 0 : i32
    %c0_i32_0 = arith.constant 0 : i32
    %c0_i32_1 = arith.constant 0 : i32
    %c0_i32_2 = arith.constant 0 : i32
    return %c0_i32, %c0_i32_0, %c0_i32_1 : i32, i32, i32
  }
  func.func @transform_33(%arg0: i32, %arg1: memref<2xi32, #tpu.memory_space<smem>>) -> (i32, i32, i32) {
    %c0_i32 = arith.constant 0 : i32
    %c0_i32_0 = arith.constant 0 : i32
    %c0_i32_1 = arith.constant 0 : i32
    %c0_i32_2 = arith.constant 0 : i32
    return %c0_i32, %c0_i32_0, %c0_i32_1 : i32, i32, i32
  }
  func.func @transform_34(%arg0: i32, %arg1: memref<2xi32, #tpu.memory_space<smem>>) -> (i32, i32, i32) {
    %c0_i32 = arith.constant 0 : i32
    %c0_i32_0 = arith.constant 0 : i32
    %c0_i32_1 = arith.constant 0 : i32
    %c0_i32_2 = arith.constant 0 : i32
    return %c0_i32, %c0_i32_0, %c0_i32_1 : i32, i32, i32
  }
  func.func @transform_35(%arg0: i32, %arg1: memref<2xi32, #tpu.memory_space<smem>>) -> (i32, i32) {
    %c0_i32 = arith.constant 0 : i32
    %c0_i32_0 = arith.constant 0 : i32
    %c0_i32_1 = arith.constant 0 : i32
    return %c0_i32, %c0_i32_0 : i32, i32
  }
  func.func @transform_36(%arg0: i32, %arg1: memref<2xi32, #tpu.memory_space<smem>>) -> (i32, i32) {
    %c0_i32 = arith.constant 0 : i32
    %c0_i32_0 = arith.constant 0 : i32
    %c0_i32_1 = arith.constant 0 : i32
    return %c0_i32, %c0_i32_0 : i32, i32
  }
  func.func @transform_37(%arg0: i32, %arg1: memref<2xi32, #tpu.memory_space<smem>>) -> (i32, i32, i32) {
    %c0_i32 = arith.constant 0 : i32
    %c0_i32_0 = arith.constant 0 : i32
    %c0_i32_1 = arith.constant 0 : i32
    return %arg0, %c0_i32, %c0_i32_0 : i32, i32, i32
  }
}

</mosaic_0001>

<llo_original>
// kernel: model_forward.4
$region0: #{model_forward.4}
  #allocation0 [shape = 'u32[]', space=smem, size = 0x4, offset = 0x4, fixed_abs, tag = 'smem constant byte address 0x4 - core index']
  #allocation1 [shape = 'u32[72,128]{1,0:T(1,128)}', space=vmem, size = 0x9000, scoped, tag = 'internal scratch']
  %s0 = inlined_call_operand.vmem [shape: f32[66,32], index: 0, kind: input, shape index: {}]
  %s1 = inlined_call_operand.vmem [shape: f32[32,17], index: 1, kind: input, shape index: {}]
  %s2 = inlined_call_operand.vmem [shape: f32[32,17], index: 2, kind: input, shape index: {}]
  %s3 = inlined_call_operand.vmem [shape: f32[17,128], index: 3, kind: input, shape index: {}]
  %s4 = inlined_call_operand.vmem [shape: f32[66,128], index: 4, kind: output, shape index: {}]
  %s5 = sld [smem:[#allocation0]]
  $region26: #{model_forward.4} parent=0
    _
  %s7 = ssub.s32 1, %s5
  %s8 = scalar_select 0, %s7, %s5
  // Predicated region
  $region2: #{model_forward.4} parent=0 // pred_check
    _
  $region3: #{model_forward.4} parent=0 // pred_check_branch
    %10 = sbr.rel (0) target = $region5
  $region4: #{model_forward.4} parent=0 // pred_region
    _
  $region5: #{model_forward.4} parent=0 // pred_fallthru
    _
  // Predicated region
  $region6: #{model_forward.4} parent=0 // pred_check
    _
  $region7: #{model_forward.4} parent=0 // pred_check_branch
    %12 = sbr.rel (0) target = $region9
  $region8: #{model_forward.4} parent=0 // pred_region
    _
  $region9: #{model_forward.4} parent=0 // pred_fallthru
    _
  // Predicated region
  $region10: #{model_forward.4} parent=0 // pred_check
    _
  $region11: #{model_forward.4} parent=0 // pred_check_branch
    %14 = sbr.rel (0) target = $region13
  $region12: #{model_forward.4} parent=0 // pred_region
    _
  $region13: #{model_forward.4} parent=0 // pred_fallthru
    _
  // Predicated region
  $region14: #{model_forward.4} parent=0 // pred_check
    _
  $region15: #{model_forward.4} parent=0 // pred_check_branch
    %16 = sbr.rel (0) target = $region17
  $region16: #{model_forward.4} parent=0 // pred_region
    _
  $region17: #{model_forward.4} parent=0 // pred_fallthru
    _
  %v17 = vld [vmem:[%s0] sm:$0xff]
  %v18 = vld [vmem:[%s0 + $0x8] sm:$0xff]
  %v19 = vld [vmem:[%s0 + $0x10] sm:$0xff]
  %v20 = vld [vmem:[%s0 + $0x18] sm:$0xff]
  %v21 = vld [vmem:[%s0 + $0x20] sm:$0xff]
  %v22 = vld [vmem:[%s0 + $0x28] sm:$0xff]
  %v23 = vld [vmem:[%s0 + $0x30] sm:$0xff]
  %v24 = vld [vmem:[%s0 + $0x38] sm:$0xff]
  %v25 = vld [vmem:[%s0 + $0x40] sm:$0x3]
  %v26 = vld [vmem:[%s1] sm:$0xff]
  %v27 = vld [vmem:[%s1 + $0x8] sm:$0xff]
  %v28 = vld [vmem:[%s1 + $0x10] sm:$0xff]
  %v29 = vld [vmem:[%s1 + $0x18] sm:$0xff]
  %vm30 = vcmask 261120
  %v32 = vsel %vm30, %v17, 0
  %v35 = vsel %vm30, %v18, 0
  %v38 = vsel %vm30, %v19, 0
  %v41 = vsel %vm30, %v20, 0
  %v44 = vsel %vm30, %v21, 0
  %v47 = vsel %vm30, %v22, 0
  %v50 = vsel %vm30, %v23, 0
  %v53 = vsel %vm30, %v24, 0
  %v56 = vsel %vm30, %v25, 0
  %58 = vmatpush.msra.mxu0 0.0
  %59 = vmatpush.msra.mxu0 0.0
  %60 = vmatpush.msra.mxu0 0.0
  %61 = vmatpush.msra.mxu0 0.0
  %62 = vmatpush.msra.mxu0 0.0
  %63 = vmatpush.msra.mxu0 0.0
  %64 = vmatpush.msra.mxu0 0.0
  %65 = vmatpush.msra.mxu0 0.0
  %66 = vmatpush.msra.mxu0 0.0
  %67 = vmatpush.msra.mxu0 0.0
  %68 = vmatpush.msra.mxu0 0.0
  %69 = vmatpush.msra.mxu0 0.0
  %70 = vmatpush.msra.mxu0 %v29
  %71 = vmatpush.msra.mxu0 %v28
  %72 = vmatpush.msra.mxu0 %v27
  %73 = vmatpush.msra.mxu0 %v26
  %74 = vmatmul.f32.gmra.mxu0 %v32
  %v75 = vpop.f32.mrf.mxu0
  %v76 = vadd.f32 0.0, %v75
  %77 = vmatmul.f32.gmra.mxu0 %v35
  %v78 = vpop.f32.mrf.mxu0
  %v79 = vadd.f32 0.0, %v78
  %80 = vmatmul.f32.gmra.mxu0 %v38
  %v81 = vpop.f32.mrf.mxu0
  %v82 = vadd.f32 0.0, %v81
  %83 = vmatmul.f32.gmra.mxu0 %v41
  %v84 = vpop.f32.mrf.mxu0
  %v85 = vadd.f32 0.0, %v84
  %86 = vmatmul.f32.gmra.mxu0 %v44
  %v87 = vpop.f32.mrf.mxu0
  %v88 = vadd.f32 0.0, %v87
  %89 = vmatmul.f32.gmra.mxu0 %v47
  %v90 = vpop.f32.mrf.mxu0
  %v91 = vadd.f32 0.0, %v90
  %92 = vmatmul.f32.gmra.mxu0 %v50
  %v93 = vpop.f32.mrf.mxu0
  %v94 = vadd.f32 0.0, %v93
  %95 = vmatmul.f32.gmra.mxu0 %v53
  %v96 = vpop.f32.mrf.mxu0
  %v97 = vadd.f32 0.0, %v96
  %98 = vmatmul.f32.gmra.mxu0 %v56
  %v99 = vpop.f32.mrf.mxu0
  %v100 = vadd.f32 0.0, %v99
  %101 = vdwg.mxu0
  %v102 = vld [vmem:[%s2] sm:$0xff]
  %v103 = vld [vmem:[%s2 + $0x8] sm:$0xff]
  %v104 = vld [vmem:[%s2 + $0x10] sm:$0xff]
  %v105 = vld [vmem:[%s2 + $0x18] sm:$0xff]
  %106 = vmatpush.msra.mxu0 0.0
  %107 = vmatpush.msra.mxu0 0.0
  %108 = vmatpush.msra.mxu0 0.0
  %109 = vmatpush.msra.mxu0 0.0
  %110 = vmatpush.msra.mxu0 0.0
  %111 = vmatpush.msra.mxu0 0.0
  %112 = vmatpush.msra.mxu0 0.0
  %113 = vmatpush.msra.mxu0 0.0
  %114 = vmatpush.msra.mxu0 0.0
  %115 = vmatpush.msra.mxu0 0.0
  %116 = vmatpush.msra.mxu0 0.0
  %117 = vmatpush.msra.mxu0 0.0
  %118 = vmatpush.msra.mxu0 %v105
  %119 = vmatpush.msra.mxu0 %v104
  %120 = vmatpush.msra.mxu0 %v103
  %121 = vmatpush.msra.mxu0 %v102
  %122 = vmatmul.f32.gmra.mxu0 %v32
  %v123 = vpop.f32.mrf.mxu0
  %v124 = vadd.f32 0.0, %v123
  %125 = vmatmul.f32.gmra.mxu0 %v35
  %v126 = vpop.f32.mrf.mxu0
  %v127 = vadd.f32 0.0, %v126
  %128 = vmatmul.f32.gmra.mxu0 %v38
  %v129 = vpop.f32.mrf.mxu0
  %v130 = vadd.f32 0.0, %v129
  %131 = vmatmul.f32.gmra.mxu0 %v41
  %v132 = vpop.f32.mrf.mxu0
  %v133 = vadd.f32 0.0, %v132
  %134 = vmatmul.f32.gmra.mxu0 %v44
  %v135 = vpop.f32.mrf.mxu0
  %v136 = vadd.f32 0.0, %v135
  %137 = vmatmul.f32.gmra.mxu0 %v47
  %v138 = vpop.f32.mrf.mxu0
  %v139 = vadd.f32 0.0, %v138
  %140 = vmatmul.f32.gmra.mxu0 %v50
  %v141 = vpop.f32.mrf.mxu0
  %v142 = vadd.f32 0.0, %v141
  %143 = vmatmul.f32.gmra.mxu0 %v53
  %v144 = vpop.f32.mrf.mxu0
  %v145 = vadd.f32 0.0, %v144
  %146 = vmatmul.f32.gmra.mxu0 %v56
  %v147 = vpop.f32.mrf.mxu0
  %v148 = vadd.f32 0.0, %v147
  %149 = vdwg.mxu0
  %v150 = vmul.f32 %v76, %v76
  %v151 = vmul.f32 %v79, %v79
  %v152 = vmul.f32 %v82, %v82
  %v153 = vmul.f32 %v85, %v85
  %v154 = vmul.f32 %v88, %v88
  %v155 = vmul.f32 %v91, %v91
  %v156 = vmul.f32 %v94, %v94
  %v157 = vmul.f32 %v97, %v97
  %v158 = vmul.f32 %v100, %v100
  %v159 = vmul.f32 %v124, %v124
  %v160 = vmul.f32 %v127, %v127
  %v161 = vmul.f32 %v130, %v130
  %v162 = vmul.f32 %v133, %v133
  %v163 = vmul.f32 %v136, %v136
  %v164 = vmul.f32 %v139, %v139
  %v165 = vmul.f32 %v142, %v142
  %v166 = vmul.f32 %v145, %v145
  %v167 = vmul.f32 %v148, %v148
  %v168 = vadd.f32 %v150, %v159
  %v169 = vadd.f32 %v151, %v160
  %v170 = vadd.f32 %v152, %v161
  %v171 = vadd.f32 %v153, %v162
  %v172 = vadd.f32 %v154, %v163
  %v173 = vadd.f32 %v155, %v164
  %v174 = vadd.f32 %v156, %v165
  %v175 = vadd.f32 %v157, %v166
  %v176 = vadd.f32 %v158, %v167
  %v177 = vld [vmem:[%s3] sm:$0xff]
  %v178 = vld [vmem:[%s3 + $0x8] sm:$0xff]
  %v179 = vld [vmem:[%s3 + $0x10] sm:$0x1]
  %vm180 = vcmask 138240
  %v182 = vsel %vm180, %v168, 0
  %v185 = vsel %vm180, %v169, 0
  %v188 = vsel %vm180, %v170, 0
  %v191 = vsel %vm180, %v171, 0
  %v194 = vsel %vm180, %v172, 0
  %v197 = vsel %vm180, %v173, 0
  %v200 = vsel %vm180, %v174, 0
  %v203 = vsel %vm180, %v175, 0
  %v206 = vsel %vm180, %v176, 0
  %vm208 = vcmask 1040384
  %v210 = vsel %vm208, %v179, 0
  %212 = vmatpush.msra.mxu0 0.0
  %213 = vmatpush.msra.mxu0 0.0
  %214 = vmatpush.msra.mxu0 0.0
  %215 = vmatpush.msra.mxu0 0.0
  %216 = vmatpush.msra.mxu0 0.0
  %217 = vmatpush.msra.mxu0 0.0
  %218 = vmatpush.msra.mxu0 0.0
  %219 = vmatpush.msra.mxu0 0.0
  %220 = vmatpush.msra.mxu0 0.0
  %221 = vmatpush.msra.mxu0 0.0
  %222 = vmatpush.msra.mxu0 0.0
  %223 = vmatpush.msra.mxu0 0.0
  %224 = vmatpush.msra.mxu0 0.0
  %225 = vmatpush.msra.mxu0 %v210
  %226 = vmatpush.msra.mxu0 %v178
  %227 = vmatpush.msra.mxu0 %v177
  %228 = vmatmul.f32.gmra.mxu0 %v182
  %v229 = vpop.f32.mrf.mxu0
  %v230 = vadd.f32 0.0, %v229
  %231 = vmatmul.f32.gmra.mxu0 %v185
  %v232 = vpop.f32.mrf.mxu0
  %v233 = vadd.f32 0.0, %v232
  %234 = vmatmul.f32.gmra.mxu0 %v188
  %v235 = vpop.f32.mrf.mxu0
  %v236 = vadd.f32 0.0, %v235
  %237 = vmatmul.f32.gmra.mxu0 %v191
  %v238 = vpop.f32.mrf.mxu0
  %v239 = vadd.f32 0.0, %v238
  %240 = vmatmul.f32.gmra.mxu0 %v194
  %v241 = vpop.f32.mrf.mxu0
  %v242 = vadd.f32 0.0, %v241
  %243 = vmatmul.f32.gmra.mxu0 %v197
  %v244 = vpop.f32.mrf.mxu0
  %v245 = vadd.f32 0.0, %v244
  %246 = vmatmul.f32.gmra.mxu0 %v200
  %v247 = vpop.f32.mrf.mxu0
  %v248 = vadd.f32 0.0, %v247
  %249 = vmatmul.f32.gmra.mxu0 %v203
  %v250 = vpop.f32.mrf.mxu0
  %v251 = vadd.f32 0.0, %v250
  %252 = vmatmul.f32.gmra.mxu0 %v206
  %v253 = vpop.f32.mrf.mxu0
  %v254 = vadd.f32 0.0, %v253
  %255 = vdwg.mxu0
  %v256 = vmax.f32 %v230, 1e-10
  %v257 = vmax.f32 %v233, 1e-10
  %v258 = vmax.f32 %v236, 1e-10
  %v259 = vmax.f32 %v239, 1e-10
  %v260 = vmax.f32 %v242, 1e-10
  %v261 = vmax.f32 %v245, 1e-10
  %v262 = vmax.f32 %v248, 1e-10
  %v263 = vmax.f32 %v251, 1e-10
  %v264 = vmax.f32 %v254, 1e-10
  %v265 = vlog2.pop %v256
  %v266 = vmul.f32 %v265, 0.6931472
  %v267 = vlog2.pop %v257
  %v268 = vmul.f32 %v267, 0.6931472
  %v269 = vlog2.pop %v258
  %v270 = vmul.f32 %v269, 0.6931472
  %v271 = vlog2.pop %v259
  %v272 = vmul.f32 %v271, 0.6931472
  %v273 = vlog2.pop %v260
  %v274 = vmul.f32 %v273, 0.6931472
  %v275 = vlog2.pop %v261
  %v276 = vmul.f32 %v275, 0.6931472
  %v277 = vlog2.pop %v262
  %v278 = vmul.f32 %v277, 0.6931472
  %v279 = vlog2.pop %v263
  %v280 = vmul.f32 %v279, 0.6931472
  %v281 = vlog2.pop %v264
  %v282 = vmul.f32 %v281, 0.6931472
  %v283 = vmul.f32 %v266, 0.4342945
  %v284 = vmul.f32 %v268, 0.4342945
  %v285 = vmul.f32 %v270, 0.4342945
  %v286 = vmul.f32 %v272, 0.4342945
  %v287 = vmul.f32 %v274, 0.4342945
  %v288 = vmul.f32 %v276, 0.4342945
  %v289 = vmul.f32 %v278, 0.4342945
  %v290 = vmul.f32 %v280, 0.4342945
  %v291 = vmul.f32 %v282, 0.4342945
  %292 = vst [vmem:[%s4] sm:$0xff] %v283
  %293 = vst [vmem:[%s4 + $0x8] sm:$0xff] %v284
  %294 = vst [vmem:[%s4 + $0x10] sm:$0xff] %v285
  %295 = vst [vmem:[%s4 + $0x18] sm:$0xff] %v286
  %296 = vst [vmem:[%s4 + $0x20] sm:$0xff] %v287
  %297 = vst [vmem:[%s4 + $0x28] sm:$0xff] %v288
  %298 = vst [vmem:[%s4 + $0x30] sm:$0xff] %v289
  %299 = vst [vmem:[%s4 + $0x38] sm:$0xff] %v290
  %300 = vst [vmem:[%s4 + $0x40] sm:$0x3] %v291
  // Predicated region
  $region18: #{model_forward.4} parent=0 // pred_check
    _
  $region19: #{model_forward.4} parent=0 // pred_check_branch
    %302 = sbr.rel (0) target = $region21
  $region20: #{model_forward.4} parent=0 // pred_region
    _
  $region21: #{model_forward.4} parent=0 // pred_fallthru
    _
  // Predicated region
  $region22: #{model_forward.4} parent=0 // pred_check
    _
  $region23: #{model_forward.4} parent=0 // pred_check_branch
    %304 = sbr.rel (0) target = $region25
  $region24: #{model_forward.4} parent=0 // pred_region
    _
  $region25: #{model_forward.4} parent=0 // pred_fallthru
    _

// kernel: model_forward.5
$region0: #{model_forward.5}
  #allocation0 [shape = 'u32[]', space=smem, size = 0x4, offset = 0x4, fixed_abs, tag = 'smem constant byte address 0x4 - core index']
  #allocation1 [shape = 'u32[72,128]{1,0:T(1,128)}', space=vmem, size = 0x9000, scoped, tag = 'internal scratch']
  %s0 = inlined_call_operand.vmem [shape: f32[2048,9], index: 0, kind: input, shape index: {}]
  %s1 = inlined_call_operand.vmem [shape: f32[9,8], index: 1, kind: input, shape index: {}]
  %s2 = inlined_call_operand.vmem [shape: f32[1,8], index: 2, kind: input, shape index: {}]
  %s3 = inlined_call_operand.vmem [shape: f32[2048,8], index: 3, kind: output, shape index: {}]
  %s4 = sld [smem:[#allocation0]]
  $region22: #{model_forward.5} parent=0
    _
  %s6 = ssub.s32 1, %s4
  %s7 = scalar_select 0, %s6, %s4
  // Predicated region
  $region2: #{model_forward.5} parent=0 // pred_check
    _
  $region3: #{model_forward.5} parent=0 // pred_check_branch
    %9 = sbr.rel (0) target = $region5
  $region4: #{model_forward.5} parent=0 // pred_region
    _
  $region5: #{model_forward.5} parent=0 // pred_fallthru
    _
  // Predicated region
  $region6: #{model_forward.5} parent=0 // pred_check
    _
  $region7: #{model_forward.5} parent=0 // pred_check_branch
    %11 = sbr.rel (0) target = $region9
  $region8: #{model_forward.5} parent=0 // pred_region
    _
  $region9: #{model_forward.5} parent=0 // pred_fallthru
    _
  // Predicated region
  $region10: #{model_forward.5} parent=0 // pred_check
    _
  $region11: #{model_forward.5} parent=0 // pred_check_branch
    %13 = sbr.rel (0) target = $region13
  $region12: #{model_forward.5} parent=0 // pred_region
    _
  $region13: #{model_forward.5} parent=0 // pred_fallthru
    _
  %v14 = vld [vmem:[%s0] sm:$0xff]
  %v15 = vld [vmem:[%s0 + $0x8] sm:$0xff]
  %v16 = vld [vmem:[%s0 + $0x10] sm:$0xff]
  %v17 = vld [vmem:[%s0 + $0x18] sm:$0xff]
  %v18 = vld [vmem:[%s0 + $0x20] sm:$0xff]
  %v19 = vld [vmem:[%s0 + $0x28] sm:$0xff]
  %v20 = vld [vmem:[%s0 + $0x30] sm:$0xff]
  %v21 = vld [vmem:[%s0 + $0x38] sm:$0xff]
  %v22 = vld [vmem:[%s0 + $0x40] sm:$0xff]
  %v23 = vld [vmem:[%s0 + $0x48] sm:$0xff]
  %v24 = vld [vmem:[%s0 + $0x50] sm:$0xff]
  %v25 = vld [vmem:[%s0 + $0x58] sm:$0xff]
  %v26 = vld [vmem:[%s0 + $0x60] sm:$0xff]
  %v27 = vld [vmem:[%s0 + $0x68] sm:$0xff]
  %v28 = vld [vmem:[%s0 + $0x70] sm:$0xff]
  %v29 = vld [vmem:[%s0 + $0x78] sm:$0xff]
  %v30 = vld [vmem:[%s0 + $0x80] sm:$0xff]
  %v31 = vld [vmem:[%s0 + $0x88] sm:$0xff]
  %v32 = vld [vmem:[%s0 + $0x90] sm:$0xff]
  %v33 = vld [vmem:[%s0 + $0x98] sm:$0xff]
  %v34 = vld [vmem:[%s0 + $0xa0] sm:$0xff]
  %v35 = vld [vmem:[%s0 + $0xa8] sm:$0xff]
  %v36 = vld [vmem:[%s0 + $0xb0] sm:$0xff]
  %v37 = vld [vmem:[%s0 + $0xb8] sm:$0xff]
  %v38 = vld [vmem:[%s0 + $0xc0] sm:$0xff]
  %v39 = vld [vmem:[%s0 + $0xc8] sm:$0xff]
  %v40 = vld [vmem:[%s0 + $0xd0] sm:$0xff]
  %v41 = vld [vmem:[%s0 + $0xd8] sm:$0xff]
  %v42 = vld [vmem:[%s0 + $0xe0] sm:$0xff]
  %v43 = vld [vmem:[%s0 + $0xe8] sm:$0xff]
  %v44 = vld [vmem:[%s0 + $0xf0] sm:$0xff]
  %v45 = vld [vmem:[%s0 + $0xf8] sm:$0xff]
  %v46 = vld [vmem:[%s0 + $0x100] sm:$0xff]
  %v47 = vld [vmem:[%s0 + $0x108] sm:$0xff]
  %v48 = vld [vmem:[%s0 + $0x110] sm:$0xff]
  %v49 = vld [vmem:[%s0 + $0x118] sm:$0xff]
  %v50 = vld [vmem:[%s0 + $0x120] sm:$0xff]
  %v51 = vld [vmem:[%s0 + $0x128] sm:$0xff]
  %v52 = vld [vmem:[%s0 + $0x130] sm:$0xff]
  %v53 = vld [vmem:[%s0 + $0x138] sm:$0xff]
  %v54 = vld [vmem:[%s0 + $0x140] sm:$0xff]
  %v55 = vld [vmem:[%s0 + $0x148] sm:$0xff]
  %v56 = vld [vmem:[%s0 + $0x150] sm:$0xff]
  %v57 = vld [vmem:[%s0 + $0x158] sm:$0xff]
  %v58 = vld [vmem:[%s0 + $0x160] sm:$0xff]
  %v59 = vld [vmem:[%s0 + $0x168] sm:$0xff]
  %v60 = vld [vmem:[%s0 + $0x170] sm:$0xff]
  %v61 = vld [vmem:[%s0 + $0x178] sm:$0xff]
  %v62 = vld [vmem:[%s0 + $0x180] sm:$0xff]
  %v63 = vld [vmem:[%s0 + $0x188] sm:$0xff]
  %v64 = vld [vmem:[%s0 + $0x190] sm:$0xff]
  %v65 = vld [vmem:[%s0 + $0x198] sm:$0xff]
  %v66 = vld [vmem:[%s0 + $0x1a0] sm:$0xff]
  %v67 = vld [vmem:[%s0 + $0x1a8] sm:$0xff]
  %v68 = vld [vmem:[%s0 + $0x1b0] sm:$0xff]
  %v69 = vld [vmem:[%s0 + $0x1b8] sm:$0xff]
  %v70 = vld [vmem:[%s0 + $0x1c0] sm:$0xff]
  %v71 = vld [vmem:[%s0 + $0x1c8] sm:$0xff]
  %v72 = vld [vmem:[%s0 + $0x1d0] sm:$0xff]
  %v73 = vld [vmem:[%s0 + $0x1d8] sm:$0xff]
  %v74 = vld [vmem:[%s0 + $0x1e0] sm:$0xff]
  %v75 = vld [vmem:[%s0 + $0x1e8] sm:$0xff]
  %v76 = vld [vmem:[%s0 + $0x1f0] sm:$0xff]
  %v77 = vld [vmem:[%s0 + $0x1f8] sm:$0xff]
  %v78 = vld [vmem:[%s0 + $0x200] sm:$0xff]
  %v79 = vld [vmem:[%s0 + $0x208] sm:$0xff]
  %v80 = vld [vmem:[%s0 + $0x210] sm:$0xff]
  %v81 = vld [vmem:[%s0 + $0x218] sm:$0xff]
  %v82 = vld [vmem:[%s0 + $0x220] sm:$0xff]
  %v83 = vld [vmem:[%s0 + $0x228] sm:$0xff]
  %v84 = vld [vmem:[%s0 + $0x230] sm:$0xff]
  %v85 = vld [vmem:[%s0 + $0x238] sm:$0xff]
  %v86 = vld [vmem:[%s0 + $0x240] sm:$0xff]
  %v87 = vld [vmem:[%s0 + $0x248] sm:$0xff]
  %v88 = vld [vmem:[%s0 + $0x250] sm:$0xff]
  %v89 = vld [vmem:[%s0 + $0x258] sm:$0xff]
  %v90 = vld [vmem:[%s0 + $0x260] sm:$0xff]
  %v91 = vld [vmem:[%s0 + $0x268] sm:$0xff]
  %v92 = vld [vmem:[%s0 + $0x270] sm:$0xff]
  %v93 = vld [vmem:[%s0 + $0x278] sm:$0xff]
  %v94 = vld [vmem:[%s0 + $0x280] sm:$0xff]
  %v95 = vld [vmem:[%s0 + $0x288] sm:$0xff]
  %v96 = vld [vmem:[%s0 + $0x290] sm:$0xff]
  %v97 = vld [vmem:[%s0 + $0x298] sm:$0xff]
  %v98 = vld [vmem:[%s0 + $0x2a0] sm:$0xff]
  %v99 = vld [vmem:[%s0 + $0x2a8] sm:$0xff]
  %v100 = vld [vmem:[%s0 + $0x2b0] sm:$0xff]
  %v101 = vld [vmem:[%s0 + $0x2b8] sm:$0xff]
  %v102 = vld [vmem:[%s0 + $0x2c0] sm:$0xff]
  %v103 = vld [vmem:[%s0 + $0x2c8] sm:$0xff]
  %v104 = vld [vmem:[%s0 + $0x2d0] sm:$0xff]
  %v105 = vld [vmem:[%s0 + $0x2d8] sm:$0xff]
  %v106 = vld [vmem:[%s0 + $0x2e0] sm:$0xff]
  %v107 = vld [vmem:[%s0 + $0x2e8] sm:$0xff]
  %v108 = vld [vmem:[%s0 + $0x2f0] sm:$0xff]
  %v109 = vld [vmem:[%s0 + $0x2f8] sm:$0xff]
  %v110 = vld [vmem:[%s0 + $0x300] sm:$0xff]
  %v111 = vld [vmem:[%s0 + $0x308] sm:$0xff]
  %v112 = vld [vmem:[%s0 + $0x310] sm:$0xff]
  %v113 = vld [vmem:[%s0 + $0x318] sm:$0xff]
  %v114 = vld [vmem:[%s0 + $0x320] sm:$0xff]
  %v115 = vld [vmem:[%s0 + $0x328] sm:$0xff]
  %v116 = vld [vmem:[%s0 + $0x330] sm:$0xff]
  %v117 = vld [vmem:[%s0 + $0x338] sm:$0xff]
  %v118 = vld [vmem:[%s0 + $0x340] sm:$0xff]
  %v119 = vld [vmem:[%s0 + $0x348] sm:$0xff]
  %v120 = vld [vmem:[%s0 + $0x350] sm:$0xff]
  %v121 = vld [vmem:[%s0 + $0x358] sm:$0xff]
  %v122 = vld [vmem:[%s0 + $0x360] sm:$0xff]
  %v123 = vld [vmem:[%s0 + $0x368] sm:$0xff]
  %v124 = vld [vmem:[%s0 + $0x370] sm:$0xff]
  %v125 = vld [vmem:[%s0 + $0x378] sm:$0xff]
  %v126 = vld [vmem:[%s0 + $0x380] sm:$0xff]
  %v127 = vld [vmem:[%s0 + $0x388] sm:$0xff]
  %v128 = vld [vmem:[%s0 + $0x390] sm:$0xff]
  %v129 = vld [vmem:[%s0 + $0x398] sm:$0xff]
  %v130 = vld [vmem:[%s0 + $0x3a0] sm:$0xff]
  %v131 = vld [vmem:[%s0 + $0x3a8] sm:$0xff]
  %v132 = vld [vmem:[%s0 + $0x3b0] sm:$0xff]
  %v133 = vld [vmem:[%s0 + $0x3b8] sm:$0xff]
  %v134 = vld [vmem:[%s0 + $0x3c0] sm:$0xff]
  %v135 = vld [vmem:[%s0 + $0x3c8] sm:$0xff]
  %v136 = vld [vmem:[%s0 + $0x3d0] sm:$0xff]
  %v137 = vld [vmem:[%s0 + $0x3d8] sm:$0xff]
  %v138 = vld [vmem:[%s0 + $0x3e0] sm:$0xff]
  %v139 = vld [vmem:[%s0 + $0x3e8] sm:$0xff]
  %v140 = vld [vmem:[%s0 + $0x3f0] sm:$0xff]
  %v141 = vld [vmem:[%s0 + $0x3f8] sm:$0xff]
  %v142 = vld [vmem:[%s0 + $0x400] sm:$0xff]
  %v143 = vld [vmem:[%s0 + $0x408] sm:$0xff]
  %v144 = vld [vmem:[%s0 + $0x410] sm:$0xff]
  %v145 = vld [vmem:[%s0 + $0x418] sm:$0xff]
  %v146 = vld [vmem:[%s0 + $0x420] sm:$0xff]
  %v147 = vld [vmem:[%s0 + $0x428] sm:$0xff]
  %v148 = vld [vmem:[%s0 + $0x430] sm:$0xff]
  %v149 = vld [vmem:[%s0 + $0x438] sm:$0xff]
  %v150 = vld [vmem:[%s0 + $0x440] sm:$0xff]
  %v151 = vld [vmem:[%s0 + $0x448] sm:$0xff]
  %v152 = vld [vmem:[%s0 + $0x450] sm:$0xff]
  %v153 = vld [vmem:[%s0 + $0x458] sm:$0xff]
  %v154 = vld [vmem:[%s0 + $0x460] sm:$0xff]
  %v155 = vld [vmem:[%s0 + $0x468] sm:$0xff]
  %v156 = vld [vmem:[%s0 + $0x470] sm:$0xff]
  %v157 = vld [vmem:[%s0 + $0x478] sm:$0xff]
  %v158 = vld [vmem:[%s0 + $0x480] sm:$0xff]
  %v159 = vld [vmem:[%s0 + $0x488] sm:$0xff]
  %v160 = vld [vmem:[%s0 + $0x490] sm:$0xff]
  %v161 = vld [vmem:[%s0 + $0x498] sm:$0xff]
  %v162 = vld [vmem:[%s0 + $0x4a0] sm:$0xff]
  %v163 = vld [vmem:[%s0 + $0x4a8] sm:$0xff]
  %v164 = vld [vmem:[%s0 + $0x4b0] sm:$0xff]
  %v165 = vld [vmem:[%s0 + $0x4b8] sm:$0xff]
  %v166 = vld [vmem:[%s0 + $0x4c0] sm:$0xff]
  %v167 = vld [vmem:[%s0 + $0x4c8] sm:$0xff]
  %v168 = vld [vmem:[%s0 + $0x4d0] sm:$0xff]
  %v169 = vld [vmem:[%s0 + $0x4d8] sm:$0xff]
  %v170 = vld [vmem:[%s0 + $0x4e0] sm:$0xff]
  %v171 = vld [vmem:[%s0 + $0x4e8] sm:$0xff]
  %v172 = vld [vmem:[%s0 + $0x4f0] sm:$0xff]
  %v173 = vld [vmem:[%s0 + $0x4f8] sm:$0xff]
  %v174 = vld [vmem:[%s0 + $0x500] sm:$0xff]
  %v175 = vld [vmem:[%s0 + $0x508] sm:$0xff]
  %v176 = vld [vmem:[%s0 + $0x510] sm:$0xff]
  %v177 = vld [vmem:[%s0 + $0x518] sm:$0xff]
  %v178 = vld [vmem:[%s0 + $0x520] sm:$0xff]
  %v179 = vld [vmem:[%s0 + $0x528] sm:$0xff]
  %v180 = vld [vmem:[%s0 + $0x530] sm:$0xff]
  %v181 = vld [vmem:[%s0 + $0x538] sm:$0xff]
  %v182 = vld [vmem:[%s0 + $0x540] sm:$0xff]
  %v183 = vld [vmem:[%s0 + $0x548] sm:$0xff]
  %v184 = vld [vmem:[%s0 + $0x550] sm:$0xff]
  %v185 = vld [vmem:[%s0 + $0x558] sm:$0xff]
  %v186 = vld [vmem:[%s0 + $0x560] sm:$0xff]
  %v187 = vld [vmem:[%s0 + $0x568] sm:$0xff]
  %v188 = vld [vmem:[%s0 + $0x570] sm:$0xff]
  %v189 = vld [vmem:[%s0 + $0x578] sm:$0xff]
  %v190 = vld [vmem:[%s0 + $0x580] sm:$0xff]
  %v191 = vld [vmem:[%s0 + $0x588] sm:$0xff]
  %v192 = vld [vmem:[%s0 + $0x590] sm:$0xff]
  %v193 = vld [vmem:[%s0 + $0x598] sm:$0xff]
  %v194 = vld [vmem:[%s0 + $0x5a0] sm:$0xff]
  %v195 = vld [vmem:[%s0 + $0x5a8] sm:$0xff]
  %v196 = vld [vmem:[%s0 + $0x5b0] sm:$0xff]
  %v197 = vld [vmem:[%s0 + $0x5b8] sm:$0xff]
  %v198 = vld [vmem:[%s0 + $0x5c0] sm:$0xff]
  %v199 = vld [vmem:[%s0 + $0x5c8] sm:$0xff]
  %v200 = vld [vmem:[%s0 + $0x5d0] sm:$0xff]
  %v201 = vld [vmem:[%s0 + $0x5d8] sm:$0xff]
  %v202 = vld [vmem:[%s0 + $0x5e0] sm:$0xff]
  %v203 = vld [vmem:[%s0 + $0x5e8] sm:$0xff]
  %v204 = vld [vmem:[%s0 + $0x5f0] sm:$0xff]
  %v205 = vld [vmem:[%s0 + $0x5f8] sm:$0xff]
  %v206 = vld [vmem:[%s0 + $0x600] sm:$0xff]
  %v207 = vld [vmem:[%s0 + $0x608] sm:$0xff]
  %v208 = vld [vmem:[%s0 + $0x610] sm:$0xff]
  %v209 = vld [vmem:[%s0 + $0x618] sm:$0xff]
  %v210 = vld [vmem:[%s0 + $0x620] sm:$0xff]
  %v211 = vld [vmem:[%s0 + $0x628] sm:$0xff]
  %v212 = vld [vmem:[%s0 + $0x630] sm:$0xff]
  %v213 = vld [vmem:[%s0 + $0x638] sm:$0xff]
  %v214 = vld [vmem:[%s0 + $0x640] sm:$0xff]
  %v215 = vld [vmem:[%s0 + $0x648] sm:$0xff]
  %v216 = vld [vmem:[%s0 + $0x650] sm:$0xff]
  %v217 = vld [vmem:[%s0 + $0x658] sm:$0xff]
  %v218 = vld [vmem:[%s0 + $0x660] sm:$0xff]
  %v219 = vld [vmem:[%s0 + $0x668] sm:$0xff]
  %v220 = vld [vmem:[%s0 + $0x670] sm:$0xff]
  %v221 = vld [vmem:[%s0 + $0x678] sm:$0xff]
  %v222 = vld [vmem:[%s0 + $0x680] sm:$0xff]
  %v223 = vld [vmem:[%s0 + $0x688] sm:$0xff]
  %v224 = vld [vmem:[%s0 + $0x690] sm:$0xff]
  %v225 = vld [vmem:[%s0 + $0x698] sm:$0xff]
  %v226 = vld [vmem:[%s0 + $0x6a0] sm:$0xff]
  %v227 = vld [vmem:[%s0 + $0x6a8] sm:$0xff]
  %v228 = vld [vmem:[%s0 + $0x6b0] sm:$0xff]
  %v229 = vld [vmem:[%s0 + $0x6b8] sm:$0xff]
  %v230 = vld [vmem:[%s0 + $0x6c0] sm:$0xff]
  %v231 = vld [vmem:[%s0 + $0x6c8] sm:$0xff]
  %v232 = vld [vmem:[%s0 + $0x6d0] sm:$0xff]
  %v233 = vld [vmem:[%s0 + $0x6d8] sm:$0xff]
  %v234 = vld [vmem:[%s0 + $0x6e0] sm:$0xff]
  %v235 = vld [vmem:[%s0 + $0x6e8] sm:$0xff]
  %v236 = vld [vmem:[%s0 + $0x6f0] sm:$0xff]
  %v237 = vld [vmem:[%s0 + $0x6f8] sm:$0xff]
  %v238 = vld [vmem:[%s0 + $0x700] sm:$0xff]
  %v239 = vld [vmem:[%s0 + $0x708] sm:$0xff]
  %v240 = vld [vmem:[%s0 + $0x710] sm:$0xff]
  %v241 = vld [vmem:[%s0 + $0x718] sm:$0xff]
  %v242 = vld [vmem:[%s0 + $0x720] sm:$0xff]
  %v243 = vld [vmem:[%s0 + $0x728] sm:$0xff]
  %v244 = vld [vmem:[%s0 + $0x730] sm:$0xff]
  %v245 = vld [vmem:[%s0 + $0x738] sm:$0xff]
  %v246 = vld [vmem:[%s0 + $0x740] sm:$0xff]
  %v247 = vld [vmem:[%s0 + $0x748] sm:$0xff]
  %v248 = vld [vmem:[%s0 + $0x750] sm:$0xff]
  %v249 = vld [vmem:[%s0 + $0x758] sm:$0xff]
  %v250 = vld [vmem:[%s0 + $0x760] sm:$0xff]
  %v251 = vld [vmem:[%s0 + $0x768] sm:$0xff]
  %v252 = vld [vmem:[%s0 + $0x770] sm:$0xff]
  %v253 = vld [vmem:[%s0 + $0x778] sm:$0xff]
  %v254 = vld [vmem:[%s0 + $0x780] sm:$0xff]
  %v255 = vld [vmem:[%s0 + $0x788] sm:$0xff]
  %v256 = vld [vmem:[%s0 + $0x790] sm:$0xff]
  %v257 = vld [vmem:[%s0 + $0x798] sm:$0xff]
  %v258 = vld [vmem:[%s0 + $0x7a0] sm:$0xff]
  %v259 = vld [vmem:[%s0 + $0x7a8] sm:$0xff]
  %v260 = vld [vmem:[%s0 + $0x7b0] sm:$0xff]
  %v261 = vld [vmem:[%s0 + $0x7b8] sm:$0xff]
  %v262 = vld [vmem:[%s0 + $0x7c0] sm:$0xff]
  %v263 = vld [vmem:[%s0 + $0x7c8] sm:$0xff]
  %v264 = vld [vmem:[%s0 + $0x7d0] sm:$0xff]
  %v265 = vld [vmem:[%s0 + $0x7d8] sm:$0xff]
  %v266 = vld [vmem:[%s0 + $0x7e0] sm:$0xff]
  %v267 = vld [vmem:[%s0 + $0x7e8] sm:$0xff]
  %v268 = vld [vmem:[%s0 + $0x7f0] sm:$0xff]
  %v269 = vld [vmem:[%s0 + $0x7f8] sm:$0xff]
  %v270 = vld [vmem:[%s1] sm:$0xff]
  %v271 = vld [vmem:[%s1 + $0x8] sm:$0x1]
  %v272 = vld [vmem:[%s2] sm:$0x1]
  %v274 = vperm.slane %v272, 0
  %vm276 = vcmask 72704
  %v278 = vsel %vm276, %v14, 0
  %v281 = vsel %vm276, %v15, 0
  %v284 = vsel %vm276, %v16, 0
  %v287 = vsel %vm276, %v17, 0
  %v290 = vsel %vm276, %v18, 0
  %v293 = vsel %vm276, %v19, 0
  %v296 = vsel %vm276, %v20, 0
  %v299 = vsel %vm276, %v21, 0
  %v302 = vsel %vm276, %v22, 0
  %v305 = vsel %vm276, %v23, 0
  %v308 = vsel %vm276, %v24, 0
  %v311 = vsel %vm276, %v25, 0
  %v314 = vsel %vm276, %v26, 0
  %v317 = vsel %vm276, %v27, 0
  %v320 = vsel %vm276, %v28, 0
  %v323 = vsel %vm276, %v29, 0
  %v326 = vsel %vm276, %v30, 0
  %v329 = vsel %vm276, %v31, 0
  %v332 = vsel %vm276, %v32, 0
  %v335 = vsel %vm276, %v33, 0
  %v338 = vsel %vm276, %v34, 0
  %v341 = vsel %vm276, %v35, 0
  %v344 = vsel %vm276, %v36, 0
  %v347 = vsel %vm276, %v37, 0
  %v350 = vsel %vm276, %v38, 0
  %v353 = vsel %vm276, %v39, 0
  %v356 = vsel %vm276, %v40, 0
  %v359 = vsel %vm276, %v41, 0
  %v362 = vsel %vm276, %v42, 0
  %v365 = vsel %vm276, %v43, 0
  %v368 = vsel %vm276, %v44, 0
  %v371 = vsel %vm276, %v45, 0
  %v374 = vsel %vm276, %v46, 0
  %v377 = vsel %vm276, %v47, 0
  %v380 = vsel %vm276, %v48, 0
  %v383 = vsel %vm276, %v49, 0
  %v386 = vsel %vm276, %v50, 0
  %v389 = vsel %vm276, %v51, 0
  %v392 = vsel %vm276, %v52, 0
  %v395 = vsel %vm276, %v53, 0
  %v398 = vsel %vm276, %v54, 0
  %v401 = vsel %vm276, %v55, 0
  %v404 = vsel %vm276, %v56, 0
  %v407 = vsel %vm276, %v57, 0
  %v410 = vsel %vm276, %v58, 0
  %v413 = vsel %vm276, %v59, 0
  %v416 = vsel %vm276, %v60, 0
  %v419 = vsel %vm276, %v61, 0
  %v422 = vsel %vm276, %v62, 0
  %v425 = vsel %vm276, %v63, 0
  %v428 = vsel %vm276, %v64, 0
  %v431 = vsel %vm276, %v65, 0
  %v434 = vsel %vm276, %v66, 0
  %v437 = vsel %vm276, %v67, 0
  %v440 = vsel %vm276, %v68, 0
  %v443 = vsel %vm276, %v69, 0
  %v446 = vsel %vm276, %v70, 0
  %v449 = vsel %vm276, %v71, 0
  %v452 = vsel %vm276, %v72, 0
  %v455 = vsel %vm276, %v73, 0
  %v458 = vsel %vm276, %v74, 0
  %v461 = vsel %vm276, %v75, 0
  %v464 = vsel %vm276, %v76, 0
  %v467 = vsel %vm276, %v77, 0
  %v470 = vsel %vm276, %v78, 0
  %v473 = vsel %vm276, %v79, 0
  %v476 = vsel %vm276, %v80, 0
  %v479 = vsel %vm276, %v81, 0
  %v482 = vsel %vm276, %v82, 0
  %v485 = vsel %vm276, %v83, 0
  %v488 = vsel %vm276, %v84, 0
  %v491 = vsel %vm276, %v85, 0
  %v494 = vsel %vm276, %v86, 0
  %v497 = vsel %vm276, %v87, 0
  %v500 = vsel %vm276, %v88, 0
  %v503 = vsel %vm276, %v89, 0
  %v506 = vsel %vm276, %v90, 0
  %v509 = vsel %vm276, %v91, 0
  %v512 = vsel %vm276, %v92, 0
  %v515 = vsel %vm276, %v93, 0
  %v518 = vsel %vm276, %v94, 0
  %v521 = vsel %vm276, %v95, 0
  %v524 = vsel %vm276, %v96, 0
  %v527 = vsel %vm276, %v97, 0
  %v530 = vsel %vm276, %v98, 0
  %v533 = vsel %vm276, %v99, 0
  %v536 = vsel %vm276, %v100, 0
  %v539 = vsel %vm276, %v101, 0
  %v542 = vsel %vm276, %v102, 0
  %v545 = vsel %vm276, %v103, 0
  %v548 = vsel %vm276, %v104, 0
  %v551 = vsel %vm276, %v105, 0
  %v554 = vsel %vm276, %v106, 0
  %v557 = vsel %vm276, %v107, 0
  %v560 = vsel %vm276, %v108, 0
  %v563 = vsel %vm276, %v109, 0
  %v566 = vsel %vm276, %v110, 0
  %v569 = vsel %vm276, %v111, 0
  %v572 = vsel %vm276, %v112, 0
  %v575 = vsel %vm276, %v113, 0
  %v578 = vsel %vm276, %v114, 0
  %v581 = vsel %vm276, %v115, 0
  %v584 = vsel %vm276, %v116, 0
  %v587 = vsel %vm276, %v117, 0
  %v590 = vsel %vm276, %v118, 0
  %v593 = vsel %vm276, %v119, 0
  %v596 = vsel %vm276, %v120, 0
  %v599 = vsel %vm276, %v121, 0
  %v602 = vsel %vm276, %v122, 0
  %v605 = vsel %vm276, %v123, 0
  %v608 = vsel %vm276, %v124, 0
  %v611 = vsel %vm276, %v125, 0
  %v614 = vsel %vm276, %v126, 0
  %v617 = vsel %vm276, %v127, 0
  %v620 = vsel %vm276, %v128, 0
  %v623 = vsel %vm276, %v129, 0
  %v626 = vsel %vm276, %v130, 0
  %v629 = vsel %vm276, %v131, 0
  %v632 = vsel %vm276, %v132, 0
  %v635 = vsel %vm276, %v133, 0
  %v638 = vsel %vm276, %v134, 0
  %v641 = vsel %vm276, %v135, 0
  %v644 = vsel %vm276, %v136, 0
  %v647 = vsel %vm276, %v137, 0
  %v650 = vsel %vm276, %v138, 0
  %v653 = vsel %vm276, %v139, 0
  %v656 = vsel %vm276, %v140, 0
  %v659 = vsel %vm276, %v141, 0
  %v662 = vsel %vm276, %v142, 0
  %v665 = vsel %vm276, %v143, 0
  %v668 = vsel %vm276, %v144, 0
  %v671 = vsel %vm276, %v145, 0
  %v674 = vsel %vm276, %v146, 0
  %v677 = vsel %vm276, %v147, 0
  %v680 = vsel %vm276, %v148, 0
  %v683 = vsel %vm276, %v149, 0
  %v686 = vsel %vm276, %v150, 0
  %v689 = vsel %vm276, %v151, 0
  %v692 = vsel %vm276, %v152, 0
  %v695 = vsel %vm276, %v153, 0
  %v698 = vsel %vm276, %v154, 0
  %v701 = vsel %vm276, %v155, 0
  %v704 = vsel %vm276, %v156, 0
  %v707 = vsel %vm276, %v157, 0
  %v710 = vsel %vm276, %v158, 0
  %v713 = vsel %vm276, %v159, 0
  %v716 = vsel %vm276, %v160, 0
  %v719 = vsel %vm276, %v161, 0
  %v722 = vsel %vm276, %v162, 0
  %v725 = vsel %vm276, %v163, 0
  %v728 = vsel %vm276, %v164, 0
  %v731 = vsel %vm276, %v165, 0
  %v734 = vsel %vm276, %v166, 0
  %v737 = vsel %vm276, %v167, 0
  %v740 = vsel %vm276, %v168, 0
  %v743 = vsel %vm276, %v169, 0
  %v746 = vsel %vm276, %v170, 0
  %v749 = vsel %vm276, %v171, 0
  %v752 = vsel %vm276, %v172, 0
  %v755 = vsel %vm276, %v173, 0
  %v758 = vsel %vm276, %v174, 0
  %v761 = vsel %vm276, %v175, 0
  %v764 = vsel %vm276, %v176, 0
  %v767 = vsel %vm276, %v177, 0
  %v770 = vsel %vm276, %v178, 0
  %v773 = vsel %vm276, %v179, 0
  %v776 = vsel %vm276, %v180, 0
  %v779 = vsel %vm276, %v181, 0
  %v782 = vsel %vm276, %v182, 0
  %v785 = vsel %vm276, %v183, 0
  %v788 = vsel %vm276, %v184, 0
  %v791 = vsel %vm276, %v185, 0
  %v794 = vsel %vm276, %v186, 0
  %v797 = vsel %vm276, %v187, 0
  %v800 = vsel %vm276, %v188, 0
  %v803 = vsel %vm276, %v189, 0
  %v806 = vsel %vm276, %v190, 0
  %v809 = vsel %vm276, %v191, 0
  %v812 = vsel %vm276, %v192, 0
  %v815 = vsel %vm276, %v193, 0
  %v818 = vsel %vm276, %v194, 0
  %v821 = vsel %vm276, %v195, 0
  %v824 = vsel %vm276, %v196, 0
  %v827 = vsel %vm276, %v197, 0
  %v830 = vsel %vm276, %v198, 0
  %v833 = vsel %vm276, %v199, 0
  %v836 = vsel %vm276, %v200, 0
  %v839 = vsel %vm276, %v201, 0
  %v842 = vsel %vm276, %v202, 0
  %v845 = vsel %vm276, %v203, 0
  %v848 = vsel %vm276, %v204, 0
  %v851 = vsel %vm276, %v205, 0
  %v854 = vsel %vm276, %v206, 0
  %v857 = vsel %vm276, %v207, 0
  %v860 = vsel %vm276, %v208, 0
  %v863 = vsel %vm276, %v209, 0
  %v866 = vsel %vm276, %v210, 0
  %v869 = vsel %vm276, %v211, 0
  %v872 = vsel %vm276, %v212, 0
  %v875 = vsel %vm276, %v213, 0
  %v878 = vsel %vm276, %v214, 0
  %v881 = vsel %vm276, %v215, 0
  %v884 = vsel %vm276, %v216, 0
  %v887 = vsel %vm276, %v217, 0
  %v890 = vsel %vm276, %v218, 0
  %v893 = vsel %vm276, %v219, 0
  %v896 = vsel %vm276, %v220, 0
  %v899 = vsel %vm276, %v221, 0
  %v902 = vsel %vm276, %v222, 0
  %v905 = vsel %vm276, %v223, 0
  %v908 = vsel %vm276, %v224, 0
  %v911 = vsel %vm276, %v225, 0
  %v914 = vsel %vm276, %v226, 0
  %v917 = vsel %vm276, %v227, 0
  %v920 = vsel %vm276, %v228, 0
  %v923 = vsel %vm276, %v229, 0
  %v926 = vsel %vm276, %v230, 0
  %v929 = vsel %vm276, %v231, 0
  %v932 = vsel %vm276, %v232, 0
  %v935 = vsel %vm276, %v233, 0
  %v938 = vsel %vm276, %v234, 0
  %v941 = vsel %vm276, %v235, 0
  %v944 = vsel %vm276, %v236, 0
  %v947 = vsel %vm276, %v237, 0
  %v950 = vsel %vm276, %v238, 0
  %v953 = vsel %vm276, %v239, 0
  %v956 = vsel %vm276, %v240, 0
  %v959 = vsel %vm276, %v241, 0
  %v962 = vsel %vm276, %v242, 0
  %v965 = vsel %vm276, %v243, 0
  %v968 = vsel %vm276, %v244, 0
  %v971 = vsel %vm276, %v245, 0
  %v974 = vsel %vm276, %v246, 0
  %v977 = vsel %vm276, %v247, 0
  %v980 = vsel %vm276, %v248, 0
  %v983 = vsel %vm276, %v249, 0
  %v986 = vsel %vm276, %v250, 0
  %v989 = vsel %vm276, %v251, 0
  %v992 = vsel %vm276, %v252, 0
  %v995 = vsel %vm276, %v253, 0
  %v998 = vsel %vm276, %v254, 0
  %v1001 = vsel %vm276, %v255, 0
  %v1004 = vsel %vm276, %v256, 0
  %v1007 = vsel %vm276, %v257, 0
  %v1010 = vsel %vm276, %v258, 0
  %v1013 = vsel %vm276, %v259, 0
  %v1016 = vsel %vm276, %v260, 0
  %v1019 = vsel %vm276, %v261, 0
  %v1022 = vsel %vm276, %v262, 0
  %v1025 = vsel %vm276, %v263, 0
  %v1028 = vsel %vm276, %v264, 0
  %v1031 = vsel %vm276, %v265, 0
  %v1034 = vsel %vm276, %v266, 0
  %v1037 = vsel %vm276, %v267, 0
  %v1040 = vsel %vm276, %v268, 0
  %v1043 = vsel %vm276, %v269, 0
  %vm1045 = vcmask 1040384
  %v1047 = vsel %vm1045, %v271, 0
  %1049 = vmatpush.msra.mxu0 0.0
  %1050 = vmatpush.msra.mxu0 0.0
  %1051 = vmatpush.msra.mxu0 0.0
  %1052 = vmatpush.msra.mxu0 0.0
  %1053 = vmatpush.msra.mxu0 0.0
  %1054 = vmatpush.msra.mxu0 0.0
  %1055 = vmatpush.msra.mxu0 0.0
  %1056 = vmatpush.msra.mxu0 0.0
  %1057 = vmatpush.msra.mxu0 0.0
  %1058 = vmatpush.msra.mxu0 0.0
  %1059 = vmatpush.msra.mxu0 0.0
  %1060 = vmatpush.msra.mxu0 0.0
  %1061 = vmatpush.msra.mxu0 0.0
  %1062 = vmatpush.msra.mxu0 0.0
  %1063 = vmatpush.msra.mxu0 %v1047
  %1064 = vmatpush.msra.mxu0 %v270
  %1065 = vmatmul.f32.gmra.mxu0 %v278
  %v1066 = vpop.f32.mrf.mxu0
  %v1067 = vadd.f32 %v274, %v1066
  %1068 = vmatmul.f32.gmra.mxu0 %v281
  %v1069 = vpop.f32.mrf.mxu0
  %v1070 = vadd.f32 %v274, %v1069
  %1071 = vmatmul.f32.gmra.mxu0 %v284
  %v1072 = vpop.f32.mrf.mxu0
  %v1073 = vadd.f32 %v274, %v1072
  %1074 = vmatmul.f32.gmra.mxu0 %v287
  %v1075 = vpop.f32.mrf.mxu0
  %v1076 = vadd.f32 %v274, %v1075
  %1077 = vmatmul.f32.gmra.mxu0 %v290
  %v1078 = vpop.f32.mrf.mxu0
  %v1079 = vadd.f32 %v274, %v1078
  %1080 = vmatmul.f32.gmra.mxu0 %v293
  %v1081 = vpop.f32.mrf.mxu0
  %v1082 = vadd.f32 %v274, %v1081
  %1083 = vmatmul.f32.gmra.mxu0 %v296
  %v1084 = vpop.f32.mrf.mxu0
  %v1085 = vadd.f32 %v274, %v1084
  %1086 = vmatmul.f32.gmra.mxu0 %v299
  %v1087 = vpop.f32.mrf.mxu0
  %v1088 = vadd.f32 %v274, %v1087
  %1089 = vmatmul.f32.gmra.mxu0 %v302
  %v1090 = vpop.f32.mrf.mxu0
  %v1091 = vadd.f32 %v274, %v1090
  %1092 = vmatmul.f32.gmra.mxu0 %v305
  %v1093 = vpop.f32.mrf.mxu0
  %v1094 = vadd.f32 %v274, %v1093
  %1095 = vmatmul.f32.gmra.mxu0 %v308
  %v1096 = vpop.f32.mrf.mxu0
  %v1097 = vadd.f32 %v274, %v1096
  %1098 = vmatmul.f32.gmra.mxu0 %v311
  %v1099 = vpop.f32.mrf.mxu0
  %v1100 = vadd.f32 %v274, %v1099
  %1101 = vmatmul.f32.gmra.mxu0 %v314
  %v1102 = vpop.f32.mrf.mxu0
  %v1103 = vadd.f32 %v274, %v1102
  %1104 = vmatmul.f32.gmra.mxu0 %v317
  %v1105 = vpop.f32.mrf.mxu0
  %v1106 = vadd.f32 %v274, %v1105
  %1107 = vmatmul.f32.gmra.mxu0 %v320
  %v1108 = vpop.f32.mrf.mxu0
  %v1109 = vadd.f32 %v274, %v1108
  %1110 = vmatmul.f32.gmra.mxu0 %v323
  %v1111 = vpop.f32.mrf.mxu0
  %v1112 = vadd.f32 %v274, %v1111
  %1113 = vmatmul.f32.gmra.mxu0 %v326
  %v1114 = vpop.f32.mrf.mxu0
  %v1115 = vadd.f32 %v274, %v1114
  %1116 = vmatmul.f32.gmra.mxu0 %v329
  %v1117 = vpop.f32.mrf.mxu0
  %v1118 = vadd.f32 %v274, %v1117
  %1119 = vmatmul.f32.gmra.mxu0 %v332
  %v1120 = vpop.f32.mrf.mxu0
  %v1121 = vadd.f32 %v274, %v1120
  %1122 = vmatmul.f32.gmra.mxu0 %v335
  %v1123 = vpop.f32.mrf.mxu0
  %v1124 = vadd.f32 %v274, %v1123
  %1125 = vmatmul.f32.gmra.mxu0 %v338
  %v1126 = vpop.f32.mrf.mxu0
  %v1127 = vadd.f32 %v274, %v1126
  %1128 = vmatmul.f32.gmra.mxu0 %v341
  %v1129 = vpop.f32.mrf.mxu0
  %v1130 = vadd.f32 %v274, %v1129
  %1131 = vmatmul.f32.gmra.mxu0 %v344
  %v1132 = vpop.f32.mrf.mxu0
  %v1133 = vadd.f32 %v274, %v1132
  %1134 = vmatmul.f32.gmra.mxu0 %v347
  %v1135 = vpop.f32.mrf.mxu0
  %v1136 = vadd.f32 %v274, %v1135
  %1137 = vmatmul.f32.gmra.mxu0 %v350
  %v1138 = vpop.f32.mrf.mxu0
  %v1139 = vadd.f32 %v274, %v1138
  %1140 = vmatmul.f32.gmra.mxu0 %v353
  %v1141 = vpop.f32.mrf.mxu0
  %v1142 = vadd.f32 %v274, %v1141
  %1143 = vmatmul.f32.gmra.mxu0 %v356
  %v1144 = vpop.f32.mrf.mxu0
  %v1145 = vadd.f32 %v274, %v1144
  %1146 = vmatmul.f32.gmra.mxu0 %v359
  %v1147 = vpop.f32.mrf.mxu0
  %v1148 = vadd.f32 %v274, %v1147
  %1149 = vmatmul.f32.gmra.mxu0 %v362
  %v1150 = vpop.f32.mrf.mxu0
  %v1151 = vadd.f32 %v274, %v1150
  %1152 = vmatmul.f32.gmra.mxu0 %v365
  %v1153 = vpop.f32.mrf.mxu0
  %v1154 = vadd.f32 %v274, %v1153
  %1155 = vmatmul.f32.gmra.mxu0 %v368
  %v1156 = vpop.f32.mrf.mxu0
  %v1157 = vadd.f32 %v274, %v1156
  %1158 = vmatmul.f32.gmra.mxu0 %v371
  %v1159 = vpop.f32.mrf.mxu0
  %v1160 = vadd.f32 %v274, %v1159
  %1161 = vmatmul.f32.gmra.mxu0 %v374
  %v1162 = vpop.f32.mrf.mxu0
  %v1163 = vadd.f32 %v274, %v1162
  %1164 = vmatmul.f32.gmra.mxu0 %v377
  %v1165 = vpop.f32.mrf.mxu0
  %v1166 = vadd.f32 %v274, %v1165
  %1167 = vmatmul.f32.gmra.mxu0 %v380
  %v1168 = vpop.f32.mrf.mxu0
  %v1169 = vadd.f32 %v274, %v1168
  %1170 = vmatmul.f32.gmra.mxu0 %v383
  %v1171 = vpop.f32.mrf.mxu0
  %v1172 = vadd.f32 %v274, %v1171
  %1173 = vmatmul.f32.gmra.mxu0 %v386
  %v1174 = vpop.f32.mrf.mxu0
  %v1175 = vadd.f32 %v274, %v1174
  %1176 = vmatmul.f32.gmra.mxu0 %v389
  %v1177 = vpop.f32.mrf.mxu0
  %v1178 = vadd.f32 %v274, %v1177
  %1179 = vmatmul.f32.gmra.mxu0 %v392
  %v1180 = vpop.f32.mrf.mxu0
  %v1181 = vadd.f32 %v274, %v1180
  %1182 = vmatmul.f32.gmra.mxu0 %v395
  %v1183 = vpop.f32.mrf.mxu0
  %v1184 = vadd.f32 %v274, %v1183
  %1185 = vmatmul.f32.gmra.mxu0 %v398
  %v1186 = vpop.f32.mrf.mxu0
  %v1187 = vadd.f32 %v274, %v1186
  %1188 = vmatmul.f32.gmra.mxu0 %v401
  %v1189 = vpop.f32.mrf.mxu0
  %v1190 = vadd.f32 %v274, %v1189
  %1191 = vmatmul.f32.gmra.mxu0 %v404
  %v1192 = vpop.f32.mrf.mxu0
  %v1193 = vadd.f32 %v274, %v1192
  %1194 = vmatmul.f32.gmra.mxu0 %v407
  %v1195 = vpop.f32.mrf.mxu0
  %v1196 = vadd.f32 %v274, %v1195
  %1197 = vmatmul.f32.gmra.mxu0 %v410
  %v1198 = vpop.f32.mrf.mxu0
  %v1199 = vadd.f32 %v274, %v1198
  %1200 = vmatmul.f32.gmra.mxu0 %v413
  %v1201 = vpop.f32.mrf.mxu0
  %v1202 = vadd.f32 %v274, %v1201
  %1203 = vmatmul.f32.gmra.mxu0 %v416
  %v1204 = vpop.f32.mrf.mxu0
  %v1205 = vadd.f32 %v274, %v1204
  %1206 = vmatmul.f32.gmra.mxu0 %v419
  %v1207 = vpop.f32.mrf.mxu0
  %v1208 = vadd.f32 %v274, %v1207
  %1209 = vmatmul.f32.gmra.mxu0 %v422
  %v1210 = vpop.f32.mrf.mxu0
  %v1211 = vadd.f32 %v274, %v1210
  %1212 = vmatmul.f32.gmra.mxu0 %v425
  %v1213 = vpop.f32.mrf.mxu0
  %v1214 = vadd.f32 %v274, %v1213
  %1215 = vmatmul.f32.gmra.mxu0 %v428
  %v1216 = vpop.f32.mrf.mxu0
  %v1217 = vadd.f32 %v274, %v1216
  %1218 = vmatmul.f32.gmra.mxu0 %v431
  %v1219 = vpop.f32.mrf.mxu0
  %v1220 = vadd.f32 %v274, %v1219
  %1221 = vmatmul.f32.gmra.mxu0 %v434
  %v1222 = vpop.f32.mrf.mxu0
  %v1223 = vadd.f32 %v274, %v1222
  %1224 = vmatmul.f32.gmra.mxu0 %v437
  %v1225 = vpop.f32.mrf.mxu0
  %v1226 = vadd.f32 %v274, %v1225
  %1227 = vmatmul.f32.gmra.mxu0 %v440
  %v1228 = vpop.f32.mrf.mxu0
  %v1229 = vadd.f32 %v274, %v1228
  %1230 = vmatmul.f32.gmra.mxu0 %v443
  %v1231 = vpop.f32.mrf.mxu0
  %v1232 = vadd.f32 %v274, %v1231
  %1233 = vmatmul.f32.gmra.mxu0 %v446
  %v1234 = vpop.f32.mrf.mxu0
  %v1235 = vadd.f32 %v274, %v1234
  %1236 = vmatmul.f32.gmra.mxu0 %v449
  %v1237 = vpop.f32.mrf.mxu0
  %v1238 = vadd.f32 %v274, %v1237
  %1239 = vmatmul.f32.gmra.mxu0 %v452
  %v1240 = vpop.f32.mrf.mxu0
  %v1241 = vadd.f32 %v274, %v1240
  %1242 = vmatmul.f32.gmra.mxu0 %v455
  %v1243 = vpop.f32.mrf.mxu0
  %v1244 = vadd.f32 %v274, %v1243
  %1245 = vmatmul.f32.gmra.mxu0 %v458
  %v1246 = vpop.f32.mrf.mxu0
  %v1247 = vadd.f32 %v274, %v1246
  %1248 = vmatmul.f32.gmra.mxu0 %v461
  %v1249 = vpop.f32.mrf.mxu0
  %v1250 = vadd.f32 %v274, %v1249
  %1251 = vmatmul.f32.gmra.mxu0 %v464
  %v1252 = vpop.f32.mrf.mxu0
  %v1253 = vadd.f32 %v274, %v1252
  %1254 = vmatmul.f32.gmra.mxu0 %v467
  %v1255 = vpop.f32.mrf.mxu0
  %v1256 = vadd.f32 %v274, %v1255
  %1257 = vmatmul.f32.gmra.mxu0 %v470
  %v1258 = vpop.f32.mrf.mxu0
  %v1259 = vadd.f32 %v274, %v1258
  %1260 = vmatmul.f32.gmra.mxu0 %v473
  %v1261 = vpop.f32.mrf.mxu0
  %v1262 = vadd.f32 %v274, %v1261
  %1263 = vmatmul.f32.gmra.mxu0 %v476
  %v1264 = vpop.f32.mrf.mxu0
  %v1265 = vadd.f32 %v274, %v1264
  %1266 = vmatmul.f32.gmra.mxu0 %v479
  %v1267 = vpop.f32.mrf.mxu0
  %v1268 = vadd.f32 %v274, %v1267
  %1269 = vmatmul.f32.gmra.mxu0 %v482
  %v1270 = vpop.f32.mrf.mxu0
  %v1271 = vadd.f32 %v274, %v1270
  %1272 = vmatmul.f32.gmra.mxu0 %v485
  %v1273 = vpop.f32.mrf.mxu0
  %v1274 = vadd.f32 %v274, %v1273
  %1275 = vmatmul.f32.gmra.mxu0 %v488
  %v1276 = vpop.f32.mrf.mxu0
  %v1277 = vadd.f32 %v274, %v1276
  %1278 = vmatmul.f32.gmra.mxu0 %v491
  %v1279 = vpop.f32.mrf.mxu0
  %v1280 = vadd.f32 %v274, %v1279
  %1281 = vmatmul.f32.gmra.mxu0 %v494
  %v1282 = vpop.f32.mrf.mxu0
  %v1283 = vadd.f32 %v274, %v1282
  %1284 = vmatmul.f32.gmra.mxu0 %v497
  %v1285 = vpop.f32.mrf.mxu0
  %v1286 = vadd.f32 %v274, %v1285
  %1287 = vmatmul.f32.gmra.mxu0 %v500
  %v1288 = vpop.f32.mrf.mxu0
  %v1289 = vadd.f32 %v274, %v1288
  %1290 = vmatmul.f32.gmra.mxu0 %v503
  %v1291 = vpop.f32.mrf.mxu0
  %v1292 = vadd.f32 %v274, %v1291
  %1293 = vmatmul.f32.gmra.mxu0 %v506
  %v1294 = vpop.f32.mrf.mxu0
  %v1295 = vadd.f32 %v274, %v1294
  %1296 = vmatmul.f32.gmra.mxu0 %v509
  %v1297 = vpop.f32.mrf.mxu0
  %v1298 = vadd.f32 %v274, %v1297
  %1299 = vmatmul.f32.gmra.mxu0 %v512
  %v1300 = vpop.f32.mrf.mxu0
  %v1301 = vadd.f32 %v274, %v1300
  %1302 = vmatmul.f32.gmra.mxu0 %v515
  %v1303 = vpop.f32.mrf.mxu0
  %v1304 = vadd.f32 %v274, %v1303
  %1305 = vmatmul.f32.gmra.mxu0 %v518
  %v1306 = vpop.f32.mrf.mxu0
  %v1307 = vadd.f32 %v274, %v1306
  %1308 = vmatmul.f32.gmra.mxu0 %v521
  %v1309 = vpop.f32.mrf.mxu0
  %v1310 = vadd.f32 %v274, %v1309
  %1311 = vmatmul.f32.gmra.mxu0 %v524
  %v1312 = vpop.f32.mrf.mxu0
  %v1313 = vadd.f32 %v274, %v1312
  %1314 = vmatmul.f32.gmra.mxu0 %v527
  %v1315 = vpop.f32.mrf.mxu0
  %v1316 = vadd.f32 %v274, %v1315
  %1317 = vmatmul.f32.gmra.mxu0 %v530
  %v1318 = vpop.f32.mrf.mxu0
  %v1319 = vadd.f32 %v274, %v1318
  %1320 = vmatmul.f32.gmra.mxu0 %v533
  %v1321 = vpop.f32.mrf.mxu0
  %v1322 = vadd.f32 %v274, %v1321
  %1323 = vmatmul.f32.gmra.mxu0 %v536
  %v1324 = vpop.f32.mrf.mxu0
  %v1325 = vadd.f32 %v274, %v1324
  %1326 = vmatmul.f32.gmra.mxu0 %v539
  %v1327 = vpop.f32.mrf.mxu0
  %v1328 = vadd.f32 %v274, %v1327
  %1329 = vmatmul.f32.gmra.mxu0 %v542
  %v1330 = vpop.f32.mrf.mxu0
  %v1331 = vadd.f32 %v274, %v1330
  %1332 = vmatmul.f32.gmra.mxu0 %v545
  %v1333 = vpop.f32.mrf.mxu0
  %v1334 = vadd.f32 %v274, %v1333
  %1335 = vmatmul.f32.gmra.mxu0 %v548
  %v1336 = vpop.f32.mrf.mxu0
  %v1337 = vadd.f32 %v274, %v1336
  %1338 = vmatmul.f32.gmra.mxu0 %v551
  %v1339 = vpop.f32.mrf.mxu0
  %v1340 = vadd.f32 %v274, %v1339
  %1341 = vmatmul.f32.gmra.mxu0 %v554
  %v1342 = vpop.f32.mrf.mxu0
  %v1343 = vadd.f32 %v274, %v1342
  %1344 = vmatmul.f32.gmra.mxu0 %v557
  %v1345 = vpop.f32.mrf.mxu0
  %v1346 = vadd.f32 %v274, %v1345
  %1347 = vmatmul.f32.gmra.mxu0 %v560
  %v1348 = vpop.f32.mrf.mxu0
  %v1349 = vadd.f32 %v274, %v1348
  %1350 = vmatmul.f32.gmra.mxu0 %v563
  %v1351 = vpop.f32.mrf.mxu0
  %v1352 = vadd.f32 %v274, %v1351
  %1353 = vmatmul.f32.gmra.mxu0 %v566
  %v1354 = vpop.f32.mrf.mxu0
  %v1355 = vadd.f32 %v274, %v1354
  %1356 = vmatmul.f32.gmra.mxu0 %v569
  %v1357 = vpop.f32.mrf.mxu0
  %v1358 = vadd.f32 %v274, %v1357
  %1359 = vmatmul.f32.gmra.mxu0 %v572
  %v1360 = vpop.f32.mrf.mxu0
  %v1361 = vadd.f32 %v274, %v1360
  %1362 = vmatmul.f32.gmra.mxu0 %v575
  %v1363 = vpop.f32.mrf.mxu0
  %v1364 = vadd.f32 %v274, %v1363
  %1365 = vmatmul.f32.gmra.mxu0 %v578
  %v1366 = vpop.f32.mrf.mxu0
  %v1367 = vadd.f32 %v274, %v1366
  %1368 = vmatmul.f32.gmra.mxu0 %v581
  %v1369 = vpop.f32.mrf.mxu0
  %v1370 = vadd.f32 %v274, %v1369
  %1371 = vmatmul.f32.gmra.mxu0 %v584
  %v1372 = vpop.f32.mrf.mxu0
  %v1373 = vadd.f32 %v274, %v1372
  %1374 = vmatmul.f32.gmra.mxu0 %v587
  %v1375 = vpop.f32.mrf.mxu0
  %v1376 = vadd.f32 %v274, %v1375
  %1377 = vmatmul.f32.gmra.mxu0 %v590
  %v1378 = vpop.f32.mrf.mxu0
  %v1379 = vadd.f32 %v274, %v1378
  %1380 = vmatmul.f32.gmra.mxu0 %v593
  %v1381 = vpop.f32.mrf.mxu0
  %v1382 = vadd.f32 %v274, %v1381
  %1383 = vmatmul.f32.gmra.mxu0 %v596
  %v1384 = vpop.f32.mrf.mxu0
  %v1385 = vadd.f32 %v274, %v1384
  %1386 = vmatmul.f32.gmra.mxu0 %v599
  %v1387 = vpop.f32.mrf.mxu0
  %v1388 = vadd.f32 %v274, %v1387
  %1389 = vmatmul.f32.gmra.mxu0 %v602
  %v1390 = vpop.f32.mrf.mxu0
  %v1391 = vadd.f32 %v274, %v1390
  %1392 = vmatmul.f32.gmra.mxu0 %v605
  %v1393 = vpop.f32.mrf.mxu0
  %v1394 = vadd.f32 %v274, %v1393
  %1395 = vmatmul.f32.gmra.mxu0 %v608
  %v1396 = vpop.f32.mrf.mxu0
  %v1397 = vadd.f32 %v274, %v1396
  %1398 = vmatmul.f32.gmra.mxu0 %v611
  %v1399 = vpop.f32.mrf.mxu0
  %v1400 = vadd.f32 %v274, %v1399
  %1401 = vmatmul.f32.gmra.mxu0 %v614
  %v1402 = vpop.f32.mrf.mxu0
  %v1403 = vadd.f32 %v274, %v1402
  %1404 = vmatmul.f32.gmra.mxu0 %v617
  %v1405 = vpop.f32.mrf.mxu0
  %v1406 = vadd.f32 %v274, %v1405
  %1407 = vmatmul.f32.gmra.mxu0 %v620
  %v1408 = vpop.f32.mrf.mxu0
  %v1409 = vadd.f32 %v274, %v1408
  %1410 = vmatmul.f32.gmra.mxu0 %v623
  %v1411 = vpop.f32.mrf.mxu0
  %v1412 = vadd.f32 %v274, %v1411
  %1413 = vmatmul.f32.gmra.mxu0 %v626
  %v1414 = vpop.f32.mrf.mxu0
  %v1415 = vadd.f32 %v274, %v1414
  %1416 = vmatmul.f32.gmra.mxu0 %v629
  %v1417 = vpop.f32.mrf.mxu0
  %v1418 = vadd.f32 %v274, %v1417
  %1419 = vmatmul.f32.gmra.mxu0 %v632
  %v1420 = vpop.f32.mrf.mxu0
  %v1421 = vadd.f32 %v274, %v1420
  %1422 = vmatmul.f32.gmra.mxu0 %v635
  %v1423 = vpop.f32.mrf.mxu0
  %v1424 = vadd.f32 %v274, %v1423
  %1425 = vmatmul.f32.gmra.mxu0 %v638
  %v1426 = vpop.f32.mrf.mxu0
  %v1427 = vadd.f32 %v274, %v1426
  %1428 = vmatmul.f32.gmra.mxu0 %v641
  %v1429 = vpop.f32.mrf.mxu0
  %v1430 = vadd.f32 %v274, %v1429
  %1431 = vmatmul.f32.gmra.mxu0 %v644
  %v1432 = vpop.f32.mrf.mxu0
  %v1433 = vadd.f32 %v274, %v1432
  %1434 = vmatmul.f32.gmra.mxu0 %v647
  %v1435 = vpop.f32.mrf.mxu0
  %v1436 = vadd.f32 %v274, %v1435
  %1437 = vmatmul.f32.gmra.mxu0 %v650
  %v1438 = vpop.f32.mrf.mxu0
  %v1439 = vadd.f32 %v274, %v1438
  %1440 = vmatmul.f32.gmra.mxu0 %v653
  %v1441 = vpop.f32.mrf.mxu0
  %v1442 = vadd.f32 %v274, %v1441
  %1443 = vmatmul.f32.gmra.mxu0 %v656
  %v1444 = vpop.f32.mrf.mxu0
  %v1445 = vadd.f32 %v274, %v1444
  %1446 = vmatmul.f32.gmra.mxu0 %v659
  %v1447 = vpop.f32.mrf.mxu0
  %v1448 = vadd.f32 %v274, %v1447
  %1449 = vmatmul.f32.gmra.mxu0 %v662
  %v1450 = vpop.f32.mrf.mxu0
  %v1451 = vadd.f32 %v274, %v1450
  %1452 = vmatmul.f32.gmra.mxu0 %v665
  %v1453 = vpop.f32.mrf.mxu0
  %v1454 = vadd.f32 %v274, %v1453
  %1455 = vmatmul.f32.gmra.mxu0 %v668
  %v1456 = vpop.f32.mrf.mxu0
  %v1457 = vadd.f32 %v274, %v1456
  %1458 = vmatmul.f32.gmra.mxu0 %v671
  %v1459 = vpop.f32.mrf.mxu0
  %v1460 = vadd.f32 %v274, %v1459
  %1461 = vmatmul.f32.gmra.mxu0 %v674
  %v1462 = vpop.f32.mrf.mxu0
  %v1463 = vadd.f32 %v274, %v1462
  %1464 = vmatmul.f32.gmra.mxu0 %v677
  %v1465 = vpop.f32.mrf.mxu0
  %v1466 = vadd.f32 %v274, %v1465
  %1467 = vmatmul.f32.gmra.mxu0 %v680
  %v1468 = vpop.f32.mrf.mxu0
  %v1469 = vadd.f32 %v274, %v1468
  %1470 = vmatmul.f32.gmra.mxu0 %v683
  %v1471 = vpop.f32.mrf.mxu0
  %v1472 = vadd.f32 %v274, %v1471
  %1473 = vmatmul.f32.gmra.mxu0 %v686
  %v1474 = vpop.f32.mrf.mxu0
  %v1475 = vadd.f32 %v274, %v1474
  %1476 = vmatmul.f32.gmra.mxu0 %v689
  %v1477 = vpop.f32.mrf.mxu0
  %v1478 = vadd.f32 %v274, %v1477
  %1479 = vmatmul.f32.gmra.mxu0 %v692
  %v1480 = vpop.f32.mrf.mxu0
  %v1481 = vadd.f32 %v274, %v1480
  %1482 = vmatmul.f32.gmra.mxu0 %v695
  %v1483 = vpop.f32.mrf.mxu0
  %v1484 = vadd.f32 %v274, %v1483
  %1485 = vmatmul.f32.gmra.mxu0 %v698
  %v1486 = vpop.f32.mrf.mxu0
  %v1487 = vadd.f32 %v274, %v1486
  %1488 = vmatmul.f32.gmra.mxu0 %v701
  %v1489 = vpop.f32.mrf.mxu0
  %v1490 = vadd.f32 %v274, %v1489
  %1491 = vmatmul.f32.gmra.mxu0 %v704
  %v1492 = vpop.f32.mrf.mxu0
  %v1493 = vadd.f32 %v274, %v1492
  %1494 = vmatmul.f32.gmra.mxu0 %v707
  %v1495 = vpop.f32.mrf.mxu0
  %v1496 = vadd.f32 %v274, %v1495
  %1497 = vmatmul.f32.gmra.mxu0 %v710
  %v1498 = vpop.f32.mrf.mxu0
  %v1499 = vadd.f32 %v274, %v1498
  %1500 = vmatmul.f32.gmra.mxu0 %v713
  %v1501 = vpop.f32.mrf.mxu0
  %v1502 = vadd.f32 %v274, %v1501
  %1503 = vmatmul.f32.gmra.mxu0 %v716
  %v1504 = vpop.f32.mrf.mxu0
  %v1505 = vadd.f32 %v274, %v1504
  %1506 = vmatmul.f32.gmra.mxu0 %v719
  %v1507 = vpop.f32.mrf.mxu0
  %v1508 = vadd.f32 %v274, %v1507
  %1509 = vmatmul.f32.gmra.mxu0 %v722
  %v1510 = vpop.f32.mrf.mxu0
  %v1511 = vadd.f32 %v274, %v1510
  %1512 = vmatmul.f32.gmra.mxu0 %v725
  %v1513 = vpop.f32.mrf.mxu0
  %v1514 = vadd.f32 %v274, %v1513
  %1515 = vmatmul.f32.gmra.mxu0 %v728
  %v1516 = vpop.f32.mrf.mxu0
  %v1517 = vadd.f32 %v274, %v1516
  %1518 = vmatmul.f32.gmra.mxu0 %v731
  %v1519 = vpop.f32.mrf.mxu0
  %v1520 = vadd.f32 %v274, %v1519
  %1521 = vmatmul.f32.gmra.mxu0 %v734
  %v1522 = vpop.f32.mrf.mxu0
  %v1523 = vadd.f32 %v274, %v1522
  %1524 = vmatmul.f32.gmra.mxu0 %v737
  %v1525 = vpop.f32.mrf.mxu0
  %v1526 = vadd.f32 %v274, %v1525
  %1527 = vmatmul.f32.gmra.mxu0 %v740
  %v1528 = vpop.f32.mrf.mxu0
  %v1529 = vadd.f32 %v274, %v1528
  %1530 = vmatmul.f32.gmra.mxu0 %v743
  %v1531 = vpop.f32.mrf.mxu0
  %v1532 = vadd.f32 %v274, %v1531
  %1533 = vmatmul.f32.gmra.mxu0 %v746
  %v1534 = vpop.f32.mrf.mxu0
  %v1535 = vadd.f32 %v274, %v1534
  %1536 = vmatmul.f32.gmra.mxu0 %v749
  %v1537 = vpop.f32.mrf.mxu0
  %v1538 = vadd.f32 %v274, %v1537
  %1539 = vmatmul.f32.gmra.mxu0 %v752
  %v1540 = vpop.f32.mrf.mxu0
  %v1541 = vadd.f32 %v274, %v1540
  %1542 = vmatmul.f32.gmra.mxu0 %v755
  %v1543 = vpop.f32.mrf.mxu0
  %v1544 = vadd.f32 %v274, %v1543
  %1545 = vmatmul.f32.gmra.mxu0 %v758
  %v1546 = vpop.f32.mrf.mxu0
  %v1547 = vadd.f32 %v274, %v1546
  %1548 = vmatmul.f32.gmra.mxu0 %v761
  %v1549 = vpop.f32.mrf.mxu0
  %v1550 = vadd.f32 %v274, %v1549
  %1551 = vmatmul.f32.gmra.mxu0 %v764
  %v1552 = vpop.f32.mrf.mxu0
  %v1553 = vadd.f32 %v274, %v1552
  %1554 = vmatmul.f32.gmra.mxu0 %v767
  %v1555 = vpop.f32.mrf.mxu0
  %v1556 = vadd.f32 %v274, %v1555
  %1557 = vmatmul.f32.gmra.mxu0 %v770
  %v1558 = vpop.f32.mrf.mxu0
  %v1559 = vadd.f32 %v274, %v1558
  %1560 = vmatmul.f32.gmra.mxu0 %v773
  %v1561 = vpop.f32.mrf.mxu0
  %v1562 = vadd.f32 %v274, %v1561
  %1563 = vmatmul.f32.gmra.mxu0 %v776
  %v1564 = vpop.f32.mrf.mxu0
  %v1565 = vadd.f32 %v274, %v1564
  %1566 = vmatmul.f32.gmra.mxu0 %v779
  %v1567 = vpop.f32.mrf.mxu0
  %v1568 = vadd.f32 %v274, %v1567
  %1569 = vmatmul.f32.gmra.mxu0 %v782
  %v1570 = vpop.f32.mrf.mxu0
  %v1571 = vadd.f32 %v274, %v1570
  %1572 = vmatmul.f32.gmra.mxu0 %v785
  %v1573 = vpop.f32.mrf.mxu0
  %v1574 = vadd.f32 %v274, %v1573
  %1575 = vmatmul.f32.gmra.mxu0 %v788
  %v1576 = vpop.f32.mrf.mxu0
  %v1577 = vadd.f32 %v274, %v1576
  %1578 = vmatmul.f32.gmra.mxu0 %v791
  %v1579 = vpop.f32.mrf.mxu0
  %v1580 = vadd.f32 %v274, %v1579
  %1581 = vmatmul.f32.gmra.mxu0 %v794
  %v1582 = vpop.f32.mrf.mxu0
  %v1583 = vadd.f32 %v274, %v1582
  %1584 = vmatmul.f32.gmra.mxu0 %v797
  %v1585 = vpop.f32.mrf.mxu0
  %v1586 = vadd.f32 %v274, %v1585
  %1587 = vmatmul.f32.gmra.mxu0 %v800
  %v1588 = vpop.f32.mrf.mxu0
  %v1589 = vadd.f32 %v274, %v1588
  %1590 = vmatmul.f32.gmra.mxu0 %v803
  %v1591 = vpop.f32.mrf.mxu0
  %v1592 = vadd.f32 %v274, %v1591
  %1593 = vmatmul.f32.gmra.mxu0 %v806
  %v1594 = vpop.f32.mrf.mxu0
  %v1595 = vadd.f32 %v274, %v1594
  %1596 = vmatmul.f32.gmra.mxu0 %v809
  %v1597 = vpop.f32.mrf.mxu0
  %v1598 = vadd.f32 %v274, %v1597
  %1599 = vmatmul.f32.gmra.mxu0 %v812
  %v1600 = vpop.f32.mrf.mxu0
  %v1601 = vadd.f32 %v274, %v1600
  %1602 = vmatmul.f32.gmra.mxu0 %v815
  %v1603 = vpop.f32.mrf.mxu0
  %v1604 = vadd.f32 %v274, %v1603
  %1605 = vmatmul.f32.gmra.mxu0 %v818
  %v1606 = vpop.f32.mrf.mxu0
  %v1607 = vadd.f32 %v274, %v1606
  %1608 = vmatmul.f32.gmra.mxu0 %v821
  %v1609 = vpop.f32.mrf.mxu0
  %v1610 = vadd.f32 %v274, %v1609
  %1611 = vmatmul.f32.gmra.mxu0 %v824
  %v1612 = vpop.f32.mrf.mxu0
  %v1613 = vadd.f32 %v274, %v1612
  %1614 = vmatmul.f32.gmra.mxu0 %v827
  %v1615 = vpop.f32.mrf.mxu0
  %v1616 = vadd.f32 %v274, %v1615
  %1617 = vmatmul.f32.gmra.mxu0 %v830
  %v1618 = vpop.f32.mrf.mxu0
  %v1619 = vadd.f32 %v274, %v1618
  %1620 = vmatmul.f32.gmra.mxu0 %v833
  %v1621 = vpop.f32.mrf.mxu0
  %v1622 = vadd.f32 %v274, %v1621
  %1623 = vmatmul.f32.gmra.mxu0 %v836
  %v1624 = vpop.f32.mrf.mxu0
  %v1625 = vadd.f32 %v274, %v1624
  %1626 = vmatmul.f32.gmra.mxu0 %v839
  %v1627 = vpop.f32.mrf.mxu0
  %v1628 = vadd.f32 %v274, %v1627
  %1629 = vmatmul.f32.gmra.mxu0 %v842
  %v1630 = vpop.f32.mrf.mxu0
  %v1631 = vadd.f32 %v274, %v1630
  %1632 = vmatmul.f32.gmra.mxu0 %v845
  %v1633 = vpop.f32.mrf.mxu0
  %v1634 = vadd.f32 %v274, %v1633
  %1635 = vmatmul.f32.gmra.mxu0 %v848
  %v1636 = vpop.f32.mrf.mxu0
  %v1637 = vadd.f32 %v274, %v1636
  %1638 = vmatmul.f32.gmra.mxu0 %v851
  %v1639 = vpop.f32.mrf.mxu0
  %v1640 = vadd.f32 %v274, %v1639
  %1641 = vmatmul.f32.gmra.mxu0 %v854
  %v1642 = vpop.f32.mrf.mxu0
  %v1643 = vadd.f32 %v274, %v1642
  %1644 = vmatmul.f32.gmra.mxu0 %v857
  %v1645 = vpop.f32.mrf.mxu0
  %v1646 = vadd.f32 %v274, %v1645
  %1647 = vmatmul.f32.gmra.mxu0 %v860
  %v1648 = vpop.f32.mrf.mxu0
  %v1649 = vadd.f32 %v274, %v1648
  %1650 = vmatmul.f32.gmra.mxu0 %v863
  %v1651 = vpop.f32.mrf.mxu0
  %v1652 = vadd.f32 %v274, %v1651
  %1653 = vmatmul.f32.gmra.mxu0 %v866
  %v1654 = vpop.f32.mrf.mxu0
  %v1655 = vadd.f32 %v274, %v1654
  %1656 = vmatmul.f32.gmra.mxu0 %v869
  %v1657 = vpop.f32.mrf.mxu0
  %v1658 = vadd.f32 %v274, %v1657
  %1659 = vmatmul.f32.gmra.mxu0 %v872
  %v1660 = vpop.f32.mrf.mxu0
  %v1661 = vadd.f32 %v274, %v1660
  %1662 = vmatmul.f32.gmra.mxu0 %v875
  %v1663 = vpop.f32.mrf.mxu0
  %v1664 = vadd.f32 %v274, %v1663
  %1665 = vmatmul.f32.gmra.mxu0 %v878
  %v1666 = vpop.f32.mrf.mxu0
  %v1667 = vadd.f32 %v274, %v1666
  %1668 = vmatmul.f32.gmra.mxu0 %v881
  %v1669 = vpop.f32.mrf.mxu0
  %v1670 = vadd.f32 %v274, %v1669
  %1671 = vmatmul.f32.gmra.mxu0 %v884
  %v1672 = vpop.f32.mrf.mxu0
  %v1673 = vadd.f32 %v274, %v1672
  %1674 = vmatmul.f32.gmra.mxu0 %v887
  %v1675 = vpop.f32.mrf.mxu0
  %v1676 = vadd.f32 %v274, %v1675
  %1677 = vmatmul.f32.gmra.mxu0 %v890
  %v1678 = vpop.f32.mrf.mxu0
  %v1679 = vadd.f32 %v274, %v1678
  %1680 = vmatmul.f32.gmra.mxu0 %v893
  %v1681 = vpop.f32.mrf.mxu0
  %v1682 = vadd.f32 %v274, %v1681
  %1683 = vmatmul.f32.gmra.mxu0 %v896
  %v1684 = vpop.f32.mrf.mxu0
  %v1685 = vadd.f32 %v274, %v1684
  %1686 = vmatmul.f32.gmra.mxu0 %v899
  %v1687 = vpop.f32.mrf.mxu0
  %v1688 = vadd.f32 %v274, %v1687
  %1689 = vmatmul.f32.gmra.mxu0 %v902
  %v1690 = vpop.f32.mrf.mxu0
  %v1691 = vadd.f32 %v274, %v1690
  %1692 = vmatmul.f32.gmra.mxu0 %v905
  %v1693 = vpop.f32.mrf.mxu0
  %v1694 = vadd.f32 %v274, %v1693
  %1695 = vmatmul.f32.gmra.mxu0 %v908
  %v1696 = vpop.f32.mrf.mxu0
  %v1697 = vadd.f32 %v274, %v1696
  %1698 = vmatmul.f32.gmra.mxu0 %v911
  %v1699 = vpop.f32.mrf.mxu0
  %v1700 = vadd.f32 %v274, %v1699
  %1701 = vmatmul.f32.gmra.mxu0 %v914
  %v1702 = vpop.f32.mrf.mxu0
  %v1703 = vadd.f32 %v274, %v1702
  %1704 = vmatmul.f32.gmra.mxu0 %v917
  %v1705 = vpop.f32.mrf.mxu0
  %v1706 = vadd.f32 %v274, %v1705
  %1707 = vmatmul.f32.gmra.mxu0 %v920
  %v1708 = vpop.f32.mrf.mxu0
  %v1709 = vadd.f32 %v274, %v1708
  %1710 = vmatmul.f32.gmra.mxu0 %v923
  %v1711 = vpop.f32.mrf.mxu0
  %v1712 = vadd.f32 %v274, %v1711
  %1713 = vmatmul.f32.gmra.mxu0 %v926
  %v1714 = vpop.f32.mrf.mxu0
  %v1715 = vadd.f32 %v274, %v1714
  %1716 = vmatmul.f32.gmra.mxu0 %v929
  %v1717 = vpop.f32.mrf.mxu0
  %v1718 = vadd.f32 %v274, %v1717
  %1719 = vmatmul.f32.gmra.mxu0 %v932
  %v1720 = vpop.f32.mrf.mxu0
  %v1721 = vadd.f32 %v274, %v1720
  %1722 = vmatmul.f32.gmra.mxu0 %v935
  %v1723 = vpop.f32.mrf.mxu0
  %v1724 = vadd.f32 %v274, %v1723
  %1725 = vmatmul.f32.gmra.mxu0 %v938
  %v1726 = vpop.f32.mrf.mxu0
  %v1727 = vadd.f32 %v274, %v1726
  %1728 = vmatmul.f32.gmra.mxu0 %v941
  %v1729 = vpop.f32.mrf.mxu0
  %v1730 = vadd.f32 %v274, %v1729
  %1731 = vmatmul.f32.gmra.mxu0 %v944
  %v1732 = vpop.f32.mrf.mxu0
  %v1733 = vadd.f32 %v274, %v1732
  %1734 = vmatmul.f32.gmra.mxu0 %v947
  %v1735 = vpop.f32.mrf.mxu0
  %v1736 = vadd.f32 %v274, %v1735
  %1737 = vmatmul.f32.gmra.mxu0 %v950
  %v1738 = vpop.f32.mrf.mxu0
  %v1739 = vadd.f32 %v274, %v1738
  %1740 = vmatmul.f32.gmra.mxu0 %v953
  %v1741 = vpop.f32.mrf.mxu0
  %v1742 = vadd.f32 %v274, %v1741
  %1743 = vmatmul.f32.gmra.mxu0 %v956
  %v1744 = vpop.f32.mrf.mxu0
  %v1745 = vadd.f32 %v274, %v1744
  %1746 = vmatmul.f32.gmra.mxu0 %v959
  %v1747 = vpop.f32.mrf.mxu0
  %v1748 = vadd.f32 %v274, %v1747
  %1749 = vmatmul.f32.gmra.mxu0 %v962
  %v1750 = vpop.f32.mrf.mxu0
  %v1751 = vadd.f32 %v274, %v1750
  %1752 = vmatmul.f32.gmra.mxu0 %v965
  %v1753 = vpop.f32.mrf.mxu0
  %v1754 = vadd.f32 %v274, %v1753
  %1755 = vmatmul.f32.gmra.mxu0 %v968
  %v1756 = vpop.f32.mrf.mxu0
  %v1757 = vadd.f32 %v274, %v1756
  %1758 = vmatmul.f32.gmra.mxu0 %v971
  %v1759 = vpop.f32.mrf.mxu0
  %v1760 = vadd.f32 %v274, %v1759
  %1761 = vmatmul.f32.gmra.mxu0 %v974
  %v1762 = vpop.f32.mrf.mxu0
  %v1763 = vadd.f32 %v274, %v1762
  %1764 = vmatmul.f32.gmra.mxu0 %v977
  %v1765 = vpop.f32.mrf.mxu0
  %v1766 = vadd.f32 %v274, %v1765
  %1767 = vmatmul.f32.gmra.mxu0 %v980
  %v1768 = vpop.f32.mrf.mxu0
  %v1769 = vadd.f32 %v274, %v1768
  %1770 = vmatmul.f32.gmra.mxu0 %v983
  %v1771 = vpop.f32.mrf.mxu0
  %v1772 = vadd.f32 %v274, %v1771
  %1773 = vmatmul.f32.gmra.mxu0 %v986
  %v1774 = vpop.f32.mrf.mxu0
  %v1775 = vadd.f32 %v274, %v1774
  %1776 = vmatmul.f32.gmra.mxu0 %v989
  %v1777 = vpop.f32.mrf.mxu0
  %v1778 = vadd.f32 %v274, %v1777
  %1779 = vmatmul.f32.gmra.mxu0 %v992
  %v1780 = vpop.f32.mrf.mxu0
  %v1781 = vadd.f32 %v274, %v1780
  %1782 = vmatmul.f32.gmra.mxu0 %v995
  %v1783 = vpop.f32.mrf.mxu0
  %v1784 = vadd.f32 %v274, %v1783
  %1785 = vmatmul.f32.gmra.mxu0 %v998
  %v1786 = vpop.f32.mrf.mxu0
  %v1787 = vadd.f32 %v274, %v1786
  %1788 = vmatmul.f32.gmra.mxu0 %v1001
  %v1789 = vpop.f32.mrf.mxu0
  %v1790 = vadd.f32 %v274, %v1789
  %1791 = vmatmul.f32.gmra.mxu0 %v1004
  %v1792 = vpop.f32.mrf.mxu0
  %v1793 = vadd.f32 %v274, %v1792
  %1794 = vmatmul.f32.gmra.mxu0 %v1007
  %v1795 = vpop.f32.mrf.mxu0
  %v1796 = vadd.f32 %v274, %v1795
  %1797 = vmatmul.f32.gmra.mxu0 %v1010
  %v1798 = vpop.f32.mrf.mxu0
  %v1799 = vadd.f32 %v274, %v1798
  %1800 = vmatmul.f32.gmra.mxu0 %v1013
  %v1801 = vpop.f32.mrf.mxu0
  %v1802 = vadd.f32 %v274, %v1801
  %1803 = vmatmul.f32.gmra.mxu0 %v1016
  %v1804 = vpop.f32.mrf.mxu0
  %v1805 = vadd.f32 %v274, %v1804
  %1806 = vmatmul.f32.gmra.mxu0 %v1019
  %v1807 = vpop.f32.mrf.mxu0
  %v1808 = vadd.f32 %v274, %v1807
  %1809 = vmatmul.f32.gmra.mxu0 %v1022
  %v1810 = vpop.f32.mrf.mxu0
  %v1811 = vadd.f32 %v274, %v1810
  %1812 = vmatmul.f32.gmra.mxu0 %v1025
  %v1813 = vpop.f32.mrf.mxu0
  %v1814 = vadd.f32 %v274, %v1813
  %1815 = vmatmul.f32.gmra.mxu0 %v1028
  %v1816 = vpop.f32.mrf.mxu0
  %v1817 = vadd.f32 %v274, %v1816
  %1818 = vmatmul.f32.gmra.mxu0 %v1031
  %v1819 = vpop.f32.mrf.mxu0
  %v1820 = vadd.f32 %v274, %v1819
  %1821 = vmatmul.f32.gmra.mxu0 %v1034
  %v1822 = vpop.f32.mrf.mxu0
  %v1823 = vadd.f32 %v274, %v1822
  %1824 = vmatmul.f32.gmra.mxu0 %v1037
  %v1825 = vpop.f32.mrf.mxu0
  %v1826 = vadd.f32 %v274, %v1825
  %1827 = vmatmul.f32.gmra.mxu0 %v1040
  %v1828 = vpop.f32.mrf.mxu0
  %v1829 = vadd.f32 %v274, %v1828
  %1830 = vmatmul.f32.gmra.mxu0 %v1043
  %v1831 = vpop.f32.mrf.mxu0
  %v1832 = vadd.f32 %v274, %v1831
  %1833 = vdwg.mxu0
  %v1834 = vmax.f32 %v1067, 0.0
  %v1835 = vmax.f32 %v1070, 0.0
  %v1836 = vmax.f32 %v1073, 0.0
  %v1837 = vmax.f32 %v1076, 0.0
  %v1838 = vmax.f32 %v1079, 0.0
  %v1839 = vmax.f32 %v1082, 0.0
  %v1840 = vmax.f32 %v1085, 0.0
  %v1841 = vmax.f32 %v1088, 0.0
  %v1842 = vmax.f32 %v1091, 0.0
  %v1843 = vmax.f32 %v1094, 0.0
  %v1844 = vmax.f32 %v1097, 0.0
  %v1845 = vmax.f32 %v1100, 0.0
  %v1846 = vmax.f32 %v1103, 0.0
  %v1847 = vmax.f32 %v1106, 0.0
  %v1848 = vmax.f32 %v1109, 0.0
  %v1849 = vmax.f32 %v1112, 0.0
  %v1850 = vmax.f32 %v1115, 0.0
  %v1851 = vmax.f32 %v1118, 0.0
  %v1852 = vmax.f32 %v1121, 0.0
  %v1853 = vmax.f32 %v1124, 0.0
  %v1854 = vmax.f32 %v1127, 0.0
  %v1855 = vmax.f32 %v1130, 0.0
  %v1856 = vmax.f32 %v1133, 0.0
  %v1857 = vmax.f32 %v1136, 0.0
  %v1858 = vmax.f32 %v1139, 0.0
  %v1859 = vmax.f32 %v1142, 0.0
  %v1860 = vmax.f32 %v1145, 0.0
  %v1861 = vmax.f32 %v1148, 0.0
  %v1862 = vmax.f32 %v1151, 0.0
  %v1863 = vmax.f32 %v1154, 0.0
  %v1864 = vmax.f32 %v1157, 0.0
  %v1865 = vmax.f32 %v1160, 0.0
  %v1866 = vmax.f32 %v1163, 0.0
  %v1867 = vmax.f32 %v1166, 0.0
  %v1868 = vmax.f32 %v1169, 0.0
  %v1869 = vmax.f32 %v1172, 0.0
  %v1870 = vmax.f32 %v1175, 0.0
  %v1871 = vmax.f32 %v1178, 0.0
  %v1872 = vmax.f32 %v1181, 0.0
  %v1873 = vmax.f32 %v1184, 0.0
  %v1874 = vmax.f32 %v1187, 0.0
  %v1875 = vmax.f32 %v1190, 0.0
  %v1876 = vmax.f32 %v1193, 0.0
  %v1877 = vmax.f32 %v1196, 0.0
  %v1878 = vmax.f32 %v1199, 0.0
  %v1879 = vmax.f32 %v1202, 0.0
  %v1880 = vmax.f32 %v1205, 0.0
  %v1881 = vmax.f32 %v1208, 0.0
  %v1882 = vmax.f32 %v1211, 0.0
  %v1883 = vmax.f32 %v1214, 0.0
  %v1884 = vmax.f32 %v1217, 0.0
  %v1885 = vmax.f32 %v1220, 0.0
  %v1886 = vmax.f32 %v1223, 0.0
  %v1887 = vmax.f32 %v1226, 0.0
  %v1888 = vmax.f32 %v1229, 0.0
  %v1889 = vmax.f32 %v1232, 0.0
  %v1890 = vmax.f32 %v1235, 0.0
  %v1891 = vmax.f32 %v1238, 0.0
  %v1892 = vmax.f32 %v1241, 0.0
  %v1893 = vmax.f32 %v1244, 0.0
  %v1894 = vmax.f32 %v1247, 0.0
  %v1895 = vmax.f32 %v1250, 0.0
  %v1896 = vmax.f32 %v1253, 0.0
  %v1897 = vmax.f32 %v1256, 0.0
  %v1898 = vmax.f32 %v1259, 0.0
  %v1899 = vmax.f32 %v1262, 0.0
  %v1900 = vmax.f32 %v1265, 0.0
  %v1901 = vmax.f32 %v1268, 0.0
  %v1902 = vmax.f32 %v1271, 0.0
  %v1903 = vmax.f32 %v1274, 0.0
  %v1904 = vmax.f32 %v1277, 0.0
  %v1905 = vmax.f32 %v1280, 0.0
  %v1906 = vmax.f32 %v1283, 0.0
  %v1907 = vmax.f32 %v1286, 0.0
  %v1908 = vmax.f32 %v1289, 0.0
  %v1909 = vmax.f32 %v1292, 0.0
  %v1910 = vmax.f32 %v1295, 0.0
  %v1911 = vmax.f32 %v1298, 0.0
  %v1912 = vmax.f32 %v1301, 0.0
  %v1913 = vmax.f32 %v1304, 0.0
  %v1914 = vmax.f32 %v1307, 0.0
  %v1915 = vmax.f32 %v1310, 0.0
  %v1916 = vmax.f32 %v1313, 0.0
  %v1917 = vmax.f32 %v1316, 0.0
  %v1918 = vmax.f32 %v1319, 0.0
  %v1919 = vmax.f32 %v1322, 0.0
  %v1920 = vmax.f32 %v1325, 0.0
  %v1921 = vmax.f32 %v1328, 0.0
  %v1922 = vmax.f32 %v1331, 0.0
  %v1923 = vmax.f32 %v1334, 0.0
  %v1924 = vmax.f32 %v1337, 0.0
  %v1925 = vmax.f32 %v1340, 0.0
  %v1926 = vmax.f32 %v1343, 0.0
  %v1927 = vmax.f32 %v1346, 0.0
  %v1928 = vmax.f32 %v1349, 0.0
  %v1929 = vmax.f32 %v1352, 0.0
  %v1930 = vmax.f32 %v1355, 0.0
  %v1931 = vmax.f32 %v1358, 0.0
  %v1932 = vmax.f32 %v1361, 0.0
  %v1933 = vmax.f32 %v1364, 0.0
  %v1934 = vmax.f32 %v1367, 0.0
  %v1935 = vmax.f32 %v1370, 0.0
  %v1936 = vmax.f32 %v1373, 0.0
  %v1937 = vmax.f32 %v1376, 0.0
  %v1938 = vmax.f32 %v1379, 0.0
  %v1939 = vmax.f32 %v1382, 0.0
  %v1940 = vmax.f32 %v1385, 0.0
  %v1941 = vmax.f32 %v1388, 0.0
  %v1942 = vmax.f32 %v1391, 0.0
  %v1943 = vmax.f32 %v1394, 0.0
  %v1944 = vmax.f32 %v1397, 0.0
  %v1945 = vmax.f32 %v1400, 0.0
  %v1946 = vmax.f32 %v1403, 0.0
  %v1947 = vmax.f32 %v1406, 0.0
  %v1948 = vmax.f32 %v1409, 0.0
  %v1949 = vmax.f32 %v1412, 0.0
  %v1950 = vmax.f32 %v1415, 0.0
  %v1951 = vmax.f32 %v1418, 0.0
  %v1952 = vmax.f32 %v1421, 0.0
  %v1953 = vmax.f32 %v1424, 0.0
  %v1954 = vmax.f32 %v1427, 0.0
  %v1955 = vmax.f32 %v1430, 0.0
  %v1956 = vmax.f32 %v1433, 0.0
  %v1957 = vmax.f32 %v1436, 0.0
  %v1958 = vmax.f32 %v1439, 0.0
  %v1959 = vmax.f32 %v1442, 0.0
  %v1960 = vmax.f32 %v1445, 0.0
  %v1961 = vmax.f32 %v1448, 0.0
  %v1962 = vmax.f32 %v1451, 0.0
  %v1963 = vmax.f32 %v1454, 0.0
  %v1964 = vmax.f32 %v1457, 0.0
  %v1965 = vmax.f32 %v1460, 0.0
  %v1966 = vmax.f32 %v1463, 0.0
  %v1967 = vmax.f32 %v1466, 0.0
  %v1968 = vmax.f32 %v1469, 0.0
  %v1969 = vmax.f32 %v1472, 0.0
  %v1970 = vmax.f32 %v1475, 0.0
  %v1971 = vmax.f32 %v1478, 0.0
  %v1972 = vmax.f32 %v1481, 0.0
  %v1973 = vmax.f32 %v1484, 0.0
  %v1974 = vmax.f32 %v1487, 0.0
  %v1975 = vmax.f32 %v1490, 0.0
  %v1976 = vmax.f32 %v1493, 0.0
  %v1977 = vmax.f32 %v1496, 0.0
  %v1978 = vmax.f32 %v1499, 0.0
  %v1979 = vmax.f32 %v1502, 0.0
  %v1980 = vmax.f32 %v1505, 0.0
  %v1981 = vmax.f32 %v1508, 0.0
  %v1982 = vmax.f32 %v1511, 0.0
  %v1983 = vmax.f32 %v1514, 0.0
  %v1984 = vmax.f32 %v1517, 0.0
  %v1985 = vmax.f32 %v1520, 0.0
  %v1986 = vmax.f32 %v1523, 0.0
  %v1987 = vmax.f32 %v1526, 0.0
  %v1988 = vmax.f32 %v1529, 0.0
  %v1989 = vmax.f32 %v1532, 0.0
  %v1990 = vmax.f32 %v1535, 0.0
  %v1991 = vmax.f32 %v1538, 0.0
  %v1992 = vmax.f32 %v1541, 0.0
  %v1993 = vmax.f32 %v1544, 0.0
  %v1994 = vmax.f32 %v1547, 0.0
  %v1995 = vmax.f32 %v1550, 0.0
  %v1996 = vmax.f32 %v1553, 0.0
  %v1997 = vmax.f32 %v1556, 0.0
  %v1998 = vmax.f32 %v1559, 0.0
  %v1999 = vmax.f32 %v1562, 0.0
  %v2000 = vmax.f32 %v1565, 0.0
  %v2001 = vmax.f32 %v1568, 0.0
  %v2002 = vmax.f32 %v1571, 0.0
  %v2003 = vmax.f32 %v1574, 0.0
  %v2004 = vmax.f32 %v1577, 0.0
  %v2005 = vmax.f32 %v1580, 0.0
  %v2006 = vmax.f32 %v1583, 0.0
  %v2007 = vmax.f32 %v1586, 0.0
  %v2008 = vmax.f32 %v1589, 0.0
  %v2009 = vmax.f32 %v1592, 0.0
  %v2010 = vmax.f32 %v1595, 0.0
  %v2011 = vmax.f32 %v1598, 0.0
  %v2012 = vmax.f32 %v1601, 0.0
  %v2013 = vmax.f32 %v1604, 0.0
  %v2014 = vmax.f32 %v1607, 0.0
  %v2015 = vmax.f32 %v1610, 0.0
  %v2016 = vmax.f32 %v1613, 0.0
  %v2017 = vmax.f32 %v1616, 0.0
  %v2018 = vmax.f32 %v1619, 0.0
  %v2019 = vmax.f32 %v1622, 0.0
  %v2020 = vmax.f32 %v1625, 0.0
  %v2021 = vmax.f32 %v1628, 0.0
  %v2022 = vmax.f32 %v1631, 0.0
  %v2023 = vmax.f32 %v1634, 0.0
  %v2024 = vmax.f32 %v1637, 0.0
  %v2025 = vmax.f32 %v1640, 0.0
  %v2026 = vmax.f32 %v1643, 0.0
  %v2027 = vmax.f32 %v1646, 0.0
  %v2028 = vmax.f32 %v1649, 0.0
  %v2029 = vmax.f32 %v1652, 0.0
  %v2030 = vmax.f32 %v1655, 0.0
  %v2031 = vmax.f32 %v1658, 0.0
  %v2032 = vmax.f32 %v1661, 0.0
  %v2033 = vmax.f32 %v1664, 0.0
  %v2034 = vmax.f32 %v1667, 0.0
  %v2035 = vmax.f32 %v1670, 0.0
  %v2036 = vmax.f32 %v1673, 0.0
  %v2037 = vmax.f32 %v1676, 0.0
  %v2038 = vmax.f32 %v1679, 0.0
  %v2039 = vmax.f32 %v1682, 0.0
  %v2040 = vmax.f32 %v1685, 0.0
  %v2041 = vmax.f32 %v1688, 0.0
  %v2042 = vmax.f32 %v1691, 0.0
  %v2043 = vmax.f32 %v1694, 0.0
  %v2044 = vmax.f32 %v1697, 0.0
  %v2045 = vmax.f32 %v1700, 0.0
  %v2046 = vmax.f32 %v1703, 0.0
  %v2047 = vmax.f32 %v1706, 0.0
  %v2048 = vmax.f32 %v1709, 0.0
  %v2049 = vmax.f32 %v1712, 0.0
  %v2050 = vmax.f32 %v1715, 0.0
  %v2051 = vmax.f32 %v1718, 0.0
  %v2052 = vmax.f32 %v1721, 0.0
  %v2053 = vmax.f32 %v1724, 0.0
  %v2054 = vmax.f32 %v1727, 0.0
  %v2055 = vmax.f32 %v1730, 0.0
  %v2056 = vmax.f32 %v1733, 0.0
  %v2057 = vmax.f32 %v1736, 0.0
  %v2058 = vmax.f32 %v1739, 0.0
  %v2059 = vmax.f32 %v1742, 0.0
  %v2060 = vmax.f32 %v1745, 0.0
  %v2061 = vmax.f32 %v1748, 0.0
  %v2062 = vmax.f32 %v1751, 0.0
  %v2063 = vmax.f32 %v1754, 0.0
  %v2064 = vmax.f32 %v1757, 0.0
  %v2065 = vmax.f32 %v1760, 0.0
  %v2066 = vmax.f32 %v1763, 0.0
  %v2067 = vmax.f32 %v1766, 0.0
  %v2068 = vmax.f32 %v1769, 0.0
  %v2069 = vmax.f32 %v1772, 0.0
  %v2070 = vmax.f32 %v1775, 0.0
  %v2071 = vmax.f32 %v1778, 0.0
  %v2072 = vmax.f32 %v1781, 0.0
  %v2073 = vmax.f32 %v1784, 0.0
  %v2074 = vmax.f32 %v1787, 0.0
  %v2075 = vmax.f32 %v1790, 0.0
  %v2076 = vmax.f32 %v1793, 0.0
  %v2077 = vmax.f32 %v1796, 0.0
  %v2078 = vmax.f32 %v1799, 0.0
  %v2079 = vmax.f32 %v1802, 0.0
  %v2080 = vmax.f32 %v1805, 0.0
  %v2081 = vmax.f32 %v1808, 0.0
  %v2082 = vmax.f32 %v1811, 0.0
  %v2083 = vmax.f32 %v1814, 0.0
  %v2084 = vmax.f32 %v1817, 0.0
  %v2085 = vmax.f32 %v1820, 0.0
  %v2086 = vmax.f32 %v1823, 0.0
  %v2087 = vmax.f32 %v1826, 0.0
  %v2088 = vmax.f32 %v1829, 0.0
  %v2089 = vmax.f32 %v1832, 0.0
  %vm2090 = vcmask 64512
  %2091 = vst.msk [vmem:[%s3] sm:$0xff] %vm2090, %v1834
  %2092 = vst.msk [vmem:[%s3 + $0x8] sm:$0xff] %vm2090, %v1835
  %2093 = vst.msk [vmem:[%s3 + $0x10] sm:$0xff] %vm2090, %v1836
  %2094 = vst.msk [vmem:[%s3 + $0x18] sm:$0xff] %vm2090, %v1837
  %2095 = vst.msk [vmem:[%s3 + $0x20] sm:$0xff] %vm2090, %v1838
  %2096 = vst.msk [vmem:[%s3 + $0x28] sm:$0xff] %vm2090, %v1839
  %2097 = vst.msk [vmem:[%s3 + $0x30] sm:$0xff] %vm2090, %v1840
  %2098 = vst.msk [vmem:[%s3 + $0x38] sm:$0xff] %vm2090, %v1841
  %2099 = vst.msk [vmem:[%s3 + $0x40] sm:$0xff] %vm2090, %v1842
  %2100 = vst.msk [vmem:[%s3 + $0x48] sm:$0xff] %vm2090, %v1843
  %2101 = vst.msk [vmem:[%s3 + $0x50] sm:$0xff] %vm2090, %v1844
  %2102 = vst.msk [vmem:[%s3 + $0x58] sm:$0xff] %vm2090, %v1845
  %2103 = vst.msk [vmem:[%s3 + $0x60] sm:$0xff] %vm2090, %v1846
  %2104 = vst.msk [vmem:[%s3 + $0x68] sm:$0xff] %vm2090, %v1847
  %2105 = vst.msk [vmem:[%s3 + $0x70] sm:$0xff] %vm2090, %v1848
  %2106 = vst.msk [vmem:[%s3 + $0x78] sm:$0xff] %vm2090, %v1849
  %2107 = vst.msk [vmem:[%s3 + $0x80] sm:$0xff] %vm2090, %v1850
  %2108 = vst.msk [vmem:[%s3 + $0x88] sm:$0xff] %vm2090, %v1851
  %2109 = vst.msk [vmem:[%s3 + $0x90] sm:$0xff] %vm2090, %v1852
  %2110 = vst.msk [vmem:[%s3 + $0x98] sm:$0xff] %vm2090, %v1853
  %2111 = vst.msk [vmem:[%s3 + $0xa0] sm:$0xff] %vm2090, %v1854
  %2112 = vst.msk [vmem:[%s3 + $0xa8] sm:$0xff] %vm2090, %v1855
  %2113 = vst.msk [vmem:[%s3 + $0xb0] sm:$0xff] %vm2090, %v1856
  %2114 = vst.msk [vmem:[%s3 + $0xb8] sm:$0xff] %vm2090, %v1857
  %2115 = vst.msk [vmem:[%s3 + $0xc0] sm:$0xff] %vm2090, %v1858
  %2116 = vst.msk [vmem:[%s3 + $0xc8] sm:$0xff] %vm2090, %v1859
  %2117 = vst.msk [vmem:[%s3 + $0xd0] sm:$0xff] %vm2090, %v1860
  %2118 = vst.msk [vmem:[%s3 + $0xd8] sm:$0xff] %vm2090, %v1861
  %2119 = vst.msk [vmem:[%s3 + $0xe0] sm:$0xff] %vm2090, %v1862
  %2120 = vst.msk [vmem:[%s3 + $0xe8] sm:$0xff] %vm2090, %v1863
  %2121 = vst.msk [vmem:[%s3 + $0xf0] sm:$0xff] %vm2090, %v1864
  %2122 = vst.msk [vmem:[%s3 + $0xf8] sm:$0xff] %vm2090, %v1865
  %2123 = vst.msk [vmem:[%s3 + $0x100] sm:$0xff] %vm2090, %v1866
  %2124 = vst.msk [vmem:[%s3 + $0x108] sm:$0xff] %vm2090, %v1867
  %2125 = vst.msk [vmem:[%s3 + $0x110] sm:$0xff] %vm2090, %v1868
  %2126 = vst.msk [vmem:[%s3 + $0x118] sm:$0xff] %vm2090, %v1869
  %2127 = vst.msk [vmem:[%s3 + $0x120] sm:$0xff] %vm2090, %v1870
  %2128 = vst.msk [vmem:[%s3 + $0x128] sm:$0xff] %vm2090, %v1871
  %2129 = vst.msk [vmem:[%s3 + $0x130] sm:$0xff] %vm2090, %v1872
  %2130 = vst.msk [vmem:[%s3 + $0x138] sm:$0xff] %vm2090, %v1873
  %2131 = vst.msk [vmem:[%s3 + $0x140] sm:$0xff] %vm2090, %v1874
  %2132 = vst.msk [vmem:[%s3 + $0x148] sm:$0xff] %vm2090, %v1875
  %2133 = vst.msk [vmem:[%s3 + $0x150] sm:$0xff] %vm2090, %v1876
  %2134 = vst.msk [vmem:[%s3 + $0x158] sm:$0xff] %vm2090, %v1877
  %2135 = vst.msk [vmem:[%s3 + $0x160] sm:$0xff] %vm2090, %v1878
  %2136 = vst.msk [vmem:[%s3 + $0x168] sm:$0xff] %vm2090, %v1879
  %2137 = vst.msk [vmem:[%s3 + $0x170] sm:$0xff] %vm2090, %v1880
  %2138 = vst.msk [vmem:[%s3 + $0x178] sm:$0xff] %vm2090, %v1881
  %2139 = vst.msk [vmem:[%s3 + $0x180] sm:$0xff] %vm2090, %v1882
  %2140 = vst.msk [vmem:[%s3 + $0x188] sm:$0xff] %vm2090, %v1883
  %2141 = vst.msk [vmem:[%s3 + $0x190] sm:$0xff] %vm2090, %v1884
  %2142 = vst.msk [vmem:[%s3 + $0x198] sm:$0xff] %vm2090, %v1885
  %2143 = vst.msk [vmem:[%s3 + $0x1a0] sm:$0xff] %vm2090, %v1886
  %2144 = vst.msk [vmem:[%s3 + $0x1a8] sm:$0xff] %vm2090, %v1887
  %2145 = vst.msk [vmem:[%s3 + $0x1b0] sm:$0xff] %vm2090, %v1888
  %2146 = vst.msk [vmem:[%s3 + $0x1b8] sm:$0xff] %vm2090, %v1889
  %2147 = vst.msk [vmem:[%s3 + $0x1c0] sm:$0xff] %vm2090, %v1890
  %2148 = vst.msk [vmem:[%s3 + $0x1c8] sm:$0xff] %vm2090, %v1891
  %2149 = vst.msk [vmem:[%s3 + $0x1d0] sm:$0xff] %vm2090, %v1892
  %2150 = vst.msk [vmem:[%s3 + $0x1d8] sm:$0xff] %vm2090, %v1893
  %2151 = vst.msk [vmem:[%s3 + $0x1e0] sm:$0xff] %vm2090, %v1894
  %2152 = vst.msk [vmem:[%s3 + $0x1e8] sm:$0xff] %vm2090, %v1895
  %2153 = vst.msk [vmem:[%s3 + $0x1f0] sm:$0xff] %vm2090, %v1896
  %2154 = vst.msk [vmem:[%s3 + $0x1f8] sm:$0xff] %vm2090, %v1897
  %2155 = vst.msk [vmem:[%s3 + $0x200] sm:$0xff] %vm2090, %v1898
  %2156 = vst.msk [vmem:[%s3 + $0x208] sm:$0xff] %vm2090, %v1899
  %2157 = vst.msk [vmem:[%s3 + $0x210] sm:$0xff] %vm2090, %v1900
  %2158 = vst.msk [vmem:[%s3 + $0x218] sm:$0xff] %vm2090, %v1901
  %2159 = vst.msk [vmem:[%s3 + $0x220] sm:$0xff] %vm2090, %v1902
  %2160 = vst.msk [vmem:[%s3 + $0x228] sm:$0xff] %vm2090, %v1903
  %2161 = vst.msk [vmem:[%s3 + $0x230] sm:$0xff] %vm2090, %v1904
  %2162 = vst.msk [vmem:[%s3 + $0x238] sm:$0xff] %vm2090, %v1905
  %2163 = vst.msk [vmem:[%s3 + $0x240] sm:$0xff] %vm2090, %v1906
  %2164 = vst.msk [vmem:[%s3 + $0x248] sm:$0xff] %vm2090, %v1907
  %2165 = vst.msk [vmem:[%s3 + $0x250] sm:$0xff] %vm2090, %v1908
  %2166 = vst.msk [vmem:[%s3 + $0x258] sm:$0xff] %vm2090, %v1909
  %2167 = vst.msk [vmem:[%s3 + $0x260] sm:$0xff] %vm2090, %v1910
  %2168 = vst.msk [vmem:[%s3 + $0x268] sm:$0xff] %vm2090, %v1911
  %2169 = vst.msk [vmem:[%s3 + $0x270] sm:$0xff] %vm2090, %v1912
  %2170 = vst.msk [vmem:[%s3 + $0x278] sm:$0xff] %vm2090, %v1913
  %2171 = vst.msk [vmem:[%s3 + $0x280] sm:$0xff] %vm2090, %v1914
  %2172 = vst.msk [vmem:[%s3 + $0x288] sm:$0xff] %vm2090, %v1915
  %2173 = vst.msk [vmem:[%s3 + $0x290] sm:$0xff] %vm2090, %v1916
  %2174 = vst.msk [vmem:[%s3 + $0x298] sm:$0xff] %vm2090, %v1917
  %2175 = vst.msk [vmem:[%s3 + $0x2a0] sm:$0xff] %vm2090, %v1918
  %2176 = vst.msk [vmem:[%s3 + $0x2a8] sm:$0xff] %vm2090, %v1919
  %2177 = vst.msk [vmem:[%s3 + $0x2b0] sm:$0xff] %vm2090, %v1920
  %2178 = vst.msk [vmem:[%s3 + $0x2b8] sm:$0xff] %vm2090, %v1921
  %2179 = vst.msk [vmem:[%s3 + $0x2c0] sm:$0xff] %vm2090, %v1922
  %2180 = vst.msk [vmem:[%s3 + $0x2c8] sm:$0xff] %vm2090, %v1923
  %2181 = vst.msk [vmem:[%s3 + $0x2d0] sm:$0xff] %vm2090, %v1924
  %2182 = vst.msk [vmem:[%s3 + $0x2d8] sm:$0xff] %vm2090, %v1925
  %2183 = vst.msk [vmem:[%s3 + $0x2e0] sm:$0xff] %vm2090, %v1926
  %2184 = vst.msk [vmem:[%s3 + $0x2e8] sm:$0xff] %vm2090, %v1927
  %2185 = vst.msk [vmem:[%s3 + $0x2f0] sm:$0xff] %vm2090, %v1928
  %2186 = vst.msk [vmem:[%s3 + $0x2f8] sm:$0xff] %vm2090, %v1929
  %2187 = vst.msk [vmem:[%s3 + $0x300] sm:$0xff] %vm2090, %v1930
  %2188 = vst.msk [vmem:[%s3 + $0x308] sm:$0xff] %vm2090, %v1931
  %2189 = vst.msk [vmem:[%s3 + $0x310] sm:$0xff] %vm2090, %v1932
  %2190 = vst.msk [vmem:[%s3 + $0x318] sm:$0xff] %vm2090, %v1933
  %2191 = vst.msk [vmem:[%s3 + $0x320] sm:$0xff] %vm2090, %v1934
  %2192 = vst.msk [vmem:[%s3 + $0x328] sm:$0xff] %vm2090, %v1935
  %2193 = vst.msk [vmem:[%s3 + $0x330] sm:$0xff] %vm2090, %v1936
  %2194 = vst.msk [vmem:[%s3 + $0x338] sm:$0xff] %vm2090, %v1937
  %2195 = vst.msk [vmem:[%s3 + $0x340] sm:$0xff] %vm2090, %v1938
  %2196 = vst.msk [vmem:[%s3 + $0x348] sm:$0xff] %vm2090, %v1939
  %2197 = vst.msk [vmem:[%s3 + $0x350] sm:$0xff] %vm2090, %v1940
  %2198 = vst.msk [vmem:[%s3 + $0x358] sm:$0xff] %vm2090, %v1941
  %2199 = vst.msk [vmem:[%s3 + $0x360] sm:$0xff] %vm2090, %v1942
  %2200 = vst.msk [vmem:[%s3 + $0x368] sm:$0xff] %vm2090, %v1943
  %2201 = vst.msk [vmem:[%s3 + $0x370] sm:$0xff] %vm2090, %v1944
  %2202 = vst.msk [vmem:[%s3 + $0x378] sm:$0xff] %vm2090, %v1945
  %2203 = vst.msk [vmem:[%s3 + $0x380] sm:$0xff] %vm2090, %v1946
  %2204 = vst.msk [vmem:[%s3 + $0x388] sm:$0xff] %vm2090, %v1947
  %2205 = vst.msk [vmem:[%s3 + $0x390] sm:$0xff] %vm2090, %v1948
  %2206 = vst.msk [vmem:[%s3 + $0x398] sm:$0xff] %vm2090, %v1949
  %2207 = vst.msk [vmem:[%s3 + $0x3a0] sm:$0xff] %vm2090, %v1950
  %2208 = vst.msk [vmem:[%s3 + $0x3a8] sm:$0xff] %vm2090, %v1951
  %2209 = vst.msk [vmem:[%s3 + $0x3b0] sm:$0xff] %vm2090, %v1952
  %2210 = vst.msk [vmem:[%s3 + $0x3b8] sm:$0xff] %vm2090, %v1953
  %2211 = vst.msk [vmem:[%s3 + $0x3c0] sm:$0xff] %vm2090, %v1954
  %2212 = vst.msk [vmem:[%s3 + $0x3c8] sm:$0xff] %vm2090, %v1955
  %2213 = vst.msk [vmem:[%s3 + $0x3d0] sm:$0xff] %vm2090, %v1956
  %2214 = vst.msk [vmem:[%s3 + $0x3d8] sm:$0xff] %vm2090, %v1957
  %2215 = vst.msk [vmem:[%s3 + $0x3e0] sm:$0xff] %vm2090, %v1958
  %2216 = vst.msk [vmem:[%s3 + $0x3e8] sm:$0xff] %vm2090, %v1959
  %2217 = vst.msk [vmem:[%s3 + $0x3f0] sm:$0xff] %vm2090, %v1960
  %2218 = vst.msk [vmem:[%s3 + $0x3f8] sm:$0xff] %vm2090, %v1961
  %2219 = vst.msk [vmem:[%s3 + $0x400] sm:$0xff] %vm2090, %v1962
  %2220 = vst.msk [vmem:[%s3 + $0x408] sm:$0xff] %vm2090, %v1963
  %2221 = vst.msk [vmem:[%s3 + $0x410] sm:$0xff] %vm2090, %v1964
  %2222 = vst.msk [vmem:[%s3 + $0x418] sm:$0xff] %vm2090, %v1965
  %2223 = vst.msk [vmem:[%s3 + $0x420] sm:$0xff] %vm2090, %v1966
  %2224 = vst.msk [vmem:[%s3 + $0x428] sm:$0xff] %vm2090, %v1967
  %2225 = vst.msk [vmem:[%s3 + $0x430] sm:$0xff] %vm2090, %v1968
  %2226 = vst.msk [vmem:[%s3 + $0x438] sm:$0xff] %vm2090, %v1969
  %2227 = vst.msk [vmem:[%s3 + $0x440] sm:$0xff] %vm2090, %v1970
  %2228 = vst.msk [vmem:[%s3 + $0x448] sm:$0xff] %vm2090, %v1971
  %2229 = vst.msk [vmem:[%s3 + $0x450] sm:$0xff] %vm2090, %v1972
  %2230 = vst.msk [vmem:[%s3 + $0x458] sm:$0xff] %vm2090, %v1973
  %2231 = vst.msk [vmem:[%s3 + $0x460] sm:$0xff] %vm2090, %v1974
  %2232 = vst.msk [vmem:[%s3 + $0x468] sm:$0xff] %vm2090, %v1975
  %2233 = vst.msk [vmem:[%s3 + $0x470] sm:$0xff] %vm2090, %v1976
  %2234 = vst.msk [vmem:[%s3 + $0x478] sm:$0xff] %vm2090, %v1977
  %2235 = vst.msk [vmem:[%s3 + $0x480] sm:$0xff] %vm2090, %v1978
  %2236 = vst.msk [vmem:[%s3 + $0x488] sm:$0xff] %vm2090, %v1979
  %2237 = vst.msk [vmem:[%s3 + $0x490] sm:$0xff] %vm2090, %v1980
  %2238 = vst.msk [vmem:[%s3 + $0x498] sm:$0xff] %vm2090, %v1981
  %2239 = vst.msk [vmem:[%s3 + $0x4a0] sm:$0xff] %vm2090, %v1982
  %2240 = vst.msk [vmem:[%s3 + $0x4a8] sm:$0xff] %vm2090, %v1983
  %2241 = vst.msk [vmem:[%s3 + $0x4b0] sm:$0xff] %vm2090, %v1984
  %2242 = vst.msk [vmem:[%s3 + $0x4b8] sm:$0xff] %vm2090, %v1985
  %2243 = vst.msk [vmem:[%s3 + $0x4c0] sm:$0xff] %vm2090, %v1986
  %2244 = vst.msk [vmem:[%s3 + $0x4c8] sm:$0xff] %vm2090, %v1987
  %2245 = vst.msk [vmem:[%s3 + $0x4d0] sm:$0xff] %vm2090, %v1988
  %2246 = vst.msk [vmem:[%s3 + $0x4d8] sm:$0xff] %vm2090, %v1989
  %2247 = vst.msk [vmem:[%s3 + $0x4e0] sm:$0xff] %vm2090, %v1990
  %2248 = vst.msk [vmem:[%s3 + $0x4e8] sm:$0xff] %vm2090, %v1991
  %2249 = vst.msk [vmem:[%s3 + $0x4f0] sm:$0xff] %vm2090, %v1992
  %2250 = vst.msk [vmem:[%s3 + $0x4f8] sm:$0xff] %vm2090, %v1993
  %2251 = vst.msk [vmem:[%s3 + $0x500] sm:$0xff] %vm2090, %v1994
  %2252 = vst.msk [vmem:[%s3 + $0x508] sm:$0xff] %vm2090, %v1995
  %2253 = vst.msk [vmem:[%s3 + $0x510] sm:$0xff] %vm2090, %v1996
  %2254 = vst.msk [vmem:[%s3 + $0x518] sm:$0xff] %vm2090, %v1997
  %2255 = vst.msk [vmem:[%s3 + $0x520] sm:$0xff] %vm2090, %v1998
  %2256 = vst.msk [vmem:[%s3 + $0x528] sm:$0xff] %vm2090, %v1999
  %2257 = vst.msk [vmem:[%s3 + $0x530] sm:$0xff] %vm2090, %v2000
  %2258 = vst.msk [vmem:[%s3 + $0x538] sm:$0xff] %vm2090, %v2001
  %2259 = vst.msk [vmem:[%s3 + $0x540] sm:$0xff] %vm2090, %v2002
  %2260 = vst.msk [vmem:[%s3 + $0x548] sm:$0xff] %vm2090, %v2003
  %2261 = vst.msk [vmem:[%s3 + $0x550] sm:$0xff] %vm2090, %v2004
  %2262 = vst.msk [vmem:[%s3 + $0x558] sm:$0xff] %vm2090, %v2005
  %2263 = vst.msk [vmem:[%s3 + $0x560] sm:$0xff] %vm2090, %v2006
  %2264 = vst.msk [vmem:[%s3 + $0x568] sm:$0xff] %vm2090, %v2007
  %2265 = vst.msk [vmem:[%s3 + $0x570] sm:$0xff] %vm2090, %v2008
  %2266 = vst.msk [vmem:[%s3 + $0x578] sm:$0xff] %vm2090, %v2009
  %2267 = vst.msk [vmem:[%s3 + $0x580] sm:$0xff] %vm2090, %v2010
  %2268 = vst.msk [vmem:[%s3 + $0x588] sm:$0xff] %vm2090, %v2011
  %2269 = vst.msk [vmem:[%s3 + $0x590] sm:$0xff] %vm2090, %v2012
  %2270 = vst.msk [vmem:[%s3 + $0x598] sm:$0xff] %vm2090, %v2013
  %2271 = vst.msk [vmem:[%s3 + $0x5a0] sm:$0xff] %vm2090, %v2014
  %2272 = vst.msk [vmem:[%s3 + $0x5a8] sm:$0xff] %vm2090, %v2015
  %2273 = vst.msk [vmem:[%s3 + $0x5b0] sm:$0xff] %vm2090, %v2016
  %2274 = vst.msk [vmem:[%s3 + $0x5b8] sm:$0xff] %vm2090, %v2017
  %2275 = vst.msk [vmem:[%s3 + $0x5c0] sm:$0xff] %vm2090, %v2018
  %2276 = vst.msk [vmem:[%s3 + $0x5c8] sm:$0xff] %vm2090, %v2019
  %2277 = vst.msk [vmem:[%s3 + $0x5d0] sm:$0xff] %vm2090, %v2020
  %2278 = vst.msk [vmem:[%s3 + $0x5d8] sm:$0xff] %vm2090, %v2021
  %2279 = vst.msk [vmem:[%s3 + $0x5e0] sm:$0xff] %vm2090, %v2022
  %2280 = vst.msk [vmem:[%s3 + $0x5e8] sm:$0xff] %vm2090, %v2023
  %2281 = vst.msk [vmem:[%s3 + $0x5f0] sm:$0xff] %vm2090, %v2024
  %2282 = vst.msk [vmem:[%s3 + $0x5f8] sm:$0xff] %vm2090, %v2025
  %2283 = vst.msk [vmem:[%s3 + $0x600] sm:$0xff] %vm2090, %v2026
  %2284 = vst.msk [vmem:[%s3 + $0x608] sm:$0xff] %vm2090, %v2027
  %2285 = vst.msk [vmem:[%s3 + $0x610] sm:$0xff] %vm2090, %v2028
  %2286 = vst.msk [vmem:[%s3 + $0x618] sm:$0xff] %vm2090, %v2029
  %2287 = vst.msk [vmem:[%s3 + $0x620] sm:$0xff] %vm2090, %v2030
  %2288 = vst.msk [vmem:[%s3 + $0x628] sm:$0xff] %vm2090, %v2031
  %2289 = vst.msk [vmem:[%s3 + $0x630] sm:$0xff] %vm2090, %v2032
  %2290 = vst.msk [vmem:[%s3 + $0x638] sm:$0xff] %vm2090, %v2033
  %2291 = vst.msk [vmem:[%s3 + $0x640] sm:$0xff] %vm2090, %v2034
  %2292 = vst.msk [vmem:[%s3 + $0x648] sm:$0xff] %vm2090, %v2035
  %2293 = vst.msk [vmem:[%s3 + $0x650] sm:$0xff] %vm2090, %v2036
  %2294 = vst.msk [vmem:[%s3 + $0x658] sm:$0xff] %vm2090, %v2037
  %2295 = vst.msk [vmem:[%s3 + $0x660] sm:$0xff] %vm2090, %v2038
  %2296 = vst.msk [vmem:[%s3 + $0x668] sm:$0xff] %vm2090, %v2039
  %2297 = vst.msk [vmem:[%s3 + $0x670] sm:$0xff] %vm2090, %v2040
  %2298 = vst.msk [vmem:[%s3 + $0x678] sm:$0xff] %vm2090, %v2041
  %2299 = vst.msk [vmem:[%s3 + $0x680] sm:$0xff] %vm2090, %v2042
  %2300 = vst.msk [vmem:[%s3 + $0x688] sm:$0xff] %vm2090, %v2043
  %2301 = vst.msk [vmem:[%s3 + $0x690] sm:$0xff] %vm2090, %v2044
  %2302 = vst.msk [vmem:[%s3 + $0x698] sm:$0xff] %vm2090, %v2045
  %2303 = vst.msk [vmem:[%s3 + $0x6a0] sm:$0xff] %vm2090, %v2046
  %2304 = vst.msk [vmem:[%s3 + $0x6a8] sm:$0xff] %vm2090, %v2047
  %2305 = vst.msk [vmem:[%s3 + $0x6b0] sm:$0xff] %vm2090, %v2048
  %2306 = vst.msk [vmem:[%s3 + $0x6b8] sm:$0xff] %vm2090, %v2049
  %2307 = vst.msk [vmem:[%s3 + $0x6c0] sm:$0xff] %vm2090, %v2050
  %2308 = vst.msk [vmem:[%s3 + $0x6c8] sm:$0xff] %vm2090, %v2051
  %2309 = vst.msk [vmem:[%s3 + $0x6d0] sm:$0xff] %vm2090, %v2052
  %2310 = vst.msk [vmem:[%s3 + $0x6d8] sm:$0xff] %vm2090, %v2053
  %2311 = vst.msk [vmem:[%s3 + $0x6e0] sm:$0xff] %vm2090, %v2054
  %2312 = vst.msk [vmem:[%s3 + $0x6e8] sm:$0xff] %vm2090, %v2055
  %2313 = vst.msk [vmem:[%s3 + $0x6f0] sm:$0xff] %vm2090, %v2056
  %2314 = vst.msk [vmem:[%s3 + $0x6f8] sm:$0xff] %vm2090, %v2057
  %2315 = vst.msk [vmem:[%s3 + $0x700] sm:$0xff] %vm2090, %v2058
  %2316 = vst.msk [vmem:[%s3 + $0x708] sm:$0xff] %vm2090, %v2059
  %2317 = vst.msk [vmem:[%s3 + $0x710] sm:$0xff] %vm2090, %v2060
  %2318 = vst.msk [vmem:[%s3 + $0x718] sm:$0xff] %vm2090, %v2061
  %2319 = vst.msk [vmem:[%s3 + $0x720] sm:$0xff] %vm2090, %v2062
  %2320 = vst.msk [vmem:[%s3 + $0x728] sm:$0xff] %vm2090, %v2063
  %2321 = vst.msk [vmem:[%s3 + $0x730] sm:$0xff] %vm2090, %v2064
  %2322 = vst.msk [vmem:[%s3 + $0x738] sm:$0xff] %vm2090, %v2065
  %2323 = vst.msk [vmem:[%s3 + $0x740] sm:$0xff] %vm2090, %v2066
  %2324 = vst.msk [vmem:[%s3 + $0x748] sm:$0xff] %vm2090, %v2067
  %2325 = vst.msk [vmem:[%s3 + $0x750] sm:$0xff] %vm2090, %v2068
  %2326 = vst.msk [vmem:[%s3 + $0x758] sm:$0xff] %vm2090, %v2069
  %2327 = vst.msk [vmem:[%s3 + $0x760] sm:$0xff] %vm2090, %v2070
  %2328 = vst.msk [vmem:[%s3 + $0x768] sm:$0xff] %vm2090, %v2071
  %2329 = vst.msk [vmem:[%s3 + $0x770] sm:$0xff] %vm2090, %v2072
  %2330 = vst.msk [vmem:[%s3 + $0x778] sm:$0xff] %vm2090, %v2073
  %2331 = vst.msk [vmem:[%s3 + $0x780] sm:$0xff] %vm2090, %v2074
  %2332 = vst.msk [vmem:[%s3 + $0x788] sm:$0xff] %vm2090, %v2075
  %2333 = vst.msk [vmem:[%s3 + $0x790] sm:$0xff] %vm2090, %v2076
  %2334 = vst.msk [vmem:[%s3 + $0x798] sm:$0xff] %vm2090, %v2077
  %2335 = vst.msk [vmem:[%s3 + $0x7a0] sm:$0xff] %vm2090, %v2078
  %2336 = vst.msk [vmem:[%s3 + $0x7a8] sm:$0xff] %vm2090, %v2079
  %2337 = vst.msk [vmem:[%s3 + $0x7b0] sm:$0xff] %vm2090, %v2080
  %2338 = vst.msk [vmem:[%s3 + $0x7b8] sm:$0xff] %vm2090, %v2081
  %2339 = vst.msk [vmem:[%s3 + $0x7c0] sm:$0xff] %vm2090, %v2082
  %2340 = vst.msk [vmem:[%s3 + $0x7c8] sm:$0xff] %vm2090, %v2083
  %2341 = vst.msk [vmem:[%s3 + $0x7d0] sm:$0xff] %vm2090, %v2084
  %2342 = vst.msk [vmem:[%s3 + $0x7d8] sm:$0xff] %vm2090, %v2085
  %2343 = vst.msk [vmem:[%s3 + $0x7e0] sm:$0xff] %vm2090, %v2086
  %2344 = vst.msk [vmem:[%s3 + $0x7e8] sm:$0xff] %vm2090, %v2087
  %2345 = vst.msk [vmem:[%s3 + $0x7f0] sm:$0xff] %vm2090, %v2088
  %2346 = vst.msk [vmem:[%s3 + $0x7f8] sm:$0xff] %vm2090, %v2089
  // Predicated region
  $region14: #{model_forward.5} parent=0 // pred_check
    _
  $region15: #{model_forward.5} parent=0 // pred_check_branch
    %2348 = sbr.rel (0) target = $region17
  $region16: #{model_forward.5} parent=0 // pred_region
    _
  $region17: #{model_forward.5} parent=0 // pred_fallthru
    _
  // Predicated region
  $region18: #{model_forward.5} parent=0 // pred_check
    _
  $region19: #{model_forward.5} parent=0 // pred_check_branch
    %2350 = sbr.rel (0) target = $region21
  $region20: #{model_forward.5} parent=0 // pred_region
    _
  $region21: #{model_forward.5} parent=0 // pred_fallthru
    _

// kernel: model_forward.6
$region0: #{model_forward.6}
  #allocation0 [shape = 'u32[]', space=smem, size = 0x4, offset = 0x4, fixed_abs, tag = 'smem constant byte address 0x4 - core index']
  #allocation1 [shape = 'u32[72,128]{1,0:T(1,128)}', space=vmem, size = 0x9000, scoped, tag = 'internal scratch']
  %s0 = inlined_call_operand.vmem [shape: f32[1024,72], index: 0, kind: input, shape index: {}]
  %s1 = inlined_call_operand.vmem [shape: f32[72,16], index: 1, kind: input, shape index: {}]
  %s2 = inlined_call_operand.vmem [shape: f32[1,16], index: 2, kind: input, shape index: {}]
  %s3 = inlined_call_operand.vmem [shape: f32[1024,16], index: 3, kind: output, shape index: {}]
  %s4 = sld [smem:[#allocation0]]
  $region22: #{model_forward.6} parent=0
    _
  %s6 = ssub.s32 1, %s4
  %s7 = scalar_select 0, %s6, %s4
  // Predicated region
  $region2: #{model_forward.6} parent=0 // pred_check
    _
  $region3: #{model_forward.6} parent=0 // pred_check_branch
    %9 = sbr.rel (0) target = $region5
  $region4: #{model_forward.6} parent=0 // pred_region
    _
  $region5: #{model_forward.6} parent=0 // pred_fallthru
    _
  // Predicated region
  $region6: #{model_forward.6} parent=0 // pred_check
    _
  $region7: #{model_forward.6} parent=0 // pred_check_branch
    %11 = sbr.rel (0) target = $region9
  $region8: #{model_forward.6} parent=0 // pred_region
    _
  $region9: #{model_forward.6} parent=0 // pred_fallthru
    _
  // Predicated region
  $region10: #{model_forward.6} parent=0 // pred_check
    _
  $region11: #{model_forward.6} parent=0 // pred_check_branch
    %13 = sbr.rel (0) target = $region13
  $region12: #{model_forward.6} parent=0 // pred_region
    _
  $region13: #{model_forward.6} parent=0 // pred_fallthru
    _
  %v14 = vld [vmem:[%s0] sm:$0xff]
  %v15 = vld [vmem:[%s0 + $0x8] sm:$0xff]
  %v16 = vld [vmem:[%s0 + $0x10] sm:$0xff]
  %v17 = vld [vmem:[%s0 + $0x18] sm:$0xff]
  %v18 = vld [vmem:[%s0 + $0x20] sm:$0xff]
  %v19 = vld [vmem:[%s0 + $0x28] sm:$0xff]
  %v20 = vld [vmem:[%s0 + $0x30] sm:$0xff]
  %v21 = vld [vmem:[%s0 + $0x38] sm:$0xff]
  %v22 = vld [vmem:[%s0 + $0x40] sm:$0xff]
  %v23 = vld [vmem:[%s0 + $0x48] sm:$0xff]
  %v24 = vld [vmem:[%s0 + $0x50] sm:$0xff]
  %v25 = vld [vmem:[%s0 + $0x58] sm:$0xff]
  %v26 = vld [vmem:[%s0 + $0x60] sm:$0xff]
  %v27 = vld [vmem:[%s0 + $0x68] sm:$0xff]
  %v28 = vld [vmem:[%s0 + $0x70] sm:$0xff]
  %v29 = vld [vmem:[%s0 + $0x78] sm:$0xff]
  %v30 = vld [vmem:[%s0 + $0x80] sm:$0xff]
  %v31 = vld [vmem:[%s0 + $0x88] sm:$0xff]
  %v32 = vld [vmem:[%s0 + $0x90] sm:$0xff]
  %v33 = vld [vmem:[%s0 + $0x98] sm:$0xff]
  %v34 = vld [vmem:[%s0 + $0xa0] sm:$0xff]
  %v35 = vld [vmem:[%s0 + $0xa8] sm:$0xff]
  %v36 = vld [vmem:[%s0 + $0xb0] sm:$0xff]
  %v37 = vld [vmem:[%s0 + $0xb8] sm:$0xff]
  %v38 = vld [vmem:[%s0 + $0xc0] sm:$0xff]
  %v39 = vld [vmem:[%s0 + $0xc8] sm:$0xff]
  %v40 = vld [vmem:[%s0 + $0xd0] sm:$0xff]
  %v41 = vld [vmem:[%s0 + $0xd8] sm:$0xff]
  %v42 = vld [vmem:[%s0 + $0xe0] sm:$0xff]
  %v43 = vld [vmem:[%s0 + $0xe8] sm:$0xff]
  %v44 = vld [vmem:[%s0 + $0xf0] sm:$0xff]
  %v45 = vld [vmem:[%s0 + $0xf8] sm:$0xff]
  %v46 = vld [vmem:[%s0 + $0x100] sm:$0xff]
  %v47 = vld [vmem:[%s0 + $0x108] sm:$0xff]
  %v48 = vld [vmem:[%s0 + $0x110] sm:$0xff]
  %v49 = vld [vmem:[%s0 + $0x118] sm:$0xff]
  %v50 = vld [vmem:[%s0 + $0x120] sm:$0xff]
  %v51 = vld [vmem:[%s0 + $0x128] sm:$0xff]
  %v52 = vld [vmem:[%s0 + $0x130] sm:$0xff]
  %v53 = vld [vmem:[%s0 + $0x138] sm:$0xff]
  %v54 = vld [vmem:[%s0 + $0x140] sm:$0xff]
  %v55 = vld [vmem:[%s0 + $0x148] sm:$0xff]
  %v56 = vld [vmem:[%s0 + $0x150] sm:$0xff]
  %v57 = vld [vmem:[%s0 + $0x158] sm:$0xff]
  %v58 = vld [vmem:[%s0 + $0x160] sm:$0xff]
  %v59 = vld [vmem:[%s0 + $0x168] sm:$0xff]
  %v60 = vld [vmem:[%s0 + $0x170] sm:$0xff]
  %v61 = vld [vmem:[%s0 + $0x178] sm:$0xff]
  %v62 = vld [vmem:[%s0 + $0x180] sm:$0xff]
  %v63 = vld [vmem:[%s0 + $0x188] sm:$0xff]
  %v64 = vld [vmem:[%s0 + $0x190] sm:$0xff]
  %v65 = vld [vmem:[%s0 + $0x198] sm:$0xff]
  %v66 = vld [vmem:[%s0 + $0x1a0] sm:$0xff]
  %v67 = vld [vmem:[%s0 + $0x1a8] sm:$0xff]
  %v68 = vld [vmem:[%s0 + $0x1b0] sm:$0xff]
  %v69 = vld [vmem:[%s0 + $0x1b8] sm:$0xff]
  %v70 = vld [vmem:[%s0 + $0x1c0] sm:$0xff]
  %v71 = vld [vmem:[%s0 + $0x1c8] sm:$0xff]
  %v72 = vld [vmem:[%s0 + $0x1d0] sm:$0xff]
  %v73 = vld [vmem:[%s0 + $0x1d8] sm:$0xff]
  %v74 = vld [vmem:[%s0 + $0x1e0] sm:$0xff]
  %v75 = vld [vmem:[%s0 + $0x1e8] sm:$0xff]
  %v76 = vld [vmem:[%s0 + $0x1f0] sm:$0xff]
  %v77 = vld [vmem:[%s0 + $0x1f8] sm:$0xff]
  %v78 = vld [vmem:[%s0 + $0x200] sm:$0xff]
  %v79 = vld [vmem:[%s0 + $0x208] sm:$0xff]
  %v80 = vld [vmem:[%s0 + $0x210] sm:$0xff]
  %v81 = vld [vmem:[%s0 + $0x218] sm:$0xff]
  %v82 = vld [vmem:[%s0 + $0x220] sm:$0xff]
  %v83 = vld [vmem:[%s0 + $0x228] sm:$0xff]
  %v84 = vld [vmem:[%s0 + $0x230] sm:$0xff]
  %v85 = vld [vmem:[%s0 + $0x238] sm:$0xff]
  %v86 = vld [vmem:[%s0 + $0x240] sm:$0xff]
  %v87 = vld [vmem:[%s0 + $0x248] sm:$0xff]
  %v88 = vld [vmem:[%s0 + $0x250] sm:$0xff]
  %v89 = vld [vmem:[%s0 + $0x258] sm:$0xff]
  %v90 = vld [vmem:[%s0 + $0x260] sm:$0xff]
  %v91 = vld [vmem:[%s0 + $0x268] sm:$0xff]
  %v92 = vld [vmem:[%s0 + $0x270] sm:$0xff]
  %v93 = vld [vmem:[%s0 + $0x278] sm:$0xff]
  %v94 = vld [vmem:[%s0 + $0x280] sm:$0xff]
  %v95 = vld [vmem:[%s0 + $0x288] sm:$0xff]
  %v96 = vld [vmem:[%s0 + $0x290] sm:$0xff]
  %v97 = vld [vmem:[%s0 + $0x298] sm:$0xff]
  %v98 = vld [vmem:[%s0 + $0x2a0] sm:$0xff]
  %v99 = vld [vmem:[%s0 + $0x2a8] sm:$0xff]
  %v100 = vld [vmem:[%s0 + $0x2b0] sm:$0xff]
  %v101 = vld [vmem:[%s0 + $0x2b8] sm:$0xff]
  %v102 = vld [vmem:[%s0 + $0x2c0] sm:$0xff]
  %v103 = vld [vmem:[%s0 + $0x2c8] sm:$0xff]
  %v104 = vld [vmem:[%s0 + $0x2d0] sm:$0xff]
  %v105 = vld [vmem:[%s0 + $0x2d8] sm:$0xff]
  %v106 = vld [vmem:[%s0 + $0x2e0] sm:$0xff]
  %v107 = vld [vmem:[%s0 + $0x2e8] sm:$0xff]
  %v108 = vld [vmem:[%s0 + $0x2f0] sm:$0xff]
  %v109 = vld [vmem:[%s0 + $0x2f8] sm:$0xff]
  %v110 = vld [vmem:[%s0 + $0x300] sm:$0xff]
  %v111 = vld [vmem:[%s0 + $0x308] sm:$0xff]
  %v112 = vld [vmem:[%s0 + $0x310] sm:$0xff]
  %v113 = vld [vmem:[%s0 + $0x318] sm:$0xff]
  %v114 = vld [vmem:[%s0 + $0x320] sm:$0xff]
  %v115 = vld [vmem:[%s0 + $0x328] sm:$0xff]
  %v116 = vld [vmem:[%s0 + $0x330] sm:$0xff]
  %v117 = vld [vmem:[%s0 + $0x338] sm:$0xff]
  %v118 = vld [vmem:[%s0 + $0x340] sm:$0xff]
  %v119 = vld [vmem:[%s0 + $0x348] sm:$0xff]
  %v120 = vld [vmem:[%s0 + $0x350] sm:$0xff]
  %v121 = vld [vmem:[%s0 + $0x358] sm:$0xff]
  %v122 = vld [vmem:[%s0 + $0x360] sm:$0xff]
  %v123 = vld [vmem:[%s0 + $0x368] sm:$0xff]
  %v124 = vld [vmem:[%s0 + $0x370] sm:$0xff]
  %v125 = vld [vmem:[%s0 + $0x378] sm:$0xff]
  %v126 = vld [vmem:[%s0 + $0x380] sm:$0xff]
  %v127 = vld [vmem:[%s0 + $0x388] sm:$0xff]
  %v128 = vld [vmem:[%s0 + $0x390] sm:$0xff]
  %v129 = vld [vmem:[%s0 + $0x398] sm:$0xff]
  %v130 = vld [vmem:[%s0 + $0x3a0] sm:$0xff]
  %v131 = vld [vmem:[%s0 + $0x3a8] sm:$0xff]
  %v132 = vld [vmem:[%s0 + $0x3b0] sm:$0xff]
  %v133 = vld [vmem:[%s0 + $0x3b8] sm:$0xff]
  %v134 = vld [vmem:[%s0 + $0x3c0] sm:$0xff]
  %v135 = vld [vmem:[%s0 + $0x3c8] sm:$0xff]
  %v136 = vld [vmem:[%s0 + $0x3d0] sm:$0xff]
  %v137 = vld [vmem:[%s0 + $0x3d8] sm:$0xff]
  %v138 = vld [vmem:[%s0 + $0x3e0] sm:$0xff]
  %v139 = vld [vmem:[%s0 + $0x3e8] sm:$0xff]
  %v140 = vld [vmem:[%s0 + $0x3f0] sm:$0xff]
  %v141 = vld [vmem:[%s0 + $0x3f8] sm:$0xff]
  %v142 = vld [vmem:[%s1] sm:$0xff]
  %v143 = vld [vmem:[%s1 + $0x8] sm:$0xff]
  %v144 = vld [vmem:[%s1 + $0x10] sm:$0xff]
  %v145 = vld [vmem:[%s1 + $0x18] sm:$0xff]
  %v146 = vld [vmem:[%s1 + $0x20] sm:$0xff]
  %v147 = vld [vmem:[%s1 + $0x28] sm:$0xff]
  %v148 = vld [vmem:[%s1 + $0x30] sm:$0xff]
  %v149 = vld [vmem:[%s1 + $0x38] sm:$0xff]
  %v150 = vld [vmem:[%s1 + $0x40] sm:$0xff]
  %v151 = vld [vmem:[%s2] sm:$0x1]
  %v153 = vperm.slane %v151, 0
  %vm155 = vcmask 588800
  %v157 = vsel %vm155, %v14, 0
  %v160 = vsel %vm155, %v15, 0
  %v163 = vsel %vm155, %v16, 0
  %v166 = vsel %vm155, %v17, 0
  %v169 = vsel %vm155, %v18, 0
  %v172 = vsel %vm155, %v19, 0
  %v175 = vsel %vm155, %v20, 0
  %v178 = vsel %vm155, %v21, 0
  %v181 = vsel %vm155, %v22, 0
  %v184 = vsel %vm155, %v23, 0
  %v187 = vsel %vm155, %v24, 0
  %v190 = vsel %vm155, %v25, 0
  %v193 = vsel %vm155, %v26, 0
  %v196 = vsel %vm155, %v27, 0
  %v199 = vsel %vm155, %v28, 0
  %v202 = vsel %vm155, %v29, 0
  %v205 = vsel %vm155, %v30, 0
  %v208 = vsel %vm155, %v31, 0
  %v211 = vsel %vm155, %v32, 0
  %v214 = vsel %vm155, %v33, 0
  %v217 = vsel %vm155, %v34, 0
  %v220 = vsel %vm155, %v35, 0
  %v223 = vsel %vm155, %v36, 0
  %v226 = vsel %vm155, %v37, 0
  %v229 = vsel %vm155, %v38, 0
  %v232 = vsel %vm155, %v39, 0
  %v235 = vsel %vm155, %v40, 0
  %v238 = vsel %vm155, %v41, 0
  %v241 = vsel %vm155, %v42, 0
  %v244 = vsel %vm155, %v43, 0
  %v247 = vsel %vm155, %v44, 0
  %v250 = vsel %vm155, %v45, 0
  %v253 = vsel %vm155, %v46, 0
  %v256 = vsel %vm155, %v47, 0
  %v259 = vsel %vm155, %v48, 0
  %v262 = vsel %vm155, %v49, 0
  %v265 = vsel %vm155, %v50, 0
  %v268 = vsel %vm155, %v51, 0
  %v271 = vsel %vm155, %v52, 0
  %v274 = vsel %vm155, %v53, 0
  %v277 = vsel %vm155, %v54, 0
  %v280 = vsel %vm155, %v55, 0
  %v283 = vsel %vm155, %v56, 0
  %v286 = vsel %vm155, %v57, 0
  %v289 = vsel %vm155, %v58, 0
  %v292 = vsel %vm155, %v59, 0
  %v295 = vsel %vm155, %v60, 0
  %v298 = vsel %vm155, %v61, 0
  %v301 = vsel %vm155, %v62, 0
  %v304 = vsel %vm155, %v63, 0
  %v307 = vsel %vm155, %v64, 0
  %v310 = vsel %vm155, %v65, 0
  %v313 = vsel %vm155, %v66, 0
  %v316 = vsel %vm155, %v67, 0
  %v319 = vsel %vm155, %v68, 0
  %v322 = vsel %vm155, %v69, 0
  %v325 = vsel %vm155, %v70, 0
  %v328 = vsel %vm155, %v71, 0
  %v331 = vsel %vm155, %v72, 0
  %v334 = vsel %vm155, %v73, 0
  %v337 = vsel %vm155, %v74, 0
  %v340 = vsel %vm155, %v75, 0
  %v343 = vsel %vm155, %v76, 0
  %v346 = vsel %vm155, %v77, 0
  %v349 = vsel %vm155, %v78, 0
  %v352 = vsel %vm155, %v79, 0
  %v355 = vsel %vm155, %v80, 0
  %v358 = vsel %vm155, %v81, 0
  %v361 = vsel %vm155, %v82, 0
  %v364 = vsel %vm155, %v83, 0
  %v367 = vsel %vm155, %v84, 0
  %v370 = vsel %vm155, %v85, 0
  %v373 = vsel %vm155, %v86, 0
  %v376 = vsel %vm155, %v87, 0
  %v379 = vsel %vm155, %v88, 0
  %v382 = vsel %vm155, %v89, 0
  %v385 = vsel %vm155, %v90, 0
  %v388 = vsel %vm155, %v91, 0
  %v391 = vsel %vm155, %v92, 0
  %v394 = vsel %vm155, %v93, 0
  %v397 = vsel %vm155, %v94, 0
  %v400 = vsel %vm155, %v95, 0
  %v403 = vsel %vm155, %v96, 0
  %v406 = vsel %vm155, %v97, 0
  %v409 = vsel %vm155, %v98, 0
  %v412 = vsel %vm155, %v99, 0
  %v415 = vsel %vm155, %v100, 0
  %v418 = vsel %vm155, %v101, 0
  %v421 = vsel %vm155, %v102, 0
  %v424 = vsel %vm155, %v103, 0
  %v427 = vsel %vm155, %v104, 0
  %v430 = vsel %vm155, %v105, 0
  %v433 = vsel %vm155, %v106, 0
  %v436 = vsel %vm155, %v107, 0
  %v439 = vsel %vm155, %v108, 0
  %v442 = vsel %vm155, %v109, 0
  %v445 = vsel %vm155, %v110, 0
  %v448 = vsel %vm155, %v111, 0
  %v451 = vsel %vm155, %v112, 0
  %v454 = vsel %vm155, %v113, 0
  %v457 = vsel %vm155, %v114, 0
  %v460 = vsel %vm155, %v115, 0
  %v463 = vsel %vm155, %v116, 0
  %v466 = vsel %vm155, %v117, 0
  %v469 = vsel %vm155, %v118, 0
  %v472 = vsel %vm155, %v119, 0
  %v475 = vsel %vm155, %v120, 0
  %v478 = vsel %vm155, %v121, 0
  %v481 = vsel %vm155, %v122, 0
  %v484 = vsel %vm155, %v123, 0
  %v487 = vsel %vm155, %v124, 0
  %v490 = vsel %vm155, %v125, 0
  %v493 = vsel %vm155, %v126, 0
  %v496 = vsel %vm155, %v127, 0
  %v499 = vsel %vm155, %v128, 0
  %v502 = vsel %vm155, %v129, 0
  %v505 = vsel %vm155, %v130, 0
  %v508 = vsel %vm155, %v131, 0
  %v511 = vsel %vm155, %v132, 0
  %v514 = vsel %vm155, %v133, 0
  %v517 = vsel %vm155, %v134, 0
  %v520 = vsel %vm155, %v135, 0
  %v523 = vsel %vm155, %v136, 0
  %v526 = vsel %vm155, %v137, 0
  %v529 = vsel %vm155, %v138, 0
  %v532 = vsel %vm155, %v139, 0
  %v535 = vsel %vm155, %v140, 0
  %v538 = vsel %vm155, %v141, 0
  %540 = vmatpush.msra.mxu0 0.0
  %541 = vmatpush.msra.mxu0 0.0
  %542 = vmatpush.msra.mxu0 0.0
  %543 = vmatpush.msra.mxu0 0.0
  %544 = vmatpush.msra.mxu0 0.0
  %545 = vmatpush.msra.mxu0 0.0
  %546 = vmatpush.msra.mxu0 0.0
  %547 = vmatpush.msra.mxu0 %v150
  %548 = vmatpush.msra.mxu0 %v149
  %549 = vmatpush.msra.mxu0 %v148
  %550 = vmatpush.msra.mxu0 %v147
  %551 = vmatpush.msra.mxu0 %v146
  %552 = vmatpush.msra.mxu0 %v145
  %553 = vmatpush.msra.mxu0 %v144
  %554 = vmatpush.msra.mxu0 %v143
  %555 = vmatpush.msra.mxu0 %v142
  %556 = vmatmul.f32.gmra.mxu0 %v157
  %v557 = vpop.f32.mrf.mxu0
  %v558 = vadd.f32 %v153, %v557
  %559 = vmatmul.f32.gmra.mxu0 %v160
  %v560 = vpop.f32.mrf.mxu0
  %v561 = vadd.f32 %v153, %v560
  %562 = vmatmul.f32.gmra.mxu0 %v163
  %v563 = vpop.f32.mrf.mxu0
  %v564 = vadd.f32 %v153, %v563
  %565 = vmatmul.f32.gmra.mxu0 %v166
  %v566 = vpop.f32.mrf.mxu0
  %v567 = vadd.f32 %v153, %v566
  %568 = vmatmul.f32.gmra.mxu0 %v169
  %v569 = vpop.f32.mrf.mxu0
  %v570 = vadd.f32 %v153, %v569
  %571 = vmatmul.f32.gmra.mxu0 %v172
  %v572 = vpop.f32.mrf.mxu0
  %v573 = vadd.f32 %v153, %v572
  %574 = vmatmul.f32.gmra.mxu0 %v175
  %v575 = vpop.f32.mrf.mxu0
  %v576 = vadd.f32 %v153, %v575
  %577 = vmatmul.f32.gmra.mxu0 %v178
  %v578 = vpop.f32.mrf.mxu0
  %v579 = vadd.f32 %v153, %v578
  %580 = vmatmul.f32.gmra.mxu0 %v181
  %v581 = vpop.f32.mrf.mxu0
  %v582 = vadd.f32 %v153, %v581
  %583 = vmatmul.f32.gmra.mxu0 %v184
  %v584 = vpop.f32.mrf.mxu0
  %v585 = vadd.f32 %v153, %v584
  %586 = vmatmul.f32.gmra.mxu0 %v187
  %v587 = vpop.f32.mrf.mxu0
  %v588 = vadd.f32 %v153, %v587
  %589 = vmatmul.f32.gmra.mxu0 %v190
  %v590 = vpop.f32.mrf.mxu0
  %v591 = vadd.f32 %v153, %v590
  %592 = vmatmul.f32.gmra.mxu0 %v193
  %v593 = vpop.f32.mrf.mxu0
  %v594 = vadd.f32 %v153, %v593
  %595 = vmatmul.f32.gmra.mxu0 %v196
  %v596 = vpop.f32.mrf.mxu0
  %v597 = vadd.f32 %v153, %v596
  %598 = vmatmul.f32.gmra.mxu0 %v199
  %v599 = vpop.f32.mrf.mxu0
  %v600 = vadd.f32 %v153, %v599
  %601 = vmatmul.f32.gmra.mxu0 %v202
  %v602 = vpop.f32.mrf.mxu0
  %v603 = vadd.f32 %v153, %v602
  %604 = vmatmul.f32.gmra.mxu0 %v205
  %v605 = vpop.f32.mrf.mxu0
  %v606 = vadd.f32 %v153, %v605
  %607 = vmatmul.f32.gmra.mxu0 %v208
  %v608 = vpop.f32.mrf.mxu0
  %v609 = vadd.f32 %v153, %v608
  %610 = vmatmul.f32.gmra.mxu0 %v211
  %v611 = vpop.f32.mrf.mxu0
  %v612 = vadd.f32 %v153, %v611
  %613 = vmatmul.f32.gmra.mxu0 %v214
  %v614 = vpop.f32.mrf.mxu0
  %v615 = vadd.f32 %v153, %v614
  %616 = vmatmul.f32.gmra.mxu0 %v217
  %v617 = vpop.f32.mrf.mxu0
  %v618 = vadd.f32 %v153, %v617
  %619 = vmatmul.f32.gmra.mxu0 %v220
  %v620 = vpop.f32.mrf.mxu0
  %v621 = vadd.f32 %v153, %v620
  %622 = vmatmul.f32.gmra.mxu0 %v223
  %v623 = vpop.f32.mrf.mxu0
  %v624 = vadd.f32 %v153, %v623
  %625 = vmatmul.f32.gmra.mxu0 %v226
  %v626 = vpop.f32.mrf.mxu0
  %v627 = vadd.f32 %v153, %v626
  %628 = vmatmul.f32.gmra.mxu0 %v229
  %v629 = vpop.f32.mrf.mxu0
  %v630 = vadd.f32 %v153, %v629
  %631 = vmatmul.f32.gmra.mxu0 %v232
  %v632 = vpop.f32.mrf.mxu0
  %v633 = vadd.f32 %v153, %v632
  %634 = vmatmul.f32.gmra.mxu0 %v235
  %v635 = vpop.f32.mrf.mxu0
  %v636 = vadd.f32 %v153, %v635
  %637 = vmatmul.f32.gmra.mxu0 %v238
  %v638 = vpop.f32.mrf.mxu0
  %v639 = vadd.f32 %v153, %v638
  %640 = vmatmul.f32.gmra.mxu0 %v241
  %v641 = vpop.f32.mrf.mxu0
  %v642 = vadd.f32 %v153, %v641
  %643 = vmatmul.f32.gmra.mxu0 %v244
  %v644 = vpop.f32.mrf.mxu0
  %v645 = vadd.f32 %v153, %v644
  %646 = vmatmul.f32.gmra.mxu0 %v247
  %v647 = vpop.f32.mrf.mxu0
  %v648 = vadd.f32 %v153, %v647
  %649 = vmatmul.f32.gmra.mxu0 %v250
  %v650 = vpop.f32.mrf.mxu0
  %v651 = vadd.f32 %v153, %v650
  %652 = vmatmul.f32.gmra.mxu0 %v253
  %v653 = vpop.f32.mrf.mxu0
  %v654 = vadd.f32 %v153, %v653
  %655 = vmatmul.f32.gmra.mxu0 %v256
  %v656 = vpop.f32.mrf.mxu0
  %v657 = vadd.f32 %v153, %v656
  %658 = vmatmul.f32.gmra.mxu0 %v259
  %v659 = vpop.f32.mrf.mxu0
  %v660 = vadd.f32 %v153, %v659
  %661 = vmatmul.f32.gmra.mxu0 %v262
  %v662 = vpop.f32.mrf.mxu0
  %v663 = vadd.f32 %v153, %v662
  %664 = vmatmul.f32.gmra.mxu0 %v265
  %v665 = vpop.f32.mrf.mxu0
  %v666 = vadd.f32 %v153, %v665
  %667 = vmatmul.f32.gmra.mxu0 %v268
  %v668 = vpop.f32.mrf.mxu0
  %v669 = vadd.f32 %v153, %v668
  %670 = vmatmul.f32.gmra.mxu0 %v271
  %v671 = vpop.f32.mrf.mxu0
  %v672 = vadd.f32 %v153, %v671
  %673 = vmatmul.f32.gmra.mxu0 %v274
  %v674 = vpop.f32.mrf.mxu0
  %v675 = vadd.f32 %v153, %v674
  %676 = vmatmul.f32.gmra.mxu0 %v277
  %v677 = vpop.f32.mrf.mxu0
  %v678 = vadd.f32 %v153, %v677
  %679 = vmatmul.f32.gmra.mxu0 %v280
  %v680 = vpop.f32.mrf.mxu0
  %v681 = vadd.f32 %v153, %v680
  %682 = vmatmul.f32.gmra.mxu0 %v283
  %v683 = vpop.f32.mrf.mxu0
  %v684 = vadd.f32 %v153, %v683
  %685 = vmatmul.f32.gmra.mxu0 %v286
  %v686 = vpop.f32.mrf.mxu0
  %v687 = vadd.f32 %v153, %v686
  %688 = vmatmul.f32.gmra.mxu0 %v289
  %v689 = vpop.f32.mrf.mxu0
  %v690 = vadd.f32 %v153, %v689
  %691 = vmatmul.f32.gmra.mxu0 %v292
  %v692 = vpop.f32.mrf.mxu0
  %v693 = vadd.f32 %v153, %v692
  %694 = vmatmul.f32.gmra.mxu0 %v295
  %v695 = vpop.f32.mrf.mxu0
  %v696 = vadd.f32 %v153, %v695
  %697 = vmatmul.f32.gmra.mxu0 %v298
  %v698 = vpop.f32.mrf.mxu0
  %v699 = vadd.f32 %v153, %v698
  %700 = vmatmul.f32.gmra.mxu0 %v301
  %v701 = vpop.f32.mrf.mxu0
  %v702 = vadd.f32 %v153, %v701
  %703 = vmatmul.f32.gmra.mxu0 %v304
  %v704 = vpop.f32.mrf.mxu0
  %v705 = vadd.f32 %v153, %v704
  %706 = vmatmul.f32.gmra.mxu0 %v307
  %v707 = vpop.f32.mrf.mxu0
  %v708 = vadd.f32 %v153, %v707
  %709 = vmatmul.f32.gmra.mxu0 %v310
  %v710 = vpop.f32.mrf.mxu0
  %v711 = vadd.f32 %v153, %v710
  %712 = vmatmul.f32.gmra.mxu0 %v313
  %v713 = vpop.f32.mrf.mxu0
  %v714 = vadd.f32 %v153, %v713
  %715 = vmatmul.f32.gmra.mxu0 %v316
  %v716 = vpop.f32.mrf.mxu0
  %v717 = vadd.f32 %v153, %v716
  %718 = vmatmul.f32.gmra.mxu0 %v319
  %v719 = vpop.f32.mrf.mxu0
  %v720 = vadd.f32 %v153, %v719
  %721 = vmatmul.f32.gmra.mxu0 %v322
  %v722 = vpop.f32.mrf.mxu0
  %v723 = vadd.f32 %v153, %v722
  %724 = vmatmul.f32.gmra.mxu0 %v325
  %v725 = vpop.f32.mrf.mxu0
  %v726 = vadd.f32 %v153, %v725
  %727 = vmatmul.f32.gmra.mxu0 %v328
  %v728 = vpop.f32.mrf.mxu0
  %v729 = vadd.f32 %v153, %v728
  %730 = vmatmul.f32.gmra.mxu0 %v331
  %v731 = vpop.f32.mrf.mxu0
  %v732 = vadd.f32 %v153, %v731
  %733 = vmatmul.f32.gmra.mxu0 %v334
  %v734 = vpop.f32.mrf.mxu0
  %v735 = vadd.f32 %v153, %v734
  %736 = vmatmul.f32.gmra.mxu0 %v337
  %v737 = vpop.f32.mrf.mxu0
  %v738 = vadd.f32 %v153, %v737
  %739 = vmatmul.f32.gmra.mxu0 %v340
  %v740 = vpop.f32.mrf.mxu0
  %v741 = vadd.f32 %v153, %v740
  %742 = vmatmul.f32.gmra.mxu0 %v343
  %v743 = vpop.f32.mrf.mxu0
  %v744 = vadd.f32 %v153, %v743
  %745 = vmatmul.f32.gmra.mxu0 %v346
  %v746 = vpop.f32.mrf.mxu0
  %v747 = vadd.f32 %v153, %v746
  %748 = vmatmul.f32.gmra.mxu0 %v349
  %v749 = vpop.f32.mrf.mxu0
  %v750 = vadd.f32 %v153, %v749
  %751 = vmatmul.f32.gmra.mxu0 %v352
  %v752 = vpop.f32.mrf.mxu0
  %v753 = vadd.f32 %v153, %v752
  %754 = vmatmul.f32.gmra.mxu0 %v355
  %v755 = vpop.f32.mrf.mxu0
  %v756 = vadd.f32 %v153, %v755
  %757 = vmatmul.f32.gmra.mxu0 %v358
  %v758 = vpop.f32.mrf.mxu0
  %v759 = vadd.f32 %v153, %v758
  %760 = vmatmul.f32.gmra.mxu0 %v361
  %v761 = vpop.f32.mrf.mxu0
  %v762 = vadd.f32 %v153, %v761
  %763 = vmatmul.f32.gmra.mxu0 %v364
  %v764 = vpop.f32.mrf.mxu0
  %v765 = vadd.f32 %v153, %v764
  %766 = vmatmul.f32.gmra.mxu0 %v367
  %v767 = vpop.f32.mrf.mxu0
  %v768 = vadd.f32 %v153, %v767
  %769 = vmatmul.f32.gmra.mxu0 %v370
  %v770 = vpop.f32.mrf.mxu0
  %v771 = vadd.f32 %v153, %v770
  %772 = vmatmul.f32.gmra.mxu0 %v373
  %v773 = vpop.f32.mrf.mxu0
  %v774 = vadd.f32 %v153, %v773
  %775 = vmatmul.f32.gmra.mxu0 %v376
  %v776 = vpop.f32.mrf.mxu0
  %v777 = vadd.f32 %v153, %v776
  %778 = vmatmul.f32.gmra.mxu0 %v379
  %v779 = vpop.f32.mrf.mxu0
  %v780 = vadd.f32 %v153, %v779
  %781 = vmatmul.f32.gmra.mxu0 %v382
  %v782 = vpop.f32.mrf.mxu0
  %v783 = vadd.f32 %v153, %v782
  %784 = vmatmul.f32.gmra.mxu0 %v385
  %v785 = vpop.f32.mrf.mxu0
  %v786 = vadd.f32 %v153, %v785
  %787 = vmatmul.f32.gmra.mxu0 %v388
  %v788 = vpop.f32.mrf.mxu0
  %v789 = vadd.f32 %v153, %v788
  %790 = vmatmul.f32.gmra.mxu0 %v391
  %v791 = vpop.f32.mrf.mxu0
  %v792 = vadd.f32 %v153, %v791
  %793 = vmatmul.f32.gmra.mxu0 %v394
  %v794 = vpop.f32.mrf.mxu0
  %v795 = vadd.f32 %v153, %v794
  %796 = vmatmul.f32.gmra.mxu0 %v397
  %v797 = vpop.f32.mrf.mxu0
  %v798 = vadd.f32 %v153, %v797
  %799 = vmatmul.f32.gmra.mxu0 %v400
  %v800 = vpop.f32.mrf.mxu0
  %v801 = vadd.f32 %v153, %v800
  %802 = vmatmul.f32.gmra.mxu0 %v403
  %v803 = vpop.f32.mrf.mxu0
  %v804 = vadd.f32 %v153, %v803
  %805 = vmatmul.f32.gmra.mxu0 %v406
  %v806 = vpop.f32.mrf.mxu0
  %v807 = vadd.f32 %v153, %v806
  %808 = vmatmul.f32.gmra.mxu0 %v409
  %v809 = vpop.f32.mrf.mxu0
  %v810 = vadd.f32 %v153, %v809
  %811 = vmatmul.f32.gmra.mxu0 %v412
  %v812 = vpop.f32.mrf.mxu0
  %v813 = vadd.f32 %v153, %v812
  %814 = vmatmul.f32.gmra.mxu0 %v415
  %v815 = vpop.f32.mrf.mxu0
  %v816 = vadd.f32 %v153, %v815
  %817 = vmatmul.f32.gmra.mxu0 %v418
  %v818 = vpop.f32.mrf.mxu0
  %v819 = vadd.f32 %v153, %v818
  %820 = vmatmul.f32.gmra.mxu0 %v421
  %v821 = vpop.f32.mrf.mxu0
  %v822 = vadd.f32 %v153, %v821
  %823 = vmatmul.f32.gmra.mxu0 %v424
  %v824 = vpop.f32.mrf.mxu0
  %v825 = vadd.f32 %v153, %v824
  %826 = vmatmul.f32.gmra.mxu0 %v427
  %v827 = vpop.f32.mrf.mxu0
  %v828 = vadd.f32 %v153, %v827
  %829 = vmatmul.f32.gmra.mxu0 %v430
  %v830 = vpop.f32.mrf.mxu0
  %v831 = vadd.f32 %v153, %v830
  %832 = vmatmul.f32.gmra.mxu0 %v433
  %v833 = vpop.f32.mrf.mxu0
  %v834 = vadd.f32 %v153, %v833
  %835 = vmatmul.f32.gmra.mxu0 %v436
  %v836 = vpop.f32.mrf.mxu0
  %v837 = vadd.f32 %v153, %v836
  %838 = vmatmul.f32.gmra.mxu0 %v439
  %v839 = vpop.f32.mrf.mxu0
  %v840 = vadd.f32 %v153, %v839
  %841 = vmatmul.f32.gmra.mxu0 %v442
  %v842 = vpop.f32.mrf.mxu0
  %v843 = vadd.f32 %v153, %v842
  %844 = vmatmul.f32.gmra.mxu0 %v445
  %v845 = vpop.f32.mrf.mxu0
  %v846 = vadd.f32 %v153, %v845
  %847 = vmatmul.f32.gmra.mxu0 %v448
  %v848 = vpop.f32.mrf.mxu0
  %v849 = vadd.f32 %v153, %v848
  %850 = vmatmul.f32.gmra.mxu0 %v451
  %v851 = vpop.f32.mrf.mxu0
  %v852 = vadd.f32 %v153, %v851
  %853 = vmatmul.f32.gmra.mxu0 %v454
  %v854 = vpop.f32.mrf.mxu0
  %v855 = vadd.f32 %v153, %v854
  %856 = vmatmul.f32.gmra.mxu0 %v457
  %v857 = vpop.f32.mrf.mxu0
  %v858 = vadd.f32 %v153, %v857
  %859 = vmatmul.f32.gmra.mxu0 %v460
  %v860 = vpop.f32.mrf.mxu0
  %v861 = vadd.f32 %v153, %v860
  %862 = vmatmul.f32.gmra.mxu0 %v463
  %v863 = vpop.f32.mrf.mxu0
  %v864 = vadd.f32 %v153, %v863
  %865 = vmatmul.f32.gmra.mxu0 %v466
  %v866 = vpop.f32.mrf.mxu0
  %v867 = vadd.f32 %v153, %v866
  %868 = vmatmul.f32.gmra.mxu0 %v469
  %v869 = vpop.f32.mrf.mxu0
  %v870 = vadd.f32 %v153, %v869
  %871 = vmatmul.f32.gmra.mxu0 %v472
  %v872 = vpop.f32.mrf.mxu0
  %v873 = vadd.f32 %v153, %v872
  %874 = vmatmul.f32.gmra.mxu0 %v475
  %v875 = vpop.f32.mrf.mxu0
  %v876 = vadd.f32 %v153, %v875
  %877 = vmatmul.f32.gmra.mxu0 %v478
  %v878 = vpop.f32.mrf.mxu0
  %v879 = vadd.f32 %v153, %v878
  %880 = vmatmul.f32.gmra.mxu0 %v481
  %v881 = vpop.f32.mrf.mxu0
  %v882 = vadd.f32 %v153, %v881
  %883 = vmatmul.f32.gmra.mxu0 %v484
  %v884 = vpop.f32.mrf.mxu0
  %v885 = vadd.f32 %v153, %v884
  %886 = vmatmul.f32.gmra.mxu0 %v487
  %v887 = vpop.f32.mrf.mxu0
  %v888 = vadd.f32 %v153, %v887
  %889 = vmatmul.f32.gmra.mxu0 %v490
  %v890 = vpop.f32.mrf.mxu0
  %v891 = vadd.f32 %v153, %v890
  %892 = vmatmul.f32.gmra.mxu0 %v493
  %v893 = vpop.f32.mrf.mxu0
  %v894 = vadd.f32 %v153, %v893
  %895 = vmatmul.f32.gmra.mxu0 %v496
  %v896 = vpop.f32.mrf.mxu0
  %v897 = vadd.f32 %v153, %v896
  %898 = vmatmul.f32.gmra.mxu0 %v499
  %v899 = vpop.f32.mrf.mxu0
  %v900 = vadd.f32 %v153, %v899
  %901 = vmatmul.f32.gmra.mxu0 %v502
  %v902 = vpop.f32.mrf.mxu0
  %v903 = vadd.f32 %v153, %v902
  %904 = vmatmul.f32.gmra.mxu0 %v505
  %v905 = vpop.f32.mrf.mxu0
  %v906 = vadd.f32 %v153, %v905
  %907 = vmatmul.f32.gmra.mxu0 %v508
  %v908 = vpop.f32.mrf.mxu0
  %v909 = vadd.f32 %v153, %v908
  %910 = vmatmul.f32.gmra.mxu0 %v511
  %v911 = vpop.f32.mrf.mxu0
  %v912 = vadd.f32 %v153, %v911
  %913 = vmatmul.f32.gmra.mxu0 %v514
  %v914 = vpop.f32.mrf.mxu0
  %v915 = vadd.f32 %v153, %v914
  %916 = vmatmul.f32.gmra.mxu0 %v517
  %v917 = vpop.f32.mrf.mxu0
  %v918 = vadd.f32 %v153, %v917
  %919 = vmatmul.f32.gmra.mxu0 %v520
  %v920 = vpop.f32.mrf.mxu0
  %v921 = vadd.f32 %v153, %v920
  %922 = vmatmul.f32.gmra.mxu0 %v523
  %v923 = vpop.f32.mrf.mxu0
  %v924 = vadd.f32 %v153, %v923
  %925 = vmatmul.f32.gmra.mxu0 %v526
  %v926 = vpop.f32.mrf.mxu0
  %v927 = vadd.f32 %v153, %v926
  %928 = vmatmul.f32.gmra.mxu0 %v529
  %v929 = vpop.f32.mrf.mxu0
  %v930 = vadd.f32 %v153, %v929
  %931 = vmatmul.f32.gmra.mxu0 %v532
  %v932 = vpop.f32.mrf.mxu0
  %v933 = vadd.f32 %v153, %v932
  %934 = vmatmul.f32.gmra.mxu0 %v535
  %v935 = vpop.f32.mrf.mxu0
  %v936 = vadd.f32 %v153, %v935
  %937 = vmatmul.f32.gmra.mxu0 %v538
  %v938 = vpop.f32.mrf.mxu0
  %v939 = vadd.f32 %v153, %v938
  %940 = vdwg.mxu0
  %v941 = vmax.f32 %v558, 0.0
  %v942 = vmax.f32 %v561, 0.0
  %v943 = vmax.f32 %v564, 0.0
  %v944 = vmax.f32 %v567, 0.0
  %v945 = vmax.f32 %v570, 0.0
  %v946 = vmax.f32 %v573, 0.0
  %v947 = vmax.f32 %v576, 0.0
  %v948 = vmax.f32 %v579, 0.0
  %v949 = vmax.f32 %v582, 0.0
  %v950 = vmax.f32 %v585, 0.0
  %v951 = vmax.f32 %v588, 0.0
  %v952 = vmax.f32 %v591, 0.0
  %v953 = vmax.f32 %v594, 0.0
  %v954 = vmax.f32 %v597, 0.0
  %v955 = vmax.f32 %v600, 0.0
  %v956 = vmax.f32 %v603, 0.0
  %v957 = vmax.f32 %v606, 0.0
  %v958 = vmax.f32 %v609, 0.0
  %v959 = vmax.f32 %v612, 0.0
  %v960 = vmax.f32 %v615, 0.0
  %v961 = vmax.f32 %v618, 0.0
  %v962 = vmax.f32 %v621, 0.0
  %v963 = vmax.f32 %v624, 0.0
  %v964 = vmax.f32 %v627, 0.0
  %v965 = vmax.f32 %v630, 0.0
  %v966 = vmax.f32 %v633, 0.0
  %v967 = vmax.f32 %v636, 0.0
  %v968 = vmax.f32 %v639, 0.0
  %v969 = vmax.f32 %v642, 0.0
  %v970 = vmax.f32 %v645, 0.0
  %v971 = vmax.f32 %v648, 0.0
  %v972 = vmax.f32 %v651, 0.0
  %v973 = vmax.f32 %v654, 0.0
  %v974 = vmax.f32 %v657, 0.0
  %v975 = vmax.f32 %v660, 0.0
  %v976 = vmax.f32 %v663, 0.0
  %v977 = vmax.f32 %v666, 0.0
  %v978 = vmax.f32 %v669, 0.0
  %v979 = vmax.f32 %v672, 0.0
  %v980 = vmax.f32 %v675, 0.0
  %v981 = vmax.f32 %v678, 0.0
  %v982 = vmax.f32 %v681, 0.0
  %v983 = vmax.f32 %v684, 0.0
  %v984 = vmax.f32 %v687, 0.0
  %v985 = vmax.f32 %v690, 0.0
  %v986 = vmax.f32 %v693, 0.0
  %v987 = vmax.f32 %v696, 0.0
  %v988 = vmax.f32 %v699, 0.0
  %v989 = vmax.f32 %v702, 0.0
  %v990 = vmax.f32 %v705, 0.0
  %v991 = vmax.f32 %v708, 0.0
  %v992 = vmax.f32 %v711, 0.0
  %v993 = vmax.f32 %v714, 0.0
  %v994 = vmax.f32 %v717, 0.0
  %v995 = vmax.f32 %v720, 0.0
  %v996 = vmax.f32 %v723, 0.0
  %v997 = vmax.f32 %v726, 0.0
  %v998 = vmax.f32 %v729, 0.0
  %v999 = vmax.f32 %v732, 0.0
  %v1000 = vmax.f32 %v735, 0.0
  %v1001 = vmax.f32 %v738, 0.0
  %v1002 = vmax.f32 %v741, 0.0
  %v1003 = vmax.f32 %v744, 0.0
  %v1004 = vmax.f32 %v747, 0.0
  %v1005 = vmax.f32 %v750, 0.0
  %v1006 = vmax.f32 %v753, 0.0
  %v1007 = vmax.f32 %v756, 0.0
  %v1008 = vmax.f32 %v759, 0.0
  %v1009 = vmax.f32 %v762, 0.0
  %v1010 = vmax.f32 %v765, 0.0
  %v1011 = vmax.f32 %v768, 0.0
  %v1012 = vmax.f32 %v771, 0.0
  %v1013 = vmax.f32 %v774, 0.0
  %v1014 = vmax.f32 %v777, 0.0
  %v1015 = vmax.f32 %v780, 0.0
  %v1016 = vmax.f32 %v783, 0.0
  %v1017 = vmax.f32 %v786, 0.0
  %v1018 = vmax.f32 %v789, 0.0
  %v1019 = vmax.f32 %v792, 0.0
  %v1020 = vmax.f32 %v795, 0.0
  %v1021 = vmax.f32 %v798, 0.0
  %v1022 = vmax.f32 %v801, 0.0
  %v1023 = vmax.f32 %v804, 0.0
  %v1024 = vmax.f32 %v807, 0.0
  %v1025 = vmax.f32 %v810, 0.0
  %v1026 = vmax.f32 %v813, 0.0
  %v1027 = vmax.f32 %v816, 0.0
  %v1028 = vmax.f32 %v819, 0.0
  %v1029 = vmax.f32 %v822, 0.0
  %v1030 = vmax.f32 %v825, 0.0
  %v1031 = vmax.f32 %v828, 0.0
  %v1032 = vmax.f32 %v831, 0.0
  %v1033 = vmax.f32 %v834, 0.0
  %v1034 = vmax.f32 %v837, 0.0
  %v1035 = vmax.f32 %v840, 0.0
  %v1036 = vmax.f32 %v843, 0.0
  %v1037 = vmax.f32 %v846, 0.0
  %v1038 = vmax.f32 %v849, 0.0
  %v1039 = vmax.f32 %v852, 0.0
  %v1040 = vmax.f32 %v855, 0.0
  %v1041 = vmax.f32 %v858, 0.0
  %v1042 = vmax.f32 %v861, 0.0
  %v1043 = vmax.f32 %v864, 0.0
  %v1044 = vmax.f32 %v867, 0.0
  %v1045 = vmax.f32 %v870, 0.0
  %v1046 = vmax.f32 %v873, 0.0
  %v1047 = vmax.f32 %v876, 0.0
  %v1048 = vmax.f32 %v879, 0.0
  %v1049 = vmax.f32 %v882, 0.0
  %v1050 = vmax.f32 %v885, 0.0
  %v1051 = vmax.f32 %v888, 0.0
  %v1052 = vmax.f32 %v891, 0.0
  %v1053 = vmax.f32 %v894, 0.0
  %v1054 = vmax.f32 %v897, 0.0
  %v1055 = vmax.f32 %v900, 0.0
  %v1056 = vmax.f32 %v903, 0.0
  %v1057 = vmax.f32 %v906, 0.0
  %v1058 = vmax.f32 %v909, 0.0
  %v1059 = vmax.f32 %v912, 0.0
  %v1060 = vmax.f32 %v915, 0.0
  %v1061 = vmax.f32 %v918, 0.0
  %v1062 = vmax.f32 %v921, 0.0
  %v1063 = vmax.f32 %v924, 0.0
  %v1064 = vmax.f32 %v927, 0.0
  %v1065 = vmax.f32 %v930, 0.0
  %v1066 = vmax.f32 %v933, 0.0
  %v1067 = vmax.f32 %v936, 0.0
  %v1068 = vmax.f32 %v939, 0.0
  %vm1069 = vcmask 130048
  %1070 = vst.msk [vmem:[%s3] sm:$0xff] %vm1069, %v941
  %1071 = vst.msk [vmem:[%s3 + $0x8] sm:$0xff] %vm1069, %v942
  %1072 = vst.msk [vmem:[%s3 + $0x10] sm:$0xff] %vm1069, %v943
  %1073 = vst.msk [vmem:[%s3 + $0x18] sm:$0xff] %vm1069, %v944
  %1074 = vst.msk [vmem:[%s3 + $0x20] sm:$0xff] %vm1069, %v945
  %1075 = vst.msk [vmem:[%s3 + $0x28] sm:$0xff] %vm1069, %v946
  %1076 = vst.msk [vmem:[%s3 + $0x30] sm:$0xff] %vm1069, %v947
  %1077 = vst.msk [vmem:[%s3 + $0x38] sm:$0xff] %vm1069, %v948
  %1078 = vst.msk [vmem:[%s3 + $0x40] sm:$0xff] %vm1069, %v949
  %1079 = vst.msk [vmem:[%s3 + $0x48] sm:$0xff] %vm1069, %v950
  %1080 = vst.msk [vmem:[%s3 + $0x50] sm:$0xff] %vm1069, %v951
  %1081 = vst.msk [vmem:[%s3 + $0x58] sm:$0xff] %vm1069, %v952
  %1082 = vst.msk [vmem:[%s3 + $0x60] sm:$0xff] %vm1069, %v953
  %1083 = vst.msk [vmem:[%s3 + $0x68] sm:$0xff] %vm1069, %v954
  %1084 = vst.msk [vmem:[%s3 + $0x70] sm:$0xff] %vm1069, %v955
  %1085 = vst.msk [vmem:[%s3 + $0x78] sm:$0xff] %vm1069, %v956
  %1086 = vst.msk [vmem:[%s3 + $0x80] sm:$0xff] %vm1069, %v957
  %1087 = vst.msk [vmem:[%s3 + $0x88] sm:$0xff] %vm1069, %v958
  %1088 = vst.msk [vmem:[%s3 + $0x90] sm:$0xff] %vm1069, %v959
  %1089 = vst.msk [vmem:[%s3 + $0x98] sm:$0xff] %vm1069, %v960
  %1090 = vst.msk [vmem:[%s3 + $0xa0] sm:$0xff] %vm1069, %v961
  %1091 = vst.msk [vmem:[%s3 + $0xa8] sm:$0xff] %vm1069, %v962
  %1092 = vst.msk [vmem:[%s3 + $0xb0] sm:$0xff] %vm1069, %v963
  %1093 = vst.msk [vmem:[%s3 + $0xb8] sm:$0xff] %vm1069, %v964
  %1094 = vst.msk [vmem:[%s3 + $0xc0] sm:$0xff] %vm1069, %v965
  %1095 = vst.msk [vmem:[%s3 + $0xc8] sm:$0xff] %vm1069, %v966
  %1096 = vst.msk [vmem:[%s3 + $0xd0] sm:$0xff] %vm1069, %v967
  %1097 = vst.msk [vmem:[%s3 + $0xd8] sm:$0xff] %vm1069, %v968
  %1098 = vst.msk [vmem:[%s3 + $0xe0] sm:$0xff] %vm1069, %v969
  %1099 = vst.msk [vmem:[%s3 + $0xe8] sm:$0xff] %vm1069, %v970
  %1100 = vst.msk [vmem:[%s3 + $0xf0] sm:$0xff] %vm1069, %v971
  %1101 = vst.msk [vmem:[%s3 + $0xf8] sm:$0xff] %vm1069, %v972
  %1102 = vst.msk [vmem:[%s3 + $0x100] sm:$0xff] %vm1069, %v973
  %1103 = vst.msk [vmem:[%s3 + $0x108] sm:$0xff] %vm1069, %v974
  %1104 = vst.msk [vmem:[%s3 + $0x110] sm:$0xff] %vm1069, %v975
  %1105 = vst.msk [vmem:[%s3 + $0x118] sm:$0xff] %vm1069, %v976
  %1106 = vst.msk [vmem:[%s3 + $0x120] sm:$0xff] %vm1069, %v977
  %1107 = vst.msk [vmem:[%s3 + $0x128] sm:$0xff] %vm1069, %v978
  %1108 = vst.msk [vmem:[%s3 + $0x130] sm:$0xff] %vm1069, %v979
  %1109 = vst.msk [vmem:[%s3 + $0x138] sm:$0xff] %vm1069, %v980
  %1110 = vst.msk [vmem:[%s3 + $0x140] sm:$0xff] %vm1069, %v981
  %1111 = vst.msk [vmem:[%s3 + $0x148] sm:$0xff] %vm1069, %v982
  %1112 = vst.msk [vmem:[%s3 + $0x150] sm:$0xff] %vm1069, %v983
  %1113 = vst.msk [vmem:[%s3 + $0x158] sm:$0xff] %vm1069, %v984
  %1114 = vst.msk [vmem:[%s3 + $0x160] sm:$0xff] %vm1069, %v985
  %1115 = vst.msk [vmem:[%s3 + $0x168] sm:$0xff] %vm1069, %v986
  %1116 = vst.msk [vmem:[%s3 + $0x170] sm:$0xff] %vm1069, %v987
  %1117 = vst.msk [vmem:[%s3 + $0x178] sm:$0xff] %vm1069, %v988
  %1118 = vst.msk [vmem:[%s3 + $0x180] sm:$0xff] %vm1069, %v989
  %1119 = vst.msk [vmem:[%s3 + $0x188] sm:$0xff] %vm1069, %v990
  %1120 = vst.msk [vmem:[%s3 + $0x190] sm:$0xff] %vm1069, %v991
  %1121 = vst.msk [vmem:[%s3 + $0x198] sm:$0xff] %vm1069, %v992
  %1122 = vst.msk [vmem:[%s3 + $0x1a0] sm:$0xff] %vm1069, %v993
  %1123 = vst.msk [vmem:[%s3 + $0x1a8] sm:$0xff] %vm1069, %v994
  %1124 = vst.msk [vmem:[%s3 + $0x1b0] sm:$0xff] %vm1069, %v995
  %1125 = vst.msk [vmem:[%s3 + $0x1b8] sm:$0xff] %vm1069, %v996
  %1126 = vst.msk [vmem:[%s3 + $0x1c0] sm:$0xff] %vm1069, %v997
  %1127 = vst.msk [vmem:[%s3 + $0x1c8] sm:$0xff] %vm1069, %v998
  %1128 = vst.msk [vmem:[%s3 + $0x1d0] sm:$0xff] %vm1069, %v999
  %1129 = vst.msk [vmem:[%s3 + $0x1d8] sm:$0xff] %vm1069, %v1000
  %1130 = vst.msk [vmem:[%s3 + $0x1e0] sm:$0xff] %vm1069, %v1001
  %1131 = vst.msk [vmem:[%s3 + $0x1e8] sm:$0xff] %vm1069, %v1002
  %1132 = vst.msk [vmem:[%s3 + $0x1f0] sm:$0xff] %vm1069, %v1003
  %1133 = vst.msk [vmem:[%s3 + $0x1f8] sm:$0xff] %vm1069, %v1004
  %1134 = vst.msk [vmem:[%s3 + $0x200] sm:$0xff] %vm1069, %v1005
  %1135 = vst.msk [vmem:[%s3 + $0x208] sm:$0xff] %vm1069, %v1006
  %1136 = vst.msk [vmem:[%s3 + $0x210] sm:$0xff] %vm1069, %v1007
  %1137 = vst.msk [vmem:[%s3 + $0x218] sm:$0xff] %vm1069, %v1008
  %1138 = vst.msk [vmem:[%s3 + $0x220] sm:$0xff] %vm1069, %v1009
  %1139 = vst.msk [vmem:[%s3 + $0x228] sm:$0xff] %vm1069, %v1010
  %1140 = vst.msk [vmem:[%s3 + $0x230] sm:$0xff] %vm1069, %v1011
  %1141 = vst.msk [vmem:[%s3 + $0x238] sm:$0xff] %vm1069, %v1012
  %1142 = vst.msk [vmem:[%s3 + $0x240] sm:$0xff] %vm1069, %v1013
  %1143 = vst.msk [vmem:[%s3 + $0x248] sm:$0xff] %vm1069, %v1014
  %1144 = vst.msk [vmem:[%s3 + $0x250] sm:$0xff] %vm1069, %v1015
  %1145 = vst.msk [vmem:[%s3 + $0x258] sm:$0xff] %vm1069, %v1016
  %1146 = vst.msk [vmem:[%s3 + $0x260] sm:$0xff] %vm1069, %v1017
  %1147 = vst.msk [vmem:[%s3 + $0x268] sm:$0xff] %vm1069, %v1018
  %1148 = vst.msk [vmem:[%s3 + $0x270] sm:$0xff] %vm1069, %v1019
  %1149 = vst.msk [vmem:[%s3 + $0x278] sm:$0xff] %vm1069, %v1020
  %1150 = vst.msk [vmem:[%s3 + $0x280] sm:$0xff] %vm1069, %v1021
  %1151 = vst.msk [vmem:[%s3 + $0x288] sm:$0xff] %vm1069, %v1022
  %1152 = vst.msk [vmem:[%s3 + $0x290] sm:$0xff] %vm1069, %v1023
  %1153 = vst.msk [vmem:[%s3 + $0x298] sm:$0xff] %vm1069, %v1024
  %1154 = vst.msk [vmem:[%s3 + $0x2a0] sm:$0xff] %vm1069, %v1025
  %1155 = vst.msk [vmem:[%s3 + $0x2a8] sm:$0xff] %vm1069, %v1026
  %1156 = vst.msk [vmem:[%s3 + $0x2b0] sm:$0xff] %vm1069, %v1027
  %1157 = vst.msk [vmem:[%s3 + $0x2b8] sm:$0xff] %vm1069, %v1028
  %1158 = vst.msk [vmem:[%s3 + $0x2c0] sm:$0xff] %vm1069, %v1029
  %1159 = vst.msk [vmem:[%s3 + $0x2c8] sm:$0xff] %vm1069, %v1030
  %1160 = vst.msk [vmem:[%s3 + $0x2d0] sm:$0xff] %vm1069, %v1031
  %1161 = vst.msk [vmem:[%s3 + $0x2d8] sm:$0xff] %vm1069, %v1032
  %1162 = vst.msk [vmem:[%s3 + $0x2e0] sm:$0xff] %vm1069, %v1033
  %1163 = vst.msk [vmem:[%s3 + $0x2e8] sm:$0xff] %vm1069, %v1034
  %1164 = vst.msk [vmem:[%s3 + $0x2f0] sm:$0xff] %vm1069, %v1035
  %1165 = vst.msk [vmem:[%s3 + $0x2f8] sm:$0xff] %vm1069, %v1036
  %1166 = vst.msk [vmem:[%s3 + $0x300] sm:$0xff] %vm1069, %v1037
  %1167 = vst.msk [vmem:[%s3 + $0x308] sm:$0xff] %vm1069, %v1038
  %1168 = vst.msk [vmem:[%s3 + $0x310] sm:$0xff] %vm1069, %v1039
  %1169 = vst.msk [vmem:[%s3 + $0x318] sm:$0xff] %vm1069, %v1040
  %1170 = vst.msk [vmem:[%s3 + $0x320] sm:$0xff] %vm1069, %v1041
  %1171 = vst.msk [vmem:[%s3 + $0x328] sm:$0xff] %vm1069, %v1042
  %1172 = vst.msk [vmem:[%s3 + $0x330] sm:$0xff] %vm1069, %v1043
  %1173 = vst.msk [vmem:[%s3 + $0x338] sm:$0xff] %vm1069, %v1044
  %1174 = vst.msk [vmem:[%s3 + $0x340] sm:$0xff] %vm1069, %v1045
  %1175 = vst.msk [vmem:[%s3 + $0x348] sm:$0xff] %vm1069, %v1046
  %1176 = vst.msk [vmem:[%s3 + $0x350] sm:$0xff] %vm1069, %v1047
  %1177 = vst.msk [vmem:[%s3 + $0x358] sm:$0xff] %vm1069, %v1048
  %1178 = vst.msk [vmem:[%s3 + $0x360] sm:$0xff] %vm1069, %v1049
  %1179 = vst.msk [vmem:[%s3 + $0x368] sm:$0xff] %vm1069, %v1050
  %1180 = vst.msk [vmem:[%s3 + $0x370] sm:$0xff] %vm1069, %v1051
  %1181 = vst.msk [vmem:[%s3 + $0x378] sm:$0xff] %vm1069, %v1052
  %1182 = vst.msk [vmem:[%s3 + $0x380] sm:$0xff] %vm1069, %v1053
  %1183 = vst.msk [vmem:[%s3 + $0x388] sm:$0xff] %vm1069, %v1054
  %1184 = vst.msk [vmem:[%s3 + $0x390] sm:$0xff] %vm1069, %v1055
  %1185 = vst.msk [vmem:[%s3 + $0x398] sm:$0xff] %vm1069, %v1056
  %1186 = vst.msk [vmem:[%s3 + $0x3a0] sm:$0xff] %vm1069, %v1057
  %1187 = vst.msk [vmem:[%s3 + $0x3a8] sm:$0xff] %vm1069, %v1058
  %1188 = vst.msk [vmem:[%s3 + $0x3b0] sm:$0xff] %vm1069, %v1059
  %1189 = vst.msk [vmem:[%s3 + $0x3b8] sm:$0xff] %vm1069, %v1060
  %1190 = vst.msk [vmem:[%s3 + $0x3c0] sm:$0xff] %vm1069, %v1061
  %1191 = vst.msk [vmem:[%s3 + $0x3c8] sm:$0xff] %vm1069, %v1062
  %1192 = vst.msk [vmem:[%s3 + $0x3d0] sm:$0xff] %vm1069, %v1063
  %1193 = vst.msk [vmem:[%s3 + $0x3d8] sm:$0xff] %vm1069, %v1064
  %1194 = vst.msk [vmem:[%s3 + $0x3e0] sm:$0xff] %vm1069, %v1065
  %1195 = vst.msk [vmem:[%s3 + $0x3e8] sm:$0xff] %vm1069, %v1066
  %1196 = vst.msk [vmem:[%s3 + $0x3f0] sm:$0xff] %vm1069, %v1067
  %1197 = vst.msk [vmem:[%s3 + $0x3f8] sm:$0xff] %vm1069, %v1068
  // Predicated region
  $region14: #{model_forward.6} parent=0 // pred_check
    _
  $region15: #{model_forward.6} parent=0 // pred_check_branch
    %1199 = sbr.rel (0) target = $region17
  $region16: #{model_forward.6} parent=0 // pred_region
    _
  $region17: #{model_forward.6} parent=0 // pred_fallthru
    _
  // Predicated region
  $region18: #{model_forward.6} parent=0 // pred_check
    _
  $region19: #{model_forward.6} parent=0 // pred_check_branch
    %1201 = sbr.rel (0) target = $region21
  $region20: #{model_forward.6} parent=0 // pred_region
    _
  $region21: #{model_forward.6} parent=0 // pred_fallthru
    _

// kernel: model_forward.7
$region0: #{model_forward.7}
  #allocation0 [shape = 'u32[]', space=smem, size = 0x4, offset = 0x4, fixed_abs, tag = 'smem constant byte address 0x4 - core index']
  #allocation1 [shape = 'u32[72,128]{1,0:T(1,128)}', space=vmem, size = 0x9000, scoped, tag = 'internal scratch']
  #allocation2 [shape = 's32[1]{0}', space=sflag, size = 0x4, scoped, tag = 'scoped memory for model_forward.7']
  #allocation3 [shape = 'u8[512]{0}', space=smem, size = 0x200, scoped, tag = 'prefetched SMEM operand 0']
  %s0 = inlined_call_operand.smem [shape: u32[39], index: -1, kind: input, shape index: {}]
  %s1 = sld [smem:[%s0]]
  %s2 = scalar_lea.smem %s0, 1
  %s3 = sld [smem:[%s2]]
  %s4 = scalar_lea.smem %s0, 2
  %s5 = sld [smem:[%s4]]
  %s6 = scalar_lea.smem %s0, 3
  %s7 = sld [smem:[%s6]]
  %s8 = scalar_lea.smem %s0, 4
  %s9 = sld [smem:[%s8]]
  %s10 = scalar_lea.smem %s0, 5
  %s11 = sld [smem:[%s10]]
  %s12 = scalar_lea.smem %s0, 6
  %s13 = sld [smem:[%s12]]
  %s14 = scalar_lea.smem %s0, 7
  %s15 = sld [smem:[%s14]]
  %s16 = scalar_lea.smem %s0, 8
  %s17 = sld [smem:[%s16]]
  %s18 = scalar_lea.smem %s0, 9
  %s19 = sld [smem:[%s18]]
  %s20 = scalar_lea.smem %s0, 10
  %s21 = sld [smem:[%s20]]
  %s22 = scalar_lea.smem %s0, 11
  %s23 = sld [smem:[%s22]]
  %s24 = scalar_lea.smem %s0, 12
  %s25 = sld [smem:[%s24]]
  %s26 = scalar_lea.smem %s0, 13
  %s27 = sld [smem:[%s26]]
  %s28 = scalar_lea.smem %s0, 14
  %s29 = sld [smem:[%s28]]
  %s30 = scalar_lea.smem %s0, 15
  %s31 = sld [smem:[%s30]]
  %s32 = scalar_lea.smem %s0, 16
  %s33 = sld [smem:[%s32]]
  %s34 = scalar_lea.smem %s0, 17
  %s35 = sld [smem:[%s34]]
  %s36 = scalar_lea.smem %s0, 18
  %s37 = sld [smem:[%s36]]
  %s38 = scalar_lea.smem %s0, 19
  %s39 = sld [smem:[%s38]]
  %s40 = scalar_lea.smem %s0, 20
  %s41 = sld [smem:[%s40]]
  %s42 = scalar_lea.smem %s0, 21
  %s43 = sld [smem:[%s42]]
  %s44 = scalar_lea.smem %s0, 22
  %s45 = sld [smem:[%s44]]
  %s46 = scalar_lea.smem %s0, 23
  %s47 = sld [smem:[%s46]]
  %s48 = scalar_lea.smem %s0, 24
  %s49 = sld [smem:[%s48]]
  %s50 = scalar_lea.smem %s0, 25
  %s51 = sld [smem:[%s50]]
  %s52 = scalar_lea.smem %s0, 26
  %s53 = sld [smem:[%s52]]
  %s54 = scalar_lea.smem %s0, 27
  %s55 = sld [smem:[%s54]]
  %s56 = scalar_lea.smem %s0, 28
  %s57 = sld [smem:[%s56]]
  %s58 = scalar_lea.smem %s0, 29
  %s59 = sld [smem:[%s58]]
  %s60 = scalar_lea.smem %s0, 30
  %s61 = sld [smem:[%s60]]
  %s62 = scalar_lea.smem %s0, 31
  %s63 = sld [smem:[%s62]]
  %s64 = scalar_lea.smem %s0, 32
  %s65 = sld [smem:[%s64]]
  %s66 = scalar_lea.smem %s0, 33
  %s67 = sld [smem:[%s66]]
  %s68 = scalar_lea.smem %s0, 34
  %s69 = sld [smem:[%s68]]
  %s70 = scalar_lea.smem %s0, 35
  %s71 = sld [smem:[%s70]]
  %s72 = scalar_lea.smem %s0, 36
  %s73 = sld [smem:[%s72]]
  %s74 = scalar_lea.smem %s0, 37
  %s75 = sld [smem:[%s74]]
  %s76 = scalar_lea.smem %s0, 38
  %s77 = sld [smem:[%s76]]
  %s78 = sld [smem:[#allocation0]]
  $region181: #{model_forward.7} parent=0
    _
  %s80 = ssub.s32 1, %s78
  %s81 = scalar_select 0, %s80, %s78
  %s83 = sshll.u32 %s1, 4
  %s84 = int_to_ptr.vmem [resolvable:$true] %s83
  %86 = dma.vmem_to_smem %s84, 16, [#allocation3], [#allocation2]
  %88 = dma.done [#allocation2], 16
  %89 = sfence
  $region1: #{model_forward.7} parent=0
    #allocation4 [shape = 'u8[16384]{0}', space=vmem, size = 0x4000, scoped, tag = 'output window, operand 0']
    #allocation5 [shape = 's32[2]{0}', space=sflag, size = 0x8, scoped, tag = 'scoped memory for model_forward.7']
    %90 = vsyncpa [#allocation5], 0
    %s91 = scalar_lea.sflag [#allocation5], 1
    %92 = vsyncpa %s91, 0
    loop: start=0, step=1, limit=4
    $region2: #{model_forward.7} parent=1 // loop_pre_header
      _
    $region3: #{model_forward.7} parent=1 // loop_header
      %s94 = sphi 0, %s98
      %p95 = scmp.ge.s32.totalorder %s94, 4
      %s104 = sphi 0, %s106
      %s107 = sphi 0, %s104
      %s108 = sphi 0, %s107
      %s124 = sphi 0, %s108
      %s128 = sphi 0, %s128
      %s130 = sphi 0, %s128
      %s131 = sphi 0, %s130
      %s145 = sphi 0, %s131
      %s149 = sphi 0, %s149
      %s151 = sphi 0, %s149
      %s152 = sphi 0, %s151
      %s166 = sphi 0, %s152
      %s170 = sphi 0, %s170
      %s172 = sphi 0, %s170
      %s173 = sphi 0, %s172
      %s187 = sphi 0, %s173
      %s191 = sphi 0, %s191
      %s193 = sphi 0, %s191
      %s194 = sphi 0, %s193
      %s208 = sphi 0, %s194
      %s212 = sphi 0, %s212
      %s214 = sphi 0, %s212
      %s215 = sphi 0, %s214
      %s229 = sphi 0, %s215
      %s233 = sphi 0, %s233
      %s235 = sphi 0, %s233
      %s236 = sphi 0, %s235
      %s250 = sphi 0, %s236
      %s254 = sphi 0, %s254
      %s256 = sphi 0, %s254
      %s257 = sphi 0, %s256
      %s271 = sphi 0, %s257
      %s275 = sphi 0, %s275
      %s277 = sphi 0, %s275
      %s278 = sphi 0, %s277
      %s292 = sphi 0, %s278
      %s296 = sphi 0, %s296
      %s298 = sphi 0, %s296
      %s299 = sphi 0, %s298
      %s313 = sphi 0, %s299
      %s317 = sphi 0, %s317
      %s319 = sphi 0, %s317
      %s320 = sphi 0, %s319
      %s334 = sphi 0, %s320
      %s338 = sphi 0, %s338
      %s340 = sphi 0, %s338
      %s341 = sphi 0, %s340
      %s355 = sphi 0, %s341
      %s359 = sphi 0, %s359
      %s361 = sphi 0, %s359
      %s362 = sphi 0, %s361
      %s376 = sphi 0, %s362
      %s380 = sphi 0, %s380
      %s382 = sphi 0, %s380
      %s383 = sphi 0, %s382
      %s397 = sphi 0, %s383
      %s401 = sphi 0, %s401
      %s403 = sphi 0, %s401
      %s404 = sphi 0, %s403
      %s418 = sphi 0, %s404
      %s422 = sphi 0, %s422
      %s424 = sphi 0, %s422
      %s425 = sphi 0, %s424
      %s439 = sphi 0, %s425
      %s443 = sphi 0, %s443
      %s445 = sphi 0, %s443
      %s446 = sphi 0, %s445
      %s460 = sphi 0, %s446
      %s464 = sphi 0, %s464
      %s466 = sphi 0, %s464
      %s467 = sphi 0, %s466
      %s481 = sphi 0, %s467
      %s485 = sphi 0, %s485
      %s487 = sphi 0, %s485
      %s488 = sphi 0, %s487
      %s502 = sphi 0, %s488
      %s506 = sphi 0, %s506
      %s508 = sphi 0, %s506
      %s509 = sphi 0, %s508
      %s523 = sphi 0, %s509
      %s527 = sphi 0, %s527
      %s529 = sphi 0, %s527
      %s530 = sphi 0, %s529
      %s544 = sphi 0, %s530
      %s548 = sphi 0, %s548
      %s550 = sphi 0, %s548
      %s551 = sphi 0, %s550
      %s565 = sphi 0, %s551
      %s569 = sphi 0, %s569
      %s571 = sphi 0, %s569
      %s572 = sphi 0, %s571
      %s586 = sphi 0, %s572
      %s590 = sphi 0, %s590
      %s592 = sphi 0, %s590
      %s593 = sphi 0, %s592
      %s607 = sphi 0, %s593
      %s611 = sphi 0, %s611
      %s613 = sphi 0, %s611
      %s614 = sphi 0, %s613
      %s628 = sphi 0, %s614
      %s632 = sphi 0, %s632
      %s634 = sphi 0, %s632
      %s635 = sphi 0, %s634
      %s649 = sphi 0, %s635
      %s653 = sphi 0, %s653
      %s655 = sphi 0, %s653
      %s656 = sphi 0, %s655
      %s670 = sphi 0, %s656
      %s674 = sphi 0, %s674
      %s676 = sphi 0, %s674
      %s677 = sphi 0, %s676
      %s691 = sphi 0, %s677
      %s695 = sphi 0, %s695
      %s697 = sphi 0, %s695
      %s698 = sphi 0, %s697
      %s712 = sphi 0, %s698
      %s716 = sphi 0, %s716
      %s718 = sphi 0, %s716
      %s719 = sphi 0, %s718
      %s733 = sphi 0, %s719
      %s737 = sphi 0, %s737
      %s739 = sphi 0, %s737
      %s740 = sphi 0, %s739
      %s754 = sphi 0, %s740
      %s758 = sphi 0, %s758
      %s760 = sphi 0, %s758
      %s761 = sphi 0, %s760
      %s775 = sphi 0, %s761
      %s779 = sphi 0, %s779
      %s781 = sphi 0, %s779
      %s782 = sphi 0, %s781
      %s796 = sphi 0, %s782
      %s800 = sphi 0, %s800
      %s802 = sphi 0, %s800
      %s803 = sphi 0, %s802
      %s817 = sphi 0, %s803
      %s821 = sphi 0, %s821
      %s823 = sphi 0, %s821
      %s824 = sphi 0, %s823
      %s838 = sphi 0, %s824
      %s842 = sphi 0, %s842
      %s844 = sphi 0, %s842
      %s845 = sphi 0, %s844
      %s859 = sphi 0, %s845
      %s863 = sphi 0, %s863
      %s865 = sphi 0, %s863
      %s866 = sphi 0, %s865
      %s880 = sphi 0, %s866
      %s886 = sphi 0, %s888
      %s889 = sphi 0, %s886
      %s890 = sphi 0, %s889
      %s906 = sphi 0, %s890
    $region4: #{model_forward.7} parent=1 // loop_header_branch
      %97 = sbr.rel (%p95) target = $region8
    $region5: #{model_forward.7} parent=1 // loop_body
      %s99 = ssub.s32 %s94, 1
      %s100 = ssub.s32 %s94, 2
      %s101 = sadd.s32 %s94, 1
      %s102 = ssub.s32 %s94, %s101
      %p103 = scmp.eq.s32.totalorder %s102, 0
      %s105 = sadd.s32 %s104, 1
      %s106 = scalar_select %p103, %s104, %s105
      %p109 = pneg %p103
      %p110 = scmp.eq.s32.totalorder %s94, 1
      %p111 = por %p109, %p110
      %p112 = scmp.ne.s32.totalorder %s104, %s107
      %p113 = scmp.eq.s32.totalorder %s94, 0
      %p114 = por %p112, %p113
      %p115 = scmp.ne.s32.totalorder %s104, %s107
      %p116 = scmp.eq.s32.totalorder %s99, 1
      %p117 = por %p115, %p116
      %p118 = scmp.ne.s32.totalorder %s107, %s108
      %p119 = scmp.eq.s32.totalorder %s99, 0
      %p120 = por %p118, %p119
      %p121 = scmp.ne.s32.totalorder %s107, %s108
      %p122 = scmp.eq.s32.totalorder %s100, 1
      %p123 = por %p121, %p122
      %p125 = scmp.ne.s32.totalorder %s108, %s124
      %p126 = scmp.eq.s32.totalorder %s100, 0
      %p127 = por %p125, %p126
      %s129 = sadd.s32 %s128, 1
      %p132 = scmp.eq.s32.totalorder %s94, 1
      %p133 = scmp.ne.s32.totalorder %s128, %s130
      %p134 = scmp.eq.s32.totalorder %s94, 0
      %p135 = por %p133, %p134
      %p136 = scmp.ne.s32.totalorder %s128, %s130
      %p137 = scmp.eq.s32.totalorder %s99, 1
      %p138 = por %p136, %p137
      %p139 = scmp.ne.s32.totalorder %s130, %s131
      %p140 = scmp.eq.s32.totalorder %s99, 0
      %p141 = por %p139, %p140
      %p142 = scmp.ne.s32.totalorder %s130, %s131
      %p143 = scmp.eq.s32.totalorder %s100, 1
      %p144 = por %p142, %p143
      %p146 = scmp.ne.s32.totalorder %s131, %s145
      %p147 = scmp.eq.s32.totalorder %s100, 0
      %p148 = por %p146, %p147
      %s150 = sadd.s32 %s149, 1
      %p153 = scmp.eq.s32.totalorder %s94, 1
      %p154 = scmp.ne.s32.totalorder %s149, %s151
      %p155 = scmp.eq.s32.totalorder %s94, 0
      %p156 = por %p154, %p155
      %p157 = scmp.ne.s32.totalorder %s149, %s151
      %p158 = scmp.eq.s32.totalorder %s99, 1
      %p159 = por %p157, %p158
      %p160 = scmp.ne.s32.totalorder %s151, %s152
      %p161 = scmp.eq.s32.totalorder %s99, 0
      %p162 = por %p160, %p161
      %p163 = scmp.ne.s32.totalorder %s151, %s152
      %p164 = scmp.eq.s32.totalorder %s100, 1
      %p165 = por %p163, %p164
      %p167 = scmp.ne.s32.totalorder %s152, %s166
      %p168 = scmp.eq.s32.totalorder %s100, 0
      %p169 = por %p167, %p168
      %s171 = sadd.s32 %s170, 1
      %p174 = scmp.eq.s32.totalorder %s94, 1
      %p175 = scmp.ne.s32.totalorder %s170, %s172
      %p176 = scmp.eq.s32.totalorder %s94, 0
      %p177 = por %p175, %p176
      %p178 = scmp.ne.s32.totalorder %s170, %s172
      %p179 = scmp.eq.s32.totalorder %s99, 1
      %p180 = por %p178, %p179
      %p181 = scmp.ne.s32.totalorder %s172, %s173
      %p182 = scmp.eq.s32.totalorder %s99, 0
      %p183 = por %p181, %p182
      %p184 = scmp.ne.s32.totalorder %s172, %s173
      %p185 = scmp.eq.s32.totalorder %s100, 1
      %p186 = por %p184, %p185
      %p188 = scmp.ne.s32.totalorder %s173, %s187
      %p189 = scmp.eq.s32.totalorder %s100, 0
      %p190 = por %p188, %p189
      %s192 = sadd.s32 %s191, 1
      %p195 = scmp.eq.s32.totalorder %s94, 1
      %p196 = scmp.ne.s32.totalorder %s191, %s193
      %p197 = scmp.eq.s32.totalorder %s94, 0
      %p198 = por %p196, %p197
      %p199 = scmp.ne.s32.totalorder %s191, %s193
      %p200 = scmp.eq.s32.totalorder %s99, 1
      %p201 = por %p199, %p200
      %p202 = scmp.ne.s32.totalorder %s193, %s194
      %p203 = scmp.eq.s32.totalorder %s99, 0
      %p204 = por %p202, %p203
      %p205 = scmp.ne.s32.totalorder %s193, %s194
      %p206 = scmp.eq.s32.totalorder %s100, 1
      %p207 = por %p205, %p206
      %p209 = scmp.ne.s32.totalorder %s194, %s208
      %p210 = scmp.eq.s32.totalorder %s100, 0
      %p211 = por %p209, %p210
      %s213 = sadd.s32 %s212, 1
      %p216 = scmp.eq.s32.totalorder %s94, 1
      %p217 = scmp.ne.s32.totalorder %s212, %s214
      %p218 = scmp.eq.s32.totalorder %s94, 0
      %p219 = por %p217, %p218
      %p220 = scmp.ne.s32.totalorder %s212, %s214
      %p221 = scmp.eq.s32.totalorder %s99, 1
      %p222 = por %p220, %p221
      %p223 = scmp.ne.s32.totalorder %s214, %s215
      %p224 = scmp.eq.s32.totalorder %s99, 0
      %p225 = por %p223, %p224
      %p226 = scmp.ne.s32.totalorder %s214, %s215
      %p227 = scmp.eq.s32.totalorder %s100, 1
      %p228 = por %p226, %p227
      %p230 = scmp.ne.s32.totalorder %s215, %s229
      %p231 = scmp.eq.s32.totalorder %s100, 0
      %p232 = por %p230, %p231
      %s234 = sadd.s32 %s233, 1
      %p237 = scmp.eq.s32.totalorder %s94, 1
      %p238 = scmp.ne.s32.totalorder %s233, %s235
      %p239 = scmp.eq.s32.totalorder %s94, 0
      %p240 = por %p238, %p239
      %p241 = scmp.ne.s32.totalorder %s233, %s235
      %p242 = scmp.eq.s32.totalorder %s99, 1
      %p243 = por %p241, %p242
      %p244 = scmp.ne.s32.totalorder %s235, %s236
      %p245 = scmp.eq.s32.totalorder %s99, 0
      %p246 = por %p244, %p245
      %p247 = scmp.ne.s32.totalorder %s235, %s236
      %p248 = scmp.eq.s32.totalorder %s100, 1
      %p249 = por %p247, %p248
      %p251 = scmp.ne.s32.totalorder %s236, %s250
      %p252 = scmp.eq.s32.totalorder %s100, 0
      %p253 = por %p251, %p252
      %s255 = sadd.s32 %s254, 1
      %p258 = scmp.eq.s32.totalorder %s94, 1
      %p259 = scmp.ne.s32.totalorder %s254, %s256
      %p260 = scmp.eq.s32.totalorder %s94, 0
      %p261 = por %p259, %p260
      %p262 = scmp.ne.s32.totalorder %s254, %s256
      %p263 = scmp.eq.s32.totalorder %s99, 1
      %p264 = por %p262, %p263
      %p265 = scmp.ne.s32.totalorder %s256, %s257
      %p266 = scmp.eq.s32.totalorder %s99, 0
      %p267 = por %p265, %p266
      %p268 = scmp.ne.s32.totalorder %s256, %s257
      %p269 = scmp.eq.s32.totalorder %s100, 1
      %p270 = por %p268, %p269
      %p272 = scmp.ne.s32.totalorder %s257, %s271
      %p273 = scmp.eq.s32.totalorder %s100, 0
      %p274 = por %p272, %p273
      %s276 = sadd.s32 %s275, 1
      %p279 = scmp.eq.s32.totalorder %s94, 1
      %p280 = scmp.ne.s32.totalorder %s275, %s277
      %p281 = scmp.eq.s32.totalorder %s94, 0
      %p282 = por %p280, %p281
      %p283 = scmp.ne.s32.totalorder %s275, %s277
      %p284 = scmp.eq.s32.totalorder %s99, 1
      %p285 = por %p283, %p284
      %p286 = scmp.ne.s32.totalorder %s277, %s278
      %p287 = scmp.eq.s32.totalorder %s99, 0
      %p288 = por %p286, %p287
      %p289 = scmp.ne.s32.totalorder %s277, %s278
      %p290 = scmp.eq.s32.totalorder %s100, 1
      %p291 = por %p289, %p290
      %p293 = scmp.ne.s32.totalorder %s278, %s292
      %p294 = scmp.eq.s32.totalorder %s100, 0
      %p295 = por %p293, %p294
      %s297 = sadd.s32 %s296, 1
      %p300 = scmp.eq.s32.totalorder %s94, 1
      %p301 = scmp.ne.s32.totalorder %s296, %s298
      %p302 = scmp.eq.s32.totalorder %s94, 0
      %p303 = por %p301, %p302
      %p304 = scmp.ne.s32.totalorder %s296, %s298
      %p305 = scmp.eq.s32.totalorder %s99, 1
      %p306 = por %p304, %p305
      %p307 = scmp.ne.s32.totalorder %s298, %s299
      %p308 = scmp.eq.s32.totalorder %s99, 0
      %p309 = por %p307, %p308
      %p310 = scmp.ne.s32.totalorder %s298, %s299
      %p311 = scmp.eq.s32.totalorder %s100, 1
      %p312 = por %p310, %p311
      %p314 = scmp.ne.s32.totalorder %s299, %s313
      %p315 = scmp.eq.s32.totalorder %s100, 0
      %p316 = por %p314, %p315
      %s318 = sadd.s32 %s317, 1
      %p321 = scmp.eq.s32.totalorder %s94, 1
      %p322 = scmp.ne.s32.totalorder %s317, %s319
      %p323 = scmp.eq.s32.totalorder %s94, 0
      %p324 = por %p322, %p323
      %p325 = scmp.ne.s32.totalorder %s317, %s319
      %p326 = scmp.eq.s32.totalorder %s99, 1
      %p327 = por %p325, %p326
      %p328 = scmp.ne.s32.totalorder %s319, %s320
      %p329 = scmp.eq.s32.totalorder %s99, 0
      %p330 = por %p328, %p329
      %p331 = scmp.ne.s32.totalorder %s319, %s320
      %p332 = scmp.eq.s32.totalorder %s100, 1
      %p333 = por %p331, %p332
      %p335 = scmp.ne.s32.totalorder %s320, %s334
      %p336 = scmp.eq.s32.totalorder %s100, 0
      %p337 = por %p335, %p336
      %s339 = sadd.s32 %s338, 1
      %p342 = scmp.eq.s32.totalorder %s94, 1
      %p343 = scmp.ne.s32.totalorder %s338, %s340
      %p344 = scmp.eq.s32.totalorder %s94, 0
      %p345 = por %p343, %p344
      %p346 = scmp.ne.s32.totalorder %s338, %s340
      %p347 = scmp.eq.s32.totalorder %s99, 1
      %p348 = por %p346, %p347
      %p349 = scmp.ne.s32.totalorder %s340, %s341
      %p350 = scmp.eq.s32.totalorder %s99, 0
      %p351 = por %p349, %p350
      %p352 = scmp.ne.s32.totalorder %s340, %s341
      %p353 = scmp.eq.s32.totalorder %s100, 1
      %p354 = por %p352, %p353
      %p356 = scmp.ne.s32.totalorder %s341, %s355
      %p357 = scmp.eq.s32.totalorder %s100, 0
      %p358 = por %p356, %p357
      %s360 = sadd.s32 %s359, 1
      %p363 = scmp.eq.s32.totalorder %s94, 1
      %p364 = scmp.ne.s32.totalorder %s359, %s361
      %p365 = scmp.eq.s32.totalorder %s94, 0
      %p366 = por %p364, %p365
      %p367 = scmp.ne.s32.totalorder %s359, %s361
      %p368 = scmp.eq.s32.totalorder %s99, 1
      %p369 = por %p367, %p368
      %p370 = scmp.ne.s32.totalorder %s361, %s362
      %p371 = scmp.eq.s32.totalorder %s99, 0
      %p372 = por %p370, %p371
      %p373 = scmp.ne.s32.totalorder %s361, %s362
      %p374 = scmp.eq.s32.totalorder %s100, 1
      %p375 = por %p373, %p374
      %p377 = scmp.ne.s32.totalorder %s362, %s376
      %p378 = scmp.eq.s32.totalorder %s100, 0
      %p379 = por %p377, %p378
      %s381 = sadd.s32 %s380, 1
      %p384 = scmp.eq.s32.totalorder %s94, 1
      %p385 = scmp.ne.s32.totalorder %s380, %s382
      %p386 = scmp.eq.s32.totalorder %s94, 0
      %p387 = por %p385, %p386
      %p388 = scmp.ne.s32.totalorder %s380, %s382
      %p389 = scmp.eq.s32.totalorder %s99, 1
      %p390 = por %p388, %p389
      %p391 = scmp.ne.s32.totalorder %s382, %s383
      %p392 = scmp.eq.s32.totalorder %s99, 0
      %p393 = por %p391, %p392
      %p394 = scmp.ne.s32.totalorder %s382, %s383
      %p395 = scmp.eq.s32.totalorder %s100, 1
      %p396 = por %p394, %p395
      %p398 = scmp.ne.s32.totalorder %s383, %s397
      %p399 = scmp.eq.s32.totalorder %s100, 0
      %p400 = por %p398, %p399
      %s402 = sadd.s32 %s401, 1
      %p405 = scmp.eq.s32.totalorder %s94, 1
      %p406 = scmp.ne.s32.totalorder %s401, %s403
      %p407 = scmp.eq.s32.totalorder %s94, 0
      %p408 = por %p406, %p407
      %p409 = scmp.ne.s32.totalorder %s401, %s403
      %p410 = scmp.eq.s32.totalorder %s99, 1
      %p411 = por %p409, %p410
      %p412 = scmp.ne.s32.totalorder %s403, %s404
      %p413 = scmp.eq.s32.totalorder %s99, 0
      %p414 = por %p412, %p413
      %p415 = scmp.ne.s32.totalorder %s403, %s404
      %p416 = scmp.eq.s32.totalorder %s100, 1
      %p417 = por %p415, %p416
      %p419 = scmp.ne.s32.totalorder %s404, %s418
      %p420 = scmp.eq.s32.totalorder %s100, 0
      %p421 = por %p419, %p420
      %s423 = sadd.s32 %s422, 1
      %p426 = scmp.eq.s32.totalorder %s94, 1
      %p427 = scmp.ne.s32.totalorder %s422, %s424
      %p428 = scmp.eq.s32.totalorder %s94, 0
      %p429 = por %p427, %p428
      %p430 = scmp.ne.s32.totalorder %s422, %s424
      %p431 = scmp.eq.s32.totalorder %s99, 1
      %p432 = por %p430, %p431
      %p433 = scmp.ne.s32.totalorder %s424, %s425
      %p434 = scmp.eq.s32.totalorder %s99, 0
      %p435 = por %p433, %p434
      %p436 = scmp.ne.s32.totalorder %s424, %s425
      %p437 = scmp.eq.s32.totalorder %s100, 1
      %p438 = por %p436, %p437
      %p440 = scmp.ne.s32.totalorder %s425, %s439
      %p441 = scmp.eq.s32.totalorder %s100, 0
      %p442 = por %p440, %p441
      %s444 = sadd.s32 %s443, 1
      %p447 = scmp.eq.s32.totalorder %s94, 1
      %p448 = scmp.ne.s32.totalorder %s443, %s445
      %p449 = scmp.eq.s32.totalorder %s94, 0
      %p450 = por %p448, %p449
      %p451 = scmp.ne.s32.totalorder %s443, %s445
      %p452 = scmp.eq.s32.totalorder %s99, 1
      %p453 = por %p451, %p452
      %p454 = scmp.ne.s32.totalorder %s445, %s446
      %p455 = scmp.eq.s32.totalorder %s99, 0
      %p456 = por %p454, %p455
      %p457 = scmp.ne.s32.totalorder %s445, %s446
      %p458 = scmp.eq.s32.totalorder %s100, 1
      %p459 = por %p457, %p458
      %p461 = scmp.ne.s32.totalorder %s446, %s460
      %p462 = scmp.eq.s32.totalorder %s100, 0
      %p463 = por %p461, %p462
      %s465 = sadd.s32 %s464, 1
      %p468 = scmp.eq.s32.totalorder %s94, 1
      %p469 = scmp.ne.s32.totalorder %s464, %s466
      %p470 = scmp.eq.s32.totalorder %s94, 0
      %p471 = por %p469, %p470
      %p472 = scmp.ne.s32.totalorder %s464, %s466
      %p473 = scmp.eq.s32.totalorder %s99, 1
      %p474 = por %p472, %p473
      %p475 = scmp.ne.s32.totalorder %s466, %s467
      %p476 = scmp.eq.s32.totalorder %s99, 0
      %p477 = por %p475, %p476
      %p478 = scmp.ne.s32.totalorder %s466, %s467
      %p479 = scmp.eq.s32.totalorder %s100, 1
      %p480 = por %p478, %p479
      %p482 = scmp.ne.s32.totalorder %s467, %s481
      %p483 = scmp.eq.s32.totalorder %s100, 0
      %p484 = por %p482, %p483
      %s486 = sadd.s32 %s485, 1
      %p489 = scmp.eq.s32.totalorder %s94, 1
      %p490 = scmp.ne.s32.totalorder %s485, %s487
      %p491 = scmp.eq.s32.totalorder %s94, 0
      %p492 = por %p490, %p491
      %p493 = scmp.ne.s32.totalorder %s485, %s487
      %p494 = scmp.eq.s32.totalorder %s99, 1
      %p495 = por %p493, %p494
      %p496 = scmp.ne.s32.totalorder %s487, %s488
      %p497 = scmp.eq.s32.totalorder %s99, 0
      %p498 = por %p496, %p497
      %p499 = scmp.ne.s32.totalorder %s487, %s488
      %p500 = scmp.eq.s32.totalorder %s100, 1
      %p501 = por %p499, %p500
      %p503 = scmp.ne.s32.totalorder %s488, %s502
      %p504 = scmp.eq.s32.totalorder %s100, 0
      %p505 = por %p503, %p504
      %s507 = sadd.s32 %s506, 1
      %p510 = scmp.eq.s32.totalorder %s94, 1
      %p511 = scmp.ne.s32.totalorder %s506, %s508
      %p512 = scmp.eq.s32.totalorder %s94, 0
      %p513 = por %p511, %p512
      %p514 = scmp.ne.s32.totalorder %s506, %s508
      %p515 = scmp.eq.s32.totalorder %s99, 1
      %p516 = por %p514, %p515
      %p517 = scmp.ne.s32.totalorder %s508, %s509
      %p518 = scmp.eq.s32.totalorder %s99, 0
      %p519 = por %p517, %p518
      %p520 = scmp.ne.s32.totalorder %s508, %s509
      %p521 = scmp.eq.s32.totalorder %s100, 1
      %p522 = por %p520, %p521
      %p524 = scmp.ne.s32.totalorder %s509, %s523
      %p525 = scmp.eq.s32.totalorder %s100, 0
      %p526 = por %p524, %p525
      %s528 = sadd.s32 %s527, 1
      %p531 = scmp.eq.s32.totalorder %s94, 1
      %p532 = scmp.ne.s32.totalorder %s527, %s529
      %p533 = scmp.eq.s32.totalorder %s94, 0
      %p534 = por %p532, %p533
      %p535 = scmp.ne.s32.totalorder %s527, %s529
      %p536 = scmp.eq.s32.totalorder %s99, 1
      %p537 = por %p535, %p536
      %p538 = scmp.ne.s32.totalorder %s529, %s530
      %p539 = scmp.eq.s32.totalorder %s99, 0
      %p540 = por %p538, %p539
      %p541 = scmp.ne.s32.totalorder %s529, %s530
      %p542 = scmp.eq.s32.totalorder %s100, 1
      %p543 = por %p541, %p542
      %p545 = scmp.ne.s32.totalorder %s530, %s544
      %p546 = scmp.eq.s32.totalorder %s100, 0
      %p547 = por %p545, %p546
      %s549 = sadd.s32 %s548, 1
      %p552 = scmp.eq.s32.totalorder %s94, 1
      %p553 = scmp.ne.s32.totalorder %s548, %s550
      %p554 = scmp.eq.s32.totalorder %s94, 0
      %p555 = por %p553, %p554
      %p556 = scmp.ne.s32.totalorder %s548, %s550
      %p557 = scmp.eq.s32.totalorder %s99, 1
      %p558 = por %p556, %p557
      %p559 = scmp.ne.s32.totalorder %s550, %s551
      %p560 = scmp.eq.s32.totalorder %s99, 0
      %p561 = por %p559, %p560
      %p562 = scmp.ne.s32.totalorder %s550, %s551
      %p563 = scmp.eq.s32.totalorder %s100, 1
      %p564 = por %p562, %p563
      %p566 = scmp.ne.s32.totalorder %s551, %s565
      %p567 = scmp.eq.s32.totalorder %s100, 0
      %p568 = por %p566, %p567
      %s570 = sadd.s32 %s569, 1
      %p573 = scmp.eq.s32.totalorder %s94, 1
      %p574 = scmp.ne.s32.totalorder %s569, %s571
      %p575 = scmp.eq.s32.totalorder %s94, 0
      %p576 = por %p574, %p575
      %p577 = scmp.ne.s32.totalorder %s569, %s571
      %p578 = scmp.eq.s32.totalorder %s99, 1
      %p579 = por %p577, %p578
      %p580 = scmp.ne.s32.totalorder %s571, %s572
      %p581 = scmp.eq.s32.totalorder %s99, 0
      %p582 = por %p580, %p581
      %p583 = scmp.ne.s32.totalorder %s571, %s572
      %p584 = scmp.eq.s32.totalorder %s100, 1
      %p585 = por %p583, %p584
      %p587 = scmp.ne.s32.totalorder %s572, %s586
      %p588 = scmp.eq.s32.totalorder %s100, 0
      %p589 = por %p587, %p588
      %s591 = sadd.s32 %s590, 1
      %p594 = scmp.eq.s32.totalorder %s94, 1
      %p595 = scmp.ne.s32.totalorder %s590, %s592
      %p596 = scmp.eq.s32.totalorder %s94, 0
      %p597 = por %p595, %p596
      %p598 = scmp.ne.s32.totalorder %s590, %s592
      %p599 = scmp.eq.s32.totalorder %s99, 1
      %p600 = por %p598, %p599
      %p601 = scmp.ne.s32.totalorder %s592, %s593
      %p602 = scmp.eq.s32.totalorder %s99, 0
      %p603 = por %p601, %p602
      %p604 = scmp.ne.s32.totalorder %s592, %s593
      %p605 = scmp.eq.s32.totalorder %s100, 1
      %p606 = por %p604, %p605
      %p608 = scmp.ne.s32.totalorder %s593, %s607
      %p609 = scmp.eq.s32.totalorder %s100, 0
      %p610 = por %p608, %p609
      %s612 = sadd.s32 %s611, 1
      %p615 = scmp.eq.s32.totalorder %s94, 1
      %p616 = scmp.ne.s32.totalorder %s611, %s613
      %p617 = scmp.eq.s32.totalorder %s94, 0
      %p618 = por %p616, %p617
      %p619 = scmp.ne.s32.totalorder %s611, %s613
      %p620 = scmp.eq.s32.totalorder %s99, 1
      %p621 = por %p619, %p620
      %p622 = scmp.ne.s32.totalorder %s613, %s614
      %p623 = scmp.eq.s32.totalorder %s99, 0
      %p624 = por %p622, %p623
      %p625 = scmp.ne.s32.totalorder %s613, %s614
      %p626 = scmp.eq.s32.totalorder %s100, 1
      %p627 = por %p625, %p626
      %p629 = scmp.ne.s32.totalorder %s614, %s628
      %p630 = scmp.eq.s32.totalorder %s100, 0
      %p631 = por %p629, %p630
      %s633 = sadd.s32 %s632, 1
      %p636 = scmp.eq.s32.totalorder %s94, 1
      %p637 = scmp.ne.s32.totalorder %s632, %s634
      %p638 = scmp.eq.s32.totalorder %s94, 0
      %p639 = por %p637, %p638
      %p640 = scmp.ne.s32.totalorder %s632, %s634
      %p641 = scmp.eq.s32.totalorder %s99, 1
      %p642 = por %p640, %p641
      %p643 = scmp.ne.s32.totalorder %s634, %s635
      %p644 = scmp.eq.s32.totalorder %s99, 0
      %p645 = por %p643, %p644
      %p646 = scmp.ne.s32.totalorder %s634, %s635
      %p647 = scmp.eq.s32.totalorder %s100, 1
      %p648 = por %p646, %p647
      %p650 = scmp.ne.s32.totalorder %s635, %s649
      %p651 = scmp.eq.s32.totalorder %s100, 0
      %p652 = por %p650, %p651
      %s654 = sadd.s32 %s653, 1
      %p657 = scmp.eq.s32.totalorder %s94, 1
      %p658 = scmp.ne.s32.totalorder %s653, %s655
      %p659 = scmp.eq.s32.totalorder %s94, 0
      %p660 = por %p658, %p659
      %p661 = scmp.ne.s32.totalorder %s653, %s655
      %p662 = scmp.eq.s32.totalorder %s99, 1
      %p663 = por %p661, %p662
      %p664 = scmp.ne.s32.totalorder %s655, %s656
      %p665 = scmp.eq.s32.totalorder %s99, 0
      %p666 = por %p664, %p665
      %p667 = scmp.ne.s32.totalorder %s655, %s656
      %p668 = scmp.eq.s32.totalorder %s100, 1
      %p669 = por %p667, %p668
      %p671 = scmp.ne.s32.totalorder %s656, %s670
      %p672 = scmp.eq.s32.totalorder %s100, 0
      %p673 = por %p671, %p672
      %s675 = sadd.s32 %s674, 1
      %p678 = scmp.eq.s32.totalorder %s94, 1
      %p679 = scmp.ne.s32.totalorder %s674, %s676
      %p680 = scmp.eq.s32.totalorder %s94, 0
      %p681 = por %p679, %p680
      %p682 = scmp.ne.s32.totalorder %s674, %s676
      %p683 = scmp.eq.s32.totalorder %s99, 1
      %p684 = por %p682, %p683
      %p685 = scmp.ne.s32.totalorder %s676, %s677
      %p686 = scmp.eq.s32.totalorder %s99, 0
      %p687 = por %p685, %p686
      %p688 = scmp.ne.s32.totalorder %s676, %s677
      %p689 = scmp.eq.s32.totalorder %s100, 1
      %p690 = por %p688, %p689
      %p692 = scmp.ne.s32.totalorder %s677, %s691
      %p693 = scmp.eq.s32.totalorder %s100, 0
      %p694 = por %p692, %p693
      %s696 = sadd.s32 %s695, 1
      %p699 = scmp.eq.s32.totalorder %s94, 1
      %p700 = scmp.ne.s32.totalorder %s695, %s697
      %p701 = scmp.eq.s32.totalorder %s94, 0
      %p702 = por %p700, %p701
      %p703 = scmp.ne.s32.totalorder %s695, %s697
      %p704 = scmp.eq.s32.totalorder %s99, 1
      %p705 = por %p703, %p704
      %p706 = scmp.ne.s32.totalorder %s697, %s698
      %p707 = scmp.eq.s32.totalorder %s99, 0
      %p708 = por %p706, %p707
      %p709 = scmp.ne.s32.totalorder %s697, %s698
      %p710 = scmp.eq.s32.totalorder %s100, 1
      %p711 = por %p709, %p710
      %p713 = scmp.ne.s32.totalorder %s698, %s712
      %p714 = scmp.eq.s32.totalorder %s100, 0
      %p715 = por %p713, %p714
      %s717 = sadd.s32 %s716, 1
      %p720 = scmp.eq.s32.totalorder %s94, 1
      %p721 = scmp.ne.s32.totalorder %s716, %s718
      %p722 = scmp.eq.s32.totalorder %s94, 0
      %p723 = por %p721, %p722
      %p724 = scmp.ne.s32.totalorder %s716, %s718
      %p725 = scmp.eq.s32.totalorder %s99, 1
      %p726 = por %p724, %p725
      %p727 = scmp.ne.s32.totalorder %s718, %s719
      %p728 = scmp.eq.s32.totalorder %s99, 0
      %p729 = por %p727, %p728
      %p730 = scmp.ne.s32.totalorder %s718, %s719
      %p731 = scmp.eq.s32.totalorder %s100, 1
      %p732 = por %p730, %p731
      %p734 = scmp.ne.s32.totalorder %s719, %s733
      %p735 = scmp.eq.s32.totalorder %s100, 0
      %p736 = por %p734, %p735
      %s738 = sadd.s32 %s737, 1
      %p741 = scmp.eq.s32.totalorder %s94, 1
      %p742 = scmp.ne.s32.totalorder %s737, %s739
      %p743 = scmp.eq.s32.totalorder %s94, 0
      %p744 = por %p742, %p743
      %p745 = scmp.ne.s32.totalorder %s737, %s739
      %p746 = scmp.eq.s32.totalorder %s99, 1
      %p747 = por %p745, %p746
      %p748 = scmp.ne.s32.totalorder %s739, %s740
      %p749 = scmp.eq.s32.totalorder %s99, 0
      %p750 = por %p748, %p749
      %p751 = scmp.ne.s32.totalorder %s739, %s740
      %p752 = scmp.eq.s32.totalorder %s100, 1
      %p753 = por %p751, %p752
      %p755 = scmp.ne.s32.totalorder %s740, %s754
      %p756 = scmp.eq.s32.totalorder %s100, 0
      %p757 = por %p755, %p756
      %s759 = sadd.s32 %s758, 1
      %p762 = scmp.eq.s32.totalorder %s94, 1
      %p763 = scmp.ne.s32.totalorder %s758, %s760
      %p764 = scmp.eq.s32.totalorder %s94, 0
      %p765 = por %p763, %p764
      %p766 = scmp.ne.s32.totalorder %s758, %s760
      %p767 = scmp.eq.s32.totalorder %s99, 1
      %p768 = por %p766, %p767
      %p769 = scmp.ne.s32.totalorder %s760, %s761
      %p770 = scmp.eq.s32.totalorder %s99, 0
      %p771 = por %p769, %p770
      %p772 = scmp.ne.s32.totalorder %s760, %s761
      %p773 = scmp.eq.s32.totalorder %s100, 1
      %p774 = por %p772, %p773
      %p776 = scmp.ne.s32.totalorder %s761, %s775
      %p777 = scmp.eq.s32.totalorder %s100, 0
      %p778 = por %p776, %p777
      %s780 = sadd.s32 %s779, 1
      %p783 = scmp.eq.s32.totalorder %s94, 1
      %p784 = scmp.ne.s32.totalorder %s779, %s781
      %p785 = scmp.eq.s32.totalorder %s94, 0
      %p786 = por %p784, %p785
      %p787 = scmp.ne.s32.totalorder %s779, %s781
      %p788 = scmp.eq.s32.totalorder %s99, 1
      %p789 = por %p787, %p788
      %p790 = scmp.ne.s32.totalorder %s781, %s782
      %p791 = scmp.eq.s32.totalorder %s99, 0
      %p792 = por %p790, %p791
      %p793 = scmp.ne.s32.totalorder %s781, %s782
      %p794 = scmp.eq.s32.totalorder %s100, 1
      %p795 = por %p793, %p794
      %p797 = scmp.ne.s32.totalorder %s782, %s796
      %p798 = scmp.eq.s32.totalorder %s100, 0
      %p799 = por %p797, %p798
      %s801 = sadd.s32 %s800, 1
      %p804 = scmp.eq.s32.totalorder %s94, 1
      %p805 = scmp.ne.s32.totalorder %s800, %s802
      %p806 = scmp.eq.s32.totalorder %s94, 0
      %p807 = por %p805, %p806
      %p808 = scmp.ne.s32.totalorder %s800, %s802
      %p809 = scmp.eq.s32.totalorder %s99, 1
      %p810 = por %p808, %p809
      %p811 = scmp.ne.s32.totalorder %s802, %s803
      %p812 = scmp.eq.s32.totalorder %s99, 0
      %p813 = por %p811, %p812
      %p814 = scmp.ne.s32.totalorder %s802, %s803
      %p815 = scmp.eq.s32.totalorder %s100, 1
      %p816 = por %p814, %p815
      %p818 = scmp.ne.s32.totalorder %s803, %s817
      %p819 = scmp.eq.s32.totalorder %s100, 0
      %p820 = por %p818, %p819
      %s822 = sadd.s32 %s821, 1
      %p825 = scmp.eq.s32.totalorder %s94, 1
      %p826 = scmp.ne.s32.totalorder %s821, %s823
      %p827 = scmp.eq.s32.totalorder %s94, 0
      %p828 = por %p826, %p827
      %p829 = scmp.ne.s32.totalorder %s821, %s823
      %p830 = scmp.eq.s32.totalorder %s99, 1
      %p831 = por %p829, %p830
      %p832 = scmp.ne.s32.totalorder %s823, %s824
      %p833 = scmp.eq.s32.totalorder %s99, 0
      %p834 = por %p832, %p833
      %p835 = scmp.ne.s32.totalorder %s823, %s824
      %p836 = scmp.eq.s32.totalorder %s100, 1
      %p837 = por %p835, %p836
      %p839 = scmp.ne.s32.totalorder %s824, %s838
      %p840 = scmp.eq.s32.totalorder %s100, 0
      %p841 = por %p839, %p840
      %s843 = sadd.s32 %s842, 1
      %p846 = scmp.eq.s32.totalorder %s94, 1
      %p847 = scmp.ne.s32.totalorder %s842, %s844
      %p848 = scmp.eq.s32.totalorder %s94, 0
      %p849 = por %p847, %p848
      %p850 = scmp.ne.s32.totalorder %s842, %s844
      %p851 = scmp.eq.s32.totalorder %s99, 1
      %p852 = por %p850, %p851
      %p853 = scmp.ne.s32.totalorder %s844, %s845
      %p854 = scmp.eq.s32.totalorder %s99, 0
      %p855 = por %p853, %p854
      %p856 = scmp.ne.s32.totalorder %s844, %s845
      %p857 = scmp.eq.s32.totalorder %s100, 1
      %p858 = por %p856, %p857
      %p860 = scmp.ne.s32.totalorder %s845, %s859
      %p861 = scmp.eq.s32.totalorder %s100, 0
      %p862 = por %p860, %p861
      %s864 = sadd.s32 %s863, 1
      %p867 = scmp.eq.s32.totalorder %s94, 1
      %p868 = scmp.ne.s32.totalorder %s863, %s865
      %p869 = scmp.eq.s32.totalorder %s94, 0
      %p870 = por %p868, %p869
      %p871 = scmp.ne.s32.totalorder %s863, %s865
      %p872 = scmp.eq.s32.totalorder %s99, 1
      %p873 = por %p871, %p872
      %p874 = scmp.ne.s32.totalorder %s865, %s866
      %p875 = scmp.eq.s32.totalorder %s99, 0
      %p876 = por %p874, %p875
      %p877 = scmp.ne.s32.totalorder %s865, %s866
      %p878 = scmp.eq.s32.totalorder %s100, 1
      %p879 = por %p877, %p878
      %p881 = scmp.ne.s32.totalorder %s866, %s880
      %p882 = scmp.eq.s32.totalorder %s100, 0
      %p883 = por %p881, %p882
      %s884 = ssub.s32 %s94, %s101
      %p885 = scmp.eq.s32.totalorder %s884, 0
      %s887 = sadd.s32 %s886, 1
      %s888 = scalar_select %p885, %s886, %s887
      %p891 = pneg %p885
      %p892 = scmp.eq.s32.totalorder %s94, 1
      %p893 = por %p891, %p892
      %p894 = scmp.ne.s32.totalorder %s886, %s889
      %p895 = scmp.eq.s32.totalorder %s94, 0
      %p896 = por %p894, %p895
      %p897 = scmp.ne.s32.totalorder %s886, %s889
      %p898 = scmp.eq.s32.totalorder %s99, 1
      %p899 = por %p897, %p898
      %p900 = scmp.ne.s32.totalorder %s889, %s890
      %p901 = scmp.eq.s32.totalorder %s99, 0
      %p902 = por %p900, %p901
      %p903 = scmp.ne.s32.totalorder %s889, %s890
      %p904 = scmp.eq.s32.totalorder %s100, 1
      %p905 = por %p903, %p904
      %p907 = scmp.ne.s32.totalorder %s890, %s906
      %p908 = scmp.eq.s32.totalorder %s100, 0
      %p909 = por %p907, %p908
      %p910 = scmp.le.s32.totalorder 1, %s94
      %p911 = scmp.lt.s32.totalorder %s94, 3
      %p912 = pnand %p910, %p911
      %p913 = pneg %p912
      // Predicated region
      $region9: #{model_forward.7} parent=5 // pred_check
        _
      $region10: #{model_forward.7} parent=5 // pred_check_branch
        %915 = sbr.rel (%p912) target = $region12
      $region11: #{model_forward.7} parent=5 // pred_region
        %s916 = ssub.s32 %s94, 1
        // Predicated region
        $region13: #{model_forward.7} parent=11 // pred_check
          %p917 = pneg %p141
        $region14: #{model_forward.7} parent=11 // pred_check_branch
          %919 = sbr.rel (%p917) target = $region16
        $region15: #{model_forward.7} parent=11 // pred_region
          _
        $region16: #{model_forward.7} parent=11 // pred_fallthru
          _
        // Predicated region
        $region17: #{model_forward.7} parent=11 // pred_check
          %p920 = pneg %p162
        $region18: #{model_forward.7} parent=11 // pred_check_branch
          %922 = sbr.rel (%p920) target = $region20
        $region19: #{model_forward.7} parent=11 // pred_region
          _
        $region20: #{model_forward.7} parent=11 // pred_fallthru
          _
        // Predicated region
        $region21: #{model_forward.7} parent=11 // pred_check
          %p923 = pneg %p183
        $region22: #{model_forward.7} parent=11 // pred_check_branch
          %925 = sbr.rel (%p923) target = $region24
        $region23: #{model_forward.7} parent=11 // pred_region
          _
        $region24: #{model_forward.7} parent=11 // pred_fallthru
          _
        // Predicated region
        $region25: #{model_forward.7} parent=11 // pred_check
          %p926 = pneg %p204
        $region26: #{model_forward.7} parent=11 // pred_check_branch
          %928 = sbr.rel (%p926) target = $region28
        $region27: #{model_forward.7} parent=11 // pred_region
          _
        $region28: #{model_forward.7} parent=11 // pred_fallthru
          _
        // Predicated region
        $region29: #{model_forward.7} parent=11 // pred_check
          %p929 = pneg %p225
        $region30: #{model_forward.7} parent=11 // pred_check_branch
          %931 = sbr.rel (%p929) target = $region32
        $region31: #{model_forward.7} parent=11 // pred_region
          _
        $region32: #{model_forward.7} parent=11 // pred_fallthru
          _
        // Predicated region
        $region33: #{model_forward.7} parent=11 // pred_check
          %p932 = pneg %p246
        $region34: #{model_forward.7} parent=11 // pred_check_branch
          %934 = sbr.rel (%p932) target = $region36
        $region35: #{model_forward.7} parent=11 // pred_region
          _
        $region36: #{model_forward.7} parent=11 // pred_fallthru
          _
        // Predicated region
        $region37: #{model_forward.7} parent=11 // pred_check
          %p935 = pneg %p267
        $region38: #{model_forward.7} parent=11 // pred_check_branch
          %937 = sbr.rel (%p935) target = $region40
        $region39: #{model_forward.7} parent=11 // pred_region
          _
        $region40: #{model_forward.7} parent=11 // pred_fallthru
          _
        // Predicated region
        $region41: #{model_forward.7} parent=11 // pred_check
          %p938 = pneg %p288
        $region42: #{model_forward.7} parent=11 // pred_check_branch
          %940 = sbr.rel (%p938) target = $region44
        $region43: #{model_forward.7} parent=11 // pred_region
          _
        $region44: #{model_forward.7} parent=11 // pred_fallthru
          _
        // Predicated region
        $region45: #{model_forward.7} parent=11 // pred_check
          %p941 = pneg %p309
        $region46: #{model_forward.7} parent=11 // pred_check_branch
          %943 = sbr.rel (%p941) target = $region48
        $region47: #{model_forward.7} parent=11 // pred_region
          _
        $region48: #{model_forward.7} parent=11 // pred_fallthru
          _
        // Predicated region
        $region49: #{model_forward.7} parent=11 // pred_check
          %p944 = pneg %p330
        $region50: #{model_forward.7} parent=11 // pred_check_branch
          %946 = sbr.rel (%p944) target = $region52
        $region51: #{model_forward.7} parent=11 // pred_region
          _
        $region52: #{model_forward.7} parent=11 // pred_fallthru
          _
        // Predicated region
        $region53: #{model_forward.7} parent=11 // pred_check
          %p947 = pneg %p351
        $region54: #{model_forward.7} parent=11 // pred_check_branch
          %949 = sbr.rel (%p947) target = $region56
        $region55: #{model_forward.7} parent=11 // pred_region
          _
        $region56: #{model_forward.7} parent=11 // pred_fallthru
          _
        // Predicated region
        $region57: #{model_forward.7} parent=11 // pred_check
          %p950 = pneg %p372
        $region58: #{model_forward.7} parent=11 // pred_check_branch
          %952 = sbr.rel (%p950) target = $region60
        $region59: #{model_forward.7} parent=11 // pred_region
          _
        $region60: #{model_forward.7} parent=11 // pred_fallthru
          _
        // Predicated region
        $region61: #{model_forward.7} parent=11 // pred_check
          %p953 = pneg %p393
        $region62: #{model_forward.7} parent=11 // pred_check_branch
          %955 = sbr.rel (%p953) target = $region64
        $region63: #{model_forward.7} parent=11 // pred_region
          _
        $region64: #{model_forward.7} parent=11 // pred_fallthru
          _
        // Predicated region
        $region65: #{model_forward.7} parent=11 // pred_check
          %p956 = pneg %p414
        $region66: #{model_forward.7} parent=11 // pred_check_branch
          %958 = sbr.rel (%p956) target = $region68
        $region67: #{model_forward.7} parent=11 // pred_region
          _
        $region68: #{model_forward.7} parent=11 // pred_fallthru
          _
        // Predicated region
        $region69: #{model_forward.7} parent=11 // pred_check
          %p959 = pneg %p435
        $region70: #{model_forward.7} parent=11 // pred_check_branch
          %961 = sbr.rel (%p959) target = $region72
        $region71: #{model_forward.7} parent=11 // pred_region
          _
        $region72: #{model_forward.7} parent=11 // pred_fallthru
          _
        // Predicated region
        $region73: #{model_forward.7} parent=11 // pred_check
          %p962 = pneg %p456
        $region74: #{model_forward.7} parent=11 // pred_check_branch
          %964 = sbr.rel (%p962) target = $region76
        $region75: #{model_forward.7} parent=11 // pred_region
          _
        $region76: #{model_forward.7} parent=11 // pred_fallthru
          _
        // Predicated region
        $region77: #{model_forward.7} parent=11 // pred_check
          %p965 = pneg %p477
        $region78: #{model_forward.7} parent=11 // pred_check_branch
          %967 = sbr.rel (%p965) target = $region80
        $region79: #{model_forward.7} parent=11 // pred_region
          _
        $region80: #{model_forward.7} parent=11 // pred_fallthru
          _
        // Predicated region
        $region81: #{model_forward.7} parent=11 // pred_check
          %p968 = pneg %p498
        $region82: #{model_forward.7} parent=11 // pred_check_branch
          %970 = sbr.rel (%p968) target = $region84
        $region83: #{model_forward.7} parent=11 // pred_region
          _
        $region84: #{model_forward.7} parent=11 // pred_fallthru
          _
        // Predicated region
        $region85: #{model_forward.7} parent=11 // pred_check
          %p971 = pneg %p519
        $region86: #{model_forward.7} parent=11 // pred_check_branch
          %973 = sbr.rel (%p971) target = $region88
        $region87: #{model_forward.7} parent=11 // pred_region
          _
        $region88: #{model_forward.7} parent=11 // pred_fallthru
          _
        // Predicated region
        $region89: #{model_forward.7} parent=11 // pred_check
          %p974 = pneg %p540
        $region90: #{model_forward.7} parent=11 // pred_check_branch
          %976 = sbr.rel (%p974) target = $region92
        $region91: #{model_forward.7} parent=11 // pred_region
          _
        $region92: #{model_forward.7} parent=11 // pred_fallthru
          _
        // Predicated region
        $region93: #{model_forward.7} parent=11 // pred_check
          %p977 = pneg %p561
        $region94: #{model_forward.7} parent=11 // pred_check_branch
          %979 = sbr.rel (%p977) target = $region96
        $region95: #{model_forward.7} parent=11 // pred_region
          _
        $region96: #{model_forward.7} parent=11 // pred_fallthru
          _
        // Predicated region
        $region97: #{model_forward.7} parent=11 // pred_check
          %p980 = pneg %p582
        $region98: #{model_forward.7} parent=11 // pred_check_branch
          %982 = sbr.rel (%p980) target = $region100
        $region99: #{model_forward.7} parent=11 // pred_region
          _
        $region100: #{model_forward.7} parent=11 // pred_fallthru
          _
        // Predicated region
        $region101: #{model_forward.7} parent=11 // pred_check
          %p983 = pneg %p603
        $region102: #{model_forward.7} parent=11 // pred_check_branch
          %985 = sbr.rel (%p983) target = $region104
        $region103: #{model_forward.7} parent=11 // pred_region
          _
        $region104: #{model_forward.7} parent=11 // pred_fallthru
          _
        // Predicated region
        $region105: #{model_forward.7} parent=11 // pred_check
          %p986 = pneg %p624
        $region106: #{model_forward.7} parent=11 // pred_check_branch
          %988 = sbr.rel (%p986) target = $region108
        $region107: #{model_forward.7} parent=11 // pred_region
          _
        $region108: #{model_forward.7} parent=11 // pred_fallthru
          _
        // Predicated region
        $region109: #{model_forward.7} parent=11 // pred_check
          %p989 = pneg %p645
        $region110: #{model_forward.7} parent=11 // pred_check_branch
          %991 = sbr.rel (%p989) target = $region112
        $region111: #{model_forward.7} parent=11 // pred_region
          _
        $region112: #{model_forward.7} parent=11 // pred_fallthru
          _
        // Predicated region
        $region113: #{model_forward.7} parent=11 // pred_check
          %p992 = pneg %p666
        $region114: #{model_forward.7} parent=11 // pred_check_branch
          %994 = sbr.rel (%p992) target = $region116
        $region115: #{model_forward.7} parent=11 // pred_region
          _
        $region116: #{model_forward.7} parent=11 // pred_fallthru
          _
        // Predicated region
        $region117: #{model_forward.7} parent=11 // pred_check
          %p995 = pneg %p687
        $region118: #{model_forward.7} parent=11 // pred_check_branch
          %997 = sbr.rel (%p995) target = $region120
        $region119: #{model_forward.7} parent=11 // pred_region
          _
        $region120: #{model_forward.7} parent=11 // pred_fallthru
          _
        // Predicated region
        $region121: #{model_forward.7} parent=11 // pred_check
          %p998 = pneg %p708
        $region122: #{model_forward.7} parent=11 // pred_check_branch
          %1000 = sbr.rel (%p998) target = $region124
        $region123: #{model_forward.7} parent=11 // pred_region
          _
        $region124: #{model_forward.7} parent=11 // pred_fallthru
          _
        // Predicated region
        $region125: #{model_forward.7} parent=11 // pred_check
          %p1001 = pneg %p729
        $region126: #{model_forward.7} parent=11 // pred_check_branch
          %1003 = sbr.rel (%p1001) target = $region128
        $region127: #{model_forward.7} parent=11 // pred_region
          _
        $region128: #{model_forward.7} parent=11 // pred_fallthru
          _
        // Predicated region
        $region129: #{model_forward.7} parent=11 // pred_check
          %p1004 = pneg %p750
        $region130: #{model_forward.7} parent=11 // pred_check_branch
          %1006 = sbr.rel (%p1004) target = $region132
        $region131: #{model_forward.7} parent=11 // pred_region
          _
        $region132: #{model_forward.7} parent=11 // pred_fallthru
          _
        // Predicated region
        $region133: #{model_forward.7} parent=11 // pred_check
          %p1007 = pneg %p771
        $region134: #{model_forward.7} parent=11 // pred_check_branch
          %1009 = sbr.rel (%p1007) target = $region136
        $region135: #{model_forward.7} parent=11 // pred_region
          _
        $region136: #{model_forward.7} parent=11 // pred_fallthru
          _
        // Predicated region
        $region137: #{model_forward.7} parent=11 // pred_check
          %p1010 = pneg %p792
        $region138: #{model_forward.7} parent=11 // pred_check_branch
          %1012 = sbr.rel (%p1010) target = $region140
        $region139: #{model_forward.7} parent=11 // pred_region
          _
        $region140: #{model_forward.7} parent=11 // pred_fallthru
          _
        // Predicated region
        $region141: #{model_forward.7} parent=11 // pred_check
          %p1013 = pneg %p813
        $region142: #{model_forward.7} parent=11 // pred_check_branch
          %1015 = sbr.rel (%p1013) target = $region144
        $region143: #{model_forward.7} parent=11 // pred_region
          _
        $region144: #{model_forward.7} parent=11 // pred_fallthru
          _
        // Predicated region
        $region145: #{model_forward.7} parent=11 // pred_check
          %p1016 = pneg %p834
        $region146: #{model_forward.7} parent=11 // pred_check_branch
          %1018 = sbr.rel (%p1016) target = $region148
        $region147: #{model_forward.7} parent=11 // pred_region
          _
        $region148: #{model_forward.7} parent=11 // pred_fallthru
          _
        // Predicated region
        $region149: #{model_forward.7} parent=11 // pred_check
          %p1019 = pneg %p855
        $region150: #{model_forward.7} parent=11 // pred_check_branch
          %1021 = sbr.rel (%p1019) target = $region152
        $region151: #{model_forward.7} parent=11 // pred_region
          _
        $region152: #{model_forward.7} parent=11 // pred_fallthru
          _
        // Predicated region
        $region153: #{model_forward.7} parent=11 // pred_check
          %p1022 = pneg %p876
        $region154: #{model_forward.7} parent=11 // pred_check_branch
          %1024 = sbr.rel (%p1022) target = $region156
        $region155: #{model_forward.7} parent=11 // pred_region
          _
        $region156: #{model_forward.7} parent=11 // pred_fallthru
          _
      $region12: #{model_forward.7} parent=5 // pred_fallthru
        _
      %p1025 = scmp.lt.s32.totalorder %s94, 2
      // Predicated region
      $region157: #{model_forward.7} parent=5 // pred_check
        %p1026 = pneg %p1025
      $region158: #{model_forward.7} parent=5 // pred_check_branch
        %1028 = sbr.rel (%p1026) target = $region160
      $region159: #{model_forward.7} parent=5 // pred_region
        // Predicated region
        $region161: #{model_forward.7} parent=159 // pred_check
          %p1029 = pneg %p114
        $region162: #{model_forward.7} parent=159 // pred_check_branch
          %1031 = sbr.rel (%p1029) target = $region164
        $region163: #{model_forward.7} parent=159 // pred_region
          %p1032 = scmp.lt.s32.totalorder %s94, 1
          %s1033 = scalar_select %p1032, %s94, 1
          %s1034 = smul.addr %s1033, 4
          %s1035 = smul.addr %s1034, 8
          %s1036 = scalar_lea.vmem %s3, %s1035
        $region164: #{model_forward.7} parent=159 // pred_fallthru
          _
      $region160: #{model_forward.7} parent=5 // pred_fallthru
        _
      %p1037 = scmp.le.s32.totalorder 1, %s94
      %p1038 = scmp.lt.s32.totalorder %s94, 3
      %p1039 = pnand %p1037, %p1038
      %p1040 = pneg %p1039
      // Predicated region
      $region165: #{model_forward.7} parent=5 // pred_check
        _
      $region166: #{model_forward.7} parent=5 // pred_check_branch
        %1042 = sbr.rel (%p1039) target = $region168
      $region167: #{model_forward.7} parent=5 // pred_region
        %s1043 = ssub.s32 %s94, 1
        %p1044 = scmp.lt.s32.totalorder %s99, 1
        %s1045 = scalar_select %p1044, %s99, 1
        %s1046 = smul.addr %s1045, 4
        %s1047 = smul.addr %s1046, 8
        %s1048 = scalar_lea.vmem %s3, %s1047
        %p1049 = pneg %p120
        %p1050 = pneg %p117
        %p1051 = pneg %p141
        %p1052 = pneg %p138
        %p1053 = pneg %p162
        %p1054 = pneg %p159
        %p1055 = pneg %p183
        %p1056 = pneg %p180
        %p1057 = pneg %p204
        %p1058 = pneg %p201
        %p1059 = pneg %p225
        %p1060 = pneg %p222
        %p1061 = pneg %p246
        %p1062 = pneg %p243
        %p1063 = pneg %p267
        %p1064 = pneg %p264
        %p1065 = pneg %p288
        %p1066 = pneg %p285
        %p1067 = pneg %p309
        %p1068 = pneg %p306
        %p1069 = pneg %p330
        %p1070 = pneg %p327
        %p1071 = pneg %p351
        %p1072 = pneg %p348
        %p1073 = pneg %p372
        %p1074 = pneg %p369
        %p1075 = pneg %p393
        %p1076 = pneg %p390
        %p1077 = pneg %p414
        %p1078 = pneg %p411
        %p1079 = pneg %p435
        %p1080 = pneg %p432
        %p1081 = pneg %p456
        %p1082 = pneg %p453
        %p1083 = pneg %p477
        %p1084 = pneg %p474
        %p1085 = pneg %p498
        %p1086 = pneg %p495
        %p1087 = pneg %p519
        %p1088 = pneg %p516
        %p1089 = pneg %p540
        %p1090 = pneg %p537
        %p1091 = pneg %p561
        %p1092 = pneg %p558
        %p1093 = pneg %p582
        %p1094 = pneg %p579
        %p1095 = pneg %p603
        %p1096 = pneg %p600
        %p1097 = pneg %p624
        %p1098 = pneg %p621
        %p1099 = pneg %p645
        %p1100 = pneg %p642
        %p1101 = pneg %p666
        %p1102 = pneg %p663
        %p1103 = pneg %p687
        %p1104 = pneg %p684
        %p1105 = pneg %p708
        %p1106 = pneg %p705
        %p1107 = pneg %p729
        %p1108 = pneg %p726
        %p1109 = pneg %p750
        %p1110 = pneg %p747
        %p1111 = pneg %p771
        %p1112 = pneg %p768
        %p1113 = pneg %p792
        %p1114 = pneg %p789
        %p1115 = pneg %p813
        %p1116 = pneg %p810
        %p1117 = pneg %p834
        %p1118 = pneg %p831
        %p1119 = pneg %p855
        %p1120 = pneg %p852
        %p1121 = pneg %p876
        %p1122 = pneg %p873
        %p1123 = pneg %p902
        %p1124 = pneg %p899
        %s1125 = sand.u32 %s889, 1
        %s1126 = scalar_lea.sflag [#allocation5], %s1125
        %s1127 = sand.u32 %s889, 1
        %s1128 = smul.addr %s1127, 16
        %s1129 = scalar_lea.vmem [#allocation4], %s1128
        %p1130 = scmp.lt.s32.totalorder %s99, 1
        %s1131 = scalar_select %p1130, %s99, 1
        %s1132 = smul.addr %s1131, 4
        %s1133 = smul.addr %s1132, 8
        %s1134 = scalar_lea.vmem %s3, %s1133
        %s1135 = sld [smem:[#allocation3 + %s99]]
        %v1136 = vlaneseq
        %v1137 = vshrl.u32 %v1136, 7
        %v1138 = vadd.s32 %v1137, 8
        %v1139 = vlaneseq
        %v1140 = vand.u32 %v1139, 127
        %v1141 = vstv %s1135
        %vm1142 = vcmp.lt.s32.totalorder %v1140, %v1141
        %v1143 = vsel %vm1142, 0.0, -1e+09
        %vm1144 = vcmp.lt.s32.totalorder %v1137, %v1141
        %vm1145 = vcmp.lt.s32.totalorder %v1138, %v1141
        %v1146 = vsel %vm1144, 1, 0
        %v1147 = vsel %vm1145, 1, 0
        %v1148 = vcvt.s32.f32 %v1146
        %v1149 = vcvt.s32.f32 %v1147
        %v1150 = vld [vmem:[%s1134] sm:$0xff]
        %v1151 = vld [vmem:[%s1134 + $0x8] sm:$0xff]
        %v1152 = vld [vmem:[%s1134 + $0x10] sm:$0xff]
        %v1153 = vld [vmem:[%s1134 + $0x18] sm:$0xff]
        %v1154 = vld [vmem:[%s5] sm:$0xff]
        %v1155 = vld [vmem:[%s5 + $0x8] sm:$0xff]
        %v1156 = vld [vmem:[%s5 + $0x10] sm:$0xff]
        %v1157 = vld [vmem:[%s5 + $0x18] sm:$0xff]
        %v1158 = vld [vmem:[%s5 + $0x20] sm:$0xff]
        %v1159 = vld [vmem:[%s5 + $0x28] sm:$0xff]
        %v1160 = vld [vmem:[%s5 + $0x30] sm:$0xff]
        %v1161 = vld [vmem:[%s5 + $0x38] sm:$0xff]
        %v1162 = vld [vmem:[%s5 + $0x40] sm:$0xff]
        %v1163 = vld [vmem:[%s5 + $0x48] sm:$0xff]
        %v1164 = vld [vmem:[%s5 + $0x50] sm:$0xff]
        %v1165 = vld [vmem:[%s5 + $0x58] sm:$0xff]
        %v1166 = vld [vmem:[%s5 + $0x60] sm:$0xff]
        %v1167 = vld [vmem:[%s5 + $0x68] sm:$0xff]
        %v1168 = vld [vmem:[%s5 + $0x70] sm:$0xff]
        %v1169 = vld [vmem:[%s5 + $0x78] sm:$0xff]
        %v1170 = vld [vmem:[%s5 + $0x80] sm:$0xff]
        %v1171 = vld [vmem:[%s5 + $0x88] sm:$0xff]
        %v1172 = vld [vmem:[%s5 + $0x90] sm:$0xff]
        %v1173 = vld [vmem:[%s5 + $0x98] sm:$0xff]
        %v1174 = vld [vmem:[%s5 + $0xa0] sm:$0xff]
        %v1175 = vld [vmem:[%s5 + $0xa8] sm:$0xff]
        %v1176 = vld [vmem:[%s5 + $0xb0] sm:$0xff]
        %v1177 = vld [vmem:[%s5 + $0xb8] sm:$0xff]
        %v1178 = vld [vmem:[%s5 + $0xc0] sm:$0xff]
        %v1179 = vld [vmem:[%s5 + $0xc8] sm:$0xff]
        %v1180 = vld [vmem:[%s5 + $0xd0] sm:$0xff]
        %v1181 = vld [vmem:[%s5 + $0xd8] sm:$0xff]
        %v1182 = vld [vmem:[%s5 + $0xe0] sm:$0xff]
        %v1183 = vld [vmem:[%s5 + $0xe8] sm:$0xff]
        %v1184 = vld [vmem:[%s5 + $0xf0] sm:$0xff]
        %v1185 = vld [vmem:[%s5 + $0xf8] sm:$0xff]
        %v1186 = vld [vmem:[%s7] sm:$0x1]
        %v1188 = vperm.slane %v1186, 0
        %1190 = vmatpush.msra.mxu0 %v1169
        %1191 = vmatpush.msra.mxu0 %v1168
        %1192 = vmatpush.msra.mxu0 %v1167
        %1193 = vmatpush.msra.mxu0 %v1166
        %1194 = vmatpush.msra.mxu0 %v1165
        %1195 = vmatpush.msra.mxu0 %v1164
        %1196 = vmatpush.msra.mxu0 %v1163
        %1197 = vmatpush.msra.mxu0 %v1162
        %1198 = vmatpush.msra.mxu0 %v1161
        %1199 = vmatpush.msra.mxu0 %v1160
        %1200 = vmatpush.msra.mxu0 %v1159
        %1201 = vmatpush.msra.mxu0 %v1158
        %1202 = vmatpush.msra.mxu0 %v1157
        %1203 = vmatpush.msra.mxu0 %v1156
        %1204 = vmatpush.msra.mxu0 %v1155
        %1205 = vmatpush.msra.mxu0 %v1154
        %1206 = vmatmul.f32.gmra.mxu0 %v1150
        %v1207 = vpop.f32.mrf.mxu0
        %v1208 = vadd.f32 %v1188, %v1207
        %1209 = vmatmul.f32.gmra.mxu0 %v1152
        %v1210 = vpop.f32.mrf.mxu0
        %v1211 = vadd.f32 %v1188, %v1210
        %1212 = vdwg.mxu0
        %1213 = vmatpush.msra.mxu0 %v1185
        %1214 = vmatpush.msra.mxu0 %v1184
        %1215 = vmatpush.msra.mxu0 %v1183
        %1216 = vmatpush.msra.mxu0 %v1182
        %1217 = vmatpush.msra.mxu0 %v1181
        %1218 = vmatpush.msra.mxu0 %v1180
        %1219 = vmatpush.msra.mxu0 %v1179
        %1220 = vmatpush.msra.mxu0 %v1178
        %1221 = vmatpush.msra.mxu0 %v1177
        %1222 = vmatpush.msra.mxu0 %v1176
        %1223 = vmatpush.msra.mxu0 %v1175
        %1224 = vmatpush.msra.mxu0 %v1174
        %1225 = vmatpush.msra.mxu0 %v1173
        %1226 = vmatpush.msra.mxu0 %v1172
        %1227 = vmatpush.msra.mxu0 %v1171
        %1228 = vmatpush.msra.mxu0 %v1170
        %1229 = vmatmul.f32.gmra.mxu0 %v1151
        %v1230 = vpop.f32.mrf.mxu0
        %v1231 = vadd.f32 %v1208, %v1230
        %1232 = vmatmul.f32.gmra.mxu0 %v1153
        %v1233 = vpop.f32.mrf.mxu0
        %v1234 = vadd.f32 %v1211, %v1233
        %1235 = vdwg.mxu0
        %v1236 = vld [vmem:[%s9] sm:$0x1]
        %v1237 = vld [vmem:[%s11] sm:$0x1]
        %vm1238 = vcmask 523264
        %v1239 = vsel %vm1238, %v1231, 0.0
        %1240 = vadd.xlane.f32.xlu0 %v1239
        %v1241 = vpop.xlane.xlu0 %1240
        %v1242 = vsel %vm1238, %v1234, 0.0
        %1243 = vadd.xlane.f32.xlu0 %v1242
        %v1244 = vpop.xlane.xlu0 %1243
        %v1245 = vrcp.pop 64.0
        %v1246 = vmul.f32 64.0, %v1245
        %v1247 = vsub.f32 1.0, %v1246
        %v1248 = vmul.f32 %v1245, %v1247
        %v1249 = vadd.f32 %v1245, %v1248
        %vm1250 = vweird.f32 %v1245
        %v1251 = vsel %vm1250, %v1245, %v1249
        %v1252 = vmul.f32 %v1241, %v1251
        %v1253 = vmul.f32 %v1244, %v1251
        %v1254 = vsub.f32 %v1231, %v1252
        %v1255 = vsub.f32 %v1234, %v1253
        %v1256 = vmul.f32 %v1254, %v1254
        %v1257 = vmul.f32 %v1255, %v1255
        %v1258 = vsel %vm1238, %v1256, 0.0
        %1259 = vadd.xlane.f32.xlu0 %v1258
        %v1260 = vpop.xlane.xlu0 %1259
        %v1261 = vsel %vm1238, %v1257, 0.0
        %1262 = vadd.xlane.f32.xlu0 %v1261
        %v1263 = vpop.xlane.xlu0 %1262
        %v1264 = vmul.f32 %v1260, %v1251
        %v1265 = vmul.f32 %v1263, %v1251
        %v1266 = vadd.f32 %v1264, 1e-05
        %v1267 = vadd.f32 %v1265, 1e-05
        %v1268 = vrsqrt.pop %v1266
        %v1269 = vmul.f32 %v1268, %v1266
        %v1270 = vmul.f32 %v1269, %v1268
        %v1271 = vmul.f32 0.5, %v1270
        %v1272 = vsub.f32 1.5, %v1271
        %v1273 = vmul.f32 %v1268, %v1272
        %vm1274 = vweird.f32 %v1266
        %vm1275 = vweird.f32 %v1268
        %vm1276 = vmor %vm1274, %vm1275
        %v1277 = vsel %vm1276, %v1268, %v1273
        %v1278 = vrsqrt.pop %v1267
        %v1279 = vmul.f32 %v1278, %v1267
        %v1280 = vmul.f32 %v1279, %v1278
        %v1281 = vmul.f32 0.5, %v1280
        %v1282 = vsub.f32 1.5, %v1281
        %v1283 = vmul.f32 %v1278, %v1282
        %vm1284 = vweird.f32 %v1267
        %vm1285 = vweird.f32 %v1278
        %vm1286 = vmor %vm1284, %vm1285
        %v1287 = vsel %vm1286, %v1278, %v1283
        %v1288 = vmul.f32 %v1254, %v1277
        %v1289 = vmul.f32 %v1255, %v1287
        %v1291 = vperm.slane %v1236, 0
        %v1293 = vmul.f32 %v1288, %v1291
        %v1294 = vmul.f32 %v1289, %v1291
        %v1296 = vperm.slane %v1237, 0
        %v1298 = vadd.f32 %v1293, %v1296
        %v1299 = vadd.f32 %v1294, %v1296
        %v1300 = vld [vmem:[%s13] sm:$0xff]
        %v1301 = vld [vmem:[%s13 + $0x8] sm:$0xff]
        %v1302 = vld [vmem:[%s13 + $0x10] sm:$0xff]
        %v1303 = vld [vmem:[%s13 + $0x18] sm:$0xff]
        %v1304 = vld [vmem:[%s13 + $0x20] sm:$0xff]
        %v1305 = vld [vmem:[%s13 + $0x28] sm:$0xff]
        %v1306 = vld [vmem:[%s13 + $0x30] sm:$0xff]
        %v1307 = vld [vmem:[%s13 + $0x38] sm:$0xff]
        %v1308 = vld [vmem:[%s15] sm:$0x1]
        %v1310 = vperm.slane %v1308, 0
        %v1313 = vsel %vm1238, %v1298, 0
        %v1316 = vsel %vm1238, %v1299, 0
        %1318 = vmatpush.msra.mxu0 0.0
        %1319 = vmatpush.msra.mxu0 0.0
        %1320 = vmatpush.msra.mxu0 0.0
        %1321 = vmatpush.msra.mxu0 0.0
        %1322 = vmatpush.msra.mxu0 0.0
        %1323 = vmatpush.msra.mxu0 0.0
        %1324 = vmatpush.msra.mxu0 0.0
        %1325 = vmatpush.msra.mxu0 0.0
        %1326 = vmatpush.msra.mxu0 %v1307
        %1327 = vmatpush.msra.mxu0 %v1306
        %1328 = vmatpush.msra.mxu0 %v1305
        %1329 = vmatpush.msra.mxu0 %v1304
        %1330 = vmatpush.msra.mxu0 %v1303
        %1331 = vmatpush.msra.mxu0 %v1302
        %1332 = vmatpush.msra.mxu0 %v1301
        %1333 = vmatpush.msra.mxu0 %v1300
        %1334 = vmatmul.f32.gmra.mxu0 %v1313
        %v1335 = vpop.f32.mrf.mxu0
        %v1336 = vadd.f32 %v1310, %v1335
        %1337 = vmatmul.f32.gmra.mxu0 %v1316
        %v1338 = vpop.f32.mrf.mxu0
        %v1339 = vadd.f32 %v1310, %v1338
        %1340 = vdwg.mxu0
        %v1341 = vxor.u32 %v1336, 2147483648
        %v1342 = vxor.u32 %v1339, 2147483648
        %v1343 = vmul.f32 %v1341, 1.442695
        %v1344 = vpow.pop %v1343
        %v1345 = vmul.f32 %v1342, 1.442695
        %v1346 = vpow.pop %v1345
        %v1347 = vadd.f32 %v1344, 1.0
        %v1348 = vadd.f32 %v1346, 1.0
        %v1349 = vrcp.pop %v1347
        %v1350 = vmul.f32 %v1347, %v1349
        %v1351 = vsub.f32 1.0, %v1350
        %v1352 = vmul.f32 %v1349, %v1351
        %v1353 = vadd.f32 %v1349, %v1352
        %vm1354 = vweird.f32 %v1347
        %vm1355 = vweird.f32 %v1349
        %vm1356 = vmor %vm1354, %vm1355
        %v1357 = vsel %vm1356, %v1349, %v1353
        %v1358 = vand.u32 2147483647, %v1347
        %vm1359 = vcmp.eq.f32.partialorder %v1358, 8.507059e+37
        %v1360 = vand.u32 %v1347, 2147483648
        %v1361 = vor.u32 1.1754944e-38, %v1360
        %v1362 = vsel %vm1359, %v1361, %v1357
        %v1363 = vmul.f32 1.0, %v1362
        %v1364 = vrcp.pop %v1348
        %v1365 = vmul.f32 %v1348, %v1364
        %v1366 = vsub.f32 1.0, %v1365
        %v1367 = vmul.f32 %v1364, %v1366
        %v1368 = vadd.f32 %v1364, %v1367
        %vm1369 = vweird.f32 %v1348
        %vm1370 = vweird.f32 %v1364
        %vm1371 = vmor %vm1369, %vm1370
        %v1372 = vsel %vm1371, %v1364, %v1368
        %v1373 = vand.u32 2147483647, %v1348
        %vm1374 = vcmp.eq.f32.partialorder %v1373, 8.507059e+37
        %v1375 = vand.u32 %v1348, 2147483648
        %v1376 = vor.u32 1.1754944e-38, %v1375
        %v1377 = vsel %vm1374, %v1376, %v1372
        %v1378 = vmul.f32 1.0, %v1377
        %v1379 = vmul.f32 %v1336, %v1363
        %v1380 = vmul.f32 %v1339, %v1378
        %v1381 = vld [vmem:[%s17] sm:$0xff]
        %v1382 = vld [vmem:[%s17 + $0x8] sm:$0xff]
        %v1383 = vld [vmem:[%s17 + $0x10] sm:$0xff]
        %v1384 = vld [vmem:[%s17 + $0x18] sm:$0xff]
        %v1385 = vld [vmem:[%s17 + $0x20] sm:$0xff]
        %v1386 = vld [vmem:[%s17 + $0x28] sm:$0xff]
        %v1387 = vld [vmem:[%s17 + $0x30] sm:$0xff]
        %v1388 = vld [vmem:[%s17 + $0x38] sm:$0xff]
        %v1389 = vld [vmem:[%s17 + $0x40] sm:$0xff]
        %v1390 = vld [vmem:[%s17 + $0x48] sm:$0xff]
        %v1391 = vld [vmem:[%s17 + $0x50] sm:$0xff]
        %v1392 = vld [vmem:[%s17 + $0x58] sm:$0xff]
        %v1393 = vld [vmem:[%s17 + $0x60] sm:$0xff]
        %v1394 = vld [vmem:[%s17 + $0x68] sm:$0xff]
        %v1395 = vld [vmem:[%s17 + $0x70] sm:$0xff]
        %v1396 = vld [vmem:[%s17 + $0x78] sm:$0xff]
        %v1397 = vld [vmem:[%s19] sm:$0x1]
        %v1399 = vperm.slane %v1397, 0
        %1401 = vmatpush.msra.mxu0 %v1396
        %1402 = vmatpush.msra.mxu0 %v1395
        %1403 = vmatpush.msra.mxu0 %v1394
        %1404 = vmatpush.msra.mxu0 %v1393
        %1405 = vmatpush.msra.mxu0 %v1392
        %1406 = vmatpush.msra.mxu0 %v1391
        %1407 = vmatpush.msra.mxu0 %v1390
        %1408 = vmatpush.msra.mxu0 %v1389
        %1409 = vmatpush.msra.mxu0 %v1388
        %1410 = vmatpush.msra.mxu0 %v1387
        %1411 = vmatpush.msra.mxu0 %v1386
        %1412 = vmatpush.msra.mxu0 %v1385
        %1413 = vmatpush.msra.mxu0 %v1384
        %1414 = vmatpush.msra.mxu0 %v1383
        %1415 = vmatpush.msra.mxu0 %v1382
        %1416 = vmatpush.msra.mxu0 %v1381
        %1417 = vmatmul.f32.gmra.mxu0 %v1379
        %v1418 = vpop.f32.mrf.mxu0
        %v1419 = vadd.f32 %v1399, %v1418
        %1420 = vmatmul.f32.gmra.mxu0 %v1380
        %v1421 = vpop.f32.mrf.mxu0
        %v1422 = vadd.f32 %v1399, %v1421
        %1423 = vdwg.mxu0
        %v1424 = vmul.f32 %v1419, 0.5
        %v1425 = vmul.f32 %v1422, 0.5
        %v1426 = vadd.f32 %v1231, %v1424
        %v1427 = vadd.f32 %v1234, %v1425
        %v1428 = vld [vmem:[%s21] sm:$0x1]
        %v1429 = vld [vmem:[%s23] sm:$0x1]
        %v1430 = vsel %vm1238, %v1426, 0.0
        %1431 = vadd.xlane.f32.xlu0 %v1430
        %v1432 = vpop.xlane.xlu0 %1431
        %v1433 = vsel %vm1238, %v1427, 0.0
        %1434 = vadd.xlane.f32.xlu0 %v1433
        %v1435 = vpop.xlane.xlu0 %1434
        %v1436 = vmul.f32 %v1432, %v1251
        %v1437 = vmul.f32 %v1435, %v1251
        %v1438 = vsub.f32 %v1426, %v1436
        %v1439 = vsub.f32 %v1427, %v1437
        %v1440 = vmul.f32 %v1438, %v1438
        %v1441 = vmul.f32 %v1439, %v1439
        %v1442 = vsel %vm1238, %v1440, 0.0
        %1443 = vadd.xlane.f32.xlu0 %v1442
        %v1444 = vpop.xlane.xlu0 %1443
        %v1445 = vsel %vm1238, %v1441, 0.0
        %1446 = vadd.xlane.f32.xlu0 %v1445
        %v1447 = vpop.xlane.xlu0 %1446
        %v1448 = vmul.f32 %v1444, %v1251
        %v1449 = vmul.f32 %v1447, %v1251
        %v1450 = vadd.f32 %v1448, 1e-05
        %v1451 = vadd.f32 %v1449, 1e-05
        %v1452 = vrsqrt.pop %v1450
        %v1453 = vmul.f32 %v1452, %v1450
        %v1454 = vmul.f32 %v1453, %v1452
        %v1455 = vmul.f32 0.5, %v1454
        %v1456 = vsub.f32 1.5, %v1455
        %v1457 = vmul.f32 %v1452, %v1456
        %vm1458 = vweird.f32 %v1450
        %vm1459 = vweird.f32 %v1452
        %vm1460 = vmor %vm1458, %vm1459
        %v1461 = vsel %vm1460, %v1452, %v1457
        %v1462 = vrsqrt.pop %v1451
        %v1463 = vmul.f32 %v1462, %v1451
        %v1464 = vmul.f32 %v1463, %v1462
        %v1465 = vmul.f32 0.5, %v1464
        %v1466 = vsub.f32 1.5, %v1465
        %v1467 = vmul.f32 %v1462, %v1466
        %vm1468 = vweird.f32 %v1451
        %vm1469 = vweird.f32 %v1462
        %vm1470 = vmor %vm1468, %vm1469
        %v1471 = vsel %vm1470, %v1462, %v1467
        %v1472 = vmul.f32 %v1438, %v1461
        %v1473 = vmul.f32 %v1439, %v1471
        %v1475 = vperm.slane %v1428, 0
        %v1477 = vmul.f32 %v1472, %v1475
        %v1478 = vmul.f32 %v1473, %v1475
        %v1480 = vperm.slane %v1429, 0
        %v1482 = vadd.f32 %v1477, %v1480
        %v1483 = vadd.f32 %v1478, %v1480
        %v1484 = vld [vmem:[%s25] sm:$0xff]
        %v1485 = vld [vmem:[%s25 + $0x8] sm:$0xff]
        %v1486 = vld [vmem:[%s25 + $0x10] sm:$0xff]
        %v1487 = vld [vmem:[%s25 + $0x18] sm:$0xff]
        %v1488 = vld [vmem:[%s25 + $0x20] sm:$0xff]
        %v1489 = vld [vmem:[%s25 + $0x28] sm:$0xff]
        %v1490 = vld [vmem:[%s25 + $0x30] sm:$0xff]
        %v1491 = vld [vmem:[%s25 + $0x38] sm:$0xff]
        %v1492 = vld [vmem:[%s27] sm:$0x1]
        %v1494 = vperm.slane %v1492, 0
        %v1497 = vsel %vm1238, %v1482, 0
        %v1500 = vsel %vm1238, %v1483, 0
        %1502 = vmatpush.msra.mxu0 0.0
        %1503 = vmatpush.msra.mxu0 0.0
        %1504 = vmatpush.msra.mxu0 0.0
        %1505 = vmatpush.msra.mxu0 0.0
        %1506 = vmatpush.msra.mxu0 0.0
        %1507 = vmatpush.msra.mxu0 0.0
        %1508 = vmatpush.msra.mxu0 0.0
        %1509 = vmatpush.msra.mxu0 0.0
        %1510 = vmatpush.msra.mxu0 %v1491
        %1511 = vmatpush.msra.mxu0 %v1490
        %1512 = vmatpush.msra.mxu0 %v1489
        %1513 = vmatpush.msra.mxu0 %v1488
        %1514 = vmatpush.msra.mxu0 %v1487
        %1515 = vmatpush.msra.mxu0 %v1486
        %1516 = vmatpush.msra.mxu0 %v1485
        %1517 = vmatpush.msra.mxu0 %v1484
        %1518 = vmatmul.f32.gmra.mxu0 %v1497
        %v1519 = vpop.f32.mrf.mxu0
        %v1520 = vadd.f32 %v1494, %v1519
        %1521 = vmatmul.f32.gmra.mxu0 %v1500
        %v1522 = vpop.f32.mrf.mxu0
        %v1523 = vadd.f32 %v1494, %v1522
        %1524 = vdwg.mxu0
        %v1525 = vld [vmem:[%s29] sm:$0xff]
        %v1526 = vld [vmem:[%s29 + $0x8] sm:$0xff]
        %v1527 = vld [vmem:[%s29 + $0x10] sm:$0xff]
        %v1528 = vld [vmem:[%s29 + $0x18] sm:$0xff]
        %v1529 = vld [vmem:[%s29 + $0x20] sm:$0xff]
        %v1530 = vld [vmem:[%s29 + $0x28] sm:$0xff]
        %v1531 = vld [vmem:[%s29 + $0x30] sm:$0xff]
        %v1532 = vld [vmem:[%s29 + $0x38] sm:$0xff]
        %v1533 = vld [vmem:[%s29 + $0x40] sm:$0xff]
        %v1534 = vld [vmem:[%s29 + $0x48] sm:$0xff]
        %v1535 = vld [vmem:[%s29 + $0x50] sm:$0xff]
        %v1536 = vld [vmem:[%s29 + $0x58] sm:$0xff]
        %v1537 = vld [vmem:[%s29 + $0x60] sm:$0xff]
        %v1538 = vld [vmem:[%s29 + $0x68] sm:$0xff]
        %v1539 = vld [vmem:[%s29 + $0x70] sm:$0xff]
        %v1540 = vld [vmem:[%s29 + $0x78] sm:$0xff]
        %1541 = vmatpush.msra.mxu0 0.0
        %1542 = vmatpush.msra.mxu0 0.0
        %1543 = vmatpush.msra.mxu0 0.0
        %1544 = vmatpush.msra.mxu0 0.0
        %1545 = vmatpush.msra.mxu0 0.0
        %1546 = vmatpush.msra.mxu0 0.0
        %1547 = vmatpush.msra.mxu0 0.0
        %1548 = vmatpush.msra.mxu0 0.0
        %1549 = vmatpush.msra.mxu0 %v1539
        %1550 = vmatpush.msra.mxu0 %v1537
        %1551 = vmatpush.msra.mxu0 %v1535
        %1552 = vmatpush.msra.mxu0 %v1533
        %1553 = vmatpush.msra.mxu0 %v1531
        %1554 = vmatpush.msra.mxu0 %v1529
        %1555 = vmatpush.msra.mxu0 %v1527
        %1556 = vmatpush.msra.mxu0 %v1525
        %1557 = vmatmul.f32.gmra.mxu0 %v1497
        %v1558 = vpop.f32.mrf.mxu0
        %v1559 = vadd.f32 0.0, %v1558
        %1560 = vmatmul.f32.gmra.mxu0 %v1500
        %v1561 = vpop.f32.mrf.mxu0
        %v1562 = vadd.f32 0.0, %v1561
        %1563 = vdwg.mxu0
        %1564 = vmatpush.msra.mxu0 0.0
        %1565 = vmatpush.msra.mxu0 0.0
        %1566 = vmatpush.msra.mxu0 0.0
        %1567 = vmatpush.msra.mxu0 0.0
        %1568 = vmatpush.msra.mxu0 0.0
        %1569 = vmatpush.msra.mxu0 0.0
        %1570 = vmatpush.msra.mxu0 0.0
        %1571 = vmatpush.msra.mxu0 0.0
        %1572 = vmatpush.msra.mxu0 %v1540
        %1573 = vmatpush.msra.mxu0 %v1538
        %1574 = vmatpush.msra.mxu0 %v1536
        %1575 = vmatpush.msra.mxu0 %v1534
        %1576 = vmatpush.msra.mxu0 %v1532
        %1577 = vmatpush.msra.mxu0 %v1530
        %1578 = vmatpush.msra.mxu0 %v1528
        %1579 = vmatpush.msra.mxu0 %v1526
        %1580 = vmatmul.f32.gmra.mxu0 %v1497
        %v1581 = vpop.f32.mrf.mxu0
        %v1582 = vadd.f32 0.0, %v1581
        %1583 = vmatmul.f32.gmra.mxu0 %v1500
        %v1584 = vpop.f32.mrf.mxu0
        %v1585 = vadd.f32 0.0, %v1584
        %1586 = vdwg.mxu0
        %1589 = vrot.lane.b32.xlu0 %v1520, 64
        %v1590 = vpop.permute.xlu0 %1589
        %1591 = vrot.lane.b32.xlu0 %v1523, 64
        %v1592 = vpop.permute.xlu0 %1591
        %vm1593 = vcmask 130048
        %v1594 = vsel %vm1593, %v1520, 0
        %v1596 = vsel %vm1593, %v1523, 0
        %v1598 = vsel %vm1593, %v1590, 0
        %v1600 = vsel %vm1593, %v1592, 0
        %1602 = vmatpush.xpose.msra.mxu0 0.0
        %1603 = vmatpush.xpose.msra.mxu0 0.0
        %1604 = vmatpush.xpose.msra.mxu0 0.0
        %1605 = vmatpush.xpose.msra.mxu0 0.0
        %1606 = vmatpush.xpose.msra.mxu0 0.0
        %1607 = vmatpush.xpose.msra.mxu0 0.0
        %1608 = vmatpush.xpose.msra.mxu0 0.0
        %1609 = vmatpush.xpose.msra.mxu0 0.0
        %1610 = vmatpush.xpose.msra.mxu0 0.0
        %1611 = vmatpush.xpose.msra.mxu0 0.0
        %1612 = vmatpush.xpose.msra.mxu0 0.0
        %1613 = vmatpush.xpose.msra.mxu0 0.0
        %1614 = vmatpush.xpose.msra.mxu0 0.0
        %1615 = vmatpush.xpose.msra.mxu0 0.0
        %1616 = vmatpush.xpose.msra.mxu0 %v1600
        %1617 = vmatpush.xpose.msra.mxu0 %v1598
        %1618 = vmatmul.f32.gmra.mxu0 %v1594
        %v1619 = vpop.f32.mrf.mxu0
        %v1620 = vadd.f32 0.0, %v1619
        %1621 = vmatmul.f32.gmra.mxu0 %v1596
        %v1622 = vpop.f32.mrf.mxu0
        %v1623 = vadd.f32 0.0, %v1622
        %1624 = vdwg.mxu0
        %v1625 = vmul.f32 %v1620, 0.25
        %v1626 = vmul.f32 %v1623, 0.25
        %v1627 = vadd.f32 %v1625, %v1143
        %v1628 = vadd.f32 %v1626, %v1143
        %v1629 = vsel %vm1593, %v1627, -inf
        %1630 = vmax.xlane.f32.xlu0 %v1629
        %v1631 = vpop.xlane.xlu0 %1630
        %v1632 = vsel %vm1593, %v1628, -inf
        %1633 = vmax.xlane.f32.xlu0 %v1632
        %v1634 = vpop.xlane.xlu0 %1633
        %v1635 = vsub.f32 %v1627, %v1631
        %v1636 = vsub.f32 %v1628, %v1634
        %v1637 = vmul.f32 %v1635, 1.442695
        %v1638 = vpow.pop %v1637
        %v1639 = vmul.f32 %v1636, 1.442695
        %v1640 = vpow.pop %v1639
        %v1641 = vsel %vm1593, %v1638, 0.0
        %1642 = vadd.xlane.f32.xlu0 %v1641
        %v1643 = vpop.xlane.xlu0 %1642
        %v1644 = vsel %vm1593, %v1640, 0.0
        %1645 = vadd.xlane.f32.xlu0 %v1644
        %v1646 = vpop.xlane.xlu0 %1645
        %v1647 = vrcp.pop %v1643
        %v1648 = vmul.f32 %v1643, %v1647
        %v1649 = vsub.f32 1.0, %v1648
        %v1650 = vmul.f32 %v1647, %v1649
        %v1651 = vadd.f32 %v1647, %v1650
        %vm1652 = vweird.f32 %v1643
        %vm1653 = vweird.f32 %v1647
        %vm1654 = vmor %vm1652, %vm1653
        %v1655 = vsel %vm1654, %v1647, %v1651
        %v1656 = vand.u32 2147483647, %v1643
        %vm1657 = vcmp.eq.f32.partialorder %v1656, 8.507059e+37
        %v1658 = vand.u32 %v1643, 2147483648
        %v1659 = vor.u32 1.1754944e-38, %v1658
        %v1660 = vsel %vm1657, %v1659, %v1655
        %v1661 = vmul.f32 %v1638, %v1660
        %v1662 = vrcp.pop %v1646
        %v1663 = vmul.f32 %v1646, %v1662
        %v1664 = vsub.f32 1.0, %v1663
        %v1665 = vmul.f32 %v1662, %v1664
        %v1666 = vadd.f32 %v1662, %v1665
        %vm1667 = vweird.f32 %v1646
        %vm1668 = vweird.f32 %v1662
        %vm1669 = vmor %vm1667, %vm1668
        %v1670 = vsel %vm1669, %v1662, %v1666
        %v1671 = vand.u32 2147483647, %v1646
        %vm1672 = vcmp.eq.f32.partialorder %v1671, 8.507059e+37
        %v1673 = vand.u32 %v1646, 2147483648
        %v1674 = vor.u32 1.1754944e-38, %v1673
        %v1675 = vsel %vm1672, %v1674, %v1670
        %v1676 = vmul.f32 %v1640, %v1675
        %1677 = vrot.lane.b32.xlu0 %v1520, 112
        %v1678 = vpop.permute.xlu0 %1677
        %1679 = vrot.lane.b32.xlu0 %v1523, 112
        %v1680 = vpop.permute.xlu0 %1679
        %1681 = vrot.lane.b32.xlu0 %v1520, 48
        %v1682 = vpop.permute.xlu0 %1681
        %1683 = vrot.lane.b32.xlu0 %v1523, 48
        %v1684 = vpop.permute.xlu0 %1683
        %v1685 = vsel %vm1593, %v1678, 0
        %v1687 = vsel %vm1593, %v1680, 0
        %v1689 = vsel %vm1593, %v1682, 0
        %v1691 = vsel %vm1593, %v1684, 0
        %1693 = vmatpush.xpose.msra.mxu0 0.0
        %1694 = vmatpush.xpose.msra.mxu0 0.0
        %1695 = vmatpush.xpose.msra.mxu0 0.0
        %1696 = vmatpush.xpose.msra.mxu0 0.0
        %1697 = vmatpush.xpose.msra.mxu0 0.0
        %1698 = vmatpush.xpose.msra.mxu0 0.0
        %1699 = vmatpush.xpose.msra.mxu0 0.0
        %1700 = vmatpush.xpose.msra.mxu0 0.0
        %1701 = vmatpush.xpose.msra.mxu0 0.0
        %1702 = vmatpush.xpose.msra.mxu0 0.0
        %1703 = vmatpush.xpose.msra.mxu0 0.0
        %1704 = vmatpush.xpose.msra.mxu0 0.0
        %1705 = vmatpush.xpose.msra.mxu0 0.0
        %1706 = vmatpush.xpose.msra.mxu0 0.0
        %1707 = vmatpush.xpose.msra.mxu0 %v1691
        %1708 = vmatpush.xpose.msra.mxu0 %v1689
        %1709 = vmatmul.f32.gmra.mxu0 %v1685
        %v1710 = vpop.f32.mrf.mxu0
        %v1711 = vadd.f32 0.0, %v1710
        %1712 = vmatmul.f32.gmra.mxu0 %v1687
        %v1713 = vpop.f32.mrf.mxu0
        %v1714 = vadd.f32 0.0, %v1713
        %1715 = vdwg.mxu0
        %v1716 = vmul.f32 %v1711, 0.25
        %v1717 = vmul.f32 %v1714, 0.25
        %v1718 = vadd.f32 %v1716, %v1143
        %v1719 = vadd.f32 %v1717, %v1143
        %v1720 = vsel %vm1593, %v1718, -inf
        %1721 = vmax.xlane.f32.xlu0 %v1720
        %v1722 = vpop.xlane.xlu0 %1721
        %v1723 = vsel %vm1593, %v1719, -inf
        %1724 = vmax.xlane.f32.xlu0 %v1723
        %v1725 = vpop.xlane.xlu0 %1724
        %v1726 = vsub.f32 %v1718, %v1722
        %v1727 = vsub.f32 %v1719, %v1725
        %v1728 = vmul.f32 %v1726, 1.442695
        %v1729 = vpow.pop %v1728
        %v1730 = vmul.f32 %v1727, 1.442695
        %v1731 = vpow.pop %v1730
        %v1732 = vsel %vm1593, %v1729, 0.0
        %1733 = vadd.xlane.f32.xlu0 %v1732
        %v1734 = vpop.xlane.xlu0 %1733
        %v1735 = vsel %vm1593, %v1731, 0.0
        %1736 = vadd.xlane.f32.xlu0 %v1735
        %v1737 = vpop.xlane.xlu0 %1736
        %v1738 = vrcp.pop %v1734
        %v1739 = vmul.f32 %v1734, %v1738
        %v1740 = vsub.f32 1.0, %v1739
        %v1741 = vmul.f32 %v1738, %v1740
        %v1742 = vadd.f32 %v1738, %v1741
        %vm1743 = vweird.f32 %v1734
        %vm1744 = vweird.f32 %v1738
        %vm1745 = vmor %vm1743, %vm1744
        %v1746 = vsel %vm1745, %v1738, %v1742
        %v1747 = vand.u32 2147483647, %v1734
        %vm1748 = vcmp.eq.f32.partialorder %v1747, 8.507059e+37
        %v1749 = vand.u32 %v1734, 2147483648
        %v1750 = vor.u32 1.1754944e-38, %v1749
        %v1751 = vsel %vm1748, %v1750, %v1746
        %v1752 = vmul.f32 %v1729, %v1751
        %v1753 = vrcp.pop %v1737
        %v1754 = vmul.f32 %v1737, %v1753
        %v1755 = vsub.f32 1.0, %v1754
        %v1756 = vmul.f32 %v1753, %v1755
        %v1757 = vadd.f32 %v1753, %v1756
        %vm1758 = vweird.f32 %v1737
        %vm1759 = vweird.f32 %v1753
        %vm1760 = vmor %vm1758, %vm1759
        %v1761 = vsel %vm1760, %v1753, %v1757
        %v1762 = vand.u32 2147483647, %v1737
        %vm1763 = vcmp.eq.f32.partialorder %v1762, 8.507059e+37
        %v1764 = vand.u32 %v1737, 2147483648
        %v1765 = vor.u32 1.1754944e-38, %v1764
        %v1766 = vsel %vm1763, %v1765, %v1761
        %v1767 = vmul.f32 %v1731, %v1766
        %1770 = vrot.lane.b32.xlu0 %v1559, 64
        %v1771 = vpop.permute.xlu0 %1770
        %1772 = vrot.lane.b32.xlu0 %v1562, 64
        %v1773 = vpop.permute.xlu0 %1772
        %v1777 = vsel %vm1593, %v1752, 0
        %v1780 = vsel %vm1593, %v1767, 0
        %1782 = vmatpush.msra.mxu0 0.0
        %1783 = vmatpush.msra.mxu0 0.0
        %1784 = vmatpush.msra.mxu0 0.0
        %1785 = vmatpush.msra.mxu0 0.0
        %1786 = vmatpush.msra.mxu0 0.0
        %1787 = vmatpush.msra.mxu0 0.0
        %1788 = vmatpush.msra.mxu0 0.0
        %1789 = vmatpush.msra.mxu0 0.0
        %1790 = vmatpush.msra.mxu0 0.0
        %1791 = vmatpush.msra.mxu0 0.0
        %1792 = vmatpush.msra.mxu0 0.0
        %1793 = vmatpush.msra.mxu0 0.0
        %1794 = vmatpush.msra.mxu0 0.0
        %1795 = vmatpush.msra.mxu0 0.0
        %1796 = vmatpush.msra.mxu0 %v1773
        %1797 = vmatpush.msra.mxu0 %v1771
        %1798 = vmatmul.f32.gmra.mxu0 %v1777
        %v1799 = vpop.f32.mrf.mxu0
        %v1800 = vadd.f32 0.0, %v1799
        %1801 = vmatmul.f32.gmra.mxu0 %v1780
        %v1802 = vpop.f32.mrf.mxu0
        %v1803 = vadd.f32 0.0, %v1802
        %1804 = vdwg.mxu0
        %v1806 = vsel %vm1593, %v1661, 0
        %v1809 = vsel %vm1593, %v1676, 0
        %1811 = vmatpush.msra.mxu0 0.0
        %1812 = vmatpush.msra.mxu0 0.0
        %1813 = vmatpush.msra.mxu0 0.0
        %1814 = vmatpush.msra.mxu0 0.0
        %1815 = vmatpush.msra.mxu0 0.0
        %1816 = vmatpush.msra.mxu0 0.0
        %1817 = vmatpush.msra.mxu0 0.0
        %1818 = vmatpush.msra.mxu0 0.0
        %1819 = vmatpush.msra.mxu0 0.0
        %1820 = vmatpush.msra.mxu0 0.0
        %1821 = vmatpush.msra.mxu0 0.0
        %1822 = vmatpush.msra.mxu0 0.0
        %1823 = vmatpush.msra.mxu0 0.0
        %1824 = vmatpush.msra.mxu0 0.0
        %1825 = vmatpush.msra.mxu0 %v1562
        %1826 = vmatpush.msra.mxu0 %v1559
        %1827 = vmatmul.f32.gmra.mxu0 %v1806
        %v1828 = vpop.f32.mrf.mxu0
        %v1829 = vadd.f32 %v1800, %v1828
        %1830 = vmatmul.f32.gmra.mxu0 %v1809
        %v1831 = vpop.f32.mrf.mxu0
        %v1832 = vadd.f32 %v1803, %v1831
        %1833 = vdwg.mxu0
        %1834 = vrot.lane.b32.xlu0 %v1520, 96
        %v1835 = vpop.permute.xlu0 %1834
        %1836 = vrot.lane.b32.xlu0 %v1523, 96
        %v1837 = vpop.permute.xlu0 %1836
        %1838 = vrot.lane.b32.xlu0 %v1520, 32
        %v1839 = vpop.permute.xlu0 %1838
        %1840 = vrot.lane.b32.xlu0 %v1523, 32
        %v1841 = vpop.permute.xlu0 %1840
        %v1842 = vsel %vm1593, %v1835, 0
        %v1844 = vsel %vm1593, %v1837, 0
        %v1846 = vsel %vm1593, %v1839, 0
        %v1848 = vsel %vm1593, %v1841, 0
        %1850 = vmatpush.xpose.msra.mxu0 0.0
        %1851 = vmatpush.xpose.msra.mxu0 0.0
        %1852 = vmatpush.xpose.msra.mxu0 0.0
        %1853 = vmatpush.xpose.msra.mxu0 0.0
        %1854 = vmatpush.xpose.msra.mxu0 0.0
        %1855 = vmatpush.xpose.msra.mxu0 0.0
        %1856 = vmatpush.xpose.msra.mxu0 0.0
        %1857 = vmatpush.xpose.msra.mxu0 0.0
        %1858 = vmatpush.xpose.msra.mxu0 0.0
        %1859 = vmatpush.xpose.msra.mxu0 0.0
        %1860 = vmatpush.xpose.msra.mxu0 0.0
        %1861 = vmatpush.xpose.msra.mxu0 0.0
        %1862 = vmatpush.xpose.msra.mxu0 0.0
        %1863 = vmatpush.xpose.msra.mxu0 0.0
        %1864 = vmatpush.xpose.msra.mxu0 %v1848
        %1865 = vmatpush.xpose.msra.mxu0 %v1846
        %1866 = vmatmul.f32.gmra.mxu0 %v1842
        %v1867 = vpop.f32.mrf.mxu0
        %v1868 = vadd.f32 0.0, %v1867
        %1869 = vmatmul.f32.gmra.mxu0 %v1844
        %v1870 = vpop.f32.mrf.mxu0
        %v1871 = vadd.f32 0.0, %v1870
        %1872 = vdwg.mxu0
        %v1873 = vmul.f32 %v1868, 0.25
        %v1874 = vmul.f32 %v1871, 0.25
        %v1875 = vadd.f32 %v1873, %v1143
        %v1876 = vadd.f32 %v1874, %v1143
        %v1877 = vsel %vm1593, %v1875, -inf
        %1878 = vmax.xlane.f32.xlu0 %v1877
        %v1879 = vpop.xlane.xlu0 %1878
        %v1880 = vsel %vm1593, %v1876, -inf
        %1881 = vmax.xlane.f32.xlu0 %v1880
        %v1882 = vpop.xlane.xlu0 %1881
        %v1883 = vsub.f32 %v1875, %v1879
        %v1884 = vsub.f32 %v1876, %v1882
        %v1885 = vmul.f32 %v1883, 1.442695
        %v1886 = vpow.pop %v1885
        %v1887 = vmul.f32 %v1884, 1.442695
        %v1888 = vpow.pop %v1887
        %v1889 = vsel %vm1593, %v1886, 0.0
        %1890 = vadd.xlane.f32.xlu0 %v1889
        %v1891 = vpop.xlane.xlu0 %1890
        %v1892 = vsel %vm1593, %v1888, 0.0
        %1893 = vadd.xlane.f32.xlu0 %v1892
        %v1894 = vpop.xlane.xlu0 %1893
        %v1895 = vrcp.pop %v1891
        %v1896 = vmul.f32 %v1891, %v1895
        %v1897 = vsub.f32 1.0, %v1896
        %v1898 = vmul.f32 %v1895, %v1897
        %v1899 = vadd.f32 %v1895, %v1898
        %vm1900 = vweird.f32 %v1891
        %vm1901 = vweird.f32 %v1895
        %vm1902 = vmor %vm1900, %vm1901
        %v1903 = vsel %vm1902, %v1895, %v1899
        %v1904 = vand.u32 2147483647, %v1891
        %vm1905 = vcmp.eq.f32.partialorder %v1904, 8.507059e+37
        %v1906 = vand.u32 %v1891, 2147483648
        %v1907 = vor.u32 1.1754944e-38, %v1906
        %v1908 = vsel %vm1905, %v1907, %v1903
        %v1909 = vmul.f32 %v1886, %v1908
        %v1910 = vrcp.pop %v1894
        %v1911 = vmul.f32 %v1894, %v1910
        %v1912 = vsub.f32 1.0, %v1911
        %v1913 = vmul.f32 %v1910, %v1912
        %v1914 = vadd.f32 %v1910, %v1913
        %vm1915 = vweird.f32 %v1894
        %vm1916 = vweird.f32 %v1910
        %vm1917 = vmor %vm1915, %vm1916
        %v1918 = vsel %vm1917, %v1910, %v1914
        %v1919 = vand.u32 2147483647, %v1894
        %vm1920 = vcmp.eq.f32.partialorder %v1919, 8.507059e+37
        %v1921 = vand.u32 %v1894, 2147483648
        %v1922 = vor.u32 1.1754944e-38, %v1921
        %v1923 = vsel %vm1920, %v1922, %v1918
        %v1924 = vmul.f32 %v1888, %v1923
        %v1926 = vsel %vm1593, %v1909, 0
        %v1929 = vsel %vm1593, %v1924, 0
        %1931 = vmatpush.msra.mxu0 0.0
        %1932 = vmatpush.msra.mxu0 0.0
        %1933 = vmatpush.msra.mxu0 0.0
        %1934 = vmatpush.msra.mxu0 0.0
        %1935 = vmatpush.msra.mxu0 0.0
        %1936 = vmatpush.msra.mxu0 0.0
        %1937 = vmatpush.msra.mxu0 0.0
        %1938 = vmatpush.msra.mxu0 0.0
        %1939 = vmatpush.msra.mxu0 0.0
        %1940 = vmatpush.msra.mxu0 0.0
        %1941 = vmatpush.msra.mxu0 0.0
        %1942 = vmatpush.msra.mxu0 0.0
        %1943 = vmatpush.msra.mxu0 0.0
        %1944 = vmatpush.msra.mxu0 0.0
        %1945 = vmatpush.msra.mxu0 %v1585
        %1946 = vmatpush.msra.mxu0 %v1582
        %1947 = vmatmul.f32.gmra.mxu0 %v1926
        %v1948 = vpop.f32.mrf.mxu0
        %v1949 = vadd.f32 0.0, %v1948
        %1950 = vmatmul.f32.gmra.mxu0 %v1929
        %v1951 = vpop.f32.mrf.mxu0
        %v1952 = vadd.f32 0.0, %v1951
        %1953 = vdwg.mxu0
        %v1954 = vadd.f32 %v1829, %v1949
        %v1955 = vadd.f32 %v1832, %v1952
        %1956 = vrot.lane.b32.xlu0 %v1520, 80
        %v1957 = vpop.permute.xlu0 %1956
        %1958 = vrot.lane.b32.xlu0 %v1523, 80
        %v1959 = vpop.permute.xlu0 %1958
        %1960 = vrot.lane.b32.xlu0 %v1520, 16
        %v1961 = vpop.permute.xlu0 %1960
        %1962 = vrot.lane.b32.xlu0 %v1523, 16
        %v1963 = vpop.permute.xlu0 %1962
        %v1964 = vsel %vm1593, %v1957, 0
        %v1966 = vsel %vm1593, %v1959, 0
        %v1968 = vsel %vm1593, %v1961, 0
        %v1970 = vsel %vm1593, %v1963, 0
        %1972 = vmatpush.xpose.msra.mxu0 0.0
        %1973 = vmatpush.xpose.msra.mxu0 0.0
        %1974 = vmatpush.xpose.msra.mxu0 0.0
        %1975 = vmatpush.xpose.msra.mxu0 0.0
        %1976 = vmatpush.xpose.msra.mxu0 0.0
        %1977 = vmatpush.xpose.msra.mxu0 0.0
        %1978 = vmatpush.xpose.msra.mxu0 0.0
        %1979 = vmatpush.xpose.msra.mxu0 0.0
        %1980 = vmatpush.xpose.msra.mxu0 0.0
        %1981 = vmatpush.xpose.msra.mxu0 0.0
        %1982 = vmatpush.xpose.msra.mxu0 0.0
        %1983 = vmatpush.xpose.msra.mxu0 0.0
        %1984 = vmatpush.xpose.msra.mxu0 0.0
        %1985 = vmatpush.xpose.msra.mxu0 0.0
        %1986 = vmatpush.xpose.msra.mxu0 %v1970
        %1987 = vmatpush.xpose.msra.mxu0 %v1968
        %1988 = vmatmul.f32.gmra.mxu0 %v1964
        %v1989 = vpop.f32.mrf.mxu0
        %v1990 = vadd.f32 0.0, %v1989
        %1991 = vmatmul.f32.gmra.mxu0 %v1966
        %v1992 = vpop.f32.mrf.mxu0
        %v1993 = vadd.f32 0.0, %v1992
        %1994 = vdwg.mxu0
        %v1995 = vmul.f32 %v1990, 0.25
        %v1996 = vmul.f32 %v1993, 0.25
        %v1997 = vadd.f32 %v1995, %v1143
        %v1998 = vadd.f32 %v1996, %v1143
        %v1999 = vsel %vm1593, %v1997, -inf
        %2000 = vmax.xlane.f32.xlu0 %v1999
        %v2001 = vpop.xlane.xlu0 %2000
        %v2002 = vsel %vm1593, %v1998, -inf
        %2003 = vmax.xlane.f32.xlu0 %v2002
        %v2004 = vpop.xlane.xlu0 %2003
        %v2005 = vsub.f32 %v1997, %v2001
        %v2006 = vsub.f32 %v1998, %v2004
        %v2007 = vmul.f32 %v2005, 1.442695
        %v2008 = vpow.pop %v2007
        %v2009 = vmul.f32 %v2006, 1.442695
        %v2010 = vpow.pop %v2009
        %v2011 = vsel %vm1593, %v2008, 0.0
        %2012 = vadd.xlane.f32.xlu0 %v2011
        %v2013 = vpop.xlane.xlu0 %2012
        %v2014 = vsel %vm1593, %v2010, 0.0
        %2015 = vadd.xlane.f32.xlu0 %v2014
        %v2016 = vpop.xlane.xlu0 %2015
        %v2017 = vrcp.pop %v2013
        %v2018 = vmul.f32 %v2013, %v2017
        %v2019 = vsub.f32 1.0, %v2018
        %v2020 = vmul.f32 %v2017, %v2019
        %v2021 = vadd.f32 %v2017, %v2020
        %vm2022 = vweird.f32 %v2013
        %vm2023 = vweird.f32 %v2017
        %vm2024 = vmor %vm2022, %vm2023
        %v2025 = vsel %vm2024, %v2017, %v2021
        %v2026 = vand.u32 2147483647, %v2013
        %vm2027 = vcmp.eq.f32.partialorder %v2026, 8.507059e+37
        %v2028 = vand.u32 %v2013, 2147483648
        %v2029 = vor.u32 1.1754944e-38, %v2028
        %v2030 = vsel %vm2027, %v2029, %v2025
        %v2031 = vmul.f32 %v2008, %v2030
        %v2032 = vrcp.pop %v2016
        %v2033 = vmul.f32 %v2016, %v2032
        %v2034 = vsub.f32 1.0, %v2033
        %v2035 = vmul.f32 %v2032, %v2034
        %v2036 = vadd.f32 %v2032, %v2035
        %vm2037 = vweird.f32 %v2016
        %vm2038 = vweird.f32 %v2032
        %vm2039 = vmor %vm2037, %vm2038
        %v2040 = vsel %vm2039, %v2032, %v2036
        %v2041 = vand.u32 2147483647, %v2016
        %vm2042 = vcmp.eq.f32.partialorder %v2041, 8.507059e+37
        %v2043 = vand.u32 %v2016, 2147483648
        %v2044 = vor.u32 1.1754944e-38, %v2043
        %v2045 = vsel %vm2042, %v2044, %v2040
        %v2046 = vmul.f32 %v2010, %v2045
        %2049 = vrot.lane.b32.xlu0 %v1582, 64
        %v2050 = vpop.permute.xlu0 %2049
        %2051 = vrot.lane.b32.xlu0 %v1585, 64
        %v2052 = vpop.permute.xlu0 %2051
        %v2056 = vsel %vm1593, %v2031, 0
        %v2059 = vsel %vm1593, %v2046, 0
        %2061 = vmatpush.msra.mxu0 0.0
        %2062 = vmatpush.msra.mxu0 0.0
        %2063 = vmatpush.msra.mxu0 0.0
        %2064 = vmatpush.msra.mxu0 0.0
        %2065 = vmatpush.msra.mxu0 0.0
        %2066 = vmatpush.msra.mxu0 0.0
        %2067 = vmatpush.msra.mxu0 0.0
        %2068 = vmatpush.msra.mxu0 0.0
        %2069 = vmatpush.msra.mxu0 0.0
        %2070 = vmatpush.msra.mxu0 0.0
        %2071 = vmatpush.msra.mxu0 0.0
        %2072 = vmatpush.msra.mxu0 0.0
        %2073 = vmatpush.msra.mxu0 0.0
        %2074 = vmatpush.msra.mxu0 0.0
        %2075 = vmatpush.msra.mxu0 %v2052
        %2076 = vmatpush.msra.mxu0 %v2050
        %2077 = vmatmul.f32.gmra.mxu0 %v2056
        %v2078 = vpop.f32.mrf.mxu0
        %v2079 = vadd.f32 0.0, %v2078
        %2080 = vmatmul.f32.gmra.mxu0 %v2059
        %v2081 = vpop.f32.mrf.mxu0
        %v2082 = vadd.f32 0.0, %v2081
        %2083 = vdwg.mxu0
        %v2084 = vadd.f32 %v1954, %v2079
        %v2085 = vadd.f32 %v1955, %v2082
        %v2086 = vadd.f32 %v1426, %v2084
        %v2087 = vadd.f32 %v1427, %v2085
        %v2088 = vld [vmem:[%s31] sm:$0x1]
        %v2090 = vperm.slane %v2088, 0
        %v2092 = vadd.f32 %v2086, %v2090
        %v2093 = vadd.f32 %v2087, %v2090
        %v2094 = vld [vmem:[%s33] sm:$0x1]
        %v2095 = vld [vmem:[%s35] sm:$0x1]
        %v2096 = vsel %vm1238, %v2092, 0.0
        %2097 = vadd.xlane.f32.xlu0 %v2096
        %v2098 = vpop.xlane.xlu0 %2097
        %v2099 = vsel %vm1238, %v2093, 0.0
        %2100 = vadd.xlane.f32.xlu0 %v2099
        %v2101 = vpop.xlane.xlu0 %2100
        %v2102 = vmul.f32 %v2098, %v1251
        %v2103 = vmul.f32 %v2101, %v1251
        %v2104 = vsub.f32 %v2092, %v2102
        %v2105 = vsub.f32 %v2093, %v2103
        %v2106 = vmul.f32 %v2104, %v2104
        %v2107 = vmul.f32 %v2105, %v2105
        %v2108 = vsel %vm1238, %v2106, 0.0
        %2109 = vadd.xlane.f32.xlu0 %v2108
        %v2110 = vpop.xlane.xlu0 %2109
        %v2111 = vsel %vm1238, %v2107, 0.0
        %2112 = vadd.xlane.f32.xlu0 %v2111
        %v2113 = vpop.xlane.xlu0 %2112
        %v2114 = vmul.f32 %v2110, %v1251
        %v2115 = vmul.f32 %v2113, %v1251
        %v2116 = vadd.f32 %v2114, 1e-05
        %v2117 = vadd.f32 %v2115, 1e-05
        %v2118 = vrsqrt.pop %v2116
        %v2119 = vmul.f32 %v2118, %v2116
        %v2120 = vmul.f32 %v2119, %v2118
        %v2121 = vmul.f32 0.5, %v2120
        %v2122 = vsub.f32 1.5, %v2121
        %v2123 = vmul.f32 %v2118, %v2122
        %vm2124 = vweird.f32 %v2116
        %vm2125 = vweird.f32 %v2118
        %vm2126 = vmor %vm2124, %vm2125
        %v2127 = vsel %vm2126, %v2118, %v2123
        %v2128 = vrsqrt.pop %v2117
        %v2129 = vmul.f32 %v2128, %v2117
        %v2130 = vmul.f32 %v2129, %v2128
        %v2131 = vmul.f32 0.5, %v2130
        %v2132 = vsub.f32 1.5, %v2131
        %v2133 = vmul.f32 %v2128, %v2132
        %vm2134 = vweird.f32 %v2117
        %vm2135 = vweird.f32 %v2128
        %vm2136 = vmor %vm2134, %vm2135
        %v2137 = vsel %vm2136, %v2128, %v2133
        %v2138 = vmul.f32 %v2104, %v2127
        %v2139 = vmul.f32 %v2105, %v2137
        %v2141 = vperm.slane %v2094, 0
        %v2143 = vmul.f32 %v2138, %v2141
        %v2144 = vmul.f32 %v2139, %v2141
        %v2146 = vperm.slane %v2095, 0
        %v2148 = vadd.f32 %v2143, %v2146
        %v2149 = vadd.f32 %v2144, %v2146
        %v2150 = vld [vmem:[%s37] sm:$0xff]
        %v2151 = vld [vmem:[%s37 + $0x8] sm:$0xff]
        %v2152 = vld [vmem:[%s37 + $0x10] sm:$0xff]
        %v2153 = vld [vmem:[%s37 + $0x18] sm:$0xff]
        %v2154 = vld [vmem:[%s37 + $0x20] sm:$0xff]
        %v2155 = vld [vmem:[%s37 + $0x28] sm:$0xff]
        %v2156 = vld [vmem:[%s37 + $0x30] sm:$0xff]
        %v2157 = vld [vmem:[%s37 + $0x38] sm:$0xff]
        %v2158 = vld [vmem:[%s39] sm:$0x1]
        %v2160 = vperm.slane %v2158, 0
        %v2163 = vsel %vm1238, %v2148, 0
        %v2166 = vsel %vm1238, %v2149, 0
        %2168 = vmatpush.msra.mxu0 0.0
        %2169 = vmatpush.msra.mxu0 0.0
        %2170 = vmatpush.msra.mxu0 0.0
        %2171 = vmatpush.msra.mxu0 0.0
        %2172 = vmatpush.msra.mxu0 0.0
        %2173 = vmatpush.msra.mxu0 0.0
        %2174 = vmatpush.msra.mxu0 0.0
        %2175 = vmatpush.msra.mxu0 0.0
        %2176 = vmatpush.msra.mxu0 %v2157
        %2177 = vmatpush.msra.mxu0 %v2156
        %2178 = vmatpush.msra.mxu0 %v2155
        %2179 = vmatpush.msra.mxu0 %v2154
        %2180 = vmatpush.msra.mxu0 %v2153
        %2181 = vmatpush.msra.mxu0 %v2152
        %2182 = vmatpush.msra.mxu0 %v2151
        %2183 = vmatpush.msra.mxu0 %v2150
        %2184 = vmatmul.f32.gmra.mxu0 %v2163
        %v2185 = vpop.f32.mrf.mxu0
        %v2186 = vadd.f32 %v2160, %v2185
        %2187 = vmatmul.f32.gmra.mxu0 %v2166
        %v2188 = vpop.f32.mrf.mxu0
        %v2189 = vadd.f32 %v2160, %v2188
        %2190 = vdwg.mxu0
        %v2191 = vld [vmem:[%s41] sm:$0xff]
        %v2192 = vld [vmem:[%s41 + $0x8] sm:$0xff]
        %v2193 = vld [vmem:[%s41 + $0x10] sm:$0xff]
        %v2194 = vld [vmem:[%s41 + $0x18] sm:$0xff]
        %v2195 = vld [vmem:[%s41 + $0x20] sm:$0xff]
        %v2196 = vld [vmem:[%s41 + $0x28] sm:$0xff]
        %v2197 = vld [vmem:[%s41 + $0x30] sm:$0xff]
        %v2198 = vld [vmem:[%s41 + $0x38] sm:$0xff]
        %v2199 = vld [vmem:[%s43] sm:$0x1]
        %v2201 = vperm.slane %v2199, 0
        %2203 = vmatpush.msra.mxu0 0.0
        %2204 = vmatpush.msra.mxu0 0.0
        %2205 = vmatpush.msra.mxu0 0.0
        %2206 = vmatpush.msra.mxu0 0.0
        %2207 = vmatpush.msra.mxu0 0.0
        %2208 = vmatpush.msra.mxu0 0.0
        %2209 = vmatpush.msra.mxu0 0.0
        %2210 = vmatpush.msra.mxu0 0.0
        %2211 = vmatpush.msra.mxu0 %v2198
        %2212 = vmatpush.msra.mxu0 %v2197
        %2213 = vmatpush.msra.mxu0 %v2196
        %2214 = vmatpush.msra.mxu0 %v2195
        %2215 = vmatpush.msra.mxu0 %v2194
        %2216 = vmatpush.msra.mxu0 %v2193
        %2217 = vmatpush.msra.mxu0 %v2192
        %2218 = vmatpush.msra.mxu0 %v2191
        %2219 = vmatmul.f32.gmra.mxu0 %v2163
        %v2220 = vpop.f32.mrf.mxu0
        %v2221 = vadd.f32 %v2201, %v2220
        %2222 = vmatmul.f32.gmra.mxu0 %v2166
        %v2223 = vpop.f32.mrf.mxu0
        %v2224 = vadd.f32 %v2201, %v2223
        %2225 = vdwg.mxu0
        %v2226 = vxor.u32 %v2221, 2147483648
        %v2227 = vxor.u32 %v2224, 2147483648
        %v2228 = vmul.f32 %v2226, 1.442695
        %v2229 = vpow.pop %v2228
        %v2230 = vmul.f32 %v2227, 1.442695
        %v2231 = vpow.pop %v2230
        %v2232 = vadd.f32 %v2229, 1.0
        %v2233 = vadd.f32 %v2231, 1.0
        %v2234 = vrcp.pop %v2232
        %v2235 = vmul.f32 %v2232, %v2234
        %v2236 = vsub.f32 1.0, %v2235
        %v2237 = vmul.f32 %v2234, %v2236
        %v2238 = vadd.f32 %v2234, %v2237
        %vm2239 = vweird.f32 %v2232
        %vm2240 = vweird.f32 %v2234
        %vm2241 = vmor %vm2239, %vm2240
        %v2242 = vsel %vm2241, %v2234, %v2238
        %v2243 = vand.u32 2147483647, %v2232
        %vm2244 = vcmp.eq.f32.partialorder %v2243, 8.507059e+37
        %v2245 = vand.u32 %v2232, 2147483648
        %v2246 = vor.u32 1.1754944e-38, %v2245
        %v2247 = vsel %vm2244, %v2246, %v2242
        %v2248 = vmul.f32 1.0, %v2247
        %v2249 = vrcp.pop %v2233
        %v2250 = vmul.f32 %v2233, %v2249
        %v2251 = vsub.f32 1.0, %v2250
        %v2252 = vmul.f32 %v2249, %v2251
        %v2253 = vadd.f32 %v2249, %v2252
        %vm2254 = vweird.f32 %v2233
        %vm2255 = vweird.f32 %v2249
        %vm2256 = vmor %vm2254, %vm2255
        %v2257 = vsel %vm2256, %v2249, %v2253
        %v2258 = vand.u32 2147483647, %v2233
        %vm2259 = vcmp.eq.f32.partialorder %v2258, 8.507059e+37
        %v2260 = vand.u32 %v2233, 2147483648
        %v2261 = vor.u32 1.1754944e-38, %v2260
        %v2262 = vsel %vm2259, %v2261, %v2257
        %v2263 = vmul.f32 1.0, %v2262
        %v2264 = vmul.f32 %v2186, %v2248
        %v2265 = vmul.f32 %v2189, %v2263
        %v2266 = vmul.f32 %v2264, %v1148
        %v2267 = vmul.f32 %v2265, %v1149
        %v2268 = vld [vmem:[%s45] sm:$0x7f]
        %v2269 = vrot.slane %v2266, 5
        %v2270 = vrot.slane %v2267, 5
        %vm2271 = vcmp.lt.s32.totalorder %v1137, 3
        %v2272 = vsel %vm2271, %v2269, %v2270
        %v2273 = vsel %vm2271, %v2270, %v2269
        %v2274 = vadd.s32 %v1137, 4294967293
        %v2275 = vadd.s32 %v1138, 4294967293
        %vm2276 = vcmp.ge.s32.totalorder %v2274, 0
        %vm2277 = vcmp.ge.s32.totalorder %v2275, 0
        %vm2278 = vcmp.lt.s32.totalorder %v2274, 16
        %vm2279 = vcmp.lt.s32.totalorder %v2275, 16
        %vm2280 = vmand %vm2276, %vm2278
        %vm2281 = vmand %vm2277, %vm2279
        %v2282 = vsel %vm2280, 1, 0
        %v2283 = vsel %vm2281, 1, 0
        %v2284 = vcvt.s32.f32 %v2282
        %v2285 = vcvt.s32.f32 %v2283
        %v2286 = vmul.f32 %v2273, %v2284
        %v2287 = vmul.f32 %v2272, %v2285
        %v2288 = vperm.slane %v2268, 0
        %v2289 = vmul.f32 %v2286, %v2288
        %v2290 = vmul.f32 %v2287, %v2288
        %v2291 = vadd.f32 %v2289, 0.0
        %v2292 = vadd.f32 %v2290, 0.0
        %v2293 = vrot.slane %v2266, 6
        %v2294 = vrot.slane %v2267, 6
        %vm2295 = vcmp.lt.s32.totalorder %v1137, 2
        %v2296 = vsel %vm2295, %v2293, %v2294
        %v2297 = vsel %vm2295, %v2294, %v2293
        %v2298 = vadd.s32 %v1137, 4294967294
        %v2299 = vadd.s32 %v1138, 4294967294
        %vm2300 = vcmp.ge.s32.totalorder %v2298, 0
        %vm2301 = vcmp.ge.s32.totalorder %v2299, 0
        %vm2302 = vcmp.lt.s32.totalorder %v2298, 16
        %vm2303 = vcmp.lt.s32.totalorder %v2299, 16
        %vm2304 = vmand %vm2300, %vm2302
        %vm2305 = vmand %vm2301, %vm2303
        %v2306 = vsel %vm2304, 1, 0
        %v2307 = vsel %vm2305, 1, 0
        %v2308 = vcvt.s32.f32 %v2306
        %v2309 = vcvt.s32.f32 %v2307
        %v2310 = vmul.f32 %v2297, %v2308
        %v2311 = vmul.f32 %v2296, %v2309
        %v2312 = vperm.slane %v2268, 1
        %v2313 = vmul.f32 %v2310, %v2312
        %v2314 = vmul.f32 %v2311, %v2312
        %v2315 = vadd.f32 %v2291, %v2313
        %v2316 = vadd.f32 %v2292, %v2314
        %v2317 = vrot.slane %v2266, 7
        %v2318 = vrot.slane %v2267, 7
        %vm2319 = vcmp.lt.s32.totalorder %v1137, 1
        %v2320 = vsel %vm2319, %v2317, %v2318
        %v2321 = vsel %vm2319, %v2318, %v2317
        %v2322 = vadd.s32 %v1137, 4294967295
        %v2323 = vadd.s32 %v1138, 4294967295
        %vm2324 = vcmp.ge.s32.totalorder %v2322, 0
        %vm2325 = vcmp.ge.s32.totalorder %v2323, 0
        %vm2326 = vcmp.lt.s32.totalorder %v2322, 16
        %vm2327 = vcmp.lt.s32.totalorder %v2323, 16
        %vm2328 = vmand %vm2324, %vm2326
        %vm2329 = vmand %vm2325, %vm2327
        %v2330 = vsel %vm2328, 1, 0
        %v2331 = vsel %vm2329, 1, 0
        %v2332 = vcvt.s32.f32 %v2330
        %v2333 = vcvt.s32.f32 %v2331
        %v2334 = vmul.f32 %v2321, %v2332
        %v2335 = vmul.f32 %v2320, %v2333
        %v2336 = vperm.slane %v2268, 2
        %v2337 = vmul.f32 %v2334, %v2336
        %v2338 = vmul.f32 %v2335, %v2336
        %v2339 = vadd.f32 %v2315, %v2337
        %v2340 = vadd.f32 %v2316, %v2338
        %v2341 = vperm.slane %v2268, 3
        %v2342 = vmul.f32 %v2266, %v2341
        %v2343 = vmul.f32 %v2267, %v2341
        %v2344 = vadd.f32 %v2339, %v2342
        %v2345 = vadd.f32 %v2340, %v2343
        %v2346 = vrot.slane %v2266, 1
        %v2347 = vrot.slane %v2267, 1
        %vm2348 = vcmp.lt.s32.totalorder %v1137, 7
        %v2349 = vsel %vm2348, %v2346, %v2347
        %v2350 = vsel %vm2348, %v2347, %v2346
        %v2351 = vadd.s32 %v1137, 1
        %v2352 = vadd.s32 %v1138, 1
        %vm2353 = vcmp.ge.s32.totalorder %v2351, 0
        %vm2354 = vcmp.ge.s32.totalorder %v2352, 0
        %vm2355 = vcmp.lt.s32.totalorder %v2351, 16
        %vm2356 = vcmp.lt.s32.totalorder %v2352, 16
        %vm2357 = vmand %vm2353, %vm2355
        %vm2358 = vmand %vm2354, %vm2356
        %v2359 = vsel %vm2357, 1, 0
        %v2360 = vsel %vm2358, 1, 0
        %v2361 = vcvt.s32.f32 %v2359
        %v2362 = vcvt.s32.f32 %v2360
        %v2363 = vmul.f32 %v2349, %v2361
        %v2364 = vmul.f32 %v2350, %v2362
        %v2365 = vperm.slane %v2268, 4
        %v2366 = vmul.f32 %v2363, %v2365
        %v2367 = vmul.f32 %v2364, %v2365
        %v2368 = vadd.f32 %v2344, %v2366
        %v2369 = vadd.f32 %v2345, %v2367
        %v2370 = vrot.slane %v2266, 2
        %v2371 = vrot.slane %v2267, 2
        %vm2372 = vcmp.lt.s32.totalorder %v1137, 6
        %v2373 = vsel %vm2372, %v2370, %v2371
        %v2374 = vsel %vm2372, %v2371, %v2370
        %v2375 = vadd.s32 %v1137, 2
        %v2376 = vadd.s32 %v1138, 2
        %vm2377 = vcmp.ge.s32.totalorder %v2375, 0
        %vm2378 = vcmp.ge.s32.totalorder %v2376, 0
        %vm2379 = vcmp.lt.s32.totalorder %v2375, 16
        %vm2380 = vcmp.lt.s32.totalorder %v2376, 16
        %vm2381 = vmand %vm2377, %vm2379
        %vm2382 = vmand %vm2378, %vm2380
        %v2383 = vsel %vm2381, 1, 0
        %v2384 = vsel %vm2382, 1, 0
        %v2385 = vcvt.s32.f32 %v2383
        %v2386 = vcvt.s32.f32 %v2384
        %v2387 = vmul.f32 %v2373, %v2385
        %v2388 = vmul.f32 %v2374, %v2386
        %v2389 = vperm.slane %v2268, 5
        %v2390 = vmul.f32 %v2387, %v2389
        %v2391 = vmul.f32 %v2388, %v2389
        %v2392 = vadd.f32 %v2368, %v2390
        %v2393 = vadd.f32 %v2369, %v2391
        %v2394 = vrot.slane %v2266, 3
        %v2395 = vrot.slane %v2267, 3
        %vm2396 = vcmp.lt.s32.totalorder %v1137, 5
        %v2397 = vsel %vm2396, %v2394, %v2395
        %v2398 = vsel %vm2396, %v2395, %v2394
        %v2399 = vadd.s32 %v1137, 3
        %v2400 = vadd.s32 %v1138, 3
        %vm2401 = vcmp.ge.s32.totalorder %v2399, 0
        %vm2402 = vcmp.ge.s32.totalorder %v2400, 0
        %vm2403 = vcmp.lt.s32.totalorder %v2399, 16
        %vm2404 = vcmp.lt.s32.totalorder %v2400, 16
        %vm2405 = vmand %vm2401, %vm2403
        %vm2406 = vmand %vm2402, %vm2404
        %v2407 = vsel %vm2405, 1, 0
        %v2408 = vsel %vm2406, 1, 0
        %v2409 = vcvt.s32.f32 %v2407
        %v2410 = vcvt.s32.f32 %v2408
        %v2411 = vmul.f32 %v2397, %v2409
        %v2412 = vmul.f32 %v2398, %v2410
        %v2413 = vperm.slane %v2268, 6
        %v2414 = vmul.f32 %v2411, %v2413
        %v2415 = vmul.f32 %v2412, %v2413
        %v2416 = vadd.f32 %v2392, %v2414
        %v2417 = vadd.f32 %v2393, %v2415
        %v2418 = vld [vmem:[%s47] sm:$0x1]
        %v2420 = vperm.slane %v2418, 0
        %v2422 = vadd.f32 %v2416, %v2420
        %v2423 = vadd.f32 %v2417, %v2420
        %v2424 = vld [vmem:[%s49] sm:$0x1]
        %v2425 = vld [vmem:[%s51] sm:$0x1]
        %v2426 = vsel %vm1238, %v2422, 0.0
        %2427 = vadd.xlane.f32.xlu0 %v2426
        %v2428 = vpop.xlane.xlu0 %2427
        %v2429 = vsel %vm1238, %v2423, 0.0
        %2430 = vadd.xlane.f32.xlu0 %v2429
        %v2431 = vpop.xlane.xlu0 %2430
        %v2432 = vmul.f32 %v2428, %v1251
        %v2433 = vmul.f32 %v2431, %v1251
        %v2434 = vsub.f32 %v2422, %v2432
        %v2435 = vsub.f32 %v2423, %v2433
        %v2436 = vmul.f32 %v2434, %v2434
        %v2437 = vmul.f32 %v2435, %v2435
        %v2438 = vsel %vm1238, %v2436, 0.0
        %2439 = vadd.xlane.f32.xlu0 %v2438
        %v2440 = vpop.xlane.xlu0 %2439
        %v2441 = vsel %vm1238, %v2437, 0.0
        %2442 = vadd.xlane.f32.xlu0 %v2441
        %v2443 = vpop.xlane.xlu0 %2442
        %v2444 = vmul.f32 %v2440, %v1251
        %v2445 = vmul.f32 %v2443, %v1251
        %v2446 = vadd.f32 %v2444, 1e-05
        %v2447 = vadd.f32 %v2445, 1e-05
        %v2448 = vrsqrt.pop %v2446
        %v2449 = vmul.f32 %v2448, %v2446
        %v2450 = vmul.f32 %v2449, %v2448
        %v2451 = vmul.f32 0.5, %v2450
        %v2452 = vsub.f32 1.5, %v2451
        %v2453 = vmul.f32 %v2448, %v2452
        %vm2454 = vweird.f32 %v2446
        %vm2455 = vweird.f32 %v2448
        %vm2456 = vmor %vm2454, %vm2455
        %v2457 = vsel %vm2456, %v2448, %v2453
        %v2458 = vrsqrt.pop %v2447
        %v2459 = vmul.f32 %v2458, %v2447
        %v2460 = vmul.f32 %v2459, %v2458
        %v2461 = vmul.f32 0.5, %v2460
        %v2462 = vsub.f32 1.5, %v2461
        %v2463 = vmul.f32 %v2458, %v2462
        %vm2464 = vweird.f32 %v2447
        %vm2465 = vweird.f32 %v2458
        %vm2466 = vmor %vm2464, %vm2465
        %v2467 = vsel %vm2466, %v2458, %v2463
        %v2468 = vmul.f32 %v2434, %v2457
        %v2469 = vmul.f32 %v2435, %v2467
        %v2471 = vperm.slane %v2424, 0
        %v2473 = vmul.f32 %v2468, %v2471
        %v2474 = vmul.f32 %v2469, %v2471
        %v2476 = vperm.slane %v2425, 0
        %v2478 = vadd.f32 %v2473, %v2476
        %v2479 = vadd.f32 %v2474, %v2476
        %v2480 = vxor.u32 %v2478, 2147483648
        %v2481 = vxor.u32 %v2479, 2147483648
        %v2482 = vmul.f32 %v2480, 1.442695
        %v2483 = vpow.pop %v2482
        %v2484 = vmul.f32 %v2481, 1.442695
        %v2485 = vpow.pop %v2484
        %v2486 = vadd.f32 %v2483, 1.0
        %v2487 = vadd.f32 %v2485, 1.0
        %v2488 = vrcp.pop %v2486
        %v2489 = vmul.f32 %v2486, %v2488
        %v2490 = vsub.f32 1.0, %v2489
        %v2491 = vmul.f32 %v2488, %v2490
        %v2492 = vadd.f32 %v2488, %v2491
        %vm2493 = vweird.f32 %v2486
        %vm2494 = vweird.f32 %v2488
        %vm2495 = vmor %vm2493, %vm2494
        %v2496 = vsel %vm2495, %v2488, %v2492
        %v2497 = vand.u32 2147483647, %v2486
        %vm2498 = vcmp.eq.f32.partialorder %v2497, 8.507059e+37
        %v2499 = vand.u32 %v2486, 2147483648
        %v2500 = vor.u32 1.1754944e-38, %v2499
        %v2501 = vsel %vm2498, %v2500, %v2496
        %v2502 = vmul.f32 1.0, %v2501
        %v2503 = vrcp.pop %v2487
        %v2504 = vmul.f32 %v2487, %v2503
        %v2505 = vsub.f32 1.0, %v2504
        %v2506 = vmul.f32 %v2503, %v2505
        %v2507 = vadd.f32 %v2503, %v2506
        %vm2508 = vweird.f32 %v2487
        %vm2509 = vweird.f32 %v2503
        %vm2510 = vmor %vm2508, %vm2509
        %v2511 = vsel %vm2510, %v2503, %v2507
        %v2512 = vand.u32 2147483647, %v2487
        %vm2513 = vcmp.eq.f32.partialorder %v2512, 8.507059e+37
        %v2514 = vand.u32 %v2487, 2147483648
        %v2515 = vor.u32 1.1754944e-38, %v2514
        %v2516 = vsel %vm2513, %v2515, %v2511
        %v2517 = vmul.f32 1.0, %v2516
        %v2518 = vmul.f32 %v2478, %v2502
        %v2519 = vmul.f32 %v2479, %v2517
        %v2520 = vld [vmem:[%s53] sm:$0xff]
        %v2521 = vld [vmem:[%s53 + $0x8] sm:$0xff]
        %v2522 = vld [vmem:[%s53 + $0x10] sm:$0xff]
        %v2523 = vld [vmem:[%s53 + $0x18] sm:$0xff]
        %v2524 = vld [vmem:[%s53 + $0x20] sm:$0xff]
        %v2525 = vld [vmem:[%s53 + $0x28] sm:$0xff]
        %v2526 = vld [vmem:[%s53 + $0x30] sm:$0xff]
        %v2527 = vld [vmem:[%s53 + $0x38] sm:$0xff]
        %v2528 = vld [vmem:[%s55] sm:$0x1]
        %v2530 = vperm.slane %v2528, 0
        %v2533 = vsel %vm1238, %v2518, 0
        %v2536 = vsel %vm1238, %v2519, 0
        %2538 = vmatpush.msra.mxu0 0.0
        %2539 = vmatpush.msra.mxu0 0.0
        %2540 = vmatpush.msra.mxu0 0.0
        %2541 = vmatpush.msra.mxu0 0.0
        %2542 = vmatpush.msra.mxu0 0.0
        %2543 = vmatpush.msra.mxu0 0.0
        %2544 = vmatpush.msra.mxu0 0.0
        %2545 = vmatpush.msra.mxu0 0.0
        %2546 = vmatpush.msra.mxu0 %v2527
        %2547 = vmatpush.msra.mxu0 %v2526
        %2548 = vmatpush.msra.mxu0 %v2525
        %2549 = vmatpush.msra.mxu0 %v2524
        %2550 = vmatpush.msra.mxu0 %v2523
        %2551 = vmatpush.msra.mxu0 %v2522
        %2552 = vmatpush.msra.mxu0 %v2521
        %2553 = vmatpush.msra.mxu0 %v2520
        %2554 = vmatmul.f32.gmra.mxu0 %v2533
        %v2555 = vpop.f32.mrf.mxu0
        %v2556 = vadd.f32 %v2530, %v2555
        %2557 = vmatmul.f32.gmra.mxu0 %v2536
        %v2558 = vpop.f32.mrf.mxu0
        %v2559 = vadd.f32 %v2530, %v2558
        %2560 = vdwg.mxu0
        %v2561 = vadd.f32 %v2092, %v2556
        %v2562 = vadd.f32 %v2093, %v2559
        %v2563 = vld [vmem:[%s57] sm:$0x1]
        %v2564 = vld [vmem:[%s59] sm:$0x1]
        %v2565 = vsel %vm1238, %v2561, 0.0
        %2566 = vadd.xlane.f32.xlu0 %v2565
        %v2567 = vpop.xlane.xlu0 %2566
        %v2568 = vsel %vm1238, %v2562, 0.0
        %2569 = vadd.xlane.f32.xlu0 %v2568
        %v2570 = vpop.xlane.xlu0 %2569
        %v2571 = vmul.f32 %v2567, %v1251
        %v2572 = vmul.f32 %v2570, %v1251
        %v2573 = vsub.f32 %v2561, %v2571
        %v2574 = vsub.f32 %v2562, %v2572
        %v2575 = vmul.f32 %v2573, %v2573
        %v2576 = vmul.f32 %v2574, %v2574
        %v2577 = vsel %vm1238, %v2575, 0.0
        %2578 = vadd.xlane.f32.xlu0 %v2577
        %v2579 = vpop.xlane.xlu0 %2578
        %v2580 = vsel %vm1238, %v2576, 0.0
        %2581 = vadd.xlane.f32.xlu0 %v2580
        %v2582 = vpop.xlane.xlu0 %2581
        %v2583 = vmul.f32 %v2579, %v1251
        %v2584 = vmul.f32 %v2582, %v1251
        %v2585 = vadd.f32 %v2583, 1e-05
        %v2586 = vadd.f32 %v2584, 1e-05
        %v2587 = vrsqrt.pop %v2585
        %v2588 = vmul.f32 %v2587, %v2585
        %v2589 = vmul.f32 %v2588, %v2587
        %v2590 = vmul.f32 0.5, %v2589
        %v2591 = vsub.f32 1.5, %v2590
        %v2592 = vmul.f32 %v2587, %v2591
        %vm2593 = vweird.f32 %v2585
        %vm2594 = vweird.f32 %v2587
        %vm2595 = vmor %vm2593, %vm2594
        %v2596 = vsel %vm2595, %v2587, %v2592
        %v2597 = vrsqrt.pop %v2586
        %v2598 = vmul.f32 %v2597, %v2586
        %v2599 = vmul.f32 %v2598, %v2597
        %v2600 = vmul.f32 0.5, %v2599
        %v2601 = vsub.f32 1.5, %v2600
        %v2602 = vmul.f32 %v2597, %v2601
        %vm2603 = vweird.f32 %v2586
        %vm2604 = vweird.f32 %v2597
        %vm2605 = vmor %vm2603, %vm2604
        %v2606 = vsel %vm2605, %v2597, %v2602
        %v2607 = vmul.f32 %v2573, %v2596
        %v2608 = vmul.f32 %v2574, %v2606
        %v2610 = vperm.slane %v2563, 0
        %v2612 = vmul.f32 %v2607, %v2610
        %v2613 = vmul.f32 %v2608, %v2610
        %v2615 = vperm.slane %v2564, 0
        %v2617 = vadd.f32 %v2612, %v2615
        %v2618 = vadd.f32 %v2613, %v2615
        %v2619 = vld [vmem:[%s61] sm:$0xff]
        %v2620 = vld [vmem:[%s61 + $0x8] sm:$0xff]
        %v2621 = vld [vmem:[%s61 + $0x10] sm:$0xff]
        %v2622 = vld [vmem:[%s61 + $0x18] sm:$0xff]
        %v2623 = vld [vmem:[%s61 + $0x20] sm:$0xff]
        %v2624 = vld [vmem:[%s61 + $0x28] sm:$0xff]
        %v2625 = vld [vmem:[%s61 + $0x30] sm:$0xff]
        %v2626 = vld [vmem:[%s61 + $0x38] sm:$0xff]
        %v2627 = vld [vmem:[%s63] sm:$0x1]
        %v2629 = vperm.slane %v2627, 0
        %v2632 = vsel %vm1238, %v2617, 0
        %v2635 = vsel %vm1238, %v2618, 0
        %2637 = vmatpush.msra.mxu0 0.0
        %2638 = vmatpush.msra.mxu0 0.0
        %2639 = vmatpush.msra.mxu0 0.0
        %2640 = vmatpush.msra.mxu0 0.0
        %2641 = vmatpush.msra.mxu0 0.0
        %2642 = vmatpush.msra.mxu0 0.0
        %2643 = vmatpush.msra.mxu0 0.0
        %2644 = vmatpush.msra.mxu0 0.0
        %2645 = vmatpush.msra.mxu0 %v2626
        %2646 = vmatpush.msra.mxu0 %v2625
        %2647 = vmatpush.msra.mxu0 %v2624
        %2648 = vmatpush.msra.mxu0 %v2623
        %2649 = vmatpush.msra.mxu0 %v2622
        %2650 = vmatpush.msra.mxu0 %v2621
        %2651 = vmatpush.msra.mxu0 %v2620
        %2652 = vmatpush.msra.mxu0 %v2619
        %2653 = vmatmul.f32.gmra.mxu0 %v2632
        %v2654 = vpop.f32.mrf.mxu0
        %v2655 = vadd.f32 %v2629, %v2654
        %2656 = vmatmul.f32.gmra.mxu0 %v2635
        %v2657 = vpop.f32.mrf.mxu0
        %v2658 = vadd.f32 %v2629, %v2657
        %2659 = vdwg.mxu0
        %v2660 = vxor.u32 %v2655, 2147483648
        %v2661 = vxor.u32 %v2658, 2147483648
        %v2662 = vmul.f32 %v2660, 1.442695
        %v2663 = vpow.pop %v2662
        %v2664 = vmul.f32 %v2661, 1.442695
        %v2665 = vpow.pop %v2664
        %v2666 = vadd.f32 %v2663, 1.0
        %v2667 = vadd.f32 %v2665, 1.0
        %v2668 = vrcp.pop %v2666
        %v2669 = vmul.f32 %v2666, %v2668
        %v2670 = vsub.f32 1.0, %v2669
        %v2671 = vmul.f32 %v2668, %v2670
        %v2672 = vadd.f32 %v2668, %v2671
        %vm2673 = vweird.f32 %v2666
        %vm2674 = vweird.f32 %v2668
        %vm2675 = vmor %vm2673, %vm2674
        %v2676 = vsel %vm2675, %v2668, %v2672
        %v2677 = vand.u32 2147483647, %v2666
        %vm2678 = vcmp.eq.f32.partialorder %v2677, 8.507059e+37
        %v2679 = vand.u32 %v2666, 2147483648
        %v2680 = vor.u32 1.1754944e-38, %v2679
        %v2681 = vsel %vm2678, %v2680, %v2676
        %v2682 = vmul.f32 1.0, %v2681
        %v2683 = vrcp.pop %v2667
        %v2684 = vmul.f32 %v2667, %v2683
        %v2685 = vsub.f32 1.0, %v2684
        %v2686 = vmul.f32 %v2683, %v2685
        %v2687 = vadd.f32 %v2683, %v2686
        %vm2688 = vweird.f32 %v2667
        %vm2689 = vweird.f32 %v2683
        %vm2690 = vmor %vm2688, %vm2689
        %v2691 = vsel %vm2690, %v2683, %v2687
        %v2692 = vand.u32 2147483647, %v2667
        %vm2693 = vcmp.eq.f32.partialorder %v2692, 8.507059e+37
        %v2694 = vand.u32 %v2667, 2147483648
        %v2695 = vor.u32 1.1754944e-38, %v2694
        %v2696 = vsel %vm2693, %v2695, %v2691
        %v2697 = vmul.f32 1.0, %v2696
        %v2698 = vmul.f32 %v2655, %v2682
        %v2699 = vmul.f32 %v2658, %v2697
        %v2700 = vld [vmem:[%s65] sm:$0xff]
        %v2701 = vld [vmem:[%s65 + $0x8] sm:$0xff]
        %v2702 = vld [vmem:[%s65 + $0x10] sm:$0xff]
        %v2703 = vld [vmem:[%s65 + $0x18] sm:$0xff]
        %v2704 = vld [vmem:[%s65 + $0x20] sm:$0xff]
        %v2705 = vld [vmem:[%s65 + $0x28] sm:$0xff]
        %v2706 = vld [vmem:[%s65 + $0x30] sm:$0xff]
        %v2707 = vld [vmem:[%s65 + $0x38] sm:$0xff]
        %v2708 = vld [vmem:[%s65 + $0x40] sm:$0xff]
        %v2709 = vld [vmem:[%s65 + $0x48] sm:$0xff]
        %v2710 = vld [vmem:[%s65 + $0x50] sm:$0xff]
        %v2711 = vld [vmem:[%s65 + $0x58] sm:$0xff]
        %v2712 = vld [vmem:[%s65 + $0x60] sm:$0xff]
        %v2713 = vld [vmem:[%s65 + $0x68] sm:$0xff]
        %v2714 = vld [vmem:[%s65 + $0x70] sm:$0xff]
        %v2715 = vld [vmem:[%s65 + $0x78] sm:$0xff]
        %v2716 = vld [vmem:[%s67] sm:$0x1]
        %v2718 = vperm.slane %v2716, 0
        %2720 = vmatpush.msra.mxu0 %v2715
        %2721 = vmatpush.msra.mxu0 %v2714
        %2722 = vmatpush.msra.mxu0 %v2713
        %2723 = vmatpush.msra.mxu0 %v2712
        %2724 = vmatpush.msra.mxu0 %v2711
        %2725 = vmatpush.msra.mxu0 %v2710
        %2726 = vmatpush.msra.mxu0 %v2709
        %2727 = vmatpush.msra.mxu0 %v2708
        %2728 = vmatpush.msra.mxu0 %v2707
        %2729 = vmatpush.msra.mxu0 %v2706
        %2730 = vmatpush.msra.mxu0 %v2705
        %2731 = vmatpush.msra.mxu0 %v2704
        %2732 = vmatpush.msra.mxu0 %v2703
        %2733 = vmatpush.msra.mxu0 %v2702
        %2734 = vmatpush.msra.mxu0 %v2701
        %2735 = vmatpush.msra.mxu0 %v2700
        %2736 = vmatmul.f32.gmra.mxu0 %v2698
        %v2737 = vpop.f32.mrf.mxu0
        %v2738 = vadd.f32 %v2718, %v2737
        %2739 = vmatmul.f32.gmra.mxu0 %v2699
        %v2740 = vpop.f32.mrf.mxu0
        %v2741 = vadd.f32 %v2718, %v2740
        %2742 = vdwg.mxu0
        %v2743 = vmul.f32 %v2738, 0.5
        %v2744 = vmul.f32 %v2741, 0.5
        %v2745 = vadd.f32 %v2561, %v2743
        %v2746 = vadd.f32 %v2562, %v2744
        %v2747 = vld [vmem:[%s69] sm:$0x1]
        %v2748 = vld [vmem:[%s71] sm:$0x1]
        %v2749 = vsel %vm1238, %v2745, 0.0
        %2750 = vadd.xlane.f32.xlu0 %v2749
        %v2751 = vpop.xlane.xlu0 %2750
        %v2752 = vsel %vm1238, %v2746, 0.0
        %2753 = vadd.xlane.f32.xlu0 %v2752
        %v2754 = vpop.xlane.xlu0 %2753
        %v2755 = vmul.f32 %v2751, %v1251
        %v2756 = vmul.f32 %v2754, %v1251
        %v2757 = vsub.f32 %v2745, %v2755
        %v2758 = vsub.f32 %v2746, %v2756
        %v2759 = vmul.f32 %v2757, %v2757
        %v2760 = vmul.f32 %v2758, %v2758
        %v2761 = vsel %vm1238, %v2759, 0.0
        %2762 = vadd.xlane.f32.xlu0 %v2761
        %v2763 = vpop.xlane.xlu0 %2762
        %v2764 = vsel %vm1238, %v2760, 0.0
        %2765 = vadd.xlane.f32.xlu0 %v2764
        %v2766 = vpop.xlane.xlu0 %2765
        %v2767 = vmul.f32 %v2763, %v1251
        %v2768 = vmul.f32 %v2766, %v1251
        %v2769 = vadd.f32 %v2767, 1e-05
        %v2770 = vadd.f32 %v2768, 1e-05
        %v2771 = vrsqrt.pop %v2769
        %v2772 = vmul.f32 %v2771, %v2769
        %v2773 = vmul.f32 %v2772, %v2771
        %v2774 = vmul.f32 0.5, %v2773
        %v2775 = vsub.f32 1.5, %v2774
        %v2776 = vmul.f32 %v2771, %v2775
        %vm2777 = vweird.f32 %v2769
        %vm2778 = vweird.f32 %v2771
        %vm2779 = vmor %vm2777, %vm2778
        %v2780 = vsel %vm2779, %v2771, %v2776
        %v2781 = vrsqrt.pop %v2770
        %v2782 = vmul.f32 %v2781, %v2770
        %v2783 = vmul.f32 %v2782, %v2781
        %v2784 = vmul.f32 0.5, %v2783
        %v2785 = vsub.f32 1.5, %v2784
        %v2786 = vmul.f32 %v2781, %v2785
        %vm2787 = vweird.f32 %v2770
        %vm2788 = vweird.f32 %v2781
        %vm2789 = vmor %vm2787, %vm2788
        %v2790 = vsel %vm2789, %v2781, %v2786
        %v2791 = vmul.f32 %v2757, %v2780
        %v2792 = vmul.f32 %v2758, %v2790
        %v2794 = vperm.slane %v2747, 0
        %v2796 = vmul.f32 %v2791, %v2794
        %v2797 = vmul.f32 %v2792, %v2794
        %v2799 = vperm.slane %v2748, 0
        %v2801 = vadd.f32 %v2796, %v2799
        %v2802 = vadd.f32 %v2797, %v2799
        %s2803 = scalar_lea.vmem %s9, 1
        %v2804 = vld [vmem:[%s2803] sm:$0x1]
        %s2805 = scalar_lea.vmem %s11, 1
        %v2806 = vld [vmem:[%s2805] sm:$0x1]
        %v2807 = vsel %vm1238, %v2801, 0.0
        %2808 = vadd.xlane.f32.xlu0 %v2807
        %v2809 = vpop.xlane.xlu0 %2808
        %v2810 = vsel %vm1238, %v2802, 0.0
        %2811 = vadd.xlane.f32.xlu0 %v2810
        %v2812 = vpop.xlane.xlu0 %2811
        %v2813 = vmul.f32 %v2809, %v1251
        %v2814 = vmul.f32 %v2812, %v1251
        %v2815 = vsub.f32 %v2801, %v2813
        %v2816 = vsub.f32 %v2802, %v2814
        %v2817 = vmul.f32 %v2815, %v2815
        %v2818 = vmul.f32 %v2816, %v2816
        %v2819 = vsel %vm1238, %v2817, 0.0
        %2820 = vadd.xlane.f32.xlu0 %v2819
        %v2821 = vpop.xlane.xlu0 %2820
        %v2822 = vsel %vm1238, %v2818, 0.0
        %2823 = vadd.xlane.f32.xlu0 %v2822
        %v2824 = vpop.xlane.xlu0 %2823
        %v2825 = vmul.f32 %v2821, %v1251
        %v2826 = vmul.f32 %v2824, %v1251
        %v2827 = vadd.f32 %v2825, 1e-05
        %v2828 = vadd.f32 %v2826, 1e-05
        %v2829 = vrsqrt.pop %v2827
        %v2830 = vmul.f32 %v2829, %v2827
        %v2831 = vmul.f32 %v2830, %v2829
        %v2832 = vmul.f32 0.5, %v2831
        %v2833 = vsub.f32 1.5, %v2832
        %v2834 = vmul.f32 %v2829, %v2833
        %vm2835 = vweird.f32 %v2827
        %vm2836 = vweird.f32 %v2829
        %vm2837 = vmor %vm2835, %vm2836
        %v2838 = vsel %vm2837, %v2829, %v2834
        %v2839 = vrsqrt.pop %v2828
        %v2840 = vmul.f32 %v2839, %v2828
        %v2841 = vmul.f32 %v2840, %v2839
        %v2842 = vmul.f32 0.5, %v2841
        %v2843 = vsub.f32 1.5, %v2842
        %v2844 = vmul.f32 %v2839, %v2843
        %vm2845 = vweird.f32 %v2828
        %vm2846 = vweird.f32 %v2839
        %vm2847 = vmor %vm2845, %vm2846
        %v2848 = vsel %vm2847, %v2839, %v2844
        %v2849 = vmul.f32 %v2815, %v2838
        %v2850 = vmul.f32 %v2816, %v2848
        %v2852 = vperm.slane %v2804, 0
        %v2854 = vmul.f32 %v2849, %v2852
        %v2855 = vmul.f32 %v2850, %v2852
        %v2857 = vperm.slane %v2806, 0
        %v2859 = vadd.f32 %v2854, %v2857
        %v2860 = vadd.f32 %v2855, %v2857
        %s2861 = scalar_lea.vmem %s13, 64
        %v2862 = vld [vmem:[%s2861] sm:$0xff]
        %v2863 = vld [vmem:[%s2861 + $0x8] sm:$0xff]
        %v2864 = vld [vmem:[%s2861 + $0x10] sm:$0xff]
        %v2865 = vld [vmem:[%s2861 + $0x18] sm:$0xff]
        %v2866 = vld [vmem:[%s2861 + $0x20] sm:$0xff]
        %v2867 = vld [vmem:[%s2861 + $0x28] sm:$0xff]
        %v2868 = vld [vmem:[%s2861 + $0x30] sm:$0xff]
        %v2869 = vld [vmem:[%s2861 + $0x38] sm:$0xff]
        %s2870 = scalar_lea.vmem %s15, 1
        %v2871 = vld [vmem:[%s2870] sm:$0x1]
        %v2873 = vperm.slane %v2871, 0
        %v2876 = vsel %vm1238, %v2859, 0
        %v2879 = vsel %vm1238, %v2860, 0
        %2881 = vmatpush.msra.mxu0 0.0
        %2882 = vmatpush.msra.mxu0 0.0
        %2883 = vmatpush.msra.mxu0 0.0
        %2884 = vmatpush.msra.mxu0 0.0
        %2885 = vmatpush.msra.mxu0 0.0
        %2886 = vmatpush.msra.mxu0 0.0
        %2887 = vmatpush.msra.mxu0 0.0
        %2888 = vmatpush.msra.mxu0 0.0
        %2889 = vmatpush.msra.mxu0 %v2869
        %2890 = vmatpush.msra.mxu0 %v2868
        %2891 = vmatpush.msra.mxu0 %v2867
        %2892 = vmatpush.msra.mxu0 %v2866
        %2893 = vmatpush.msra.mxu0 %v2865
        %2894 = vmatpush.msra.mxu0 %v2864
        %2895 = vmatpush.msra.mxu0 %v2863
        %2896 = vmatpush.msra.mxu0 %v2862
        %2897 = vmatmul.f32.gmra.mxu0 %v2876
        %v2898 = vpop.f32.mrf.mxu0
        %v2899 = vadd.f32 %v2873, %v2898
        %2900 = vmatmul.f32.gmra.mxu0 %v2879
        %v2901 = vpop.f32.mrf.mxu0
        %v2902 = vadd.f32 %v2873, %v2901
        %2903 = vdwg.mxu0
        %v2904 = vxor.u32 %v2899, 2147483648
        %v2905 = vxor.u32 %v2902, 2147483648
        %v2906 = vmul.f32 %v2904, 1.442695
        %v2907 = vpow.pop %v2906
        %v2908 = vmul.f32 %v2905, 1.442695
        %v2909 = vpow.pop %v2908
        %v2910 = vadd.f32 %v2907, 1.0
        %v2911 = vadd.f32 %v2909, 1.0
        %v2912 = vrcp.pop %v2910
        %v2913 = vmul.f32 %v2910, %v2912
        %v2914 = vsub.f32 1.0, %v2913
        %v2915 = vmul.f32 %v2912, %v2914
        %v2916 = vadd.f32 %v2912, %v2915
        %vm2917 = vweird.f32 %v2910
        %vm2918 = vweird.f32 %v2912
        %vm2919 = vmor %vm2917, %vm2918
        %v2920 = vsel %vm2919, %v2912, %v2916
        %v2921 = vand.u32 2147483647, %v2910
        %vm2922 = vcmp.eq.f32.partialorder %v2921, 8.507059e+37
        %v2923 = vand.u32 %v2910, 2147483648
        %v2924 = vor.u32 1.1754944e-38, %v2923
        %v2925 = vsel %vm2922, %v2924, %v2920
        %v2926 = vmul.f32 1.0, %v2925
        %v2927 = vrcp.pop %v2911
        %v2928 = vmul.f32 %v2911, %v2927
        %v2929 = vsub.f32 1.0, %v2928
        %v2930 = vmul.f32 %v2927, %v2929
        %v2931 = vadd.f32 %v2927, %v2930
        %vm2932 = vweird.f32 %v2911
        %vm2933 = vweird.f32 %v2927
        %vm2934 = vmor %vm2932, %vm2933
        %v2935 = vsel %vm2934, %v2927, %v2931
        %v2936 = vand.u32 2147483647, %v2911
        %vm2937 = vcmp.eq.f32.partialorder %v2936, 8.507059e+37
        %v2938 = vand.u32 %v2911, 2147483648
        %v2939 = vor.u32 1.1754944e-38, %v2938
        %v2940 = vsel %vm2937, %v2939, %v2935
        %v2941 = vmul.f32 1.0, %v2940
        %v2942 = vmul.f32 %v2899, %v2926
        %v2943 = vmul.f32 %v2902, %v2941
        %s2944 = scalar_lea.vmem %s17, 128
        %v2945 = vld [vmem:[%s2944] sm:$0xff]
        %v2946 = vld [vmem:[%s2944 + $0x8] sm:$0xff]
        %v2947 = vld [vmem:[%s2944 + $0x10] sm:$0xff]
        %v2948 = vld [vmem:[%s2944 + $0x18] sm:$0xff]
        %v2949 = vld [vmem:[%s2944 + $0x20] sm:$0xff]
        %v2950 = vld [vmem:[%s2944 + $0x28] sm:$0xff]
        %v2951 = vld [vmem:[%s2944 + $0x30] sm:$0xff]
        %v2952 = vld [vmem:[%s2944 + $0x38] sm:$0xff]
        %v2953 = vld [vmem:[%s2944 + $0x40] sm:$0xff]
        %v2954 = vld [vmem:[%s2944 + $0x48] sm:$0xff]
        %v2955 = vld [vmem:[%s2944 + $0x50] sm:$0xff]
        %v2956 = vld [vmem:[%s2944 + $0x58] sm:$0xff]
        %v2957 = vld [vmem:[%s2944 + $0x60] sm:$0xff]
        %v2958 = vld [vmem:[%s2944 + $0x68] sm:$0xff]
        %v2959 = vld [vmem:[%s2944 + $0x70] sm:$0xff]
        %v2960 = vld [vmem:[%s2944 + $0x78] sm:$0xff]
        %s2961 = scalar_lea.vmem %s19, 1
        %v2962 = vld [vmem:[%s2961] sm:$0x1]
        %v2964 = vperm.slane %v2962, 0
        %2966 = vmatpush.msra.mxu0 %v2960
        %2967 = vmatpush.msra.mxu0 %v2959
        %2968 = vmatpush.msra.mxu0 %v2958
        %2969 = vmatpush.msra.mxu0 %v2957
        %2970 = vmatpush.msra.mxu0 %v2956
        %2971 = vmatpush.msra.mxu0 %v2955
        %2972 = vmatpush.msra.mxu0 %v2954
        %2973 = vmatpush.msra.mxu0 %v2953
        %2974 = vmatpush.msra.mxu0 %v2952
        %2975 = vmatpush.msra.mxu0 %v2951
        %2976 = vmatpush.msra.mxu0 %v2950
        %2977 = vmatpush.msra.mxu0 %v2949
        %2978 = vmatpush.msra.mxu0 %v2948
        %2979 = vmatpush.msra.mxu0 %v2947
        %2980 = vmatpush.msra.mxu0 %v2946
        %2981 = vmatpush.msra.mxu0 %v2945
        %2982 = vmatmul.f32.gmra.mxu0 %v2942
        %v2983 = vpop.f32.mrf.mxu0
        %v2984 = vadd.f32 %v2964, %v2983
        %2985 = vmatmul.f32.gmra.mxu0 %v2943
        %v2986 = vpop.f32.mrf.mxu0
        %v2987 = vadd.f32 %v2964, %v2986
        %2988 = vdwg.mxu0
        %v2989 = vmul.f32 %v2984, 0.5
        %v2990 = vmul.f32 %v2987, 0.5
        %v2991 = vadd.f32 %v2801, %v2989
        %v2992 = vadd.f32 %v2802, %v2990
        %s2993 = scalar_lea.vmem %s21, 1
        %v2994 = vld [vmem:[%s2993] sm:$0x1]
        %s2995 = scalar_lea.vmem %s23, 1
        %v2996 = vld [vmem:[%s2995] sm:$0x1]
        %v2997 = vsel %vm1238, %v2991, 0.0
        %2998 = vadd.xlane.f32.xlu0 %v2997
        %v2999 = vpop.xlane.xlu0 %2998
        %v3000 = vsel %vm1238, %v2992, 0.0
        %3001 = vadd.xlane.f32.xlu0 %v3000
        %v3002 = vpop.xlane.xlu0 %3001
        %v3003 = vmul.f32 %v2999, %v1251
        %v3004 = vmul.f32 %v3002, %v1251
        %v3005 = vsub.f32 %v2991, %v3003
        %v3006 = vsub.f32 %v2992, %v3004
        %v3007 = vmul.f32 %v3005, %v3005
        %v3008 = vmul.f32 %v3006, %v3006
        %v3009 = vsel %vm1238, %v3007, 0.0
        %3010 = vadd.xlane.f32.xlu0 %v3009
        %v3011 = vpop.xlane.xlu0 %3010
        %v3012 = vsel %vm1238, %v3008, 0.0
        %3013 = vadd.xlane.f32.xlu0 %v3012
        %v3014 = vpop.xlane.xlu0 %3013
        %v3015 = vmul.f32 %v3011, %v1251
        %v3016 = vmul.f32 %v3014, %v1251
        %v3017 = vadd.f32 %v3015, 1e-05
        %v3018 = vadd.f32 %v3016, 1e-05
        %v3019 = vrsqrt.pop %v3017
        %v3020 = vmul.f32 %v3019, %v3017
        %v3021 = vmul.f32 %v3020, %v3019
        %v3022 = vmul.f32 0.5, %v3021
        %v3023 = vsub.f32 1.5, %v3022
        %v3024 = vmul.f32 %v3019, %v3023
        %vm3025 = vweird.f32 %v3017
        %vm3026 = vweird.f32 %v3019
        %vm3027 = vmor %vm3025, %vm3026
        %v3028 = vsel %vm3027, %v3019, %v3024
        %v3029 = vrsqrt.pop %v3018
        %v3030 = vmul.f32 %v3029, %v3018
        %v3031 = vmul.f32 %v3030, %v3029
        %v3032 = vmul.f32 0.5, %v3031
        %v3033 = vsub.f32 1.5, %v3032
        %v3034 = vmul.f32 %v3029, %v3033
        %vm3035 = vweird.f32 %v3018
        %vm3036 = vweird.f32 %v3029
        %vm3037 = vmor %vm3035, %vm3036
        %v3038 = vsel %vm3037, %v3029, %v3034
        %v3039 = vmul.f32 %v3005, %v3028
        %v3040 = vmul.f32 %v3006, %v3038
        %v3042 = vperm.slane %v2994, 0
        %v3044 = vmul.f32 %v3039, %v3042
        %v3045 = vmul.f32 %v3040, %v3042
        %v3047 = vperm.slane %v2996, 0
        %v3049 = vadd.f32 %v3044, %v3047
        %v3050 = vadd.f32 %v3045, %v3047
        %s3051 = scalar_lea.vmem %s25, 64
        %v3052 = vld [vmem:[%s3051] sm:$0xff]
        %v3053 = vld [vmem:[%s3051 + $0x8] sm:$0xff]
        %v3054 = vld [vmem:[%s3051 + $0x10] sm:$0xff]
        %v3055 = vld [vmem:[%s3051 + $0x18] sm:$0xff]
        %v3056 = vld [vmem:[%s3051 + $0x20] sm:$0xff]
        %v3057 = vld [vmem:[%s3051 + $0x28] sm:$0xff]
        %v3058 = vld [vmem:[%s3051 + $0x30] sm:$0xff]
        %v3059 = vld [vmem:[%s3051 + $0x38] sm:$0xff]
        %s3060 = scalar_lea.vmem %s27, 1
        %v3061 = vld [vmem:[%s3060] sm:$0x1]
        %v3063 = vperm.slane %v3061, 0
        %v3066 = vsel %vm1238, %v3049, 0
        %v3069 = vsel %vm1238, %v3050, 0
        %3071 = vmatpush.msra.mxu0 0.0
        %3072 = vmatpush.msra.mxu0 0.0
        %3073 = vmatpush.msra.mxu0 0.0
        %3074 = vmatpush.msra.mxu0 0.0
        %3075 = vmatpush.msra.mxu0 0.0
        %3076 = vmatpush.msra.mxu0 0.0
        %3077 = vmatpush.msra.mxu0 0.0
        %3078 = vmatpush.msra.mxu0 0.0
        %3079 = vmatpush.msra.mxu0 %v3059
        %3080 = vmatpush.msra.mxu0 %v3058
        %3081 = vmatpush.msra.mxu0 %v3057
        %3082 = vmatpush.msra.mxu0 %v3056
        %3083 = vmatpush.msra.mxu0 %v3055
        %3084 = vmatpush.msra.mxu0 %v3054
        %3085 = vmatpush.msra.mxu0 %v3053
        %3086 = vmatpush.msra.mxu0 %v3052
        %3087 = vmatmul.f32.gmra.mxu0 %v3066
        %v3088 = vpop.f32.mrf.mxu0
        %v3089 = vadd.f32 %v3063, %v3088
        %3090 = vmatmul.f32.gmra.mxu0 %v3069
        %v3091 = vpop.f32.mrf.mxu0
        %v3092 = vadd.f32 %v3063, %v3091
        %3093 = vdwg.mxu0
        %s3094 = scalar_lea.vmem %s29, 128
        %v3095 = vld [vmem:[%s3094] sm:$0xff]
        %v3096 = vld [vmem:[%s3094 + $0x8] sm:$0xff]
        %v3097 = vld [vmem:[%s3094 + $0x10] sm:$0xff]
        %v3098 = vld [vmem:[%s3094 + $0x18] sm:$0xff]
        %v3099 = vld [vmem:[%s3094 + $0x20] sm:$0xff]
        %v3100 = vld [vmem:[%s3094 + $0x28] sm:$0xff]
        %v3101 = vld [vmem:[%s3094 + $0x30] sm:$0xff]
        %v3102 = vld [vmem:[%s3094 + $0x38] sm:$0xff]
        %v3103 = vld [vmem:[%s3094 + $0x40] sm:$0xff]
        %v3104 = vld [vmem:[%s3094 + $0x48] sm:$0xff]
        %v3105 = vld [vmem:[%s3094 + $0x50] sm:$0xff]
        %v3106 = vld [vmem:[%s3094 + $0x58] sm:$0xff]
        %v3107 = vld [vmem:[%s3094 + $0x60] sm:$0xff]
        %v3108 = vld [vmem:[%s3094 + $0x68] sm:$0xff]
        %v3109 = vld [vmem:[%s3094 + $0x70] sm:$0xff]
        %v3110 = vld [vmem:[%s3094 + $0x78] sm:$0xff]
        %3111 = vmatpush.msra.mxu0 0.0
        %3112 = vmatpush.msra.mxu0 0.0
        %3113 = vmatpush.msra.mxu0 0.0
        %3114 = vmatpush.msra.mxu0 0.0
        %3115 = vmatpush.msra.mxu0 0.0
        %3116 = vmatpush.msra.mxu0 0.0
        %3117 = vmatpush.msra.mxu0 0.0
        %3118 = vmatpush.msra.mxu0 0.0
        %3119 = vmatpush.msra.mxu0 %v3109
        %3120 = vmatpush.msra.mxu0 %v3107
        %3121 = vmatpush.msra.mxu0 %v3105
        %3122 = vmatpush.msra.mxu0 %v3103
        %3123 = vmatpush.msra.mxu0 %v3101
        %3124 = vmatpush.msra.mxu0 %v3099
        %3125 = vmatpush.msra.mxu0 %v3097
        %3126 = vmatpush.msra.mxu0 %v3095
        %3127 = vmatmul.f32.gmra.mxu0 %v3066
        %v3128 = vpop.f32.mrf.mxu0
        %v3129 = vadd.f32 0.0, %v3128
        %3130 = vmatmul.f32.gmra.mxu0 %v3069
        %v3131 = vpop.f32.mrf.mxu0
        %v3132 = vadd.f32 0.0, %v3131
        %3133 = vdwg.mxu0
        %3134 = vmatpush.msra.mxu0 0.0
        %3135 = vmatpush.msra.mxu0 0.0
        %3136 = vmatpush.msra.mxu0 0.0
        %3137 = vmatpush.msra.mxu0 0.0
        %3138 = vmatpush.msra.mxu0 0.0
        %3139 = vmatpush.msra.mxu0 0.0
        %3140 = vmatpush.msra.mxu0 0.0
        %3141 = vmatpush.msra.mxu0 0.0
        %3142 = vmatpush.msra.mxu0 %v3110
        %3143 = vmatpush.msra.mxu0 %v3108
        %3144 = vmatpush.msra.mxu0 %v3106
        %3145 = vmatpush.msra.mxu0 %v3104
        %3146 = vmatpush.msra.mxu0 %v3102
        %3147 = vmatpush.msra.mxu0 %v3100
        %3148 = vmatpush.msra.mxu0 %v3098
        %3149 = vmatpush.msra.mxu0 %v3096
        %3150 = vmatmul.f32.gmra.mxu0 %v3066
        %v3151 = vpop.f32.mrf.mxu0
        %v3152 = vadd.f32 0.0, %v3151
        %3153 = vmatmul.f32.gmra.mxu0 %v3069
        %v3154 = vpop.f32.mrf.mxu0
        %v3155 = vadd.f32 0.0, %v3154
        %3156 = vdwg.mxu0
        %3159 = vrot.lane.b32.xlu0 %v3089, 64
        %v3160 = vpop.permute.xlu0 %3159
        %3161 = vrot.lane.b32.xlu0 %v3092, 64
        %v3162 = vpop.permute.xlu0 %3161
        %v3163 = vsel %vm1593, %v3089, 0
        %v3165 = vsel %vm1593, %v3092, 0
        %v3167 = vsel %vm1593, %v3160, 0
        %v3169 = vsel %vm1593, %v3162, 0
        %3171 = vmatpush.xpose.msra.mxu0 0.0
        %3172 = vmatpush.xpose.msra.mxu0 0.0
        %3173 = vmatpush.xpose.msra.mxu0 0.0
        %3174 = vmatpush.xpose.msra.mxu0 0.0
        %3175 = vmatpush.xpose.msra.mxu0 0.0
        %3176 = vmatpush.xpose.msra.mxu0 0.0
        %3177 = vmatpush.xpose.msra.mxu0 0.0
        %3178 = vmatpush.xpose.msra.mxu0 0.0
        %3179 = vmatpush.xpose.msra.mxu0 0.0
        %3180 = vmatpush.xpose.msra.mxu0 0.0
        %3181 = vmatpush.xpose.msra.mxu0 0.0
        %3182 = vmatpush.xpose.msra.mxu0 0.0
        %3183 = vmatpush.xpose.msra.mxu0 0.0
        %3184 = vmatpush.xpose.msra.mxu0 0.0
        %3185 = vmatpush.xpose.msra.mxu0 %v3169
        %3186 = vmatpush.xpose.msra.mxu0 %v3167
        %3187 = vmatmul.f32.gmra.mxu0 %v3163
        %v3188 = vpop.f32.mrf.mxu0
        %v3189 = vadd.f32 0.0, %v3188
        %3190 = vmatmul.f32.gmra.mxu0 %v3165
        %v3191 = vpop.f32.mrf.mxu0
        %v3192 = vadd.f32 0.0, %v3191
        %3193 = vdwg.mxu0
        %v3194 = vmul.f32 %v3189, 0.25
        %v3195 = vmul.f32 %v3192, 0.25
        %v3196 = vadd.f32 %v3194, %v1143
        %v3197 = vadd.f32 %v3195, %v1143
        %v3198 = vsel %vm1593, %v3196, -inf
        %3199 = vmax.xlane.f32.xlu0 %v3198
        %v3200 = vpop.xlane.xlu0 %3199
        %v3201 = vsel %vm1593, %v3197, -inf
        %3202 = vmax.xlane.f32.xlu0 %v3201
        %v3203 = vpop.xlane.xlu0 %3202
        %v3204 = vsub.f32 %v3196, %v3200
        %v3205 = vsub.f32 %v3197, %v3203
        %v3206 = vmul.f32 %v3204, 1.442695
        %v3207 = vpow.pop %v3206
        %v3208 = vmul.f32 %v3205, 1.442695
        %v3209 = vpow.pop %v3208
        %v3210 = vsel %vm1593, %v3207, 0.0
        %3211 = vadd.xlane.f32.xlu0 %v3210
        %v3212 = vpop.xlane.xlu0 %3211
        %v3213 = vsel %vm1593, %v3209, 0.0
        %3214 = vadd.xlane.f32.xlu0 %v3213
        %v3215 = vpop.xlane.xlu0 %3214
        %v3216 = vrcp.pop %v3212
        %v3217 = vmul.f32 %v3212, %v3216
        %v3218 = vsub.f32 1.0, %v3217
        %v3219 = vmul.f32 %v3216, %v3218
        %v3220 = vadd.f32 %v3216, %v3219
        %vm3221 = vweird.f32 %v3212
        %vm3222 = vweird.f32 %v3216
        %vm3223 = vmor %vm3221, %vm3222
        %v3224 = vsel %vm3223, %v3216, %v3220
        %v3225 = vand.u32 2147483647, %v3212
        %vm3226 = vcmp.eq.f32.partialorder %v3225, 8.507059e+37
        %v3227 = vand.u32 %v3212, 2147483648
        %v3228 = vor.u32 1.1754944e-38, %v3227
        %v3229 = vsel %vm3226, %v3228, %v3224
        %v3230 = vmul.f32 %v3207, %v3229
        %v3231 = vrcp.pop %v3215
        %v3232 = vmul.f32 %v3215, %v3231
        %v3233 = vsub.f32 1.0, %v3232
        %v3234 = vmul.f32 %v3231, %v3233
        %v3235 = vadd.f32 %v3231, %v3234
        %vm3236 = vweird.f32 %v3215
        %vm3237 = vweird.f32 %v3231
        %vm3238 = vmor %vm3236, %vm3237
        %v3239 = vsel %vm3238, %v3231, %v3235
        %v3240 = vand.u32 2147483647, %v3215
        %vm3241 = vcmp.eq.f32.partialorder %v3240, 8.507059e+37
        %v3242 = vand.u32 %v3215, 2147483648
        %v3243 = vor.u32 1.1754944e-38, %v3242
        %v3244 = vsel %vm3241, %v3243, %v3239
        %v3245 = vmul.f32 %v3209, %v3244
        %3246 = vrot.lane.b32.xlu0 %v3089, 112
        %v3247 = vpop.permute.xlu0 %3246
        %3248 = vrot.lane.b32.xlu0 %v3092, 112
        %v3249 = vpop.permute.xlu0 %3248
        %3250 = vrot.lane.b32.xlu0 %v3089, 48
        %v3251 = vpop.permute.xlu0 %3250
        %3252 = vrot.lane.b32.xlu0 %v3092, 48
        %v3253 = vpop.permute.xlu0 %3252
        %v3254 = vsel %vm1593, %v3247, 0
        %v3256 = vsel %vm1593, %v3249, 0
        %v3258 = vsel %vm1593, %v3251, 0
        %v3260 = vsel %vm1593, %v3253, 0
        %3262 = vmatpush.xpose.msra.mxu0 0.0
        %3263 = vmatpush.xpose.msra.mxu0 0.0
        %3264 = vmatpush.xpose.msra.mxu0 0.0
        %3265 = vmatpush.xpose.msra.mxu0 0.0
        %3266 = vmatpush.xpose.msra.mxu0 0.0
        %3267 = vmatpush.xpose.msra.mxu0 0.0
        %3268 = vmatpush.xpose.msra.mxu0 0.0
        %3269 = vmatpush.xpose.msra.mxu0 0.0
        %3270 = vmatpush.xpose.msra.mxu0 0.0
        %3271 = vmatpush.xpose.msra.mxu0 0.0
        %3272 = vmatpush.xpose.msra.mxu0 0.0
        %3273 = vmatpush.xpose.msra.mxu0 0.0
        %3274 = vmatpush.xpose.msra.mxu0 0.0
        %3275 = vmatpush.xpose.msra.mxu0 0.0
        %3276 = vmatpush.xpose.msra.mxu0 %v3260
        %3277 = vmatpush.xpose.msra.mxu0 %v3258
        %3278 = vmatmul.f32.gmra.mxu0 %v3254
        %v3279 = vpop.f32.mrf.mxu0
        %v3280 = vadd.f32 0.0, %v3279
        %3281 = vmatmul.f32.gmra.mxu0 %v3256
        %v3282 = vpop.f32.mrf.mxu0
        %v3283 = vadd.f32 0.0, %v3282
        %3284 = vdwg.mxu0
        %v3285 = vmul.f32 %v3280, 0.25
        %v3286 = vmul.f32 %v3283, 0.25
        %v3287 = vadd.f32 %v3285, %v1143
        %v3288 = vadd.f32 %v3286, %v1143
        %v3289 = vsel %vm1593, %v3287, -inf
        %3290 = vmax.xlane.f32.xlu0 %v3289
        %v3291 = vpop.xlane.xlu0 %3290
        %v3292 = vsel %vm1593, %v3288, -inf
        %3293 = vmax.xlane.f32.xlu0 %v3292
        %v3294 = vpop.xlane.xlu0 %3293
        %v3295 = vsub.f32 %v3287, %v3291
        %v3296 = vsub.f32 %v3288, %v3294
        %v3297 = vmul.f32 %v3295, 1.442695
        %v3298 = vpow.pop %v3297
        %v3299 = vmul.f32 %v3296, 1.442695
        %v3300 = vpow.pop %v3299
        %v3301 = vsel %vm1593, %v3298, 0.0
        %3302 = vadd.xlane.f32.xlu0 %v3301
        %v3303 = vpop.xlane.xlu0 %3302
        %v3304 = vsel %vm1593, %v3300, 0.0
        %3305 = vadd.xlane.f32.xlu0 %v3304
        %v3306 = vpop.xlane.xlu0 %3305
        %v3307 = vrcp.pop %v3303
        %v3308 = vmul.f32 %v3303, %v3307
        %v3309 = vsub.f32 1.0, %v3308
        %v3310 = vmul.f32 %v3307, %v3309
        %v3311 = vadd.f32 %v3307, %v3310
        %vm3312 = vweird.f32 %v3303
        %vm3313 = vweird.f32 %v3307
        %vm3314 = vmor %vm3312, %vm3313
        %v3315 = vsel %vm3314, %v3307, %v3311
        %v3316 = vand.u32 2147483647, %v3303
        %vm3317 = vcmp.eq.f32.partialorder %v3316, 8.507059e+37
        %v3318 = vand.u32 %v3303, 2147483648
        %v3319 = vor.u32 1.1754944e-38, %v3318
        %v3320 = vsel %vm3317, %v3319, %v3315
        %v3321 = vmul.f32 %v3298, %v3320
        %v3322 = vrcp.pop %v3306
        %v3323 = vmul.f32 %v3306, %v3322
        %v3324 = vsub.f32 1.0, %v3323
        %v3325 = vmul.f32 %v3322, %v3324
        %v3326 = vadd.f32 %v3322, %v3325
        %vm3327 = vweird.f32 %v3306
        %vm3328 = vweird.f32 %v3322
        %vm3329 = vmor %vm3327, %vm3328
        %v3330 = vsel %vm3329, %v3322, %v3326
        %v3331 = vand.u32 2147483647, %v3306
        %vm3332 = vcmp.eq.f32.partialorder %v3331, 8.507059e+37
        %v3333 = vand.u32 %v3306, 2147483648
        %v3334 = vor.u32 1.1754944e-38, %v3333
        %v3335 = vsel %vm3332, %v3334, %v3330
        %v3336 = vmul.f32 %v3300, %v3335
        %3339 = vrot.lane.b32.xlu0 %v3129, 64
        %v3340 = vpop.permute.xlu0 %3339
        %3341 = vrot.lane.b32.xlu0 %v3132, 64
        %v3342 = vpop.permute.xlu0 %3341
        %v3346 = vsel %vm1593, %v3321, 0
        %v3349 = vsel %vm1593, %v3336, 0
        %3351 = vmatpush.msra.mxu0 0.0
        %3352 = vmatpush.msra.mxu0 0.0
        %3353 = vmatpush.msra.mxu0 0.0
        %3354 = vmatpush.msra.mxu0 0.0
        %3355 = vmatpush.msra.mxu0 0.0
        %3356 = vmatpush.msra.mxu0 0.0
        %3357 = vmatpush.msra.mxu0 0.0
        %3358 = vmatpush.msra.mxu0 0.0
        %3359 = vmatpush.msra.mxu0 0.0
        %3360 = vmatpush.msra.mxu0 0.0
        %3361 = vmatpush.msra.mxu0 0.0
        %3362 = vmatpush.msra.mxu0 0.0
        %3363 = vmatpush.msra.mxu0 0.0
        %3364 = vmatpush.msra.mxu0 0.0
        %3365 = vmatpush.msra.mxu0 %v3342
        %3366 = vmatpush.msra.mxu0 %v3340
        %3367 = vmatmul.f32.gmra.mxu0 %v3346
        %v3368 = vpop.f32.mrf.mxu0
        %v3369 = vadd.f32 0.0, %v3368
        %3370 = vmatmul.f32.gmra.mxu0 %v3349
        %v3371 = vpop.f32.mrf.mxu0
        %v3372 = vadd.f32 0.0, %v3371
        %3373 = vdwg.mxu0
        %v3375 = vsel %vm1593, %v3230, 0
        %v3378 = vsel %vm1593, %v3245, 0
        %3380 = vmatpush.msra.mxu0 0.0
        %3381 = vmatpush.msra.mxu0 0.0
        %3382 = vmatpush.msra.mxu0 0.0
        %3383 = vmatpush.msra.mxu0 0.0
        %3384 = vmatpush.msra.mxu0 0.0
        %3385 = vmatpush.msra.mxu0 0.0
        %3386 = vmatpush.msra.mxu0 0.0
        %3387 = vmatpush.msra.mxu0 0.0
        %3388 = vmatpush.msra.mxu0 0.0
        %3389 = vmatpush.msra.mxu0 0.0
        %3390 = vmatpush.msra.mxu0 0.0
        %3391 = vmatpush.msra.mxu0 0.0
        %3392 = vmatpush.msra.mxu0 0.0
        %3393 = vmatpush.msra.mxu0 0.0
        %3394 = vmatpush.msra.mxu0 %v3132
        %3395 = vmatpush.msra.mxu0 %v3129
        %3396 = vmatmul.f32.gmra.mxu0 %v3375
        %v3397 = vpop.f32.mrf.mxu0
        %v3398 = vadd.f32 %v3369, %v3397
        %3399 = vmatmul.f32.gmra.mxu0 %v3378
        %v3400 = vpop.f32.mrf.mxu0
        %v3401 = vadd.f32 %v3372, %v3400
        %3402 = vdwg.mxu0
        %3403 = vrot.lane.b32.xlu0 %v3089, 96
        %v3404 = vpop.permute.xlu0 %3403
        %3405 = vrot.lane.b32.xlu0 %v3092, 96
        %v3406 = vpop.permute.xlu0 %3405
        %3407 = vrot.lane.b32.xlu0 %v3089, 32
        %v3408 = vpop.permute.xlu0 %3407
        %3409 = vrot.lane.b32.xlu0 %v3092, 32
        %v3410 = vpop.permute.xlu0 %3409
        %v3411 = vsel %vm1593, %v3404, 0
        %v3413 = vsel %vm1593, %v3406, 0
        %v3415 = vsel %vm1593, %v3408, 0
        %v3417 = vsel %vm1593, %v3410, 0
        %3419 = vmatpush.xpose.msra.mxu0 0.0
        %3420 = vmatpush.xpose.msra.mxu0 0.0
        %3421 = vmatpush.xpose.msra.mxu0 0.0
        %3422 = vmatpush.xpose.msra.mxu0 0.0
        %3423 = vmatpush.xpose.msra.mxu0 0.0
        %3424 = vmatpush.xpose.msra.mxu0 0.0
        %3425 = vmatpush.xpose.msra.mxu0 0.0
        %3426 = vmatpush.xpose.msra.mxu0 0.0
        %3427 = vmatpush.xpose.msra.mxu0 0.0
        %3428 = vmatpush.xpose.msra.mxu0 0.0
        %3429 = vmatpush.xpose.msra.mxu0 0.0
        %3430 = vmatpush.xpose.msra.mxu0 0.0
        %3431 = vmatpush.xpose.msra.mxu0 0.0
        %3432 = vmatpush.xpose.msra.mxu0 0.0
        %3433 = vmatpush.xpose.msra.mxu0 %v3417
        %3434 = vmatpush.xpose.msra.mxu0 %v3415
        %3435 = vmatmul.f32.gmra.mxu0 %v3411
        %v3436 = vpop.f32.mrf.mxu0
        %v3437 = vadd.f32 0.0, %v3436
        %3438 = vmatmul.f32.gmra.mxu0 %v3413
        %v3439 = vpop.f32.mrf.mxu0
        %v3440 = vadd.f32 0.0, %v3439
        %3441 = vdwg.mxu0
        %v3442 = vmul.f32 %v3437, 0.25
        %v3443 = vmul.f32 %v3440, 0.25
        %v3444 = vadd.f32 %v3442, %v1143
        %v3445 = vadd.f32 %v3443, %v1143
        %v3446 = vsel %vm1593, %v3444, -inf
        %3447 = vmax.xlane.f32.xlu0 %v3446
        %v3448 = vpop.xlane.xlu0 %3447
        %v3449 = vsel %vm1593, %v3445, -inf
        %3450 = vmax.xlane.f32.xlu0 %v3449
        %v3451 = vpop.xlane.xlu0 %3450
        %v3452 = vsub.f32 %v3444, %v3448
        %v3453 = vsub.f32 %v3445, %v3451
        %v3454 = vmul.f32 %v3452, 1.442695
        %v3455 = vpow.pop %v3454
        %v3456 = vmul.f32 %v3453, 1.442695
        %v3457 = vpow.pop %v3456
        %v3458 = vsel %vm1593, %v3455, 0.0
        %3459 = vadd.xlane.f32.xlu0 %v3458
        %v3460 = vpop.xlane.xlu0 %3459
        %v3461 = vsel %vm1593, %v3457, 0.0
        %3462 = vadd.xlane.f32.xlu0 %v3461
        %v3463 = vpop.xlane.xlu0 %3462
        %v3464 = vrcp.pop %v3460
        %v3465 = vmul.f32 %v3460, %v3464
        %v3466 = vsub.f32 1.0, %v3465
        %v3467 = vmul.f32 %v3464, %v3466
        %v3468 = vadd.f32 %v3464, %v3467
        %vm3469 = vweird.f32 %v3460
        %vm3470 = vweird.f32 %v3464
        %vm3471 = vmor %vm3469, %vm3470
        %v3472 = vsel %vm3471, %v3464, %v3468
        %v3473 = vand.u32 2147483647, %v3460
        %vm3474 = vcmp.eq.f32.partialorder %v3473, 8.507059e+37
        %v3475 = vand.u32 %v3460, 2147483648
        %v3476 = vor.u32 1.1754944e-38, %v3475
        %v3477 = vsel %vm3474, %v3476, %v3472
        %v3478 = vmul.f32 %v3455, %v3477
        %v3479 = vrcp.pop %v3463
        %v3480 = vmul.f32 %v3463, %v3479
        %v3481 = vsub.f32 1.0, %v3480
        %v3482 = vmul.f32 %v3479, %v3481
        %v3483 = vadd.f32 %v3479, %v3482
        %vm3484 = vweird.f32 %v3463
        %vm3485 = vweird.f32 %v3479
        %vm3486 = vmor %vm3484, %vm3485
        %v3487 = vsel %vm3486, %v3479, %v3483
        %v3488 = vand.u32 2147483647, %v3463
        %vm3489 = vcmp.eq.f32.partialorder %v3488, 8.507059e+37
        %v3490 = vand.u32 %v3463, 2147483648
        %v3491 = vor.u32 1.1754944e-38, %v3490
        %v3492 = vsel %vm3489, %v3491, %v3487
        %v3493 = vmul.f32 %v3457, %v3492
        %v3495 = vsel %vm1593, %v3478, 0
        %v3498 = vsel %vm1593, %v3493, 0
        %3500 = vmatpush.msra.mxu0 0.0
        %3501 = vmatpush.msra.mxu0 0.0
        %3502 = vmatpush.msra.mxu0 0.0
        %3503 = vmatpush.msra.mxu0 0.0
        %3504 = vmatpush.msra.mxu0 0.0
        %3505 = vmatpush.msra.mxu0 0.0
        %3506 = vmatpush.msra.mxu0 0.0
        %3507 = vmatpush.msra.mxu0 0.0
        %3508 = vmatpush.msra.mxu0 0.0
        %3509 = vmatpush.msra.mxu0 0.0
        %3510 = vmatpush.msra.mxu0 0.0
        %3511 = vmatpush.msra.mxu0 0.0
        %3512 = vmatpush.msra.mxu0 0.0
        %3513 = vmatpush.msra.mxu0 0.0
        %3514 = vmatpush.msra.mxu0 %v3155
        %3515 = vmatpush.msra.mxu0 %v3152
        %3516 = vmatmul.f32.gmra.mxu0 %v3495
        %v3517 = vpop.f32.mrf.mxu0
        %v3518 = vadd.f32 0.0, %v3517
        %3519 = vmatmul.f32.gmra.mxu0 %v3498
        %v3520 = vpop.f32.mrf.mxu0
        %v3521 = vadd.f32 0.0, %v3520
        %3522 = vdwg.mxu0
        %v3523 = vadd.f32 %v3398, %v3518
        %v3524 = vadd.f32 %v3401, %v3521
        %3525 = vrot.lane.b32.xlu0 %v3089, 80
        %v3526 = vpop.permute.xlu0 %3525
        %3527 = vrot.lane.b32.xlu0 %v3092, 80
        %v3528 = vpop.permute.xlu0 %3527
        %3529 = vrot.lane.b32.xlu0 %v3089, 16
        %v3530 = vpop.permute.xlu0 %3529
        %3531 = vrot.lane.b32.xlu0 %v3092, 16
        %v3532 = vpop.permute.xlu0 %3531
        %v3533 = vsel %vm1593, %v3526, 0
        %v3535 = vsel %vm1593, %v3528, 0
        %v3537 = vsel %vm1593, %v3530, 0
        %v3539 = vsel %vm1593, %v3532, 0
        %3541 = vmatpush.xpose.msra.mxu0 0.0
        %3542 = vmatpush.xpose.msra.mxu0 0.0
        %3543 = vmatpush.xpose.msra.mxu0 0.0
        %3544 = vmatpush.xpose.msra.mxu0 0.0
        %3545 = vmatpush.xpose.msra.mxu0 0.0
        %3546 = vmatpush.xpose.msra.mxu0 0.0
        %3547 = vmatpush.xpose.msra.mxu0 0.0
        %3548 = vmatpush.xpose.msra.mxu0 0.0
        %3549 = vmatpush.xpose.msra.mxu0 0.0
        %3550 = vmatpush.xpose.msra.mxu0 0.0
        %3551 = vmatpush.xpose.msra.mxu0 0.0
        %3552 = vmatpush.xpose.msra.mxu0 0.0
        %3553 = vmatpush.xpose.msra.mxu0 0.0
        %3554 = vmatpush.xpose.msra.mxu0 0.0
        %3555 = vmatpush.xpose.msra.mxu0 %v3539
        %3556 = vmatpush.xpose.msra.mxu0 %v3537
        %3557 = vmatmul.f32.gmra.mxu0 %v3533
        %v3558 = vpop.f32.mrf.mxu0
        %v3559 = vadd.f32 0.0, %v3558
        %3560 = vmatmul.f32.gmra.mxu0 %v3535
        %v3561 = vpop.f32.mrf.mxu0
        %v3562 = vadd.f32 0.0, %v3561
        %3563 = vdwg.mxu0
        %v3564 = vmul.f32 %v3559, 0.25
        %v3565 = vmul.f32 %v3562, 0.25
        %v3566 = vadd.f32 %v3564, %v1143
        %v3567 = vadd.f32 %v3565, %v1143
        %v3568 = vsel %vm1593, %v3566, -inf
        %3569 = vmax.xlane.f32.xlu0 %v3568
        %v3570 = vpop.xlane.xlu0 %3569
        %v3571 = vsel %vm1593, %v3567, -inf
        %3572 = vmax.xlane.f32.xlu0 %v3571
        %v3573 = vpop.xlane.xlu0 %3572
        %v3574 = vsub.f32 %v3566, %v3570
        %v3575 = vsub.f32 %v3567, %v3573
        %v3576 = vmul.f32 %v3574, 1.442695
        %v3577 = vpow.pop %v3576
        %v3578 = vmul.f32 %v3575, 1.442695
        %v3579 = vpow.pop %v3578
        %v3580 = vsel %vm1593, %v3577, 0.0
        %3581 = vadd.xlane.f32.xlu0 %v3580
        %v3582 = vpop.xlane.xlu0 %3581
        %v3583 = vsel %vm1593, %v3579, 0.0
        %3584 = vadd.xlane.f32.xlu0 %v3583
        %v3585 = vpop.xlane.xlu0 %3584
        %v3586 = vrcp.pop %v3582
        %v3587 = vmul.f32 %v3582, %v3586
        %v3588 = vsub.f32 1.0, %v3587
        %v3589 = vmul.f32 %v3586, %v3588
        %v3590 = vadd.f32 %v3586, %v3589
        %vm3591 = vweird.f32 %v3582
        %vm3592 = vweird.f32 %v3586
        %vm3593 = vmor %vm3591, %vm3592
        %v3594 = vsel %vm3593, %v3586, %v3590
        %v3595 = vand.u32 2147483647, %v3582
        %vm3596 = vcmp.eq.f32.partialorder %v3595, 8.507059e+37
        %v3597 = vand.u32 %v3582, 2147483648
        %v3598 = vor.u32 1.1754944e-38, %v3597
        %v3599 = vsel %vm3596, %v3598, %v3594
        %v3600 = vmul.f32 %v3577, %v3599
        %v3601 = vrcp.pop %v3585
        %v3602 = vmul.f32 %v3585, %v3601
        %v3603 = vsub.f32 1.0, %v3602
        %v3604 = vmul.f32 %v3601, %v3603
        %v3605 = vadd.f32 %v3601, %v3604
        %vm3606 = vweird.f32 %v3585
        %vm3607 = vweird.f32 %v3601
        %vm3608 = vmor %vm3606, %vm3607
        %v3609 = vsel %vm3608, %v3601, %v3605
        %v3610 = vand.u32 2147483647, %v3585
        %vm3611 = vcmp.eq.f32.partialorder %v3610, 8.507059e+37
        %v3612 = vand.u32 %v3585, 2147483648
        %v3613 = vor.u32 1.1754944e-38, %v3612
        %v3614 = vsel %vm3611, %v3613, %v3609
        %v3615 = vmul.f32 %v3579, %v3614
        %3618 = vrot.lane.b32.xlu0 %v3152, 64
        %v3619 = vpop.permute.xlu0 %3618
        %3620 = vrot.lane.b32.xlu0 %v3155, 64
        %v3621 = vpop.permute.xlu0 %3620
        %v3625 = vsel %vm1593, %v3600, 0
        %v3628 = vsel %vm1593, %v3615, 0
        %3630 = vmatpush.msra.mxu0 0.0
        %3631 = vmatpush.msra.mxu0 0.0
        %3632 = vmatpush.msra.mxu0 0.0
        %3633 = vmatpush.msra.mxu0 0.0
        %3634 = vmatpush.msra.mxu0 0.0
        %3635 = vmatpush.msra.mxu0 0.0
        %3636 = vmatpush.msra.mxu0 0.0
        %3637 = vmatpush.msra.mxu0 0.0
        %3638 = vmatpush.msra.mxu0 0.0
        %3639 = vmatpush.msra.mxu0 0.0
        %3640 = vmatpush.msra.mxu0 0.0
        %3641 = vmatpush.msra.mxu0 0.0
        %3642 = vmatpush.msra.mxu0 0.0
        %3643 = vmatpush.msra.mxu0 0.0
        %3644 = vmatpush.msra.mxu0 %v3621
        %3645 = vmatpush.msra.mxu0 %v3619
        %3646 = vmatmul.f32.gmra.mxu0 %v3625
        %v3647 = vpop.f32.mrf.mxu0
        %v3648 = vadd.f32 0.0, %v3647
        %3649 = vmatmul.f32.gmra.mxu0 %v3628
        %v3650 = vpop.f32.mrf.mxu0
        %v3651 = vadd.f32 0.0, %v3650
        %3652 = vdwg.mxu0
        %v3653 = vadd.f32 %v3523, %v3648
        %v3654 = vadd.f32 %v3524, %v3651
        %v3655 = vadd.f32 %v2991, %v3653
        %v3656 = vadd.f32 %v2992, %v3654
        %s3657 = scalar_lea.vmem %s31, 1
        %v3658 = vld [vmem:[%s3657] sm:$0x1]
        %v3660 = vperm.slane %v3658, 0
        %v3662 = vadd.f32 %v3655, %v3660
        %v3663 = vadd.f32 %v3656, %v3660
        %s3664 = scalar_lea.vmem %s33, 1
        %v3665 = vld [vmem:[%s3664] sm:$0x1]
        %s3666 = scalar_lea.vmem %s35, 1
        %v3667 = vld [vmem:[%s3666] sm:$0x1]
        %v3668 = vsel %vm1238, %v3662, 0.0
        %3669 = vadd.xlane.f32.xlu0 %v3668
        %v3670 = vpop.xlane.xlu0 %3669
        %v3671 = vsel %vm1238, %v3663, 0.0
        %3672 = vadd.xlane.f32.xlu0 %v3671
        %v3673 = vpop.xlane.xlu0 %3672
        %v3674 = vmul.f32 %v3670, %v1251
        %v3675 = vmul.f32 %v3673, %v1251
        %v3676 = vsub.f32 %v3662, %v3674
        %v3677 = vsub.f32 %v3663, %v3675
        %v3678 = vmul.f32 %v3676, %v3676
        %v3679 = vmul.f32 %v3677, %v3677
        %v3680 = vsel %vm1238, %v3678, 0.0
        %3681 = vadd.xlane.f32.xlu0 %v3680
        %v3682 = vpop.xlane.xlu0 %3681
        %v3683 = vsel %vm1238, %v3679, 0.0
        %3684 = vadd.xlane.f32.xlu0 %v3683
        %v3685 = vpop.xlane.xlu0 %3684
        %v3686 = vmul.f32 %v3682, %v1251
        %v3687 = vmul.f32 %v3685, %v1251
        %v3688 = vadd.f32 %v3686, 1e-05
        %v3689 = vadd.f32 %v3687, 1e-05
        %v3690 = vrsqrt.pop %v3688
        %v3691 = vmul.f32 %v3690, %v3688
        %v3692 = vmul.f32 %v3691, %v3690
        %v3693 = vmul.f32 0.5, %v3692
        %v3694 = vsub.f32 1.5, %v3693
        %v3695 = vmul.f32 %v3690, %v3694
        %vm3696 = vweird.f32 %v3688
        %vm3697 = vweird.f32 %v3690
        %vm3698 = vmor %vm3696, %vm3697
        %v3699 = vsel %vm3698, %v3690, %v3695
        %v3700 = vrsqrt.pop %v3689
        %v3701 = vmul.f32 %v3700, %v3689
        %v3702 = vmul.f32 %v3701, %v3700
        %v3703 = vmul.f32 0.5, %v3702
        %v3704 = vsub.f32 1.5, %v3703
        %v3705 = vmul.f32 %v3700, %v3704
        %vm3706 = vweird.f32 %v3689
        %vm3707 = vweird.f32 %v3700
        %vm3708 = vmor %vm3706, %vm3707
        %v3709 = vsel %vm3708, %v3700, %v3705
        %v3710 = vmul.f32 %v3676, %v3699
        %v3711 = vmul.f32 %v3677, %v3709
        %v3713 = vperm.slane %v3665, 0
        %v3715 = vmul.f32 %v3710, %v3713
        %v3716 = vmul.f32 %v3711, %v3713
        %v3718 = vperm.slane %v3667, 0
        %v3720 = vadd.f32 %v3715, %v3718
        %v3721 = vadd.f32 %v3716, %v3718
        %s3722 = scalar_lea.vmem %s37, 64
        %v3723 = vld [vmem:[%s3722] sm:$0xff]
        %v3724 = vld [vmem:[%s3722 + $0x8] sm:$0xff]
        %v3725 = vld [vmem:[%s3722 + $0x10] sm:$0xff]
        %v3726 = vld [vmem:[%s3722 + $0x18] sm:$0xff]
        %v3727 = vld [vmem:[%s3722 + $0x20] sm:$0xff]
        %v3728 = vld [vmem:[%s3722 + $0x28] sm:$0xff]
        %v3729 = vld [vmem:[%s3722 + $0x30] sm:$0xff]
        %v3730 = vld [vmem:[%s3722 + $0x38] sm:$0xff]
        %s3731 = scalar_lea.vmem %s39, 1
        %v3732 = vld [vmem:[%s3731] sm:$0x1]
        %v3734 = vperm.slane %v3732, 0
        %v3737 = vsel %vm1238, %v3720, 0
        %v3740 = vsel %vm1238, %v3721, 0
        %3742 = vmatpush.msra.mxu0 0.0
        %3743 = vmatpush.msra.mxu0 0.0
        %3744 = vmatpush.msra.mxu0 0.0
        %3745 = vmatpush.msra.mxu0 0.0
        %3746 = vmatpush.msra.mxu0 0.0
        %3747 = vmatpush.msra.mxu0 0.0
        %3748 = vmatpush.msra.mxu0 0.0
        %3749 = vmatpush.msra.mxu0 0.0
        %3750 = vmatpush.msra.mxu0 %v3730
        %3751 = vmatpush.msra.mxu0 %v3729
        %3752 = vmatpush.msra.mxu0 %v3728
        %3753 = vmatpush.msra.mxu0 %v3727
        %3754 = vmatpush.msra.mxu0 %v3726
        %3755 = vmatpush.msra.mxu0 %v3725
        %3756 = vmatpush.msra.mxu0 %v3724
        %3757 = vmatpush.msra.mxu0 %v3723
        %3758 = vmatmul.f32.gmra.mxu0 %v3737
        %v3759 = vpop.f32.mrf.mxu0
        %v3760 = vadd.f32 %v3734, %v3759
        %3761 = vmatmul.f32.gmra.mxu0 %v3740
        %v3762 = vpop.f32.mrf.mxu0
        %v3763 = vadd.f32 %v3734, %v3762
        %3764 = vdwg.mxu0
        %s3765 = scalar_lea.vmem %s41, 64
        %v3766 = vld [vmem:[%s3765] sm:$0xff]
        %v3767 = vld [vmem:[%s3765 + $0x8] sm:$0xff]
        %v3768 = vld [vmem:[%s3765 + $0x10] sm:$0xff]
        %v3769 = vld [vmem:[%s3765 + $0x18] sm:$0xff]
        %v3770 = vld [vmem:[%s3765 + $0x20] sm:$0xff]
        %v3771 = vld [vmem:[%s3765 + $0x28] sm:$0xff]
        %v3772 = vld [vmem:[%s3765 + $0x30] sm:$0xff]
        %v3773 = vld [vmem:[%s3765 + $0x38] sm:$0xff]
        %s3774 = scalar_lea.vmem %s43, 1
        %v3775 = vld [vmem:[%s3774] sm:$0x1]
        %v3777 = vperm.slane %v3775, 0
        %3779 = vmatpush.msra.mxu0 0.0
        %3780 = vmatpush.msra.mxu0 0.0
        %3781 = vmatpush.msra.mxu0 0.0
        %3782 = vmatpush.msra.mxu0 0.0
        %3783 = vmatpush.msra.mxu0 0.0
        %3784 = vmatpush.msra.mxu0 0.0
        %3785 = vmatpush.msra.mxu0 0.0
        %3786 = vmatpush.msra.mxu0 0.0
        %3787 = vmatpush.msra.mxu0 %v3773
        %3788 = vmatpush.msra.mxu0 %v3772
        %3789 = vmatpush.msra.mxu0 %v3771
        %3790 = vmatpush.msra.mxu0 %v3770
        %3791 = vmatpush.msra.mxu0 %v3769
        %3792 = vmatpush.msra.mxu0 %v3768
        %3793 = vmatpush.msra.mxu0 %v3767
        %3794 = vmatpush.msra.mxu0 %v3766
        %3795 = vmatmul.f32.gmra.mxu0 %v3737
        %v3796 = vpop.f32.mrf.mxu0
        %v3797 = vadd.f32 %v3777, %v3796
        %3798 = vmatmul.f32.gmra.mxu0 %v3740
        %v3799 = vpop.f32.mrf.mxu0
        %v3800 = vadd.f32 %v3777, %v3799
        %3801 = vdwg.mxu0
        %v3802 = vxor.u32 %v3797, 2147483648
        %v3803 = vxor.u32 %v3800, 2147483648
        %v3804 = vmul.f32 %v3802, 1.442695
        %v3805 = vpow.pop %v3804
        %v3806 = vmul.f32 %v3803, 1.442695
        %v3807 = vpow.pop %v3806
        %v3808 = vadd.f32 %v3805, 1.0
        %v3809 = vadd.f32 %v3807, 1.0
        %v3810 = vrcp.pop %v3808
        %v3811 = vmul.f32 %v3808, %v3810
        %v3812 = vsub.f32 1.0, %v3811
        %v3813 = vmul.f32 %v3810, %v3812
        %v3814 = vadd.f32 %v3810, %v3813
        %vm3815 = vweird.f32 %v3808
        %vm3816 = vweird.f32 %v3810
        %vm3817 = vmor %vm3815, %vm3816
        %v3818 = vsel %vm3817, %v3810, %v3814
        %v3819 = vand.u32 2147483647, %v3808
        %vm3820 = vcmp.eq.f32.partialorder %v3819, 8.507059e+37
        %v3821 = vand.u32 %v3808, 2147483648
        %v3822 = vor.u32 1.1754944e-38, %v3821
        %v3823 = vsel %vm3820, %v3822, %v3818
        %v3824 = vmul.f32 1.0, %v3823
        %v3825 = vrcp.pop %v3809
        %v3826 = vmul.f32 %v3809, %v3825
        %v3827 = vsub.f32 1.0, %v3826
        %v3828 = vmul.f32 %v3825, %v3827
        %v3829 = vadd.f32 %v3825, %v3828
        %vm3830 = vweird.f32 %v3809
        %vm3831 = vweird.f32 %v3825
        %vm3832 = vmor %vm3830, %vm3831
        %v3833 = vsel %vm3832, %v3825, %v3829
        %v3834 = vand.u32 2147483647, %v3809
        %vm3835 = vcmp.eq.f32.partialorder %v3834, 8.507059e+37
        %v3836 = vand.u32 %v3809, 2147483648
        %v3837 = vor.u32 1.1754944e-38, %v3836
        %v3838 = vsel %vm3835, %v3837, %v3833
        %v3839 = vmul.f32 1.0, %v3838
        %v3840 = vmul.f32 %v3760, %v3824
        %v3841 = vmul.f32 %v3763, %v3839
        %v3842 = vmul.f32 %v3840, %v1148
        %v3843 = vmul.f32 %v3841, %v1149
        %s3844 = scalar_lea.vmem %s45, 8
        %v3845 = vld [vmem:[%s3844] sm:$0x7f]
        %v3846 = vrot.slane %v3842, 5
        %v3847 = vrot.slane %v3843, 5
        %v3848 = vsel %vm2271, %v3846, %v3847
        %v3849 = vsel %vm2271, %v3847, %v3846
        %v3850 = vmul.f32 %v3849, %v2284
        %v3851 = vmul.f32 %v3848, %v2285
        %v3852 = vperm.slane %v3845, 0
        %v3853 = vmul.f32 %v3850, %v3852
        %v3854 = vmul.f32 %v3851, %v3852
        %v3855 = vadd.f32 %v3853, 0.0
        %v3856 = vadd.f32 %v3854, 0.0
        %v3857 = vrot.slane %v3842, 6
        %v3858 = vrot.slane %v3843, 6
        %v3859 = vsel %vm2295, %v3857, %v3858
        %v3860 = vsel %vm2295, %v3858, %v3857
        %v3861 = vmul.f32 %v3860, %v2308
        %v3862 = vmul.f32 %v3859, %v2309
        %v3863 = vperm.slane %v3845, 1
        %v3864 = vmul.f32 %v3861, %v3863
        %v3865 = vmul.f32 %v3862, %v3863
        %v3866 = vadd.f32 %v3855, %v3864
        %v3867 = vadd.f32 %v3856, %v3865
        %v3868 = vrot.slane %v3842, 7
        %v3869 = vrot.slane %v3843, 7
        %v3870 = vsel %vm2319, %v3868, %v3869
        %v3871 = vsel %vm2319, %v3869, %v3868
        %v3872 = vmul.f32 %v3871, %v2332
        %v3873 = vmul.f32 %v3870, %v2333
        %v3874 = vperm.slane %v3845, 2
        %v3875 = vmul.f32 %v3872, %v3874
        %v3876 = vmul.f32 %v3873, %v3874
        %v3877 = vadd.f32 %v3866, %v3875
        %v3878 = vadd.f32 %v3867, %v3876
        %v3879 = vperm.slane %v3845, 3
        %v3880 = vmul.f32 %v3842, %v3879
        %v3881 = vmul.f32 %v3843, %v3879
        %v3882 = vadd.f32 %v3877, %v3880
        %v3883 = vadd.f32 %v3878, %v3881
        %v3884 = vrot.slane %v3842, 1
        %v3885 = vrot.slane %v3843, 1
        %v3886 = vsel %vm2348, %v3884, %v3885
        %v3887 = vsel %vm2348, %v3885, %v3884
        %v3888 = vmul.f32 %v3886, %v2361
        %v3889 = vmul.f32 %v3887, %v2362
        %v3890 = vperm.slane %v3845, 4
        %v3891 = vmul.f32 %v3888, %v3890
        %v3892 = vmul.f32 %v3889, %v3890
        %v3893 = vadd.f32 %v3882, %v3891
        %v3894 = vadd.f32 %v3883, %v3892
        %v3895 = vrot.slane %v3842, 2
        %v3896 = vrot.slane %v3843, 2
        %v3897 = vsel %vm2372, %v3895, %v3896
        %v3898 = vsel %vm2372, %v3896, %v3895
        %v3899 = vmul.f32 %v3897, %v2385
        %v3900 = vmul.f32 %v3898, %v2386
        %v3901 = vperm.slane %v3845, 5
        %v3902 = vmul.f32 %v3899, %v3901
        %v3903 = vmul.f32 %v3900, %v3901
        %v3904 = vadd.f32 %v3893, %v3902
        %v3905 = vadd.f32 %v3894, %v3903
        %v3906 = vrot.slane %v3842, 3
        %v3907 = vrot.slane %v3843, 3
        %v3908 = vsel %vm2396, %v3906, %v3907
        %v3909 = vsel %vm2396, %v3907, %v3906
        %v3910 = vmul.f32 %v3908, %v2409
        %v3911 = vmul.f32 %v3909, %v2410
        %v3912 = vperm.slane %v3845, 6
        %v3913 = vmul.f32 %v3910, %v3912
        %v3914 = vmul.f32 %v3911, %v3912
        %v3915 = vadd.f32 %v3904, %v3913
        %v3916 = vadd.f32 %v3905, %v3914
        %s3917 = scalar_lea.vmem %s47, 1
        %v3918 = vld [vmem:[%s3917] sm:$0x1]
        %v3920 = vperm.slane %v3918, 0
        %v3922 = vadd.f32 %v3915, %v3920
        %v3923 = vadd.f32 %v3916, %v3920
        %s3924 = scalar_lea.vmem %s49, 1
        %v3925 = vld [vmem:[%s3924] sm:$0x1]
        %s3926 = scalar_lea.vmem %s51, 1
        %v3927 = vld [vmem:[%s3926] sm:$0x1]
        %v3928 = vsel %vm1238, %v3922, 0.0
        %3929 = vadd.xlane.f32.xlu0 %v3928
        %v3930 = vpop.xlane.xlu0 %3929
        %v3931 = vsel %vm1238, %v3923, 0.0
        %3932 = vadd.xlane.f32.xlu0 %v3931
        %v3933 = vpop.xlane.xlu0 %3932
        %v3934 = vmul.f32 %v3930, %v1251
        %v3935 = vmul.f32 %v3933, %v1251
        %v3936 = vsub.f32 %v3922, %v3934
        %v3937 = vsub.f32 %v3923, %v3935
        %v3938 = vmul.f32 %v3936, %v3936
        %v3939 = vmul.f32 %v3937, %v3937
        %v3940 = vsel %vm1238, %v3938, 0.0
        %3941 = vadd.xlane.f32.xlu0 %v3940
        %v3942 = vpop.xlane.xlu0 %3941
        %v3943 = vsel %vm1238, %v3939, 0.0
        %3944 = vadd.xlane.f32.xlu0 %v3943
        %v3945 = vpop.xlane.xlu0 %3944
        %v3946 = vmul.f32 %v3942, %v1251
        %v3947 = vmul.f32 %v3945, %v1251
        %v3948 = vadd.f32 %v3946, 1e-05
        %v3949 = vadd.f32 %v3947, 1e-05
        %v3950 = vrsqrt.pop %v3948
        %v3951 = vmul.f32 %v3950, %v3948
        %v3952 = vmul.f32 %v3951, %v3950
        %v3953 = vmul.f32 0.5, %v3952
        %v3954 = vsub.f32 1.5, %v3953
        %v3955 = vmul.f32 %v3950, %v3954
        %vm3956 = vweird.f32 %v3948
        %vm3957 = vweird.f32 %v3950
        %vm3958 = vmor %vm3956, %vm3957
        %v3959 = vsel %vm3958, %v3950, %v3955
        %v3960 = vrsqrt.pop %v3949
        %v3961 = vmul.f32 %v3960, %v3949
        %v3962 = vmul.f32 %v3961, %v3960
        %v3963 = vmul.f32 0.5, %v3962
        %v3964 = vsub.f32 1.5, %v3963
        %v3965 = vmul.f32 %v3960, %v3964
        %vm3966 = vweird.f32 %v3949
        %vm3967 = vweird.f32 %v3960
        %vm3968 = vmor %vm3966, %vm3967
        %v3969 = vsel %vm3968, %v3960, %v3965
        %v3970 = vmul.f32 %v3936, %v3959
        %v3971 = vmul.f32 %v3937, %v3969
        %v3973 = vperm.slane %v3925, 0
        %v3975 = vmul.f32 %v3970, %v3973
        %v3976 = vmul.f32 %v3971, %v3973
        %v3978 = vperm.slane %v3927, 0
        %v3980 = vadd.f32 %v3975, %v3978
        %v3981 = vadd.f32 %v3976, %v3978
        %v3982 = vxor.u32 %v3980, 2147483648
        %v3983 = vxor.u32 %v3981, 2147483648
        %v3984 = vmul.f32 %v3982, 1.442695
        %v3985 = vpow.pop %v3984
        %v3986 = vmul.f32 %v3983, 1.442695
        %v3987 = vpow.pop %v3986
        %v3988 = vadd.f32 %v3985, 1.0
        %v3989 = vadd.f32 %v3987, 1.0
        %v3990 = vrcp.pop %v3988
        %v3991 = vmul.f32 %v3988, %v3990
        %v3992 = vsub.f32 1.0, %v3991
        %v3993 = vmul.f32 %v3990, %v3992
        %v3994 = vadd.f32 %v3990, %v3993
        %vm3995 = vweird.f32 %v3988
        %vm3996 = vweird.f32 %v3990
        %vm3997 = vmor %vm3995, %vm3996
        %v3998 = vsel %vm3997, %v3990, %v3994
        %v3999 = vand.u32 2147483647, %v3988
        %vm4000 = vcmp.eq.f32.partialorder %v3999, 8.507059e+37
        %v4001 = vand.u32 %v3988, 2147483648
        %v4002 = vor.u32 1.1754944e-38, %v4001
        %v4003 = vsel %vm4000, %v4002, %v3998
        %v4004 = vmul.f32 1.0, %v4003
        %v4005 = vrcp.pop %v3989
        %v4006 = vmul.f32 %v3989, %v4005
        %v4007 = vsub.f32 1.0, %v4006
        %v4008 = vmul.f32 %v4005, %v4007
        %v4009 = vadd.f32 %v4005, %v4008
        %vm4010 = vweird.f32 %v3989
        %vm4011 = vweird.f32 %v4005
        %vm4012 = vmor %vm4010, %vm4011
        %v4013 = vsel %vm4012, %v4005, %v4009
        %v4014 = vand.u32 2147483647, %v3989
        %vm4015 = vcmp.eq.f32.partialorder %v4014, 8.507059e+37
        %v4016 = vand.u32 %v3989, 2147483648
        %v4017 = vor.u32 1.1754944e-38, %v4016
        %v4018 = vsel %vm4015, %v4017, %v4013
        %v4019 = vmul.f32 1.0, %v4018
        %v4020 = vmul.f32 %v3980, %v4004
        %v4021 = vmul.f32 %v3981, %v4019
        %s4022 = scalar_lea.vmem %s53, 64
        %v4023 = vld [vmem:[%s4022] sm:$0xff]
        %v4024 = vld [vmem:[%s4022 + $0x8] sm:$0xff]
        %v4025 = vld [vmem:[%s4022 + $0x10] sm:$0xff]
        %v4026 = vld [vmem:[%s4022 + $0x18] sm:$0xff]
        %v4027 = vld [vmem:[%s4022 + $0x20] sm:$0xff]
        %v4028 = vld [vmem:[%s4022 + $0x28] sm:$0xff]
        %v4029 = vld [vmem:[%s4022 + $0x30] sm:$0xff]
        %v4030 = vld [vmem:[%s4022 + $0x38] sm:$0xff]
        %s4031 = scalar_lea.vmem %s55, 1
        %v4032 = vld [vmem:[%s4031] sm:$0x1]
        %v4034 = vperm.slane %v4032, 0
        %v4037 = vsel %vm1238, %v4020, 0
        %v4040 = vsel %vm1238, %v4021, 0
        %4042 = vmatpush.msra.mxu0 0.0
        %4043 = vmatpush.msra.mxu0 0.0
        %4044 = vmatpush.msra.mxu0 0.0
        %4045 = vmatpush.msra.mxu0 0.0
        %4046 = vmatpush.msra.mxu0 0.0
        %4047 = vmatpush.msra.mxu0 0.0
        %4048 = vmatpush.msra.mxu0 0.0
        %4049 = vmatpush.msra.mxu0 0.0
        %4050 = vmatpush.msra.mxu0 %v4030
        %4051 = vmatpush.msra.mxu0 %v4029
        %4052 = vmatpush.msra.mxu0 %v4028
        %4053 = vmatpush.msra.mxu0 %v4027
        %4054 = vmatpush.msra.mxu0 %v4026
        %4055 = vmatpush.msra.mxu0 %v4025
        %4056 = vmatpush.msra.mxu0 %v4024
        %4057 = vmatpush.msra.mxu0 %v4023
        %4058 = vmatmul.f32.gmra.mxu0 %v4037
        %v4059 = vpop.f32.mrf.mxu0
        %v4060 = vadd.f32 %v4034, %v4059
        %4061 = vmatmul.f32.gmra.mxu0 %v4040
        %v4062 = vpop.f32.mrf.mxu0
        %v4063 = vadd.f32 %v4034, %v4062
        %4064 = vdwg.mxu0
        %v4065 = vadd.f32 %v3662, %v4060
        %v4066 = vadd.f32 %v3663, %v4063
        %s4067 = scalar_lea.vmem %s57, 1
        %v4068 = vld [vmem:[%s4067] sm:$0x1]
        %s4069 = scalar_lea.vmem %s59, 1
        %v4070 = vld [vmem:[%s4069] sm:$0x1]
        %v4071 = vsel %vm1238, %v4065, 0.0
        %4072 = vadd.xlane.f32.xlu0 %v4071
        %v4073 = vpop.xlane.xlu0 %4072
        %v4074 = vsel %vm1238, %v4066, 0.0
        %4075 = vadd.xlane.f32.xlu0 %v4074
        %v4076 = vpop.xlane.xlu0 %4075
        %v4077 = vmul.f32 %v4073, %v1251
        %v4078 = vmul.f32 %v4076, %v1251
        %v4079 = vsub.f32 %v4065, %v4077
        %v4080 = vsub.f32 %v4066, %v4078
        %v4081 = vmul.f32 %v4079, %v4079
        %v4082 = vmul.f32 %v4080, %v4080
        %v4083 = vsel %vm1238, %v4081, 0.0
        %4084 = vadd.xlane.f32.xlu0 %v4083
        %v4085 = vpop.xlane.xlu0 %4084
        %v4086 = vsel %vm1238, %v4082, 0.0
        %4087 = vadd.xlane.f32.xlu0 %v4086
        %v4088 = vpop.xlane.xlu0 %4087
        %v4089 = vmul.f32 %v4085, %v1251
        %v4090 = vmul.f32 %v4088, %v1251
        %v4091 = vadd.f32 %v4089, 1e-05
        %v4092 = vadd.f32 %v4090, 1e-05
        %v4093 = vrsqrt.pop %v4091
        %v4094 = vmul.f32 %v4093, %v4091
        %v4095 = vmul.f32 %v4094, %v4093
        %v4096 = vmul.f32 0.5, %v4095
        %v4097 = vsub.f32 1.5, %v4096
        %v4098 = vmul.f32 %v4093, %v4097
        %vm4099 = vweird.f32 %v4091
        %vm4100 = vweird.f32 %v4093
        %vm4101 = vmor %vm4099, %vm4100
        %v4102 = vsel %vm4101, %v4093, %v4098
        %v4103 = vrsqrt.pop %v4092
        %v4104 = vmul.f32 %v4103, %v4092
        %v4105 = vmul.f32 %v4104, %v4103
        %v4106 = vmul.f32 0.5, %v4105
        %v4107 = vsub.f32 1.5, %v4106
        %v4108 = vmul.f32 %v4103, %v4107
        %vm4109 = vweird.f32 %v4092
        %vm4110 = vweird.f32 %v4103
        %vm4111 = vmor %vm4109, %vm4110
        %v4112 = vsel %vm4111, %v4103, %v4108
        %v4113 = vmul.f32 %v4079, %v4102
        %v4114 = vmul.f32 %v4080, %v4112
        %v4116 = vperm.slane %v4068, 0
        %v4118 = vmul.f32 %v4113, %v4116
        %v4119 = vmul.f32 %v4114, %v4116
        %v4121 = vperm.slane %v4070, 0
        %v4123 = vadd.f32 %v4118, %v4121
        %v4124 = vadd.f32 %v4119, %v4121
        %s4125 = scalar_lea.vmem %s61, 64
        %v4126 = vld [vmem:[%s4125] sm:$0xff]
        %v4127 = vld [vmem:[%s4125 + $0x8] sm:$0xff]
        %v4128 = vld [vmem:[%s4125 + $0x10] sm:$0xff]
        %v4129 = vld [vmem:[%s4125 + $0x18] sm:$0xff]
        %v4130 = vld [vmem:[%s4125 + $0x20] sm:$0xff]
        %v4131 = vld [vmem:[%s4125 + $0x28] sm:$0xff]
        %v4132 = vld [vmem:[%s4125 + $0x30] sm:$0xff]
        %v4133 = vld [vmem:[%s4125 + $0x38] sm:$0xff]
        %s4134 = scalar_lea.vmem %s63, 1
        %v4135 = vld [vmem:[%s4134] sm:$0x1]
        %v4137 = vperm.slane %v4135, 0
        %v4140 = vsel %vm1238, %v4123, 0
        %v4143 = vsel %vm1238, %v4124, 0
        %4145 = vmatpush.msra.mxu0 0.0
        %4146 = vmatpush.msra.mxu0 0.0
        %4147 = vmatpush.msra.mxu0 0.0
        %4148 = vmatpush.msra.mxu0 0.0
        %4149 = vmatpush.msra.mxu0 0.0
        %4150 = vmatpush.msra.mxu0 0.0
        %4151 = vmatpush.msra.mxu0 0.0
        %4152 = vmatpush.msra.mxu0 0.0
        %4153 = vmatpush.msra.mxu0 %v4133
        %4154 = vmatpush.msra.mxu0 %v4132
        %4155 = vmatpush.msra.mxu0 %v4131
        %4156 = vmatpush.msra.mxu0 %v4130
        %4157 = vmatpush.msra.mxu0 %v4129
        %4158 = vmatpush.msra.mxu0 %v4128
        %4159 = vmatpush.msra.mxu0 %v4127
        %4160 = vmatpush.msra.mxu0 %v4126
        %4161 = vmatmul.f32.gmra.mxu0 %v4140
        %v4162 = vpop.f32.mrf.mxu0
        %v4163 = vadd.f32 %v4137, %v4162
        %4164 = vmatmul.f32.gmra.mxu0 %v4143
        %v4165 = vpop.f32.mrf.mxu0
        %v4166 = vadd.f32 %v4137, %v4165
        %4167 = vdwg.mxu0
        %v4168 = vxor.u32 %v4163, 2147483648
        %v4169 = vxor.u32 %v4166, 2147483648
        %v4170 = vmul.f32 %v4168, 1.442695
        %v4171 = vpow.pop %v4170
        %v4172 = vmul.f32 %v4169, 1.442695
        %v4173 = vpow.pop %v4172
        %v4174 = vadd.f32 %v4171, 1.0
        %v4175 = vadd.f32 %v4173, 1.0
        %v4176 = vrcp.pop %v4174
        %v4177 = vmul.f32 %v4174, %v4176
        %v4178 = vsub.f32 1.0, %v4177
        %v4179 = vmul.f32 %v4176, %v4178
        %v4180 = vadd.f32 %v4176, %v4179
        %vm4181 = vweird.f32 %v4174
        %vm4182 = vweird.f32 %v4176
        %vm4183 = vmor %vm4181, %vm4182
        %v4184 = vsel %vm4183, %v4176, %v4180
        %v4185 = vand.u32 2147483647, %v4174
        %vm4186 = vcmp.eq.f32.partialorder %v4185, 8.507059e+37
        %v4187 = vand.u32 %v4174, 2147483648
        %v4188 = vor.u32 1.1754944e-38, %v4187
        %v4189 = vsel %vm4186, %v4188, %v4184
        %v4190 = vmul.f32 1.0, %v4189
        %v4191 = vrcp.pop %v4175
        %v4192 = vmul.f32 %v4175, %v4191
        %v4193 = vsub.f32 1.0, %v4192
        %v4194 = vmul.f32 %v4191, %v4193
        %v4195 = vadd.f32 %v4191, %v4194
        %vm4196 = vweird.f32 %v4175
        %vm4197 = vweird.f32 %v4191
        %vm4198 = vmor %vm4196, %vm4197
        %v4199 = vsel %vm4198, %v4191, %v4195
        %v4200 = vand.u32 2147483647, %v4175
        %vm4201 = vcmp.eq.f32.partialorder %v4200, 8.507059e+37
        %v4202 = vand.u32 %v4175, 2147483648
        %v4203 = vor.u32 1.1754944e-38, %v4202
        %v4204 = vsel %vm4201, %v4203, %v4199
        %v4205 = vmul.f32 1.0, %v4204
        %v4206 = vmul.f32 %v4163, %v4190
        %v4207 = vmul.f32 %v4166, %v4205
        %s4208 = scalar_lea.vmem %s65, 128
        %v4209 = vld [vmem:[%s4208] sm:$0xff]
        %v4210 = vld [vmem:[%s4208 + $0x8] sm:$0xff]
        %v4211 = vld [vmem:[%s4208 + $0x10] sm:$0xff]
        %v4212 = vld [vmem:[%s4208 + $0x18] sm:$0xff]
        %v4213 = vld [vmem:[%s4208 + $0x20] sm:$0xff]
        %v4214 = vld [vmem:[%s4208 + $0x28] sm:$0xff]
        %v4215 = vld [vmem:[%s4208 + $0x30] sm:$0xff]
        %v4216 = vld [vmem:[%s4208 + $0x38] sm:$0xff]
        %v4217 = vld [vmem:[%s4208 + $0x40] sm:$0xff]
        %v4218 = vld [vmem:[%s4208 + $0x48] sm:$0xff]
        %v4219 = vld [vmem:[%s4208 + $0x50] sm:$0xff]
        %v4220 = vld [vmem:[%s4208 + $0x58] sm:$0xff]
        %v4221 = vld [vmem:[%s4208 + $0x60] sm:$0xff]
        %v4222 = vld [vmem:[%s4208 + $0x68] sm:$0xff]
        %v4223 = vld [vmem:[%s4208 + $0x70] sm:$0xff]
        %v4224 = vld [vmem:[%s4208 + $0x78] sm:$0xff]
        %s4225 = scalar_lea.vmem %s67, 1
        %v4226 = vld [vmem:[%s4225] sm:$0x1]
        %v4228 = vperm.slane %v4226, 0
        %4230 = vmatpush.msra.mxu0 %v4224
        %4231 = vmatpush.msra.mxu0 %v4223
        %4232 = vmatpush.msra.mxu0 %v4222
        %4233 = vmatpush.msra.mxu0 %v4221
        %4234 = vmatpush.msra.mxu0 %v4220
        %4235 = vmatpush.msra.mxu0 %v4219
        %4236 = vmatpush.msra.mxu0 %v4218
        %4237 = vmatpush.msra.mxu0 %v4217
        %4238 = vmatpush.msra.mxu0 %v4216
        %4239 = vmatpush.msra.mxu0 %v4215
        %4240 = vmatpush.msra.mxu0 %v4214
        %4241 = vmatpush.msra.mxu0 %v4213
        %4242 = vmatpush.msra.mxu0 %v4212
        %4243 = vmatpush.msra.mxu0 %v4211
        %4244 = vmatpush.msra.mxu0 %v4210
        %4245 = vmatpush.msra.mxu0 %v4209
        %4246 = vmatmul.f32.gmra.mxu0 %v4206
        %v4247 = vpop.f32.mrf.mxu0
        %v4248 = vadd.f32 %v4228, %v4247
        %4249 = vmatmul.f32.gmra.mxu0 %v4207
        %v4250 = vpop.f32.mrf.mxu0
        %v4251 = vadd.f32 %v4228, %v4250
        %4252 = vdwg.mxu0
        %v4253 = vmul.f32 %v4248, 0.5
        %v4254 = vmul.f32 %v4251, 0.5
        %v4255 = vadd.f32 %v4065, %v4253
        %v4256 = vadd.f32 %v4066, %v4254
        %s4257 = scalar_lea.vmem %s69, 1
        %v4258 = vld [vmem:[%s4257] sm:$0x1]
        %s4259 = scalar_lea.vmem %s71, 1
        %v4260 = vld [vmem:[%s4259] sm:$0x1]
        %v4261 = vsel %vm1238, %v4255, 0.0
        %4262 = vadd.xlane.f32.xlu0 %v4261
        %v4263 = vpop.xlane.xlu0 %4262
        %v4264 = vsel %vm1238, %v4256, 0.0
        %4265 = vadd.xlane.f32.xlu0 %v4264
        %v4266 = vpop.xlane.xlu0 %4265
        %v4267 = vmul.f32 %v4263, %v1251
        %v4268 = vmul.f32 %v4266, %v1251
        %v4269 = vsub.f32 %v4255, %v4267
        %v4270 = vsub.f32 %v4256, %v4268
        %v4271 = vmul.f32 %v4269, %v4269
        %v4272 = vmul.f32 %v4270, %v4270
        %v4273 = vsel %vm1238, %v4271, 0.0
        %4274 = vadd.xlane.f32.xlu0 %v4273
        %v4275 = vpop.xlane.xlu0 %4274
        %v4276 = vsel %vm1238, %v4272, 0.0
        %4277 = vadd.xlane.f32.xlu0 %v4276
        %v4278 = vpop.xlane.xlu0 %4277
        %v4279 = vmul.f32 %v4275, %v1251
        %v4280 = vmul.f32 %v4278, %v1251
        %v4281 = vadd.f32 %v4279, 1e-05
        %v4282 = vadd.f32 %v4280, 1e-05
        %v4283 = vrsqrt.pop %v4281
        %v4284 = vmul.f32 %v4283, %v4281
        %v4285 = vmul.f32 %v4284, %v4283
        %v4286 = vmul.f32 0.5, %v4285
        %v4287 = vsub.f32 1.5, %v4286
        %v4288 = vmul.f32 %v4283, %v4287
        %vm4289 = vweird.f32 %v4281
        %vm4290 = vweird.f32 %v4283
        %vm4291 = vmor %vm4289, %vm4290
        %v4292 = vsel %vm4291, %v4283, %v4288
        %v4293 = vrsqrt.pop %v4282
        %v4294 = vmul.f32 %v4293, %v4282
        %v4295 = vmul.f32 %v4294, %v4293
        %v4296 = vmul.f32 0.5, %v4295
        %v4297 = vsub.f32 1.5, %v4296
        %v4298 = vmul.f32 %v4293, %v4297
        %vm4299 = vweird.f32 %v4282
        %vm4300 = vweird.f32 %v4293
        %vm4301 = vmor %vm4299, %vm4300
        %v4302 = vsel %vm4301, %v4293, %v4298
        %v4303 = vmul.f32 %v4269, %v4292
        %v4304 = vmul.f32 %v4270, %v4302
        %v4306 = vperm.slane %v4258, 0
        %v4308 = vmul.f32 %v4303, %v4306
        %v4309 = vmul.f32 %v4304, %v4306
        %v4311 = vperm.slane %v4260, 0
        %v4313 = vadd.f32 %v4308, %v4311
        %v4314 = vadd.f32 %v4309, %v4311
        %v4315 = vld [vmem:[%s73] sm:$0xff]
        %v4316 = vld [vmem:[%s73 + $0x8] sm:$0xff]
        %v4317 = vld [vmem:[%s73 + $0x10] sm:$0xff]
        %v4318 = vld [vmem:[%s73 + $0x18] sm:$0xff]
        %v4319 = vld [vmem:[%s73 + $0x20] sm:$0xff]
        %v4320 = vld [vmem:[%s73 + $0x28] sm:$0xff]
        %v4321 = vld [vmem:[%s73 + $0x30] sm:$0xff]
        %v4322 = vld [vmem:[%s73 + $0x38] sm:$0xff]
        %v4323 = vld [vmem:[%s75] sm:$0x1]
        %v4325 = vperm.slane %v4323, 0
        %v4328 = vsel %vm1238, %v4313, 0
        %v4331 = vsel %vm1238, %v4314, 0
        %4333 = vmatpush.msra.mxu0 0.0
        %4334 = vmatpush.msra.mxu0 0.0
        %4335 = vmatpush.msra.mxu0 0.0
        %4336 = vmatpush.msra.mxu0 0.0
        %4337 = vmatpush.msra.mxu0 0.0
        %4338 = vmatpush.msra.mxu0 0.0
        %4339 = vmatpush.msra.mxu0 0.0
        %4340 = vmatpush.msra.mxu0 0.0
        %4341 = vmatpush.msra.mxu0 %v4322
        %4342 = vmatpush.msra.mxu0 %v4321
        %4343 = vmatpush.msra.mxu0 %v4320
        %4344 = vmatpush.msra.mxu0 %v4319
        %4345 = vmatpush.msra.mxu0 %v4318
        %4346 = vmatpush.msra.mxu0 %v4317
        %4347 = vmatpush.msra.mxu0 %v4316
        %4348 = vmatpush.msra.mxu0 %v4315
        %4349 = vmatmul.f32.gmra.mxu0 %v4328
        %v4350 = vpop.f32.mrf.mxu0
        %v4351 = vadd.f32 %v4325, %v4350
        %4352 = vmatmul.f32.gmra.mxu0 %v4331
        %v4353 = vpop.f32.mrf.mxu0
        %v4354 = vadd.f32 %v4325, %v4353
        %4355 = vdwg.mxu0
        %4356 = vmax.xlane.f32.xlu0 %v4351
        %v4357 = vpop.xlane.xlu0 %4356
        %4358 = vmax.xlane.f32.xlu0 %v4354
        %v4359 = vpop.xlane.xlu0 %4358
        %v4360 = vsub.f32 %v4351, %v4357
        %v4361 = vsub.f32 %v4354, %v4359
        %v4362 = vmul.f32 %v4360, 1.442695
        %v4363 = vpow.pop %v4362
        %v4364 = vmul.f32 %v4361, 1.442695
        %v4365 = vpow.pop %v4364
        %4366 = vadd.xlane.f32.xlu0 %v4363
        %v4367 = vpop.xlane.xlu0 %4366
        %4368 = vadd.xlane.f32.xlu0 %v4365
        %v4369 = vpop.xlane.xlu0 %4368
        %v4370 = vlog2.pop %v4367
        %v4371 = vmul.f32 %v4370, 0.6931472
        %v4372 = vlog2.pop %v4369
        %v4373 = vmul.f32 %v4372, 0.6931472
        %v4374 = vadd.f32 %v4371, %v4357
        %v4375 = vadd.f32 %v4373, %v4359
        %v4376 = vsub.f32 %v4351, %v4374
        %v4377 = vsub.f32 %v4354, %v4375
        %4378 = vst [vmem:[%s1129] sm:$0xff] %v4376
        %4379 = vst [vmem:[%s1129 + $0x8] sm:$0xff] %v4377
        %s4380 = sand.u32 %s889, 1
        %s4381 = scalar_lea.sflag [#allocation5], %s4380
        %s4382 = sand.u32 %s889, 1
        %s4383 = smul.addr %s4382, 16
        %s4384 = scalar_lea.vmem [#allocation4], %s4383
        // Predicated region
        $region169: #{model_forward.7} parent=167 // pred_check
          %p4385 = pneg %p899
        $region170: #{model_forward.7} parent=167 // pred_check_branch
          %4387 = sbr.rel (%p4385) target = $region172
        $region171: #{model_forward.7} parent=167 // pred_region
          %4389 = vsyncadd %s4381, 0
          %s4390 = smul.addr %s99, 2
          %s4391 = smul.addr %s4390, 8
          %s4392 = scalar_lea.hbm %s77, %s4391
          %s4393 = sshll.u32 %s4384, 4
          %s4394 = int_to_ptr.vmem [resolvable:$true] %s4393
          %s4395 = sshll.u32 %s4392, 4
          %s4396 = int_to_ptr.hbm [resolvable:$true] %s4395
          %4401 = dma.vmem_to_hbm [thread:$0]  %s4394, 256, %s4396, %s4381, 128, 128, 8
        $region172: #{model_forward.7} parent=167 // pred_fallthru
          _
      $region168: #{model_forward.7} parent=5 // pred_fallthru
        _
      %p4402 = scmp.le.s32.totalorder 2, %s94
      // Predicated region
      $region173: #{model_forward.7} parent=5 // pred_check
        %p4403 = pneg %p4402
      $region174: #{model_forward.7} parent=5 // pred_check_branch
        %4405 = sbr.rel (%p4403) target = $region176
      $region175: #{model_forward.7} parent=5 // pred_region
        %s4406 = ssub.s32 %s94, 2
        // Predicated region
        $region177: #{model_forward.7} parent=175 // pred_check
          %p4407 = pneg %p905
        $region178: #{model_forward.7} parent=175 // pred_check_branch
          %4409 = sbr.rel (%p4407) target = $region180
        $region179: #{model_forward.7} parent=175 // pred_region
          %s4410 = sand.u32 %s890, 1
          %s4411 = scalar_lea.sflag [#allocation5], %s4410
          %s4412 = sand.u32 %s890, 1
          %s4413 = smul.addr %s4412, 16
          %s4414 = scalar_lea.vmem [#allocation4], %s4413
          %4416 = dma.done %s4411, 256
        $region180: #{model_forward.7} parent=175 // pred_fallthru
          _
      $region176: #{model_forward.7} parent=5 // pred_fallthru
        _
    $region6: #{model_forward.7} parent=1 // loop_footer
      %s98 = sadd.s32 1, %s94
    $region7: #{model_forward.7} parent=1 // loop_footer_branch
      %93 = sbr.rel target = $region3
    $region8: #{model_forward.7} parent=1 // loop_exit
      _
    %4417 = vsyncpa [#allocation5], 1
    %s4418 = scalar_lea.sflag [#allocation5], 1
    %4419 = vsyncpa %s4418, 1

</llo_original>
